<compile_context>
chip_gen: v6e
topology: v6e:2x2x1
jax: 0.10.0
libtpu: 0.0.40
codegen_flags: <defaults>
</compile_context>

<pallas_src>
import jax
import jax.numpy as jnp
from jax import lax
from jax.experimental import pallas as pl
from jax.experimental.pallas import tpu as pltpu
import numpy as np

# ---------------- synthetic mini-BERT config ----------------
VOCAB = 100
MAX_LEN = 64
HIDDEN = 32
NUM_HEADS = 2
HEAD_DIM = HIDDEN // NUM_HEADS
FFN = 4 * HIDDEN
NUM_LAYERS = 2
MAX_DSP_LEN = 4          # max_dsp_path_length (toy)
EPS = 1e-12
OUT_DIM = 4 * HIDDEN     # hidden_size = bert_hidden * 4 in the DSP encoder


def _layernorm(x, g, b, eps=EPS):
    mu = jnp.mean(x, axis=-1, keepdims=True)
    var = jnp.mean((x - mu) ** 2, axis=-1, keepdims=True)
    return (x - mu) * lax.rsqrt(var + eps) * g + b


def _softmax_lastdim(s):
    s = s - jnp.max(s, axis=-1, keepdims=True)
    p = jnp.exp(s)
    return p * pl.reciprocal(jnp.sum(p, axis=-1, keepdims=True), approx=True)


# ---------------- the single fused kernel ----------------
def fused_forward_kernel(
        x_ref, mask_ref, p1_ref, p2_ref, hpath_ref, tpath_ref, hlen_ref, tlen_ref,
        embg_ref, embb_ref,
        wq_ref, bq_ref, wk_ref, bk_ref, wv_ref, bv_ref, wo_ref, bo_ref,
        ln1g_ref, ln1b_ref, w1_ref, b1_ref, w2_ref, b2_ref, ln2g_ref, ln2b_ref,
        wih_ref, whh_ref, bih_ref, bhh_ref, dqw_ref, dqb_ref,
        wlin_ref, blin_ref,
        out_ref):
    B, L, H = x_ref.shape
    P = hpath_ref.shape[1]

    # -- embedding LayerNorm (fused into the kernel) --
    x2 = x_ref[...].reshape(B * L, H)
    x2 = _layernorm(x2, embg_ref[...], embb_ref[...])

    # additive attention bias over keys (hoisted out of the layer loop)
    neg = ((1.0 - mask_ref[...]) * (-1e9))[:, None, :]        # (B, 1, L)
    scale = 1.0 / (HEAD_DIM ** 0.5)

    # -- transformer encoder layers (statically unrolled; x resident in VMEM/vregs) --
    for l in range(NUM_LAYERS):
        q2 = jnp.dot(x2, wq_ref[l], preferred_element_type=jnp.float32) + bq_ref[l]
        k2 = jnp.dot(x2, wk_ref[l], preferred_element_type=jnp.float32) + bk_ref[l]
        v2 = jnp.dot(x2, wv_ref[l], preferred_element_type=jnp.float32) + bv_ref[l]
        q3 = q2.reshape(B, L, H)
        k3 = k2.reshape(B, L, H)
        v3 = v2.reshape(B, L, H)
        ctx_parts = []
        for h in range(NUM_HEADS):                            # static head loop
            sl = slice(h * HEAD_DIM, (h + 1) * HEAD_DIM)
            s = jnp.einsum('bld,bmd->blm', q3[..., sl], k3[..., sl],
                           preferred_element_type=jnp.float32) * scale + neg
            p = _softmax_lastdim(s)
            ctx_parts.append(jnp.einsum('blm,bmd->bld', p, v3[..., sl],
                                        preferred_element_type=jnp.float32))
        ctx2 = jnp.concatenate(ctx_parts, axis=-1).reshape(B * L, H)
        attn_out = jnp.dot(ctx2, wo_ref[l], preferred_element_type=jnp.float32) + bo_ref[l]
        h1 = _layernorm(x2 + attn_out, ln1g_ref[l], ln1b_ref[l])
        ff = jax.nn.gelu(jnp.dot(h1, w1_ref[l], preferred_element_type=jnp.float32)
                         + b1_ref[l], approximate=True)
        ff_out = jnp.dot(ff, w2_ref[l], preferred_element_type=jnp.float32) + b2_ref[l]
        x2 = _layernorm(h1 + ff_out, ln2g_ref[l], ln2b_ref[l])

    hidden = x2.reshape(B, L, H)                              # final BERT hidden states

    # -- entity head/tail gather: one-hot matmul (MXU), matches torch.matmul(onehot, hidden) --
    iota_l = lax.broadcasted_iota(jnp.int32, (B, L), 1)
    oh_head = (iota_l == p1_ref[...]).astype(jnp.float32)[:, None, :]   # (B,1,L)
    oh_tail = (iota_l == p2_ref[...]).astype(jnp.float32)[:, None, :]   # (B,1,L)
    oh_ht = jnp.concatenate([oh_head, oh_tail], axis=1)                 # (B,2,L)
    ht = jnp.einsum('bkl,blh->bkh', oh_ht, hidden,
                    preferred_element_type=jnp.float32)                 # (B,2,H)
    head_hidden = ht[:, 0, :]
    tail_hidden = ht[:, 1, :]

    # -- DSP branch: gather path rows -> LSTM -> query attention --
    w_ih = wih_ref[...]
    w_hh = whh_ref[...]
    b_ih = bih_ref[...]
    b_hh = bhh_ref[...]
    dq_w = dqw_ref[...]
    dq_b = dqb_ref[...]

    def dsp_branch(path, lengths):
        # gather dsp_rep = hidden[b, path[b]] via one-hot matmul   (B,P,H)
        iota_p = lax.broadcasted_iota(jnp.int32, (B, P, L), 2)
        oh = (iota_p == path[:, :, None]).astype(jnp.float32)           # (B,P,L)
        rep = jnp.einsum('bpl,blh->bph', oh, hidden,
                         preferred_element_type=jnp.float32)            # (B,P,H)
        # unidirectional LSTM (nn.LSTM(H, H, 1, batch_first=True)), zero init state
        h_t = jnp.zeros((B, H), jnp.float32)
        c_t = jnp.zeros((B, H), jnp.float32)
        hs = []
        for t in range(P):                                              # static time loop
            x_t = rep[:, t, :]
            z = (jnp.dot(x_t, w_ih, preferred_element_type=jnp.float32) + b_ih
                 + jnp.dot(h_t, w_hh, preferred_element_type=jnp.float32) + b_hh)
            i_g = jax.nn.sigmoid(z[:, 0:H])
            f_g = jax.nn.sigmoid(z[:, H:2 * H])
            g_g = jnp.tanh(z[:, 2 * H:3 * H])
            o_g = jax.nn.sigmoid(z[:, 3 * H:4 * H])
            c_t = f_g * c_t + i_g * g_g
            h_t = o_g * jnp.tanh(c_t)
            hs.append(h_t)
        # dsp_query attention; padded positions get score = 1e-9 (matches PyTorch code)
        scores = jnp.concatenate(
            [jnp.sum(hh * dq_w, axis=-1, keepdims=True) + dq_b for hh in hs],
            axis=1)                                                     # (B,P)
        pos = lax.broadcasted_iota(jnp.int32, (B, P), 1)
        scores = jnp.where(pos < lengths, scores, 1e-9)
        alpha = _softmax_lastdim(scores)
        out = jnp.zeros((B, H), jnp.float32)
        for t in range(P):
            out = out + alpha[:, t:t + 1] * hs[t]
        return out

    dsp_h = dsp_branch(hpath_ref[...], hlen_ref[...])
    dsp_t = dsp_branch(tpath_ref[...], tlen_ref[...])

    # -- concat (B, 4H) = lane-dense 128 lanes, then Linear(4H, 4H) --
    rep_out = jnp.concatenate([head_hidden, tail_hidden, dsp_h, dsp_t], axis=1)
    out_ref[...] = (jnp.dot(rep_out, wlin_ref[...], preferred_element_type=jnp.float32)
                    + blin_ref[...])


_VMEM_SPEC = pl.BlockSpec(memory_space=pltpu.MemorySpace.VMEM)


# ---------------- wrapper: embedding gathers are glue, everything else is the kernel ----------------
def bert_entity_dsp_forward(params, seqs, pos1, pos2, att_mask,
                            ent_h_path, ent_t_path, ent_h_length, ent_t_length):
    B, L = seqs.shape
    x_sum = (params['word_emb'][seqs]
             + params['pos_emb'][:L][None]
             + params['type_emb'][0][None, None]).astype(jnp.float32)
    maskf = att_mask.astype(jnp.float32)

    args = (
        x_sum, maskf,
        pos1.astype(jnp.int32), pos2.astype(jnp.int32),
        ent_h_path.astype(jnp.int32), ent_t_path.astype(jnp.int32),
        ent_h_length.reshape(B, 1).astype(jnp.int32),
        ent_t_length.reshape(B, 1).astype(jnp.int32),
        params['emb_ln_g'], params['emb_ln_b'],
        params['wq'], params['bq'], params['wk'], params['bk'],
        params['wv'], params['bv'], params['wo'], params['bo'],
        params['ln1_g'], params['ln1_b'],
        params['w1'], params['b1'], params['w2'], params['b2'],
        params['ln2_g'], params['ln2_b'],
        params['lstm_w_ih'], params['lstm_w_hh'],
        params['lstm_b_ih'], params['lstm_b_hh'],
        params['dsp_q_w'], params['dsp_q_b'],
        params['head_w'], params['head_b'],
    )

    flops = int(
        NUM_LAYERS * (8 * B * L * HIDDEN * HIDDEN           # q/k/v/out projections
                      + 4 * B * L * L * HIDDEN              # scores + context
                      + 4 * B * L * HIDDEN * FFN)           # FFN
        + 2 * MAX_DSP_LEN * 4 * B * HIDDEN * 4 * HIDDEN     # two LSTM branches
        + 2 * B * OUT_DIM * OUT_DIM)                        # head linear
    transcendentals = int(NUM_LAYERS * B * NUM_HEADS * L * L
                          + NUM_LAYERS * B * L * FFN
                          + 2 * MAX_DSP_LEN * B * 4 * HIDDEN)
    bytes_accessed = int(sum(a.size * a.dtype.itemsize for a in args)
                         + B * OUT_DIM * 4)

    return pl.pallas_call(
        fused_forward_kernel,
        out_shape=jax.ShapeDtypeStruct((B, OUT_DIM), jnp.float32),
        in_specs=[_VMEM_SPEC] * len(args),
        out_specs=_VMEM_SPEC,
        cost_estimate=pl.CostEstimate(flops=flops,
                                      transcendentals=transcendentals,
                                      bytes_accessed=bytes_accessed),
    )(*args)


# ---------------- deterministic parameter init ----------------
def init_params(key):
    keys = iter(jax.random.split(key, 64))

    def nrm(shape, scale=0.02):
        return (scale * jax.random.normal(next(keys), shape)).astype(jnp.float32)

    H, NL = HIDDEN, NUM_LAYERS
    return {
        'word_emb': nrm((VOCAB, H)),
        'pos_emb': nrm((MAX_LEN, H)),
        'type_emb': nrm((2, H)),
        'emb_ln_g': jnp.ones((1, H), jnp.float32),
        'emb_ln_b': jnp.zeros((1, H), jnp.float32),
        # transformer weights stacked on (NUM_LAYERS, ...), stored (in, out) => x @ W + b
        'wq': nrm((NL, H, H)), 'bq': nrm((NL, 1, H)),
        'wk': nrm((NL, H, H)), 'bk': nrm((NL, 1, H)),
        'wv': nrm((NL, H, H)), 'bv': nrm((NL, 1, H)),
        'wo': nrm((NL, H, H)), 'bo': nrm((NL, 1, H)),
        'ln1_g': jnp.ones((NL, 1, H), jnp.float32),
        'ln1_b': jnp.zeros((NL, 1, H), jnp.float32),
        'w1': nrm((NL, H, FFN)), 'b1': nrm((NL, 1, FFN)),
        'w2': nrm((NL, FFN, H)), 'b2': nrm((NL, 1, H)),
        'ln2_g': jnp.ones((NL, 1, H), jnp.float32),
        'ln2_b': jnp.zeros((NL, 1, H), jnp.float32),
        # nn.LSTM(H, H, 1, batch_first=True); weights stored transposed (in, 4H), gates [i,f,g,o]
        'lstm_w_ih': nrm((H, 4 * H)), 'lstm_w_hh': nrm((H, 4 * H)),
        'lstm_b_ih': nrm((1, 4 * H)), 'lstm_b_hh': nrm((1, 4 * H)),
        # dsp_query = nn.Linear(H, 1)
        'dsp_q_w': nrm((1, H)), 'dsp_q_b': nrm((1, 1)),
        # self.linear = nn.Linear(4H, 4H); stored as (in, out) = weight.T
        'head_w': nrm((OUT_DIM, OUT_DIM)), 'head_b': nrm((1, OUT_DIM)),
    }


# ---------------- pure-JAX reference for the correctness check ----------------
def reference_forward(params, seqs, pos1, pos2, att_mask,
                      ent_h_path, ent_t_path, ent_h_length, ent_t_length):
    B, L = seqs.shape
    x = (params['word_emb'][seqs]
         + params['pos_emb'][:L][None]
         + params['type_emb'][0][None, None])
    x = _layernorm(x, params['emb_ln_g'], params['emb_ln_b'])
    neg = (1.0 - att_mask.astype(jnp.float32))[:, None, :] * (-1e9)
    scale = 1.0 / (HEAD_DIM ** 0.5)
    for l in range(NUM_LAYERS):
        q = x @ params['wq'][l] + params['bq'][l]
        k = x @ params['wk'][l] + params['bk'][l]
        v = x @ params['wv'][l] + params['bv'][l]
        ctxs = []
        for h in range(NUM_HEADS):
            sl = slice(h * HEAD_DIM, (h + 1) * HEAD_DIM)
            s = jnp.einsum('bld,bmd->blm', q[..., sl], k[..., sl]) * scale + neg
            p = jax.nn.softmax(s, axis=-1)
            ctxs.append(jnp.einsum('blm,bmd->bld', p, v[..., sl]))
        ctx = jnp.concatenate(ctxs, axis=-1)
        attn_out = ctx @ params['wo'][l] + params['bo'][l]
        h1 = _layernorm(x + attn_out, params['ln1_g'][l], params['ln1_b'][l])
        ff = jax.nn.gelu(h1 @ params['w1'][l] + params['b1'][l], approximate=True)
        x = _layernorm(h1 + ff @ params['w2'][l] + params['b2'][l],
                       params['ln2_g'][l], params['ln2_b'][l])

    oh_head = jax.nn.one_hot(pos1[:, 0], L, dtype=jnp.float32)
    oh_tail = jax.nn.one_hot(pos2[:, 0], L, dtype=jnp.float32)
    head = jnp.einsum('bl,blh->bh', oh_head, x)
    tail = jnp.einsum('bl,blh->bh', oh_tail, x)

    def dsp_branch(path, lengths):
        rep = jax.vmap(lambda hb, pb: hb[pb])(x, path)                  # (B,P,H)
        h_t = jnp.zeros((B, HIDDEN))
        c_t = jnp.zeros((B, HIDDEN))
        hs = []
        for t in range(path.shape[1]):
            z = (rep[:, t] @ params['lstm_w_ih'] + params['lstm_b_ih']
                 + h_t @ params['lstm_w_hh'] + params['lstm_b_hh'])
            i_g = jax.nn.sigmoid(z[:, :HIDDEN])
            f_g = jax.nn.sigmoid(z[:, HIDDEN:2 * HIDDEN])
            g_g = jnp.tanh(z[:, 2 * HIDDEN:3 * HIDDEN])
            o_g = jax.nn.sigmoid(z[:, 3 * HIDDEN:])
            c_t = f_g * c_t + i_g * g_g
            h_t = o_g * jnp.tanh(c_t)
            hs.append(h_t)
        dsp_hidden = jnp.stack(hs, axis=1)                              # (B,P,H)
        score = jnp.sum(dsp_hidden * params['dsp_q_w'][None], axis=-1) + params['dsp_q_b'][0, 0]
        pos = jnp.arange(path.shape[1])[None, :]
        score = jnp.where(pos < lengths.reshape(B, 1), score, 1e-9)
        alpha = jax.nn.softmax(score, axis=-1)
        return jnp.einsum('bp,bph->bh', alpha, dsp_hidden)

    dsp_h = dsp_branch(ent_h_path, ent_h_length)
    dsp_t = dsp_branch(ent_t_path, ent_t_length)
    rep_out = jnp.concatenate([head, tail, dsp_h, dsp_t], axis=-1)
    return rep_out @ params['head_w'] + params['head_b']


if __name__ == "__main__":
    B, L, P = 2, 8, MAX_DSP_LEN
    key = jax.random.PRNGKey(0)
    pkey, skey = jax.random.split(key)
    params = init_params(pkey)

    seqs = jax.random.randint(skey, (B, L), 0, VOCAB, dtype=jnp.int32)       # (B, L)
    pos1 = jnp.array([[1], [2]], dtype=jnp.int32)                            # (B, 1)
    pos2 = jnp.array([[4], [6]], dtype=jnp.int32)                            # (B, 1)
    att_mask = jnp.array([[1] * L, [1] * 6 + [0] * 2], dtype=jnp.int32)      # (B, L)
    ent_h_path = jnp.array([[1, 2, 4, 0], [2, 3, 0, 0]], dtype=jnp.int32)    # (B, P)
    ent_t_path = jnp.array([[4, 3, 2, 1], [6, 5, 4, 0]], dtype=jnp.int32)    # (B, P)
    ent_h_length = jnp.array([3, 2], dtype=jnp.int32)                        # (B,)
    ent_t_length = jnp.array([4, 3], dtype=jnp.int32)                        # (B,)

    out = bert_entity_dsp_forward(params, seqs, pos1, pos2, att_mask,
                                  ent_h_path, ent_t_path, ent_h_length, ent_t_length)
    out = jax.block_until_ready(out)
    assert out.shape == (B, OUT_DIM)

    ref = reference_forward(params, seqs, pos1, pos2, att_mask,
                            ent_h_path, ent_t_path, ent_h_length, ent_t_length)
    np.testing.assert_allclose(np.asarray(out), np.asarray(ref),
                               rtol=1e-2, atol=1e-2)
    print("KERNEL_OK")
</pallas_src>

<mosaic_0001>
module attributes {stable_mosaic.version = 11 : i64} {
  func.func @fused_forward_kernel(%arg0: memref<2x8x32xf32, #tpu.memory_space<vmem>>, %arg1: memref<2x8xf32, #tpu.memory_space<vmem>>, %arg2: memref<2x1xi32, #tpu.memory_space<vmem>>, %arg3: memref<2x1xi32, #tpu.memory_space<vmem>>, %arg4: memref<2x4xi32, #tpu.memory_space<vmem>>, %arg5: memref<2x4xi32, #tpu.memory_space<vmem>>, %arg6: memref<2x1xi32, #tpu.memory_space<vmem>>, %arg7: memref<2x1xi32, #tpu.memory_space<vmem>>, %arg8: memref<1x32xf32, #tpu.memory_space<vmem>>, %arg9: memref<1x32xf32, #tpu.memory_space<vmem>>, %arg10: memref<2x32x32xf32, #tpu.memory_space<vmem>>, %arg11: memref<2x1x32xf32, #tpu.memory_space<vmem>>, %arg12: memref<2x32x32xf32, #tpu.memory_space<vmem>>, %arg13: memref<2x1x32xf32, #tpu.memory_space<vmem>>, %arg14: memref<2x32x32xf32, #tpu.memory_space<vmem>>, %arg15: memref<2x1x32xf32, #tpu.memory_space<vmem>>, %arg16: memref<2x32x32xf32, #tpu.memory_space<vmem>>, %arg17: memref<2x1x32xf32, #tpu.memory_space<vmem>>, %arg18: memref<2x1x32xf32, #tpu.memory_space<vmem>>, %arg19: memref<2x1x32xf32, #tpu.memory_space<vmem>>, %arg20: memref<2x32x128xf32, #tpu.memory_space<vmem>>, %arg21: memref<2x1x128xf32, #tpu.memory_space<vmem>>, %arg22: memref<2x128x32xf32, #tpu.memory_space<vmem>>, %arg23: memref<2x1x32xf32, #tpu.memory_space<vmem>>, %arg24: memref<2x1x32xf32, #tpu.memory_space<vmem>>, %arg25: memref<2x1x32xf32, #tpu.memory_space<vmem>>, %arg26: memref<32x128xf32, #tpu.memory_space<vmem>>, %arg27: memref<32x128xf32, #tpu.memory_space<vmem>>, %arg28: memref<1x128xf32, #tpu.memory_space<vmem>>, %arg29: memref<1x128xf32, #tpu.memory_space<vmem>>, %arg30: memref<1x32xf32, #tpu.memory_space<vmem>>, %arg31: memref<1x1xf32, #tpu.memory_space<vmem>>, %arg32: memref<128x128xf32, #tpu.memory_space<vmem>>, %arg33: memref<1x128xf32, #tpu.memory_space<vmem>>, %arg34: memref<2x128xf32, #tpu.memory_space<vmem>>) attributes {dimension_semantics = [], scalar_prefetch = 0 : i64, scratch_operands = 0 : i64, tpu.core_type = #tpu.core_type<tc>} {
    %c0 = arith.constant 0 : index
    %c0_0 = arith.constant 0 : index
    %c0_1 = arith.constant 0 : index
    %0 = vector.load %arg0[%c0, %c0_0, %c0_1] : memref<2x8x32xf32, #tpu.memory_space<vmem>>, vector<2x8x32xf32>
    %1 = vector.shape_cast %0 : vector<2x8x32xf32> to vector<16x32xf32>
    %c0_2 = arith.constant 0 : index
    %c0_3 = arith.constant 0 : index
    %2 = vector.load %arg8[%c0_2, %c0_3] : memref<1x32xf32, #tpu.memory_space<vmem>>, vector<1x32xf32>
    %c0_4 = arith.constant 0 : index
    %c0_5 = arith.constant 0 : index
    %3 = vector.load %arg9[%c0_4, %c0_5] : memref<1x32xf32, #tpu.memory_space<vmem>>, vector<1x32xf32>
    %cst = arith.constant dense<0.000000e+00> : vector<16xf32>
    %4 = vector.multi_reduction <add>, %1, %cst [1] : vector<16x32xf32> to vector<16xf32>
    %5 = vector.shape_cast %4 : vector<16xf32> to vector<16x1xf32>
    %cst_6 = arith.constant 3.200000e+01 : f32
    %6 = vector.broadcast %cst_6 : f32 to vector<16x1xf32>
    %7 = arith.divf %5, %6 : vector<16x1xf32>
    %8 = vector.broadcast %7 : vector<16x1xf32> to vector<16x32xf32>
    %9 = arith.subf %1, %8 : vector<16x32xf32>
    %10 = arith.mulf %9, %9 : vector<16x32xf32>
    %cst_7 = arith.constant dense<0.000000e+00> : vector<16xf32>
    %11 = vector.multi_reduction <add>, %10, %cst_7 [1] : vector<16x32xf32> to vector<16xf32>
    %12 = vector.shape_cast %11 : vector<16xf32> to vector<16x1xf32>
    %cst_8 = arith.constant 3.200000e+01 : f32
    %13 = vector.broadcast %cst_8 : f32 to vector<16x1xf32>
    %14 = arith.divf %12, %13 : vector<16x1xf32>
    %15 = vector.broadcast %7 : vector<16x1xf32> to vector<16x32xf32>
    %16 = arith.subf %1, %15 : vector<16x32xf32>
    %cst_9 = arith.constant 9.99999996E-13 : f32
    %17 = vector.broadcast %cst_9 : f32 to vector<16x1xf32>
    %18 = arith.addf %14, %17 : vector<16x1xf32>
    %19 = math.rsqrt %18 : vector<16x1xf32>
    %20 = vector.broadcast %19 : vector<16x1xf32> to vector<16x32xf32>
    %21 = arith.mulf %16, %20 : vector<16x32xf32>
    %22 = vector.broadcast %2 : vector<1x32xf32> to vector<16x32xf32>
    %23 = arith.mulf %21, %22 : vector<16x32xf32>
    %24 = vector.broadcast %3 : vector<1x32xf32> to vector<16x32xf32>
    %25 = arith.addf %23, %24 : vector<16x32xf32>
    %c0_10 = arith.constant 0 : index
    %c0_11 = arith.constant 0 : index
    %26 = vector.load %arg1[%c0_10, %c0_11] : memref<2x8xf32, #tpu.memory_space<vmem>>, vector<2x8xf32>
    %cst_12 = arith.constant 1.000000e+00 : f32
    %27 = vector.broadcast %cst_12 : f32 to vector<2x8xf32>
    %28 = arith.subf %27, %26 : vector<2x8xf32>
    %cst_13 = arith.constant -1.000000e+09 : f32
    %29 = vector.broadcast %cst_13 : f32 to vector<2x8xf32>
    %30 = arith.mulf %28, %29 : vector<2x8xf32>
    %31 = vector.shape_cast %30 : vector<2x8xf32> to vector<2x1x8xf32>
    %c0_14 = arith.constant 0 : index
    %c0_15 = arith.constant 0 : index
    %c0_16 = arith.constant 0 : index
    %32 = vector.load %arg10[%c0_14, %c0_15, %c0_16] : memref<2x32x32xf32, #tpu.memory_space<vmem>>, vector<1x32x32xf32>
    %33 = vector.shape_cast %32 : vector<1x32x32xf32> to vector<32x32xf32>
    %cst_17 = arith.constant dense<0.000000e+00> : vector<16x32xf32>
    %34 = tpu.matmul %25, %33, %cst_17 {dimension_numbers = #tpu.dot_dimension_numbers<[1], [0], [0], [1], [0, 0, 1, 1], [], []>} : vector<16x32xf32>, vector<32x32xf32>, vector<16x32xf32> -> vector<16x32xf32>
    %c0_18 = arith.constant 0 : index
    %c0_19 = arith.constant 0 : index
    %c0_20 = arith.constant 0 : index
    %35 = vector.load %arg11[%c0_18, %c0_19, %c0_20] : memref<2x1x32xf32, #tpu.memory_space<vmem>>, vector<1x1x32xf32>
    %36 = vector.shape_cast %35 : vector<1x1x32xf32> to vector<1x32xf32>
    %37 = vector.broadcast %36 : vector<1x32xf32> to vector<16x32xf32>
    %38 = arith.addf %34, %37 : vector<16x32xf32>
    %c0_21 = arith.constant 0 : index
    %c0_22 = arith.constant 0 : index
    %c0_23 = arith.constant 0 : index
    %39 = vector.load %arg12[%c0_21, %c0_22, %c0_23] : memref<2x32x32xf32, #tpu.memory_space<vmem>>, vector<1x32x32xf32>
    %40 = vector.shape_cast %39 : vector<1x32x32xf32> to vector<32x32xf32>
    %cst_24 = arith.constant dense<0.000000e+00> : vector<16x32xf32>
    %41 = tpu.matmul %25, %40, %cst_24 {dimension_numbers = #tpu.dot_dimension_numbers<[1], [0], [0], [1], [0, 0, 1, 1], [], []>} : vector<16x32xf32>, vector<32x32xf32>, vector<16x32xf32> -> vector<16x32xf32>
    %c0_25 = arith.constant 0 : index
    %c0_26 = arith.constant 0 : index
    %c0_27 = arith.constant 0 : index
    %42 = vector.load %arg13[%c0_25, %c0_26, %c0_27] : memref<2x1x32xf32, #tpu.memory_space<vmem>>, vector<1x1x32xf32>
    %43 = vector.shape_cast %42 : vector<1x1x32xf32> to vector<1x32xf32>
    %44 = vector.broadcast %43 : vector<1x32xf32> to vector<16x32xf32>
    %45 = arith.addf %41, %44 : vector<16x32xf32>
    %c0_28 = arith.constant 0 : index
    %c0_29 = arith.constant 0 : index
    %c0_30 = arith.constant 0 : index
    %46 = vector.load %arg14[%c0_28, %c0_29, %c0_30] : memref<2x32x32xf32, #tpu.memory_space<vmem>>, vector<1x32x32xf32>
    %47 = vector.shape_cast %46 : vector<1x32x32xf32> to vector<32x32xf32>
    %cst_31 = arith.constant dense<0.000000e+00> : vector<16x32xf32>
    %48 = tpu.matmul %25, %47, %cst_31 {dimension_numbers = #tpu.dot_dimension_numbers<[1], [0], [0], [1], [0, 0, 1, 1], [], []>} : vector<16x32xf32>, vector<32x32xf32>, vector<16x32xf32> -> vector<16x32xf32>
    %c0_32 = arith.constant 0 : index
    %c0_33 = arith.constant 0 : index
    %c0_34 = arith.constant 0 : index
    %49 = vector.load %arg15[%c0_32, %c0_33, %c0_34] : memref<2x1x32xf32, #tpu.memory_space<vmem>>, vector<1x1x32xf32>
    %50 = vector.shape_cast %49 : vector<1x1x32xf32> to vector<1x32xf32>
    %51 = vector.broadcast %50 : vector<1x32xf32> to vector<16x32xf32>
    %52 = arith.addf %48, %51 : vector<16x32xf32>
    %53 = vector.shape_cast %38 : vector<16x32xf32> to vector<2x8x32xf32>
    %54 = vector.shape_cast %45 : vector<16x32xf32> to vector<2x8x32xf32>
    %55 = vector.shape_cast %52 : vector<16x32xf32> to vector<2x8x32xf32>
    %56 = vector.extract_strided_slice %53 {offsets = [0, 0, 0], sizes = [2, 8, 16], strides = [1, 1, 1]} : vector<2x8x32xf32> to vector<2x8x16xf32>
    %57 = vector.extract_strided_slice %54 {offsets = [0, 0, 0], sizes = [2, 8, 16], strides = [1, 1, 1]} : vector<2x8x32xf32> to vector<2x8x16xf32>
    "tpu.trace_start"() <{level = 10 : i32, message = "bld,bmd->blm"}> : () -> ()
    %cst_35 = arith.constant dense<0.000000e+00> : vector<2x8x8xf32>
    %58 = tpu.matmul %56, %57, %cst_35 {dimension_numbers = #tpu.dot_dimension_numbers<[2], [2], [1], [1], [0, 0, 0, 1, 1, 1], [0], [0]>} : vector<2x8x16xf32>, vector<2x8x16xf32>, vector<2x8x8xf32> -> vector<2x8x8xf32>
    "tpu.trace_stop"() : () -> ()
    %cst_36 = arith.constant 2.500000e-01 : f32
    %59 = vector.broadcast %cst_36 : f32 to vector<2x8x8xf32>
    %60 = arith.mulf %58, %59 : vector<2x8x8xf32>
    %61 = vector.broadcast %31 : vector<2x1x8xf32> to vector<2x8x8xf32>
    %62 = arith.addf %60, %61 : vector<2x8x8xf32>
    %cst_37 = arith.constant dense<0xFF800000> : vector<2x8xf32>
    %63 = vector.multi_reduction <maximumf>, %62, %cst_37 [2] : vector<2x8x8xf32> to vector<2x8xf32>
    %64 = vector.shape_cast %63 : vector<2x8xf32> to vector<2x8x1xf32>
    %65 = vector.broadcast %64 : vector<2x8x1xf32> to vector<2x8x8xf32>
    %66 = arith.subf %62, %65 : vector<2x8x8xf32>
    %67 = math.exp %66 : vector<2x8x8xf32>
    %cst_38 = arith.constant dense<0.000000e+00> : vector<2x8xf32>
    %68 = vector.multi_reduction <add>, %67, %cst_38 [2] : vector<2x8x8xf32> to vector<2x8xf32>
    %69 = vector.shape_cast %68 : vector<2x8xf32> to vector<2x8x1xf32>
    %70 = tpu.reciprocal %69 {approx = true} : vector<2x8x1xf32> -> vector<2x8x1xf32>
    %71 = vector.broadcast %70 : vector<2x8x1xf32> to vector<2x8x8xf32>
    %72 = arith.mulf %67, %71 : vector<2x8x8xf32>
    %73 = vector.extract_strided_slice %55 {offsets = [0, 0, 0], sizes = [2, 8, 16], strides = [1, 1, 1]} : vector<2x8x32xf32> to vector<2x8x16xf32>
    "tpu.trace_start"() <{level = 10 : i32, message = "blm,bmd->bld"}> : () -> ()
    %cst_39 = arith.constant dense<0.000000e+00> : vector<2x8x16xf32>
    %74 = tpu.matmul %72, %73, %cst_39 {dimension_numbers = #tpu.dot_dimension_numbers<[2], [1], [1], [2], [0, 0, 0, 1, 1, 2], [0], [0]>} : vector<2x8x8xf32>, vector<2x8x16xf32>, vector<2x8x16xf32> -> vector<2x8x16xf32>
    "tpu.trace_stop"() : () -> ()
    %75 = vector.extract_strided_slice %53 {offsets = [0, 0, 16], sizes = [2, 8, 16], strides = [1, 1, 1]} : vector<2x8x32xf32> to vector<2x8x16xf32>
    %76 = vector.extract_strided_slice %54 {offsets = [0, 0, 16], sizes = [2, 8, 16], strides = [1, 1, 1]} : vector<2x8x32xf32> to vector<2x8x16xf32>
    "tpu.trace_start"() <{level = 10 : i32, message = "bld,bmd->blm"}> : () -> ()
    %cst_40 = arith.constant dense<0.000000e+00> : vector<2x8x8xf32>
    %77 = tpu.matmul %75, %76, %cst_40 {dimension_numbers = #tpu.dot_dimension_numbers<[2], [2], [1], [1], [0, 0, 0, 1, 1, 1], [0], [0]>} : vector<2x8x16xf32>, vector<2x8x16xf32>, vector<2x8x8xf32> -> vector<2x8x8xf32>
    "tpu.trace_stop"() : () -> ()
    %cst_41 = arith.constant 2.500000e-01 : f32
    %78 = vector.broadcast %cst_41 : f32 to vector<2x8x8xf32>
    %79 = arith.mulf %77, %78 : vector<2x8x8xf32>
    %80 = vector.broadcast %31 : vector<2x1x8xf32> to vector<2x8x8xf32>
    %81 = arith.addf %79, %80 : vector<2x8x8xf32>
    %cst_42 = arith.constant dense<0xFF800000> : vector<2x8xf32>
    %82 = vector.multi_reduction <maximumf>, %81, %cst_42 [2] : vector<2x8x8xf32> to vector<2x8xf32>
    %83 = vector.shape_cast %82 : vector<2x8xf32> to vector<2x8x1xf32>
    %84 = vector.broadcast %83 : vector<2x8x1xf32> to vector<2x8x8xf32>
    %85 = arith.subf %81, %84 : vector<2x8x8xf32>
    %86 = math.exp %85 : vector<2x8x8xf32>
    %cst_43 = arith.constant dense<0.000000e+00> : vector<2x8xf32>
    %87 = vector.multi_reduction <add>, %86, %cst_43 [2] : vector<2x8x8xf32> to vector<2x8xf32>
    %88 = vector.shape_cast %87 : vector<2x8xf32> to vector<2x8x1xf32>
    %89 = tpu.reciprocal %88 {approx = true} : vector<2x8x1xf32> -> vector<2x8x1xf32>
    %90 = vector.broadcast %89 : vector<2x8x1xf32> to vector<2x8x8xf32>
    %91 = arith.mulf %86, %90 : vector<2x8x8xf32>
    %92 = vector.extract_strided_slice %55 {offsets = [0, 0, 16], sizes = [2, 8, 16], strides = [1, 1, 1]} : vector<2x8x32xf32> to vector<2x8x16xf32>
    "tpu.trace_start"() <{level = 10 : i32, message = "blm,bmd->bld"}> : () -> ()
    %cst_44 = arith.constant dense<0.000000e+00> : vector<2x8x16xf32>
    %93 = tpu.matmul %91, %92, %cst_44 {dimension_numbers = #tpu.dot_dimension_numbers<[2], [1], [1], [2], [0, 0, 0, 1, 1, 2], [0], [0]>} : vector<2x8x8xf32>, vector<2x8x16xf32>, vector<2x8x16xf32> -> vector<2x8x16xf32>
    "tpu.trace_stop"() : () -> ()
    %94 = tpu.concatenate %74, %93 in 2 : vector<2x8x16xf32>, vector<2x8x16xf32> -> vector<2x8x32xf32>
    %95 = vector.shape_cast %94 : vector<2x8x32xf32> to vector<16x32xf32>
    %c0_45 = arith.constant 0 : index
    %c0_46 = arith.constant 0 : index
    %c0_47 = arith.constant 0 : index
    %96 = vector.load %arg16[%c0_45, %c0_46, %c0_47] : memref<2x32x32xf32, #tpu.memory_space<vmem>>, vector<1x32x32xf32>
    %97 = vector.shape_cast %96 : vector<1x32x32xf32> to vector<32x32xf32>
    %cst_48 = arith.constant dense<0.000000e+00> : vector<16x32xf32>
    %98 = tpu.matmul %95, %97, %cst_48 {dimension_numbers = #tpu.dot_dimension_numbers<[1], [0], [0], [1], [0, 0, 1, 1], [], []>} : vector<16x32xf32>, vector<32x32xf32>, vector<16x32xf32> -> vector<16x32xf32>
    %c0_49 = arith.constant 0 : index
    %c0_50 = arith.constant 0 : index
    %c0_51 = arith.constant 0 : index
    %99 = vector.load %arg17[%c0_49, %c0_50, %c0_51] : memref<2x1x32xf32, #tpu.memory_space<vmem>>, vector<1x1x32xf32>
    %100 = vector.shape_cast %99 : vector<1x1x32xf32> to vector<1x32xf32>
    %101 = vector.broadcast %100 : vector<1x32xf32> to vector<16x32xf32>
    %102 = arith.addf %98, %101 : vector<16x32xf32>
    %103 = arith.addf %25, %102 : vector<16x32xf32>
    %c0_52 = arith.constant 0 : index
    %c0_53 = arith.constant 0 : index
    %c0_54 = arith.constant 0 : index
    %104 = vector.load %arg18[%c0_52, %c0_53, %c0_54] : memref<2x1x32xf32, #tpu.memory_space<vmem>>, vector<1x1x32xf32>
    %105 = vector.shape_cast %104 : vector<1x1x32xf32> to vector<1x32xf32>
    %c0_55 = arith.constant 0 : index
    %c0_56 = arith.constant 0 : index
    %c0_57 = arith.constant 0 : index
    %106 = vector.load %arg19[%c0_55, %c0_56, %c0_57] : memref<2x1x32xf32, #tpu.memory_space<vmem>>, vector<1x1x32xf32>
    %107 = vector.shape_cast %106 : vector<1x1x32xf32> to vector<1x32xf32>
    %cst_58 = arith.constant dense<0.000000e+00> : vector<16xf32>
    %108 = vector.multi_reduction <add>, %103, %cst_58 [1] : vector<16x32xf32> to vector<16xf32>
    %109 = vector.shape_cast %108 : vector<16xf32> to vector<16x1xf32>
    %cst_59 = arith.constant 3.200000e+01 : f32
    %110 = vector.broadcast %cst_59 : f32 to vector<16x1xf32>
    %111 = arith.divf %109, %110 : vector<16x1xf32>
    %112 = vector.broadcast %111 : vector<16x1xf32> to vector<16x32xf32>
    %113 = arith.subf %103, %112 : vector<16x32xf32>
    %114 = arith.mulf %113, %113 : vector<16x32xf32>
    %cst_60 = arith.constant dense<0.000000e+00> : vector<16xf32>
    %115 = vector.multi_reduction <add>, %114, %cst_60 [1] : vector<16x32xf32> to vector<16xf32>
    %116 = vector.shape_cast %115 : vector<16xf32> to vector<16x1xf32>
    %cst_61 = arith.constant 3.200000e+01 : f32
    %117 = vector.broadcast %cst_61 : f32 to vector<16x1xf32>
    %118 = arith.divf %116, %117 : vector<16x1xf32>
    %119 = vector.broadcast %111 : vector<16x1xf32> to vector<16x32xf32>
    %120 = arith.subf %103, %119 : vector<16x32xf32>
    %cst_62 = arith.constant 9.99999996E-13 : f32
    %121 = vector.broadcast %cst_62 : f32 to vector<16x1xf32>
    %122 = arith.addf %118, %121 : vector<16x1xf32>
    %123 = math.rsqrt %122 : vector<16x1xf32>
    %124 = vector.broadcast %123 : vector<16x1xf32> to vector<16x32xf32>
    %125 = arith.mulf %120, %124 : vector<16x32xf32>
    %126 = vector.broadcast %105 : vector<1x32xf32> to vector<16x32xf32>
    %127 = arith.mulf %125, %126 : vector<16x32xf32>
    %128 = vector.broadcast %107 : vector<1x32xf32> to vector<16x32xf32>
    %129 = arith.addf %127, %128 : vector<16x32xf32>
    %c0_63 = arith.constant 0 : index
    %c0_64 = arith.constant 0 : index
    %c0_65 = arith.constant 0 : index
    %130 = vector.load %arg20[%c0_63, %c0_64, %c0_65] : memref<2x32x128xf32, #tpu.memory_space<vmem>>, vector<1x32x128xf32>
    %131 = vector.shape_cast %130 : vector<1x32x128xf32> to vector<32x128xf32>
    %cst_66 = arith.constant dense<0.000000e+00> : vector<16x128xf32>
    %132 = tpu.matmul %129, %131, %cst_66 {dimension_numbers = #tpu.dot_dimension_numbers<[1], [0], [0], [1], [0, 0, 1, 1], [], []>} : vector<16x32xf32>, vector<32x128xf32>, vector<16x128xf32> -> vector<16x128xf32>
    %c0_67 = arith.constant 0 : index
    %c0_68 = arith.constant 0 : index
    %c0_69 = arith.constant 0 : index
    %133 = vector.load %arg21[%c0_67, %c0_68, %c0_69] : memref<2x1x128xf32, #tpu.memory_space<vmem>>, vector<1x1x128xf32>
    %134 = vector.shape_cast %133 : vector<1x1x128xf32> to vector<1x128xf32>
    %135 = vector.broadcast %134 : vector<1x128xf32> to vector<16x128xf32>
    %136 = arith.addf %132, %135 : vector<16x128xf32>
    %137 = arith.mulf %136, %136 : vector<16x128xf32>
    %138 = arith.mulf %136, %137 : vector<16x128xf32>
    %cst_70 = arith.constant 4.471500e-02 : f32
    %139 = vector.broadcast %cst_70 : f32 to vector<16x128xf32>
    %140 = arith.mulf %139, %138 : vector<16x128xf32>
    %141 = arith.addf %136, %140 : vector<16x128xf32>
    %cst_71 = arith.constant 0.797884583 : f32
    %142 = vector.broadcast %cst_71 : f32 to vector<16x128xf32>
    %143 = arith.mulf %142, %141 : vector<16x128xf32>
    %144 = math.tanh %143 : vector<16x128xf32>
    %cst_72 = arith.constant 1.000000e+00 : f32
    %145 = vector.broadcast %cst_72 : f32 to vector<16x128xf32>
    %146 = arith.addf %145, %144 : vector<16x128xf32>
    %cst_73 = arith.constant 5.000000e-01 : f32
    %147 = vector.broadcast %cst_73 : f32 to vector<16x128xf32>
    %148 = arith.mulf %147, %146 : vector<16x128xf32>
    %149 = arith.mulf %136, %148 : vector<16x128xf32>
    %c0_74 = arith.constant 0 : index
    %c0_75 = arith.constant 0 : index
    %c0_76 = arith.constant 0 : index
    %150 = vector.load %arg22[%c0_74, %c0_75, %c0_76] : memref<2x128x32xf32, #tpu.memory_space<vmem>>, vector<1x128x32xf32>
    %151 = vector.shape_cast %150 : vector<1x128x32xf32> to vector<128x32xf32>
    %cst_77 = arith.constant dense<0.000000e+00> : vector<16x32xf32>
    %152 = tpu.matmul %149, %151, %cst_77 {dimension_numbers = #tpu.dot_dimension_numbers<[1], [0], [0], [1], [0, 0, 1, 1], [], []>} : vector<16x128xf32>, vector<128x32xf32>, vector<16x32xf32> -> vector<16x32xf32>
    %c0_78 = arith.constant 0 : index
    %c0_79 = arith.constant 0 : index
    %c0_80 = arith.constant 0 : index
    %153 = vector.load %arg23[%c0_78, %c0_79, %c0_80] : memref<2x1x32xf32, #tpu.memory_space<vmem>>, vector<1x1x32xf32>
    %154 = vector.shape_cast %153 : vector<1x1x32xf32> to vector<1x32xf32>
    %155 = vector.broadcast %154 : vector<1x32xf32> to vector<16x32xf32>
    %156 = arith.addf %152, %155 : vector<16x32xf32>
    %157 = arith.addf %129, %156 : vector<16x32xf32>
    %c0_81 = arith.constant 0 : index
    %c0_82 = arith.constant 0 : index
    %c0_83 = arith.constant 0 : index
    %158 = vector.load %arg24[%c0_81, %c0_82, %c0_83] : memref<2x1x32xf32, #tpu.memory_space<vmem>>, vector<1x1x32xf32>
    %159 = vector.shape_cast %158 : vector<1x1x32xf32> to vector<1x32xf32>
    %c0_84 = arith.constant 0 : index
    %c0_85 = arith.constant 0 : index
    %c0_86 = arith.constant 0 : index
    %160 = vector.load %arg25[%c0_84, %c0_85, %c0_86] : memref<2x1x32xf32, #tpu.memory_space<vmem>>, vector<1x1x32xf32>
    %161 = vector.shape_cast %160 : vector<1x1x32xf32> to vector<1x32xf32>
    %cst_87 = arith.constant dense<0.000000e+00> : vector<16xf32>
    %162 = vector.multi_reduction <add>, %157, %cst_87 [1] : vector<16x32xf32> to vector<16xf32>
    %163 = vector.shape_cast %162 : vector<16xf32> to vector<16x1xf32>
    %cst_88 = arith.constant 3.200000e+01 : f32
    %164 = vector.broadcast %cst_88 : f32 to vector<16x1xf32>
    %165 = arith.divf %163, %164 : vector<16x1xf32>
    %166 = vector.broadcast %165 : vector<16x1xf32> to vector<16x32xf32>
    %167 = arith.subf %157, %166 : vector<16x32xf32>
    %168 = arith.mulf %167, %167 : vector<16x32xf32>
    %cst_89 = arith.constant dense<0.000000e+00> : vector<16xf32>
    %169 = vector.multi_reduction <add>, %168, %cst_89 [1] : vector<16x32xf32> to vector<16xf32>
    %170 = vector.shape_cast %169 : vector<16xf32> to vector<16x1xf32>
    %cst_90 = arith.constant 3.200000e+01 : f32
    %171 = vector.broadcast %cst_90 : f32 to vector<16x1xf32>
    %172 = arith.divf %170, %171 : vector<16x1xf32>
    %173 = vector.broadcast %165 : vector<16x1xf32> to vector<16x32xf32>
    %174 = arith.subf %157, %173 : vector<16x32xf32>
    %cst_91 = arith.constant 9.99999996E-13 : f32
    %175 = vector.broadcast %cst_91 : f32 to vector<16x1xf32>
    %176 = arith.addf %172, %175 : vector<16x1xf32>
    %177 = math.rsqrt %176 : vector<16x1xf32>
    %178 = vector.broadcast %177 : vector<16x1xf32> to vector<16x32xf32>
    %179 = arith.mulf %174, %178 : vector<16x32xf32>
    %180 = vector.broadcast %159 : vector<1x32xf32> to vector<16x32xf32>
    %181 = arith.mulf %179, %180 : vector<16x32xf32>
    %182 = vector.broadcast %161 : vector<1x32xf32> to vector<16x32xf32>
    %183 = arith.addf %181, %182 : vector<16x32xf32>
    %c1 = arith.constant 1 : index
    %c0_92 = arith.constant 0 : index
    %c0_93 = arith.constant 0 : index
    %184 = vector.load %arg10[%c1, %c0_92, %c0_93] : memref<2x32x32xf32, #tpu.memory_space<vmem>>, vector<1x32x32xf32>
    %185 = vector.shape_cast %184 : vector<1x32x32xf32> to vector<32x32xf32>
    %cst_94 = arith.constant dense<0.000000e+00> : vector<16x32xf32>
    %186 = tpu.matmul %183, %185, %cst_94 {dimension_numbers = #tpu.dot_dimension_numbers<[1], [0], [0], [1], [0, 0, 1, 1], [], []>} : vector<16x32xf32>, vector<32x32xf32>, vector<16x32xf32> -> vector<16x32xf32>
    %c1_95 = arith.constant 1 : index
    %c0_96 = arith.constant 0 : index
    %c0_97 = arith.constant 0 : index
    %187 = vector.load %arg11[%c1_95, %c0_96, %c0_97] : memref<2x1x32xf32, #tpu.memory_space<vmem>>, vector<1x1x32xf32>
    %188 = vector.shape_cast %187 : vector<1x1x32xf32> to vector<1x32xf32>
    %189 = vector.broadcast %188 : vector<1x32xf32> to vector<16x32xf32>
    %190 = arith.addf %186, %189 : vector<16x32xf32>
    %c1_98 = arith.constant 1 : index
    %c0_99 = arith.constant 0 : index
    %c0_100 = arith.constant 0 : index
    %191 = vector.load %arg12[%c1_98, %c0_99, %c0_100] : memref<2x32x32xf32, #tpu.memory_space<vmem>>, vector<1x32x32xf32>
    %192 = vector.shape_cast %191 : vector<1x32x32xf32> to vector<32x32xf32>
    %cst_101 = arith.constant dense<0.000000e+00> : vector<16x32xf32>
    %193 = tpu.matmul %183, %192, %cst_101 {dimension_numbers = #tpu.dot_dimension_numbers<[1], [0], [0], [1], [0, 0, 1, 1], [], []>} : vector<16x32xf32>, vector<32x32xf32>, vector<16x32xf32> -> vector<16x32xf32>
    %c1_102 = arith.constant 1 : index
    %c0_103 = arith.constant 0 : index
    %c0_104 = arith.constant 0 : index
    %194 = vector.load %arg13[%c1_102, %c0_103, %c0_104] : memref<2x1x32xf32, #tpu.memory_space<vmem>>, vector<1x1x32xf32>
    %195 = vector.shape_cast %194 : vector<1x1x32xf32> to vector<1x32xf32>
    %196 = vector.broadcast %195 : vector<1x32xf32> to vector<16x32xf32>
    %197 = arith.addf %193, %196 : vector<16x32xf32>
    %c1_105 = arith.constant 1 : index
    %c0_106 = arith.constant 0 : index
    %c0_107 = arith.constant 0 : index
    %198 = vector.load %arg14[%c1_105, %c0_106, %c0_107] : memref<2x32x32xf32, #tpu.memory_space<vmem>>, vector<1x32x32xf32>
    %199 = vector.shape_cast %198 : vector<1x32x32xf32> to vector<32x32xf32>
    %cst_108 = arith.constant dense<0.000000e+00> : vector<16x32xf32>
    %200 = tpu.matmul %183, %199, %cst_108 {dimension_numbers = #tpu.dot_dimension_numbers<[1], [0], [0], [1], [0, 0, 1, 1], [], []>} : vector<16x32xf32>, vector<32x32xf32>, vector<16x32xf32> -> vector<16x32xf32>
    %c1_109 = arith.constant 1 : index
    %c0_110 = arith.constant 0 : index
    %c0_111 = arith.constant 0 : index
    %201 = vector.load %arg15[%c1_109, %c0_110, %c0_111] : memref<2x1x32xf32, #tpu.memory_space<vmem>>, vector<1x1x32xf32>
    %202 = vector.shape_cast %201 : vector<1x1x32xf32> to vector<1x32xf32>
    %203 = vector.broadcast %202 : vector<1x32xf32> to vector<16x32xf32>
    %204 = arith.addf %200, %203 : vector<16x32xf32>
    %205 = vector.shape_cast %190 : vector<16x32xf32> to vector<2x8x32xf32>
    %206 = vector.shape_cast %197 : vector<16x32xf32> to vector<2x8x32xf32>
    %207 = vector.shape_cast %204 : vector<16x32xf32> to vector<2x8x32xf32>
    %208 = vector.extract_strided_slice %205 {offsets = [0, 0, 0], sizes = [2, 8, 16], strides = [1, 1, 1]} : vector<2x8x32xf32> to vector<2x8x16xf32>
    %209 = vector.extract_strided_slice %206 {offsets = [0, 0, 0], sizes = [2, 8, 16], strides = [1, 1, 1]} : vector<2x8x32xf32> to vector<2x8x16xf32>
    "tpu.trace_start"() <{level = 10 : i32, message = "bld,bmd->blm"}> : () -> ()
    %cst_112 = arith.constant dense<0.000000e+00> : vector<2x8x8xf32>
    %210 = tpu.matmul %208, %209, %cst_112 {dimension_numbers = #tpu.dot_dimension_numbers<[2], [2], [1], [1], [0, 0, 0, 1, 1, 1], [0], [0]>} : vector<2x8x16xf32>, vector<2x8x16xf32>, vector<2x8x8xf32> -> vector<2x8x8xf32>
    "tpu.trace_stop"() : () -> ()
    %cst_113 = arith.constant 2.500000e-01 : f32
    %211 = vector.broadcast %cst_113 : f32 to vector<2x8x8xf32>
    %212 = arith.mulf %210, %211 : vector<2x8x8xf32>
    %213 = vector.broadcast %31 : vector<2x1x8xf32> to vector<2x8x8xf32>
    %214 = arith.addf %212, %213 : vector<2x8x8xf32>
    %cst_114 = arith.constant dense<0xFF800000> : vector<2x8xf32>
    %215 = vector.multi_reduction <maximumf>, %214, %cst_114 [2] : vector<2x8x8xf32> to vector<2x8xf32>
    %216 = vector.shape_cast %215 : vector<2x8xf32> to vector<2x8x1xf32>
    %217 = vector.broadcast %216 : vector<2x8x1xf32> to vector<2x8x8xf32>
    %218 = arith.subf %214, %217 : vector<2x8x8xf32>
    %219 = math.exp %218 : vector<2x8x8xf32>
    %cst_115 = arith.constant dense<0.000000e+00> : vector<2x8xf32>
    %220 = vector.multi_reduction <add>, %219, %cst_115 [2] : vector<2x8x8xf32> to vector<2x8xf32>
    %221 = vector.shape_cast %220 : vector<2x8xf32> to vector<2x8x1xf32>
    %222 = tpu.reciprocal %221 {approx = true} : vector<2x8x1xf32> -> vector<2x8x1xf32>
    %223 = vector.broadcast %222 : vector<2x8x1xf32> to vector<2x8x8xf32>
    %224 = arith.mulf %219, %223 : vector<2x8x8xf32>
    %225 = vector.extract_strided_slice %207 {offsets = [0, 0, 0], sizes = [2, 8, 16], strides = [1, 1, 1]} : vector<2x8x32xf32> to vector<2x8x16xf32>
    "tpu.trace_start"() <{level = 10 : i32, message = "blm,bmd->bld"}> : () -> ()
    %cst_116 = arith.constant dense<0.000000e+00> : vector<2x8x16xf32>
    %226 = tpu.matmul %224, %225, %cst_116 {dimension_numbers = #tpu.dot_dimension_numbers<[2], [1], [1], [2], [0, 0, 0, 1, 1, 2], [0], [0]>} : vector<2x8x8xf32>, vector<2x8x16xf32>, vector<2x8x16xf32> -> vector<2x8x16xf32>
    "tpu.trace_stop"() : () -> ()
    %227 = vector.extract_strided_slice %205 {offsets = [0, 0, 16], sizes = [2, 8, 16], strides = [1, 1, 1]} : vector<2x8x32xf32> to vector<2x8x16xf32>
    %228 = vector.extract_strided_slice %206 {offsets = [0, 0, 16], sizes = [2, 8, 16], strides = [1, 1, 1]} : vector<2x8x32xf32> to vector<2x8x16xf32>
    "tpu.trace_start"() <{level = 10 : i32, message = "bld,bmd->blm"}> : () -> ()
    %cst_117 = arith.constant dense<0.000000e+00> : vector<2x8x8xf32>
    %229 = tpu.matmul %227, %228, %cst_117 {dimension_numbers = #tpu.dot_dimension_numbers<[2], [2], [1], [1], [0, 0, 0, 1, 1, 1], [0], [0]>} : vector<2x8x16xf32>, vector<2x8x16xf32>, vector<2x8x8xf32> -> vector<2x8x8xf32>
    "tpu.trace_stop"() : () -> ()
    %cst_118 = arith.constant 2.500000e-01 : f32
    %230 = vector.broadcast %cst_118 : f32 to vector<2x8x8xf32>
    %231 = arith.mulf %229, %230 : vector<2x8x8xf32>
    %232 = vector.broadcast %31 : vector<2x1x8xf32> to vector<2x8x8xf32>
    %233 = arith.addf %231, %232 : vector<2x8x8xf32>
    %cst_119 = arith.constant dense<0xFF800000> : vector<2x8xf32>
    %234 = vector.multi_reduction <maximumf>, %233, %cst_119 [2] : vector<2x8x8xf32> to vector<2x8xf32>
    %235 = vector.shape_cast %234 : vector<2x8xf32> to vector<2x8x1xf32>
    %236 = vector.broadcast %235 : vector<2x8x1xf32> to vector<2x8x8xf32>
    %237 = arith.subf %233, %236 : vector<2x8x8xf32>
    %238 = math.exp %237 : vector<2x8x8xf32>
    %cst_120 = arith.constant dense<0.000000e+00> : vector<2x8xf32>
    %239 = vector.multi_reduction <add>, %238, %cst_120 [2] : vector<2x8x8xf32> to vector<2x8xf32>
    %240 = vector.shape_cast %239 : vector<2x8xf32> to vector<2x8x1xf32>
    %241 = tpu.reciprocal %240 {approx = true} : vector<2x8x1xf32> -> vector<2x8x1xf32>
    %242 = vector.broadcast %241 : vector<2x8x1xf32> to vector<2x8x8xf32>
    %243 = arith.mulf %238, %242 : vector<2x8x8xf32>
    %244 = vector.extract_strided_slice %207 {offsets = [0, 0, 16], sizes = [2, 8, 16], strides = [1, 1, 1]} : vector<2x8x32xf32> to vector<2x8x16xf32>
    "tpu.trace_start"() <{level = 10 : i32, message = "blm,bmd->bld"}> : () -> ()
    %cst_121 = arith.constant dense<0.000000e+00> : vector<2x8x16xf32>
    %245 = tpu.matmul %243, %244, %cst_121 {dimension_numbers = #tpu.dot_dimension_numbers<[2], [1], [1], [2], [0, 0, 0, 1, 1, 2], [0], [0]>} : vector<2x8x8xf32>, vector<2x8x16xf32>, vector<2x8x16xf32> -> vector<2x8x16xf32>
    "tpu.trace_stop"() : () -> ()
    %246 = tpu.concatenate %226, %245 in 2 : vector<2x8x16xf32>, vector<2x8x16xf32> -> vector<2x8x32xf32>
    %247 = vector.shape_cast %246 : vector<2x8x32xf32> to vector<16x32xf32>
    %c1_122 = arith.constant 1 : index
    %c0_123 = arith.constant 0 : index
    %c0_124 = arith.constant 0 : index
    %248 = vector.load %arg16[%c1_122, %c0_123, %c0_124] : memref<2x32x32xf32, #tpu.memory_space<vmem>>, vector<1x32x32xf32>
    %249 = vector.shape_cast %248 : vector<1x32x32xf32> to vector<32x32xf32>
    %cst_125 = arith.constant dense<0.000000e+00> : vector<16x32xf32>
    %250 = tpu.matmul %247, %249, %cst_125 {dimension_numbers = #tpu.dot_dimension_numbers<[1], [0], [0], [1], [0, 0, 1, 1], [], []>} : vector<16x32xf32>, vector<32x32xf32>, vector<16x32xf32> -> vector<16x32xf32>
    %c1_126 = arith.constant 1 : index
    %c0_127 = arith.constant 0 : index
    %c0_128 = arith.constant 0 : index
    %251 = vector.load %arg17[%c1_126, %c0_127, %c0_128] : memref<2x1x32xf32, #tpu.memory_space<vmem>>, vector<1x1x32xf32>
    %252 = vector.shape_cast %251 : vector<1x1x32xf32> to vector<1x32xf32>
    %253 = vector.broadcast %252 : vector<1x32xf32> to vector<16x32xf32>
    %254 = arith.addf %250, %253 : vector<16x32xf32>
    %255 = arith.addf %183, %254 : vector<16x32xf32>
    %c1_129 = arith.constant 1 : index
    %c0_130 = arith.constant 0 : index
    %c0_131 = arith.constant 0 : index
    %256 = vector.load %arg18[%c1_129, %c0_130, %c0_131] : memref<2x1x32xf32, #tpu.memory_space<vmem>>, vector<1x1x32xf32>
    %257 = vector.shape_cast %256 : vector<1x1x32xf32> to vector<1x32xf32>
    %c1_132 = arith.constant 1 : index
    %c0_133 = arith.constant 0 : index
    %c0_134 = arith.constant 0 : index
    %258 = vector.load %arg19[%c1_132, %c0_133, %c0_134] : memref<2x1x32xf32, #tpu.memory_space<vmem>>, vector<1x1x32xf32>
    %259 = vector.shape_cast %258 : vector<1x1x32xf32> to vector<1x32xf32>
    %cst_135 = arith.constant dense<0.000000e+00> : vector<16xf32>
    %260 = vector.multi_reduction <add>, %255, %cst_135 [1] : vector<16x32xf32> to vector<16xf32>
    %261 = vector.shape_cast %260 : vector<16xf32> to vector<16x1xf32>
    %cst_136 = arith.constant 3.200000e+01 : f32
    %262 = vector.broadcast %cst_136 : f32 to vector<16x1xf32>
    %263 = arith.divf %261, %262 : vector<16x1xf32>
    %264 = vector.broadcast %263 : vector<16x1xf32> to vector<16x32xf32>
    %265 = arith.subf %255, %264 : vector<16x32xf32>
    %266 = arith.mulf %265, %265 : vector<16x32xf32>
    %cst_137 = arith.constant dense<0.000000e+00> : vector<16xf32>
    %267 = vector.multi_reduction <add>, %266, %cst_137 [1] : vector<16x32xf32> to vector<16xf32>
    %268 = vector.shape_cast %267 : vector<16xf32> to vector<16x1xf32>
    %cst_138 = arith.constant 3.200000e+01 : f32
    %269 = vector.broadcast %cst_138 : f32 to vector<16x1xf32>
    %270 = arith.divf %268, %269 : vector<16x1xf32>
    %271 = vector.broadcast %263 : vector<16x1xf32> to vector<16x32xf32>
    %272 = arith.subf %255, %271 : vector<16x32xf32>
    %cst_139 = arith.constant 9.99999996E-13 : f32
    %273 = vector.broadcast %cst_139 : f32 to vector<16x1xf32>
    %274 = arith.addf %270, %273 : vector<16x1xf32>
    %275 = math.rsqrt %274 : vector<16x1xf32>
    %276 = vector.broadcast %275 : vector<16x1xf32> to vector<16x32xf32>
    %277 = arith.mulf %272, %276 : vector<16x32xf32>
    %278 = vector.broadcast %257 : vector<1x32xf32> to vector<16x32xf32>
    %279 = arith.mulf %277, %278 : vector<16x32xf32>
    %280 = vector.broadcast %259 : vector<1x32xf32> to vector<16x32xf32>
    %281 = arith.addf %279, %280 : vector<16x32xf32>
    %c1_140 = arith.constant 1 : index
    %c0_141 = arith.constant 0 : index
    %c0_142 = arith.constant 0 : index
    %282 = vector.load %arg20[%c1_140, %c0_141, %c0_142] : memref<2x32x128xf32, #tpu.memory_space<vmem>>, vector<1x32x128xf32>
    %283 = vector.shape_cast %282 : vector<1x32x128xf32> to vector<32x128xf32>
    %cst_143 = arith.constant dense<0.000000e+00> : vector<16x128xf32>
    %284 = tpu.matmul %281, %283, %cst_143 {dimension_numbers = #tpu.dot_dimension_numbers<[1], [0], [0], [1], [0, 0, 1, 1], [], []>} : vector<16x32xf32>, vector<32x128xf32>, vector<16x128xf32> -> vector<16x128xf32>
    %c1_144 = arith.constant 1 : index
    %c0_145 = arith.constant 0 : index
    %c0_146 = arith.constant 0 : index
    %285 = vector.load %arg21[%c1_144, %c0_145, %c0_146] : memref<2x1x128xf32, #tpu.memory_space<vmem>>, vector<1x1x128xf32>
    %286 = vector.shape_cast %285 : vector<1x1x128xf32> to vector<1x128xf32>
    %287 = vector.broadcast %286 : vector<1x128xf32> to vector<16x128xf32>
    %288 = arith.addf %284, %287 : vector<16x128xf32>
    %289 = arith.mulf %288, %288 : vector<16x128xf32>
    %290 = arith.mulf %288, %289 : vector<16x128xf32>
    %cst_147 = arith.constant 4.471500e-02 : f32
    %291 = vector.broadcast %cst_147 : f32 to vector<16x128xf32>
    %292 = arith.mulf %291, %290 : vector<16x128xf32>
    %293 = arith.addf %288, %292 : vector<16x128xf32>
    %cst_148 = arith.constant 0.797884583 : f32
    %294 = vector.broadcast %cst_148 : f32 to vector<16x128xf32>
    %295 = arith.mulf %294, %293 : vector<16x128xf32>
    %296 = math.tanh %295 : vector<16x128xf32>
    %cst_149 = arith.constant 1.000000e+00 : f32
    %297 = vector.broadcast %cst_149 : f32 to vector<16x128xf32>
    %298 = arith.addf %297, %296 : vector<16x128xf32>
    %cst_150 = arith.constant 5.000000e-01 : f32
    %299 = vector.broadcast %cst_150 : f32 to vector<16x128xf32>
    %300 = arith.mulf %299, %298 : vector<16x128xf32>
    %301 = arith.mulf %288, %300 : vector<16x128xf32>
    %c1_151 = arith.constant 1 : index
    %c0_152 = arith.constant 0 : index
    %c0_153 = arith.constant 0 : index
    %302 = vector.load %arg22[%c1_151, %c0_152, %c0_153] : memref<2x128x32xf32, #tpu.memory_space<vmem>>, vector<1x128x32xf32>
    %303 = vector.shape_cast %302 : vector<1x128x32xf32> to vector<128x32xf32>
    %cst_154 = arith.constant dense<0.000000e+00> : vector<16x32xf32>
    %304 = tpu.matmul %301, %303, %cst_154 {dimension_numbers = #tpu.dot_dimension_numbers<[1], [0], [0], [1], [0, 0, 1, 1], [], []>} : vector<16x128xf32>, vector<128x32xf32>, vector<16x32xf32> -> vector<16x32xf32>
    %c1_155 = arith.constant 1 : index
    %c0_156 = arith.constant 0 : index
    %c0_157 = arith.constant 0 : index
    %305 = vector.load %arg23[%c1_155, %c0_156, %c0_157] : memref<2x1x32xf32, #tpu.memory_space<vmem>>, vector<1x1x32xf32>
    %306 = vector.shape_cast %305 : vector<1x1x32xf32> to vector<1x32xf32>
    %307 = vector.broadcast %306 : vector<1x32xf32> to vector<16x32xf32>
    %308 = arith.addf %304, %307 : vector<16x32xf32>
    %309 = arith.addf %281, %308 : vector<16x32xf32>
    %c1_158 = arith.constant 1 : index
    %c0_159 = arith.constant 0 : index
    %c0_160 = arith.constant 0 : index
    %310 = vector.load %arg24[%c1_158, %c0_159, %c0_160] : memref<2x1x32xf32, #tpu.memory_space<vmem>>, vector<1x1x32xf32>
    %311 = vector.shape_cast %310 : vector<1x1x32xf32> to vector<1x32xf32>
    %c1_161 = arith.constant 1 : index
    %c0_162 = arith.constant 0 : index
    %c0_163 = arith.constant 0 : index
    %312 = vector.load %arg25[%c1_161, %c0_162, %c0_163] : memref<2x1x32xf32, #tpu.memory_space<vmem>>, vector<1x1x32xf32>
    %313 = vector.shape_cast %312 : vector<1x1x32xf32> to vector<1x32xf32>
    %cst_164 = arith.constant dense<0.000000e+00> : vector<16xf32>
    %314 = vector.multi_reduction <add>, %309, %cst_164 [1] : vector<16x32xf32> to vector<16xf32>
    %315 = vector.shape_cast %314 : vector<16xf32> to vector<16x1xf32>
    %cst_165 = arith.constant 3.200000e+01 : f32
    %316 = vector.broadcast %cst_165 : f32 to vector<16x1xf32>
    %317 = arith.divf %315, %316 : vector<16x1xf32>
    %318 = vector.broadcast %317 : vector<16x1xf32> to vector<16x32xf32>
    %319 = arith.subf %309, %318 : vector<16x32xf32>
    %320 = arith.mulf %319, %319 : vector<16x32xf32>
    %cst_166 = arith.constant dense<0.000000e+00> : vector<16xf32>
    %321 = vector.multi_reduction <add>, %320, %cst_166 [1] : vector<16x32xf32> to vector<16xf32>
    %322 = vector.shape_cast %321 : vector<16xf32> to vector<16x1xf32>
    %cst_167 = arith.constant 3.200000e+01 : f32
    %323 = vector.broadcast %cst_167 : f32 to vector<16x1xf32>
    %324 = arith.divf %322, %323 : vector<16x1xf32>
    %325 = vector.broadcast %317 : vector<16x1xf32> to vector<16x32xf32>
    %326 = arith.subf %309, %325 : vector<16x32xf32>
    %cst_168 = arith.constant 9.99999996E-13 : f32
    %327 = vector.broadcast %cst_168 : f32 to vector<16x1xf32>
    %328 = arith.addf %324, %327 : vector<16x1xf32>
    %329 = math.rsqrt %328 : vector<16x1xf32>
    %330 = vector.broadcast %329 : vector<16x1xf32> to vector<16x32xf32>
    %331 = arith.mulf %326, %330 : vector<16x32xf32>
    %332 = vector.broadcast %311 : vector<1x32xf32> to vector<16x32xf32>
    %333 = arith.mulf %331, %332 : vector<16x32xf32>
    %334 = vector.broadcast %313 : vector<1x32xf32> to vector<16x32xf32>
    %335 = arith.addf %333, %334 : vector<16x32xf32>
    %336 = vector.shape_cast %335 : vector<16x32xf32> to vector<2x8x32xf32>
    %337 = tpu.iota {dimensions = array<i32: 1>} : vector<2x8xi32>
    %c0_169 = arith.constant 0 : index
    %c0_170 = arith.constant 0 : index
    %338 = vector.load %arg2[%c0_169, %c0_170] : memref<2x1xi32, #tpu.memory_space<vmem>>, vector<2x1xi32>
    %339 = vector.broadcast %338 : vector<2x1xi32> to vector<2x8xi32>
    %340 = arith.cmpi eq, %337, %339 : vector<2x8xi32>
    %341 = arith.extui %340 : vector<2x8xi1> to vector<2x8xi32>
    %342 = arith.sitofp %341 : vector<2x8xi32> to vector<2x8xf32>
    %343 = vector.shape_cast %342 : vector<2x8xf32> to vector<2x1x8xf32>
    %c0_171 = arith.constant 0 : index
    %c0_172 = arith.constant 0 : index
    %344 = vector.load %arg3[%c0_171, %c0_172] : memref<2x1xi32, #tpu.memory_space<vmem>>, vector<2x1xi32>
    %345 = vector.broadcast %344 : vector<2x1xi32> to vector<2x8xi32>
    %346 = arith.cmpi eq, %337, %345 : vector<2x8xi32>
    %347 = arith.extui %346 : vector<2x8xi1> to vector<2x8xi32>
    %348 = arith.sitofp %347 : vector<2x8xi32> to vector<2x8xf32>
    %349 = vector.shape_cast %348 : vector<2x8xf32> to vector<2x1x8xf32>
    %350 = tpu.concatenate %343, %349 in 1 : vector<2x1x8xf32>, vector<2x1x8xf32> -> vector<2x2x8xf32>
    "tpu.trace_start"() <{level = 10 : i32, message = "bkl,blh->bkh"}> : () -> ()
    %cst_173 = arith.constant dense<0.000000e+00> : vector<2x2x32xf32>
    %351 = tpu.matmul %350, %336, %cst_173 {dimension_numbers = #tpu.dot_dimension_numbers<[2], [1], [1], [2], [0, 0, 0, 1, 1, 2], [0], [0]>} : vector<2x2x8xf32>, vector<2x8x32xf32>, vector<2x2x32xf32> -> vector<2x2x32xf32>
    "tpu.trace_stop"() : () -> ()
    %352 = vector.extract_strided_slice %351 {offsets = [0, 0, 0], sizes = [2, 1, 32], strides = [1, 1, 1]} : vector<2x2x32xf32> to vector<2x1x32xf32>
    %353 = vector.shape_cast %352 : vector<2x1x32xf32> to vector<2x32xf32>
    %354 = vector.extract_strided_slice %351 {offsets = [0, 1, 0], sizes = [2, 1, 32], strides = [1, 1, 1]} : vector<2x2x32xf32> to vector<2x1x32xf32>
    %355 = vector.shape_cast %354 : vector<2x1x32xf32> to vector<2x32xf32>
    %c0_174 = arith.constant 0 : index
    %c0_175 = arith.constant 0 : index
    %356 = vector.load %arg26[%c0_174, %c0_175] : memref<32x128xf32, #tpu.memory_space<vmem>>, vector<32x128xf32>
    %c0_176 = arith.constant 0 : index
    %c0_177 = arith.constant 0 : index
    %357 = vector.load %arg27[%c0_176, %c0_177] : memref<32x128xf32, #tpu.memory_space<vmem>>, vector<32x128xf32>
    %c0_178 = arith.constant 0 : index
    %c0_179 = arith.constant 0 : index
    %358 = vector.load %arg28[%c0_178, %c0_179] : memref<1x128xf32, #tpu.memory_space<vmem>>, vector<1x128xf32>
    %c0_180 = arith.constant 0 : index
    %c0_181 = arith.constant 0 : index
    %359 = vector.load %arg29[%c0_180, %c0_181] : memref<1x128xf32, #tpu.memory_space<vmem>>, vector<1x128xf32>
    %c0_182 = arith.constant 0 : index
    %c0_183 = arith.constant 0 : index
    %360 = vector.load %arg30[%c0_182, %c0_183] : memref<1x32xf32, #tpu.memory_space<vmem>>, vector<1x32xf32>
    %c0_184 = arith.constant 0 : index
    %c0_185 = arith.constant 0 : index
    %361 = vector.load %arg31[%c0_184, %c0_185] : memref<1x1xf32, #tpu.memory_space<vmem>>, vector<1x1xf32>
    %c0_186 = arith.constant 0 : index
    %c0_187 = arith.constant 0 : index
    %362 = vector.load %arg4[%c0_186, %c0_187] : memref<2x4xi32, #tpu.memory_space<vmem>>, vector<2x4xi32>
    %c0_188 = arith.constant 0 : index
    %c0_189 = arith.constant 0 : index
    %363 = vector.load %arg6[%c0_188, %c0_189] : memref<2x1xi32, #tpu.memory_space<vmem>>, vector<2x1xi32>
    %364 = tpu.iota {dimensions = array<i32: 2>} : vector<2x4x8xi32>
    %365 = vector.shape_cast %362 : vector<2x4xi32> to vector<2x4x1xi32>
    %366 = vector.broadcast %365 : vector<2x4x1xi32> to vector<2x4x8xi32>
    %367 = arith.cmpi eq, %364, %366 : vector<2x4x8xi32>
    %368 = arith.extui %367 : vector<2x4x8xi1> to vector<2x4x8xi32>
    %369 = arith.sitofp %368 : vector<2x4x8xi32> to vector<2x4x8xf32>
    "tpu.trace_start"() <{level = 10 : i32, message = "bpl,blh->bph"}> : () -> ()
    %cst_190 = arith.constant dense<0.000000e+00> : vector<2x4x32xf32>
    %370 = tpu.matmul %369, %336, %cst_190 {dimension_numbers = #tpu.dot_dimension_numbers<[2], [1], [1], [2], [0, 0, 0, 1, 1, 2], [0], [0]>} : vector<2x4x8xf32>, vector<2x8x32xf32>, vector<2x4x32xf32> -> vector<2x4x32xf32>
    %cst_191 = arith.constant 0.000000e+00 : f32
    "tpu.trace_stop"() : () -> ()
    %371 = vector.broadcast %cst_191 : f32 to vector<2x32xf32>
    %cst_192 = arith.constant 0.000000e+00 : f32
    %372 = vector.broadcast %cst_192 : f32 to vector<2x32xf32>
    %373 = vector.extract_strided_slice %370 {offsets = [0, 0, 0], sizes = [2, 1, 32], strides = [1, 1, 1]} : vector<2x4x32xf32> to vector<2x1x32xf32>
    %374 = vector.shape_cast %373 : vector<2x1x32xf32> to vector<2x32xf32>
    %cst_193 = arith.constant dense<0.000000e+00> : vector<2x128xf32>
    %375 = tpu.matmul %374, %356, %cst_193 {dimension_numbers = #tpu.dot_dimension_numbers<[1], [0], [0], [1], [0, 0, 1, 1], [], []>} : vector<2x32xf32>, vector<32x128xf32>, vector<2x128xf32> -> vector<2x128xf32>
    %376 = vector.broadcast %358 : vector<1x128xf32> to vector<2x128xf32>
    %377 = arith.addf %375, %376 : vector<2x128xf32>
    %cst_194 = arith.constant dense<0.000000e+00> : vector<2x128xf32>
    %378 = tpu.matmul %371, %357, %cst_194 {dimension_numbers = #tpu.dot_dimension_numbers<[1], [0], [0], [1], [0, 0, 1, 1], [], []>} : vector<2x32xf32>, vector<32x128xf32>, vector<2x128xf32> -> vector<2x128xf32>
    %379 = arith.addf %377, %378 : vector<2x128xf32>
    %380 = vector.broadcast %359 : vector<1x128xf32> to vector<2x128xf32>
    %381 = arith.addf %379, %380 : vector<2x128xf32>
    %382 = vector.extract_strided_slice %381 {offsets = [0, 0], sizes = [2, 32], strides = [1, 1]} : vector<2x128xf32> to vector<2x32xf32>
    %383 = arith.negf %382 : vector<2x32xf32>
    %384 = math.exp %383 : vector<2x32xf32>
    %cst_195 = arith.constant 1.000000e+00 : f32
    %385 = vector.broadcast %cst_195 : f32 to vector<2x32xf32>
    %386 = arith.addf %385, %384 : vector<2x32xf32>
    %387 = arith.divf %385, %386 : vector<2x32xf32>
    %388 = vector.extract_strided_slice %381 {offsets = [0, 32], sizes = [2, 32], strides = [1, 1]} : vector<2x128xf32> to vector<2x32xf32>
    %389 = arith.negf %388 : vector<2x32xf32>
    %390 = math.exp %389 : vector<2x32xf32>
    %cst_196 = arith.constant 1.000000e+00 : f32
    %391 = vector.broadcast %cst_196 : f32 to vector<2x32xf32>
    %392 = arith.addf %391, %390 : vector<2x32xf32>
    %393 = arith.divf %391, %392 : vector<2x32xf32>
    %394 = vector.extract_strided_slice %381 {offsets = [0, 64], sizes = [2, 32], strides = [1, 1]} : vector<2x128xf32> to vector<2x32xf32>
    %395 = math.tanh %394 : vector<2x32xf32>
    %396 = vector.extract_strided_slice %381 {offsets = [0, 96], sizes = [2, 32], strides = [1, 1]} : vector<2x128xf32> to vector<2x32xf32>
    %397 = arith.negf %396 : vector<2x32xf32>
    %398 = math.exp %397 : vector<2x32xf32>
    %cst_197 = arith.constant 1.000000e+00 : f32
    %399 = vector.broadcast %cst_197 : f32 to vector<2x32xf32>
    %400 = arith.addf %399, %398 : vector<2x32xf32>
    %401 = arith.divf %399, %400 : vector<2x32xf32>
    %402 = arith.mulf %393, %372 : vector<2x32xf32>
    %403 = arith.mulf %387, %395 : vector<2x32xf32>
    %404 = arith.addf %402, %403 : vector<2x32xf32>
    %405 = math.tanh %404 : vector<2x32xf32>
    %406 = arith.mulf %401, %405 : vector<2x32xf32>
    %407 = vector.extract_strided_slice %370 {offsets = [0, 1, 0], sizes = [2, 1, 32], strides = [1, 1, 1]} : vector<2x4x32xf32> to vector<2x1x32xf32>
    %408 = vector.shape_cast %407 : vector<2x1x32xf32> to vector<2x32xf32>
    %cst_198 = arith.constant dense<0.000000e+00> : vector<2x128xf32>
    %409 = tpu.matmul %408, %356, %cst_198 {dimension_numbers = #tpu.dot_dimension_numbers<[1], [0], [0], [1], [0, 0, 1, 1], [], []>} : vector<2x32xf32>, vector<32x128xf32>, vector<2x128xf32> -> vector<2x128xf32>
    %410 = vector.broadcast %358 : vector<1x128xf32> to vector<2x128xf32>
    %411 = arith.addf %409, %410 : vector<2x128xf32>
    %cst_199 = arith.constant dense<0.000000e+00> : vector<2x128xf32>
    %412 = tpu.matmul %406, %357, %cst_199 {dimension_numbers = #tpu.dot_dimension_numbers<[1], [0], [0], [1], [0, 0, 1, 1], [], []>} : vector<2x32xf32>, vector<32x128xf32>, vector<2x128xf32> -> vector<2x128xf32>
    %413 = arith.addf %411, %412 : vector<2x128xf32>
    %414 = vector.broadcast %359 : vector<1x128xf32> to vector<2x128xf32>
    %415 = arith.addf %413, %414 : vector<2x128xf32>
    %416 = vector.extract_strided_slice %415 {offsets = [0, 0], sizes = [2, 32], strides = [1, 1]} : vector<2x128xf32> to vector<2x32xf32>
    %417 = arith.negf %416 : vector<2x32xf32>
    %418 = math.exp %417 : vector<2x32xf32>
    %cst_200 = arith.constant 1.000000e+00 : f32
    %419 = vector.broadcast %cst_200 : f32 to vector<2x32xf32>
    %420 = arith.addf %419, %418 : vector<2x32xf32>
    %421 = arith.divf %419, %420 : vector<2x32xf32>
    %422 = vector.extract_strided_slice %415 {offsets = [0, 32], sizes = [2, 32], strides = [1, 1]} : vector<2x128xf32> to vector<2x32xf32>
    %423 = arith.negf %422 : vector<2x32xf32>
    %424 = math.exp %423 : vector<2x32xf32>
    %cst_201 = arith.constant 1.000000e+00 : f32
    %425 = vector.broadcast %cst_201 : f32 to vector<2x32xf32>
    %426 = arith.addf %425, %424 : vector<2x32xf32>
    %427 = arith.divf %425, %426 : vector<2x32xf32>
    %428 = vector.extract_strided_slice %415 {offsets = [0, 64], sizes = [2, 32], strides = [1, 1]} : vector<2x128xf32> to vector<2x32xf32>
    %429 = math.tanh %428 : vector<2x32xf32>
    %430 = vector.extract_strided_slice %415 {offsets = [0, 96], sizes = [2, 32], strides = [1, 1]} : vector<2x128xf32> to vector<2x32xf32>
    %431 = arith.negf %430 : vector<2x32xf32>
    %432 = math.exp %431 : vector<2x32xf32>
    %cst_202 = arith.constant 1.000000e+00 : f32
    %433 = vector.broadcast %cst_202 : f32 to vector<2x32xf32>
    %434 = arith.addf %433, %432 : vector<2x32xf32>
    %435 = arith.divf %433, %434 : vector<2x32xf32>
    %436 = arith.mulf %427, %404 : vector<2x32xf32>
    %437 = arith.mulf %421, %429 : vector<2x32xf32>
    %438 = arith.addf %436, %437 : vector<2x32xf32>
    %439 = math.tanh %438 : vector<2x32xf32>
    %440 = arith.mulf %435, %439 : vector<2x32xf32>
    %441 = vector.extract_strided_slice %370 {offsets = [0, 2, 0], sizes = [2, 1, 32], strides = [1, 1, 1]} : vector<2x4x32xf32> to vector<2x1x32xf32>
    %442 = vector.shape_cast %441 : vector<2x1x32xf32> to vector<2x32xf32>
    %cst_203 = arith.constant dense<0.000000e+00> : vector<2x128xf32>
    %443 = tpu.matmul %442, %356, %cst_203 {dimension_numbers = #tpu.dot_dimension_numbers<[1], [0], [0], [1], [0, 0, 1, 1], [], []>} : vector<2x32xf32>, vector<32x128xf32>, vector<2x128xf32> -> vector<2x128xf32>
    %444 = vector.broadcast %358 : vector<1x128xf32> to vector<2x128xf32>
    %445 = arith.addf %443, %444 : vector<2x128xf32>
    %cst_204 = arith.constant dense<0.000000e+00> : vector<2x128xf32>
    %446 = tpu.matmul %440, %357, %cst_204 {dimension_numbers = #tpu.dot_dimension_numbers<[1], [0], [0], [1], [0, 0, 1, 1], [], []>} : vector<2x32xf32>, vector<32x128xf32>, vector<2x128xf32> -> vector<2x128xf32>
    %447 = arith.addf %445, %446 : vector<2x128xf32>
    %448 = vector.broadcast %359 : vector<1x128xf32> to vector<2x128xf32>
    %449 = arith.addf %447, %448 : vector<2x128xf32>
    %450 = vector.extract_strided_slice %449 {offsets = [0, 0], sizes = [2, 32], strides = [1, 1]} : vector<2x128xf32> to vector<2x32xf32>
    %451 = arith.negf %450 : vector<2x32xf32>
    %452 = math.exp %451 : vector<2x32xf32>
    %cst_205 = arith.constant 1.000000e+00 : f32
    %453 = vector.broadcast %cst_205 : f32 to vector<2x32xf32>
    %454 = arith.addf %453, %452 : vector<2x32xf32>
    %455 = arith.divf %453, %454 : vector<2x32xf32>
    %456 = vector.extract_strided_slice %449 {offsets = [0, 32], sizes = [2, 32], strides = [1, 1]} : vector<2x128xf32> to vector<2x32xf32>
    %457 = arith.negf %456 : vector<2x32xf32>
    %458 = math.exp %457 : vector<2x32xf32>
    %cst_206 = arith.constant 1.000000e+00 : f32
    %459 = vector.broadcast %cst_206 : f32 to vector<2x32xf32>
    %460 = arith.addf %459, %458 : vector<2x32xf32>
    %461 = arith.divf %459, %460 : vector<2x32xf32>
    %462 = vector.extract_strided_slice %449 {offsets = [0, 64], sizes = [2, 32], strides = [1, 1]} : vector<2x128xf32> to vector<2x32xf32>
    %463 = math.tanh %462 : vector<2x32xf32>
    %464 = vector.extract_strided_slice %449 {offsets = [0, 96], sizes = [2, 32], strides = [1, 1]} : vector<2x128xf32> to vector<2x32xf32>
    %465 = arith.negf %464 : vector<2x32xf32>
    %466 = math.exp %465 : vector<2x32xf32>
    %cst_207 = arith.constant 1.000000e+00 : f32
    %467 = vector.broadcast %cst_207 : f32 to vector<2x32xf32>
    %468 = arith.addf %467, %466 : vector<2x32xf32>
    %469 = arith.divf %467, %468 : vector<2x32xf32>
    %470 = arith.mulf %461, %438 : vector<2x32xf32>
    %471 = arith.mulf %455, %463 : vector<2x32xf32>
    %472 = arith.addf %470, %471 : vector<2x32xf32>
    %473 = math.tanh %472 : vector<2x32xf32>
    %474 = arith.mulf %469, %473 : vector<2x32xf32>
    %475 = vector.extract_strided_slice %370 {offsets = [0, 3, 0], sizes = [2, 1, 32], strides = [1, 1, 1]} : vector<2x4x32xf32> to vector<2x1x32xf32>
    %476 = vector.shape_cast %475 : vector<2x1x32xf32> to vector<2x32xf32>
    %cst_208 = arith.constant dense<0.000000e+00> : vector<2x128xf32>
    %477 = tpu.matmul %476, %356, %cst_208 {dimension_numbers = #tpu.dot_dimension_numbers<[1], [0], [0], [1], [0, 0, 1, 1], [], []>} : vector<2x32xf32>, vector<32x128xf32>, vector<2x128xf32> -> vector<2x128xf32>
    %478 = vector.broadcast %358 : vector<1x128xf32> to vector<2x128xf32>
    %479 = arith.addf %477, %478 : vector<2x128xf32>
    %cst_209 = arith.constant dense<0.000000e+00> : vector<2x128xf32>
    %480 = tpu.matmul %474, %357, %cst_209 {dimension_numbers = #tpu.dot_dimension_numbers<[1], [0], [0], [1], [0, 0, 1, 1], [], []>} : vector<2x32xf32>, vector<32x128xf32>, vector<2x128xf32> -> vector<2x128xf32>
    %481 = arith.addf %479, %480 : vector<2x128xf32>
    %482 = vector.broadcast %359 : vector<1x128xf32> to vector<2x128xf32>
    %483 = arith.addf %481, %482 : vector<2x128xf32>
    %484 = vector.extract_strided_slice %483 {offsets = [0, 0], sizes = [2, 32], strides = [1, 1]} : vector<2x128xf32> to vector<2x32xf32>
    %485 = arith.negf %484 : vector<2x32xf32>
    %486 = math.exp %485 : vector<2x32xf32>
    %cst_210 = arith.constant 1.000000e+00 : f32
    %487 = vector.broadcast %cst_210 : f32 to vector<2x32xf32>
    %488 = arith.addf %487, %486 : vector<2x32xf32>
    %489 = arith.divf %487, %488 : vector<2x32xf32>
    %490 = vector.extract_strided_slice %483 {offsets = [0, 32], sizes = [2, 32], strides = [1, 1]} : vector<2x128xf32> to vector<2x32xf32>
    %491 = arith.negf %490 : vector<2x32xf32>
    %492 = math.exp %491 : vector<2x32xf32>
    %cst_211 = arith.constant 1.000000e+00 : f32
    %493 = vector.broadcast %cst_211 : f32 to vector<2x32xf32>
    %494 = arith.addf %493, %492 : vector<2x32xf32>
    %495 = arith.divf %493, %494 : vector<2x32xf32>
    %496 = vector.extract_strided_slice %483 {offsets = [0, 64], sizes = [2, 32], strides = [1, 1]} : vector<2x128xf32> to vector<2x32xf32>
    %497 = math.tanh %496 : vector<2x32xf32>
    %498 = vector.extract_strided_slice %483 {offsets = [0, 96], sizes = [2, 32], strides = [1, 1]} : vector<2x128xf32> to vector<2x32xf32>
    %499 = arith.negf %498 : vector<2x32xf32>
    %500 = math.exp %499 : vector<2x32xf32>
    %cst_212 = arith.constant 1.000000e+00 : f32
    %501 = vector.broadcast %cst_212 : f32 to vector<2x32xf32>
    %502 = arith.addf %501, %500 : vector<2x32xf32>
    %503 = arith.divf %501, %502 : vector<2x32xf32>
    %504 = arith.mulf %495, %472 : vector<2x32xf32>
    %505 = arith.mulf %489, %497 : vector<2x32xf32>
    %506 = arith.addf %504, %505 : vector<2x32xf32>
    %507 = math.tanh %506 : vector<2x32xf32>
    %508 = arith.mulf %503, %507 : vector<2x32xf32>
    %509 = vector.broadcast %360 : vector<1x32xf32> to vector<2x32xf32>
    %510 = arith.mulf %406, %509 : vector<2x32xf32>
    %cst_213 = arith.constant dense<0.000000e+00> : vector<2xf32>
    %511 = vector.multi_reduction <add>, %510, %cst_213 [1] : vector<2x32xf32> to vector<2xf32>
    %512 = vector.shape_cast %511 : vector<2xf32> to vector<2x1xf32>
    %513 = vector.broadcast %361 : vector<1x1xf32> to vector<2x1xf32>
    %514 = arith.addf %512, %513 : vector<2x1xf32>
    %515 = vector.broadcast %360 : vector<1x32xf32> to vector<2x32xf32>
    %516 = arith.mulf %440, %515 : vector<2x32xf32>
    %cst_214 = arith.constant dense<0.000000e+00> : vector<2xf32>
    %517 = vector.multi_reduction <add>, %516, %cst_214 [1] : vector<2x32xf32> to vector<2xf32>
    %518 = vector.shape_cast %517 : vector<2xf32> to vector<2x1xf32>
    %519 = vector.broadcast %361 : vector<1x1xf32> to vector<2x1xf32>
    %520 = arith.addf %518, %519 : vector<2x1xf32>
    %521 = vector.broadcast %360 : vector<1x32xf32> to vector<2x32xf32>
    %522 = arith.mulf %474, %521 : vector<2x32xf32>
    %cst_215 = arith.constant dense<0.000000e+00> : vector<2xf32>
    %523 = vector.multi_reduction <add>, %522, %cst_215 [1] : vector<2x32xf32> to vector<2xf32>
    %524 = vector.shape_cast %523 : vector<2xf32> to vector<2x1xf32>
    %525 = vector.broadcast %361 : vector<1x1xf32> to vector<2x1xf32>
    %526 = arith.addf %524, %525 : vector<2x1xf32>
    %527 = vector.broadcast %360 : vector<1x32xf32> to vector<2x32xf32>
    %528 = arith.mulf %508, %527 : vector<2x32xf32>
    %cst_216 = arith.constant dense<0.000000e+00> : vector<2xf32>
    %529 = vector.multi_reduction <add>, %528, %cst_216 [1] : vector<2x32xf32> to vector<2xf32>
    %530 = vector.shape_cast %529 : vector<2xf32> to vector<2x1xf32>
    %531 = vector.broadcast %361 : vector<1x1xf32> to vector<2x1xf32>
    %532 = arith.addf %530, %531 : vector<2x1xf32>
    %533 = tpu.concatenate %514, %520, %526, %532 in 1 : vector<2x1xf32>, vector<2x1xf32>, vector<2x1xf32>, vector<2x1xf32> -> vector<2x4xf32>
    %534 = tpu.iota {dimensions = array<i32: 1>} : vector<2x4xi32>
    %535 = vector.broadcast %363 : vector<2x1xi32> to vector<2x4xi32>
    %536 = arith.cmpi slt, %534, %535 : vector<2x4xi32>
    %cst_217 = arith.constant 9.99999971E-10 : f32
    %537 = vector.broadcast %cst_217 : f32 to vector<2x4xf32>
    %538 = arith.select %536, %533, %537 : vector<2x4xi1>, vector<2x4xf32>
    %cst_218 = arith.constant dense<0xFF800000> : vector<2xf32>
    %539 = vector.multi_reduction <maximumf>, %538, %cst_218 [1] : vector<2x4xf32> to vector<2xf32>
    %540 = vector.shape_cast %539 : vector<2xf32> to vector<2x1xf32>
    %541 = vector.broadcast %540 : vector<2x1xf32> to vector<2x4xf32>
    %542 = arith.subf %538, %541 : vector<2x4xf32>
    %543 = math.exp %542 : vector<2x4xf32>
    %cst_219 = arith.constant dense<0.000000e+00> : vector<2xf32>
    %544 = vector.multi_reduction <add>, %543, %cst_219 [1] : vector<2x4xf32> to vector<2xf32>
    %545 = vector.shape_cast %544 : vector<2xf32> to vector<2x1xf32>
    %546 = tpu.reciprocal %545 {approx = true} : vector<2x1xf32> -> vector<2x1xf32>
    %547 = vector.broadcast %546 : vector<2x1xf32> to vector<2x4xf32>
    %548 = arith.mulf %543, %547 : vector<2x4xf32>
    %cst_220 = arith.constant 0.000000e+00 : f32
    %549 = vector.broadcast %cst_220 : f32 to vector<2x32xf32>
    %550 = vector.extract_strided_slice %548 {offsets = [0, 0], sizes = [2, 1], strides = [1, 1]} : vector<2x4xf32> to vector<2x1xf32>
    %551 = vector.broadcast %550 : vector<2x1xf32> to vector<2x32xf32>
    %552 = arith.mulf %551, %406 : vector<2x32xf32>
    %553 = arith.addf %549, %552 : vector<2x32xf32>
    %554 = vector.extract_strided_slice %548 {offsets = [0, 1], sizes = [2, 1], strides = [1, 1]} : vector<2x4xf32> to vector<2x1xf32>
    %555 = vector.broadcast %554 : vector<2x1xf32> to vector<2x32xf32>
    %556 = arith.mulf %555, %440 : vector<2x32xf32>
    %557 = arith.addf %553, %556 : vector<2x32xf32>
    %558 = vector.extract_strided_slice %548 {offsets = [0, 2], sizes = [2, 1], strides = [1, 1]} : vector<2x4xf32> to vector<2x1xf32>
    %559 = vector.broadcast %558 : vector<2x1xf32> to vector<2x32xf32>
    %560 = arith.mulf %559, %474 : vector<2x32xf32>
    %561 = arith.addf %557, %560 : vector<2x32xf32>
    %562 = vector.extract_strided_slice %548 {offsets = [0, 3], sizes = [2, 1], strides = [1, 1]} : vector<2x4xf32> to vector<2x1xf32>
    %563 = vector.broadcast %562 : vector<2x1xf32> to vector<2x32xf32>
    %564 = arith.mulf %563, %508 : vector<2x32xf32>
    %565 = arith.addf %561, %564 : vector<2x32xf32>
    %c0_221 = arith.constant 0 : index
    %c0_222 = arith.constant 0 : index
    %566 = vector.load %arg5[%c0_221, %c0_222] : memref<2x4xi32, #tpu.memory_space<vmem>>, vector<2x4xi32>
    %c0_223 = arith.constant 0 : index
    %c0_224 = arith.constant 0 : index
    %567 = vector.load %arg7[%c0_223, %c0_224] : memref<2x1xi32, #tpu.memory_space<vmem>>, vector<2x1xi32>
    %568 = tpu.iota {dimensions = array<i32: 2>} : vector<2x4x8xi32>
    %569 = vector.shape_cast %566 : vector<2x4xi32> to vector<2x4x1xi32>
    %570 = vector.broadcast %569 : vector<2x4x1xi32> to vector<2x4x8xi32>
    %571 = arith.cmpi eq, %568, %570 : vector<2x4x8xi32>
    %572 = arith.extui %571 : vector<2x4x8xi1> to vector<2x4x8xi32>
    %573 = arith.sitofp %572 : vector<2x4x8xi32> to vector<2x4x8xf32>
    "tpu.trace_start"() <{level = 10 : i32, message = "bpl,blh->bph"}> : () -> ()
    %cst_225 = arith.constant dense<0.000000e+00> : vector<2x4x32xf32>
    %574 = tpu.matmul %573, %336, %cst_225 {dimension_numbers = #tpu.dot_dimension_numbers<[2], [1], [1], [2], [0, 0, 0, 1, 1, 2], [0], [0]>} : vector<2x4x8xf32>, vector<2x8x32xf32>, vector<2x4x32xf32> -> vector<2x4x32xf32>
    %cst_226 = arith.constant 0.000000e+00 : f32
    "tpu.trace_stop"() : () -> ()
    %575 = vector.broadcast %cst_226 : f32 to vector<2x32xf32>
    %cst_227 = arith.constant 0.000000e+00 : f32
    %576 = vector.broadcast %cst_227 : f32 to vector<2x32xf32>
    %577 = vector.extract_strided_slice %574 {offsets = [0, 0, 0], sizes = [2, 1, 32], strides = [1, 1, 1]} : vector<2x4x32xf32> to vector<2x1x32xf32>
    %578 = vector.shape_cast %577 : vector<2x1x32xf32> to vector<2x32xf32>
    %cst_228 = arith.constant dense<0.000000e+00> : vector<2x128xf32>
    %579 = tpu.matmul %578, %356, %cst_228 {dimension_numbers = #tpu.dot_dimension_numbers<[1], [0], [0], [1], [0, 0, 1, 1], [], []>} : vector<2x32xf32>, vector<32x128xf32>, vector<2x128xf32> -> vector<2x128xf32>
    %580 = vector.broadcast %358 : vector<1x128xf32> to vector<2x128xf32>
    %581 = arith.addf %579, %580 : vector<2x128xf32>
    %cst_229 = arith.constant dense<0.000000e+00> : vector<2x128xf32>
    %582 = tpu.matmul %575, %357, %cst_229 {dimension_numbers = #tpu.dot_dimension_numbers<[1], [0], [0], [1], [0, 0, 1, 1], [], []>} : vector<2x32xf32>, vector<32x128xf32>, vector<2x128xf32> -> vector<2x128xf32>
    %583 = arith.addf %581, %582 : vector<2x128xf32>
    %584 = vector.broadcast %359 : vector<1x128xf32> to vector<2x128xf32>
    %585 = arith.addf %583, %584 : vector<2x128xf32>
    %586 = vector.extract_strided_slice %585 {offsets = [0, 0], sizes = [2, 32], strides = [1, 1]} : vector<2x128xf32> to vector<2x32xf32>
    %587 = arith.negf %586 : vector<2x32xf32>
    %588 = math.exp %587 : vector<2x32xf32>
    %cst_230 = arith.constant 1.000000e+00 : f32
    %589 = vector.broadcast %cst_230 : f32 to vector<2x32xf32>
    %590 = arith.addf %589, %588 : vector<2x32xf32>
    %591 = arith.divf %589, %590 : vector<2x32xf32>
    %592 = vector.extract_strided_slice %585 {offsets = [0, 32], sizes = [2, 32], strides = [1, 1]} : vector<2x128xf32> to vector<2x32xf32>
    %593 = arith.negf %592 : vector<2x32xf32>
    %594 = math.exp %593 : vector<2x32xf32>
    %cst_231 = arith.constant 1.000000e+00 : f32
    %595 = vector.broadcast %cst_231 : f32 to vector<2x32xf32>
    %596 = arith.addf %595, %594 : vector<2x32xf32>
    %597 = arith.divf %595, %596 : vector<2x32xf32>
    %598 = vector.extract_strided_slice %585 {offsets = [0, 64], sizes = [2, 32], strides = [1, 1]} : vector<2x128xf32> to vector<2x32xf32>
    %599 = math.tanh %598 : vector<2x32xf32>
    %600 = vector.extract_strided_slice %585 {offsets = [0, 96], sizes = [2, 32], strides = [1, 1]} : vector<2x128xf32> to vector<2x32xf32>
    %601 = arith.negf %600 : vector<2x32xf32>
    %602 = math.exp %601 : vector<2x32xf32>
    %cst_232 = arith.constant 1.000000e+00 : f32
    %603 = vector.broadcast %cst_232 : f32 to vector<2x32xf32>
    %604 = arith.addf %603, %602 : vector<2x32xf32>
    %605 = arith.divf %603, %604 : vector<2x32xf32>
    %606 = arith.mulf %597, %576 : vector<2x32xf32>
    %607 = arith.mulf %591, %599 : vector<2x32xf32>
    %608 = arith.addf %606, %607 : vector<2x32xf32>
    %609 = math.tanh %608 : vector<2x32xf32>
    %610 = arith.mulf %605, %609 : vector<2x32xf32>
    %611 = vector.extract_strided_slice %574 {offsets = [0, 1, 0], sizes = [2, 1, 32], strides = [1, 1, 1]} : vector<2x4x32xf32> to vector<2x1x32xf32>
    %612 = vector.shape_cast %611 : vector<2x1x32xf32> to vector<2x32xf32>
    %cst_233 = arith.constant dense<0.000000e+00> : vector<2x128xf32>
    %613 = tpu.matmul %612, %356, %cst_233 {dimension_numbers = #tpu.dot_dimension_numbers<[1], [0], [0], [1], [0, 0, 1, 1], [], []>} : vector<2x32xf32>, vector<32x128xf32>, vector<2x128xf32> -> vector<2x128xf32>
    %614 = vector.broadcast %358 : vector<1x128xf32> to vector<2x128xf32>
    %615 = arith.addf %613, %614 : vector<2x128xf32>
    %cst_234 = arith.constant dense<0.000000e+00> : vector<2x128xf32>
    %616 = tpu.matmul %610, %357, %cst_234 {dimension_numbers = #tpu.dot_dimension_numbers<[1], [0], [0], [1], [0, 0, 1, 1], [], []>} : vector<2x32xf32>, vector<32x128xf32>, vector<2x128xf32> -> vector<2x128xf32>
    %617 = arith.addf %615, %616 : vector<2x128xf32>
    %618 = vector.broadcast %359 : vector<1x128xf32> to vector<2x128xf32>
    %619 = arith.addf %617, %618 : vector<2x128xf32>
    %620 = vector.extract_strided_slice %619 {offsets = [0, 0], sizes = [2, 32], strides = [1, 1]} : vector<2x128xf32> to vector<2x32xf32>
    %621 = arith.negf %620 : vector<2x32xf32>
    %622 = math.exp %621 : vector<2x32xf32>
    %cst_235 = arith.constant 1.000000e+00 : f32
    %623 = vector.broadcast %cst_235 : f32 to vector<2x32xf32>
    %624 = arith.addf %623, %622 : vector<2x32xf32>
    %625 = arith.divf %623, %624 : vector<2x32xf32>
    %626 = vector.extract_strided_slice %619 {offsets = [0, 32], sizes = [2, 32], strides = [1, 1]} : vector<2x128xf32> to vector<2x32xf32>
    %627 = arith.negf %626 : vector<2x32xf32>
    %628 = math.exp %627 : vector<2x32xf32>
    %cst_236 = arith.constant 1.000000e+00 : f32
    %629 = vector.broadcast %cst_236 : f32 to vector<2x32xf32>
    %630 = arith.addf %629, %628 : vector<2x32xf32>
    %631 = arith.divf %629, %630 : vector<2x32xf32>
    %632 = vector.extract_strided_slice %619 {offsets = [0, 64], sizes = [2, 32], strides = [1, 1]} : vector<2x128xf32> to vector<2x32xf32>
    %633 = math.tanh %632 : vector<2x32xf32>
    %634 = vector.extract_strided_slice %619 {offsets = [0, 96], sizes = [2, 32], strides = [1, 1]} : vector<2x128xf32> to vector<2x32xf32>
    %635 = arith.negf %634 : vector<2x32xf32>
    %636 = math.exp %635 : vector<2x32xf32>
    %cst_237 = arith.constant 1.000000e+00 : f32
    %637 = vector.broadcast %cst_237 : f32 to vector<2x32xf32>
    %638 = arith.addf %637, %636 : vector<2x32xf32>
    %639 = arith.divf %637, %638 : vector<2x32xf32>
    %640 = arith.mulf %631, %608 : vector<2x32xf32>
    %641 = arith.mulf %625, %633 : vector<2x32xf32>
    %642 = arith.addf %640, %641 : vector<2x32xf32>
    %643 = math.tanh %642 : vector<2x32xf32>
    %644 = arith.mulf %639, %643 : vector<2x32xf32>
    %645 = vector.extract_strided_slice %574 {offsets = [0, 2, 0], sizes = [2, 1, 32], strides = [1, 1, 1]} : vector<2x4x32xf32> to vector<2x1x32xf32>
    %646 = vector.shape_cast %645 : vector<2x1x32xf32> to vector<2x32xf32>
    %cst_238 = arith.constant dense<0.000000e+00> : vector<2x128xf32>
    %647 = tpu.matmul %646, %356, %cst_238 {dimension_numbers = #tpu.dot_dimension_numbers<[1], [0], [0], [1], [0, 0, 1, 1], [], []>} : vector<2x32xf32>, vector<32x128xf32>, vector<2x128xf32> -> vector<2x128xf32>
    %648 = vector.broadcast %358 : vector<1x128xf32> to vector<2x128xf32>
    %649 = arith.addf %647, %648 : vector<2x128xf32>
    %cst_239 = arith.constant dense<0.000000e+00> : vector<2x128xf32>
    %650 = tpu.matmul %644, %357, %cst_239 {dimension_numbers = #tpu.dot_dimension_numbers<[1], [0], [0], [1], [0, 0, 1, 1], [], []>} : vector<2x32xf32>, vector<32x128xf32>, vector<2x128xf32> -> vector<2x128xf32>
    %651 = arith.addf %649, %650 : vector<2x128xf32>
    %652 = vector.broadcast %359 : vector<1x128xf32> to vector<2x128xf32>
    %653 = arith.addf %651, %652 : vector<2x128xf32>
    %654 = vector.extract_strided_slice %653 {offsets = [0, 0], sizes = [2, 32], strides = [1, 1]} : vector<2x128xf32> to vector<2x32xf32>
    %655 = arith.negf %654 : vector<2x32xf32>
    %656 = math.exp %655 : vector<2x32xf32>
    %cst_240 = arith.constant 1.000000e+00 : f32
    %657 = vector.broadcast %cst_240 : f32 to vector<2x32xf32>
    %658 = arith.addf %657, %656 : vector<2x32xf32>
    %659 = arith.divf %657, %658 : vector<2x32xf32>
    %660 = vector.extract_strided_slice %653 {offsets = [0, 32], sizes = [2, 32], strides = [1, 1]} : vector<2x128xf32> to vector<2x32xf32>
    %661 = arith.negf %660 : vector<2x32xf32>
    %662 = math.exp %661 : vector<2x32xf32>
    %cst_241 = arith.constant 1.000000e+00 : f32
    %663 = vector.broadcast %cst_241 : f32 to vector<2x32xf32>
    %664 = arith.addf %663, %662 : vector<2x32xf32>
    %665 = arith.divf %663, %664 : vector<2x32xf32>
    %666 = vector.extract_strided_slice %653 {offsets = [0, 64], sizes = [2, 32], strides = [1, 1]} : vector<2x128xf32> to vector<2x32xf32>
    %667 = math.tanh %666 : vector<2x32xf32>
    %668 = vector.extract_strided_slice %653 {offsets = [0, 96], sizes = [2, 32], strides = [1, 1]} : vector<2x128xf32> to vector<2x32xf32>
    %669 = arith.negf %668 : vector<2x32xf32>
    %670 = math.exp %669 : vector<2x32xf32>
    %cst_242 = arith.constant 1.000000e+00 : f32
    %671 = vector.broadcast %cst_242 : f32 to vector<2x32xf32>
    %672 = arith.addf %671, %670 : vector<2x32xf32>
    %673 = arith.divf %671, %672 : vector<2x32xf32>
    %674 = arith.mulf %665, %642 : vector<2x32xf32>
    %675 = arith.mulf %659, %667 : vector<2x32xf32>
    %676 = arith.addf %674, %675 : vector<2x32xf32>
    %677 = math.tanh %676 : vector<2x32xf32>
    %678 = arith.mulf %673, %677 : vector<2x32xf32>
    %679 = vector.extract_strided_slice %574 {offsets = [0, 3, 0], sizes = [2, 1, 32], strides = [1, 1, 1]} : vector<2x4x32xf32> to vector<2x1x32xf32>
    %680 = vector.shape_cast %679 : vector<2x1x32xf32> to vector<2x32xf32>
    %cst_243 = arith.constant dense<0.000000e+00> : vector<2x128xf32>
    %681 = tpu.matmul %680, %356, %cst_243 {dimension_numbers = #tpu.dot_dimension_numbers<[1], [0], [0], [1], [0, 0, 1, 1], [], []>} : vector<2x32xf32>, vector<32x128xf32>, vector<2x128xf32> -> vector<2x128xf32>
    %682 = vector.broadcast %358 : vector<1x128xf32> to vector<2x128xf32>
    %683 = arith.addf %681, %682 : vector<2x128xf32>
    %cst_244 = arith.constant dense<0.000000e+00> : vector<2x128xf32>
    %684 = tpu.matmul %678, %357, %cst_244 {dimension_numbers = #tpu.dot_dimension_numbers<[1], [0], [0], [1], [0, 0, 1, 1], [], []>} : vector<2x32xf32>, vector<32x128xf32>, vector<2x128xf32> -> vector<2x128xf32>
    %685 = arith.addf %683, %684 : vector<2x128xf32>
    %686 = vector.broadcast %359 : vector<1x128xf32> to vector<2x128xf32>
    %687 = arith.addf %685, %686 : vector<2x128xf32>
    %688 = vector.extract_strided_slice %687 {offsets = [0, 0], sizes = [2, 32], strides = [1, 1]} : vector<2x128xf32> to vector<2x32xf32>
    %689 = arith.negf %688 : vector<2x32xf32>
    %690 = math.exp %689 : vector<2x32xf32>
    %cst_245 = arith.constant 1.000000e+00 : f32
    %691 = vector.broadcast %cst_245 : f32 to vector<2x32xf32>
    %692 = arith.addf %691, %690 : vector<2x32xf32>
    %693 = arith.divf %691, %692 : vector<2x32xf32>
    %694 = vector.extract_strided_slice %687 {offsets = [0, 32], sizes = [2, 32], strides = [1, 1]} : vector<2x128xf32> to vector<2x32xf32>
    %695 = arith.negf %694 : vector<2x32xf32>
    %696 = math.exp %695 : vector<2x32xf32>
    %cst_246 = arith.constant 1.000000e+00 : f32
    %697 = vector.broadcast %cst_246 : f32 to vector<2x32xf32>
    %698 = arith.addf %697, %696 : vector<2x32xf32>
    %699 = arith.divf %697, %698 : vector<2x32xf32>
    %700 = vector.extract_strided_slice %687 {offsets = [0, 64], sizes = [2, 32], strides = [1, 1]} : vector<2x128xf32> to vector<2x32xf32>
    %701 = math.tanh %700 : vector<2x32xf32>
    %702 = vector.extract_strided_slice %687 {offsets = [0, 96], sizes = [2, 32], strides = [1, 1]} : vector<2x128xf32> to vector<2x32xf32>
    %703 = arith.negf %702 : vector<2x32xf32>
    %704 = math.exp %703 : vector<2x32xf32>
    %cst_247 = arith.constant 1.000000e+00 : f32
    %705 = vector.broadcast %cst_247 : f32 to vector<2x32xf32>
    %706 = arith.addf %705, %704 : vector<2x32xf32>
    %707 = arith.divf %705, %706 : vector<2x32xf32>
    %708 = arith.mulf %699, %676 : vector<2x32xf32>
    %709 = arith.mulf %693, %701 : vector<2x32xf32>
    %710 = arith.addf %708, %709 : vector<2x32xf32>
    %711 = math.tanh %710 : vector<2x32xf32>
    %712 = arith.mulf %707, %711 : vector<2x32xf32>
    %713 = vector.broadcast %360 : vector<1x32xf32> to vector<2x32xf32>
    %714 = arith.mulf %610, %713 : vector<2x32xf32>
    %cst_248 = arith.constant dense<0.000000e+00> : vector<2xf32>
    %715 = vector.multi_reduction <add>, %714, %cst_248 [1] : vector<2x32xf32> to vector<2xf32>
    %716 = vector.shape_cast %715 : vector<2xf32> to vector<2x1xf32>
    %717 = vector.broadcast %361 : vector<1x1xf32> to vector<2x1xf32>
    %718 = arith.addf %716, %717 : vector<2x1xf32>
    %719 = vector.broadcast %360 : vector<1x32xf32> to vector<2x32xf32>
    %720 = arith.mulf %644, %719 : vector<2x32xf32>
    %cst_249 = arith.constant dense<0.000000e+00> : vector<2xf32>
    %721 = vector.multi_reduction <add>, %720, %cst_249 [1] : vector<2x32xf32> to vector<2xf32>
    %722 = vector.shape_cast %721 : vector<2xf32> to vector<2x1xf32>
    %723 = vector.broadcast %361 : vector<1x1xf32> to vector<2x1xf32>
    %724 = arith.addf %722, %723 : vector<2x1xf32>
    %725 = vector.broadcast %360 : vector<1x32xf32> to vector<2x32xf32>
    %726 = arith.mulf %678, %725 : vector<2x32xf32>
    %cst_250 = arith.constant dense<0.000000e+00> : vector<2xf32>
    %727 = vector.multi_reduction <add>, %726, %cst_250 [1] : vector<2x32xf32> to vector<2xf32>
    %728 = vector.shape_cast %727 : vector<2xf32> to vector<2x1xf32>
    %729 = vector.broadcast %361 : vector<1x1xf32> to vector<2x1xf32>
    %730 = arith.addf %728, %729 : vector<2x1xf32>
    %731 = vector.broadcast %360 : vector<1x32xf32> to vector<2x32xf32>
    %732 = arith.mulf %712, %731 : vector<2x32xf32>
    %cst_251 = arith.constant dense<0.000000e+00> : vector<2xf32>
    %733 = vector.multi_reduction <add>, %732, %cst_251 [1] : vector<2x32xf32> to vector<2xf32>
    %734 = vector.shape_cast %733 : vector<2xf32> to vector<2x1xf32>
    %735 = vector.broadcast %361 : vector<1x1xf32> to vector<2x1xf32>
    %736 = arith.addf %734, %735 : vector<2x1xf32>
    %737 = tpu.concatenate %718, %724, %730, %736 in 1 : vector<2x1xf32>, vector<2x1xf32>, vector<2x1xf32>, vector<2x1xf32> -> vector<2x4xf32>
    %738 = tpu.iota {dimensions = array<i32: 1>} : vector<2x4xi32>
    %739 = vector.broadcast %567 : vector<2x1xi32> to vector<2x4xi32>
    %740 = arith.cmpi slt, %738, %739 : vector<2x4xi32>
    %cst_252 = arith.constant 9.99999971E-10 : f32
    %741 = vector.broadcast %cst_252 : f32 to vector<2x4xf32>
    %742 = arith.select %740, %737, %741 : vector<2x4xi1>, vector<2x4xf32>
    %cst_253 = arith.constant dense<0xFF800000> : vector<2xf32>
    %743 = vector.multi_reduction <maximumf>, %742, %cst_253 [1] : vector<2x4xf32> to vector<2xf32>
    %744 = vector.shape_cast %743 : vector<2xf32> to vector<2x1xf32>
    %745 = vector.broadcast %744 : vector<2x1xf32> to vector<2x4xf32>
    %746 = arith.subf %742, %745 : vector<2x4xf32>
    %747 = math.exp %746 : vector<2x4xf32>
    %cst_254 = arith.constant dense<0.000000e+00> : vector<2xf32>
    %748 = vector.multi_reduction <add>, %747, %cst_254 [1] : vector<2x4xf32> to vector<2xf32>
    %749 = vector.shape_cast %748 : vector<2xf32> to vector<2x1xf32>
    %750 = tpu.reciprocal %749 {approx = true} : vector<2x1xf32> -> vector<2x1xf32>
    %751 = vector.broadcast %750 : vector<2x1xf32> to vector<2x4xf32>
    %752 = arith.mulf %747, %751 : vector<2x4xf32>
    %cst_255 = arith.constant 0.000000e+00 : f32
    %753 = vector.broadcast %cst_255 : f32 to vector<2x32xf32>
    %754 = vector.extract_strided_slice %752 {offsets = [0, 0], sizes = [2, 1], strides = [1, 1]} : vector<2x4xf32> to vector<2x1xf32>
    %755 = vector.broadcast %754 : vector<2x1xf32> to vector<2x32xf32>
    %756 = arith.mulf %755, %610 : vector<2x32xf32>
    %757 = arith.addf %753, %756 : vector<2x32xf32>
    %758 = vector.extract_strided_slice %752 {offsets = [0, 1], sizes = [2, 1], strides = [1, 1]} : vector<2x4xf32> to vector<2x1xf32>
    %759 = vector.broadcast %758 : vector<2x1xf32> to vector<2x32xf32>
    %760 = arith.mulf %759, %644 : vector<2x32xf32>
    %761 = arith.addf %757, %760 : vector<2x32xf32>
    %762 = vector.extract_strided_slice %752 {offsets = [0, 2], sizes = [2, 1], strides = [1, 1]} : vector<2x4xf32> to vector<2x1xf32>
    %763 = vector.broadcast %762 : vector<2x1xf32> to vector<2x32xf32>
    %764 = arith.mulf %763, %678 : vector<2x32xf32>
    %765 = arith.addf %761, %764 : vector<2x32xf32>
    %766 = vector.extract_strided_slice %752 {offsets = [0, 3], sizes = [2, 1], strides = [1, 1]} : vector<2x4xf32> to vector<2x1xf32>
    %767 = vector.broadcast %766 : vector<2x1xf32> to vector<2x32xf32>
    %768 = arith.mulf %767, %712 : vector<2x32xf32>
    %769 = arith.addf %765, %768 : vector<2x32xf32>
    %770 = tpu.concatenate %353, %355, %565, %769 in 1 : vector<2x32xf32>, vector<2x32xf32>, vector<2x32xf32>, vector<2x32xf32> -> vector<2x128xf32>
    %c0_256 = arith.constant 0 : index
    %c0_257 = arith.constant 0 : index
    %771 = vector.load %arg32[%c0_256, %c0_257] : memref<128x128xf32, #tpu.memory_space<vmem>>, vector<128x128xf32>
    %cst_258 = arith.constant dense<0.000000e+00> : vector<2x128xf32>
    %772 = tpu.matmul %770, %771, %cst_258 {dimension_numbers = #tpu.dot_dimension_numbers<[1], [0], [0], [1], [0, 0, 1, 1], [], []>} : vector<2x128xf32>, vector<128x128xf32>, vector<2x128xf32> -> vector<2x128xf32>
    %c0_259 = arith.constant 0 : index
    %c0_260 = arith.constant 0 : index
    %773 = vector.load %arg33[%c0_259, %c0_260] : memref<1x128xf32, #tpu.memory_space<vmem>>, vector<1x128xf32>
    %774 = vector.broadcast %773 : vector<1x128xf32> to vector<2x128xf32>
    %775 = arith.addf %772, %774 : vector<2x128xf32>
    %c0_261 = arith.constant 0 : index
    %c0_262 = arith.constant 0 : index
    %776 = vector.load %arg34[%c0_261, %c0_262] : memref<2x128xf32, #tpu.memory_space<vmem>>, vector<2x128xf32>
    tpu.vector_store %arg34[%c0_261, %c0_262], %775 {strides = array<i32>} : memref<2x128xf32, #tpu.memory_space<vmem>>, vector<2x128xf32>,
    return
  }
}

</mosaic_0001>

<llo_original>
// kernel: tpu_custom_call.1
$region0: #{tpu_custom_call.1}
  #allocation0 [shape = 'u32[]', space=smem, size = 0x4, offset = 0x4, fixed_abs, tag = 'smem constant byte address 0x4 - core index']
  #allocation1 [shape = 'u32[144,128]{1,0:T(1,128)}', space=vmem, size = 0x12000, scoped, tag = 'internal scratch']
  #allocation2 [shape = 'f32[1,1]{1,0:T(1,128)S(1)}', space=vmem, size = 0x200, scoped, tag = 'scoped memory for tpu_custom_call.1']
  %s0 = inlined_call_operand.smem [shape: u32[35], index: -1, kind: input, shape index: {}]
  %s1 = sld [smem:[%s0]]
  %s2 = scalar_lea.smem %s0, 1
  %s3 = sld [smem:[%s2]]
  %s4 = scalar_lea.smem %s0, 2
  %s5 = sld [smem:[%s4]]
  %s6 = scalar_lea.smem %s0, 3
  %s7 = sld [smem:[%s6]]
  %s8 = scalar_lea.smem %s0, 4
  %s9 = sld [smem:[%s8]]
  %s10 = scalar_lea.smem %s0, 5
  %s11 = sld [smem:[%s10]]
  %s12 = scalar_lea.smem %s0, 6
  %s13 = sld [smem:[%s12]]
  %s14 = scalar_lea.smem %s0, 7
  %s15 = sld [smem:[%s14]]
  %s16 = scalar_lea.smem %s0, 8
  %s17 = sld [smem:[%s16]]
  %s18 = scalar_lea.smem %s0, 9
  %s19 = sld [smem:[%s18]]
  %s20 = scalar_lea.smem %s0, 10
  %s21 = sld [smem:[%s20]]
  %s22 = scalar_lea.smem %s0, 11
  %s23 = sld [smem:[%s22]]
  %s24 = scalar_lea.smem %s0, 12
  %s25 = sld [smem:[%s24]]
  %s26 = scalar_lea.smem %s0, 13
  %s27 = sld [smem:[%s26]]
  %s28 = scalar_lea.smem %s0, 14
  %s29 = sld [smem:[%s28]]
  %s30 = scalar_lea.smem %s0, 15
  %s31 = sld [smem:[%s30]]
  %s32 = scalar_lea.smem %s0, 16
  %s33 = sld [smem:[%s32]]
  %s34 = scalar_lea.smem %s0, 17
  %s35 = sld [smem:[%s34]]
  %s36 = scalar_lea.smem %s0, 18
  %s37 = sld [smem:[%s36]]
  %s38 = scalar_lea.smem %s0, 19
  %s39 = sld [smem:[%s38]]
  %s40 = scalar_lea.smem %s0, 20
  %s41 = sld [smem:[%s40]]
  %s42 = scalar_lea.smem %s0, 21
  %s43 = sld [smem:[%s42]]
  %s44 = scalar_lea.smem %s0, 22
  %s45 = sld [smem:[%s44]]
  %s46 = scalar_lea.smem %s0, 23
  %s47 = sld [smem:[%s46]]
  %s48 = scalar_lea.smem %s0, 24
  %s49 = sld [smem:[%s48]]
  %s50 = scalar_lea.smem %s0, 25
  %s51 = sld [smem:[%s50]]
  %s52 = scalar_lea.smem %s0, 26
  %s53 = sld [smem:[%s52]]
  %s54 = scalar_lea.smem %s0, 27
  %s55 = sld [smem:[%s54]]
  %s56 = scalar_lea.smem %s0, 28
  %s57 = sld [smem:[%s56]]
  %s58 = scalar_lea.smem %s0, 29
  %s59 = sld [smem:[%s58]]
  %s60 = scalar_lea.smem %s0, 30
  %s61 = sld [smem:[%s60]]
  %s62 = scalar_lea.smem %s0, 31
  %s63 = sld [smem:[%s62]]
  %s64 = scalar_lea.smem %s0, 32
  %s65 = sld [smem:[%s64]]
  %s66 = scalar_lea.smem %s0, 33
  %s67 = sld [smem:[%s66]]
  %s68 = scalar_lea.smem %s0, 34
  %s69 = sld [smem:[%s68]]
  %s70 = sld [smem:[#allocation0]]
  $region182: #{tpu_custom_call.1} parent=0
    _
  %s72 = ssub.s32 1, %s70
  %s73 = scalar_select 0, %s72, %s70
  %v74 = vstv %s63
  %75 = vst [vmem:[#allocation2] sm:$0x1] %v74
  $region1: #{tpu_custom_call.1} parent=0
    #allocation3 [shape = 'u8[8192]{0}', space=vmem, size = 0x2000, scoped, tag = 'input window, operand 0, single buffered']
    #allocation4 [shape = 's32[1]{0}', space=sflag, size = 0x4, scoped, tag = 'scoped memory for tpu_custom_call.1']
    #allocation5 [shape = 's32[1]{0}', space=sflag, size = 0x4, scoped, tag = 'scoped memory for tpu_custom_call.1']
    #allocation6 [shape = 'u8[1024]{0}', space=vmem, size = 0x400, scoped, tag = 'input window, operand 1, single buffered']
    #allocation7 [shape = 's32[1]{0}', space=sflag, size = 0x4, scoped, tag = 'scoped memory for tpu_custom_call.1']
    #allocation8 [shape = 'u8[1024]{0}', space=vmem, size = 0x400, scoped, tag = 'input window, operand 4, single buffered']
    #allocation9 [shape = 'u8[1024]{0}', space=vmem, size = 0x400, scoped, tag = 'input window, operand 5, single buffered']
    #allocation10 [shape = 's32[1]{0}', space=sflag, size = 0x4, scoped, tag = 'scoped memory for tpu_custom_call.1']
    #allocation11 [shape = 'u8[512]{0}', space=vmem, size = 0x400, scoped, tag = 'input window, operand 8, single buffered']
    #allocation12 [shape = 'u8[512]{0}', space=vmem, size = 0x400, scoped, tag = 'input window, operand 9, single buffered']
    #allocation13 [shape = 's32[1]{0}', space=sflag, size = 0x4, scoped, tag = 'scoped memory for tpu_custom_call.1']
    #allocation14 [shape = 'u8[32768]{0}', space=vmem, size = 0x8000, scoped, tag = 'input window, operand 16, single buffered']
    #allocation15 [shape = 'u8[32768]{0}', space=vmem, size = 0x8000, scoped, tag = 'input window, operand 20, single buffered']
    #allocation16 [shape = 's32[1]{0}', space=sflag, size = 0x4, scoped, tag = 'scoped memory for tpu_custom_call.1']
    #allocation17 [shape = 'u8[16384]{0}', space=vmem, size = 0x4000, scoped, tag = 'input window, operand 27, single buffered']
    #allocation18 [shape = 'u8[1024]{0}', space=vmem, size = 0x400, scoped, tag = 'output window, operand 0, single buffered']
    %76 = vsyncpa [#allocation4], 0
    %77 = vsyncpa [#allocation7], 0
    %78 = vsyncpa [#allocation10], 0
    %79 = vsyncpa [#allocation13], 0
    %80 = vsyncpa [#allocation16], 0
    %81 = vsyncpa [#allocation5], 0
    // Predicated region
    $region2: #{tpu_custom_call.1} parent=1 // pred_check
      _
    $region3: #{tpu_custom_call.1} parent=1 // pred_check_branch
      %83 = sbr.rel (0) target = $region5
    $region4: #{tpu_custom_call.1} parent=1 // pred_region
      %s85 = ssub.s32 256, 256
      %86 = vsyncadd [#allocation4], %s85
      %s87 = sshll.u32 [#allocation3], 4
      %s88 = int_to_ptr.vmem [resolvable:$true] %s87
      %93 = dma.hbm_to_vmem [thread:$0]  %s1, 256, %s88, [#allocation4], 128, 128, 8
    $region5: #{tpu_custom_call.1} parent=1 // pred_fallthru
      _
    // Predicated region
    $region6: #{tpu_custom_call.1} parent=1 // pred_check
      _
    $region7: #{tpu_custom_call.1} parent=1 // pred_check_branch
      %95 = sbr.rel (0) target = $region9
    $region8: #{tpu_custom_call.1} parent=1 // pred_region
      %s97 = ssub.s32 32, 32
      %98 = vsyncadd [#allocation7], %s97
      %s100 = sshll.u32 [#allocation6], 4
      %s101 = int_to_ptr.vmem [resolvable:$true] %s100
      %103 = dma.hbm_to_vmem [thread:$0]  %s3, 32, %s101, [#allocation7]
    $region9: #{tpu_custom_call.1} parent=1 // pred_fallthru
      _
    // Predicated region
    $region10: #{tpu_custom_call.1} parent=1 // pred_check
      _
    $region11: #{tpu_custom_call.1} parent=1 // pred_check_branch
      %105 = sbr.rel (0) target = $region13
    $region12: #{tpu_custom_call.1} parent=1 // pred_region
      _
    $region13: #{tpu_custom_call.1} parent=1 // pred_fallthru
      _
    // Predicated region
    $region14: #{tpu_custom_call.1} parent=1 // pred_check
      _
    $region15: #{tpu_custom_call.1} parent=1 // pred_check_branch
      %107 = sbr.rel (0) target = $region17
    $region16: #{tpu_custom_call.1} parent=1 // pred_region
      _
    $region17: #{tpu_custom_call.1} parent=1 // pred_fallthru
      _
    // Predicated region
    $region18: #{tpu_custom_call.1} parent=1 // pred_check
      _
    $region19: #{tpu_custom_call.1} parent=1 // pred_check_branch
      %109 = sbr.rel (0) target = $region21
    $region20: #{tpu_custom_call.1} parent=1 // pred_region
      %s111 = ssub.s32 32, 32
      %112 = vsyncadd [#allocation7], %s111
      %s114 = sshll.u32 [#allocation8], 4
      %s115 = int_to_ptr.vmem [resolvable:$true] %s114
      %117 = dma.hbm_to_vmem [thread:$0]  %s9, 32, %s115, [#allocation7]
    $region21: #{tpu_custom_call.1} parent=1 // pred_fallthru
      _
    // Predicated region
    $region22: #{tpu_custom_call.1} parent=1 // pred_check
      _
    $region23: #{tpu_custom_call.1} parent=1 // pred_check_branch
      %119 = sbr.rel (0) target = $region25
    $region24: #{tpu_custom_call.1} parent=1 // pred_region
      %s121 = ssub.s32 32, 32
      %122 = vsyncadd [#allocation10], %s121
      %s124 = sshll.u32 [#allocation9], 4
      %s125 = int_to_ptr.vmem [resolvable:$true] %s124
      %127 = dma.hbm_to_vmem [thread:$0]  %s11, 32, %s125, [#allocation10]
    $region25: #{tpu_custom_call.1} parent=1 // pred_fallthru
      _
    // Predicated region
    $region26: #{tpu_custom_call.1} parent=1 // pred_check
      _
    $region27: #{tpu_custom_call.1} parent=1 // pred_check_branch
      %129 = sbr.rel (0) target = $region29
    $region28: #{tpu_custom_call.1} parent=1 // pred_region
      _
    $region29: #{tpu_custom_call.1} parent=1 // pred_fallthru
      _
    // Predicated region
    $region30: #{tpu_custom_call.1} parent=1 // pred_check
      _
    $region31: #{tpu_custom_call.1} parent=1 // pred_check_branch
      %131 = sbr.rel (0) target = $region33
    $region32: #{tpu_custom_call.1} parent=1 // pred_region
      _
    $region33: #{tpu_custom_call.1} parent=1 // pred_fallthru
      _
    // Predicated region
    $region34: #{tpu_custom_call.1} parent=1 // pred_check
      _
    $region35: #{tpu_custom_call.1} parent=1 // pred_check_branch
      %133 = sbr.rel (0) target = $region37
    $region36: #{tpu_custom_call.1} parent=1 // pred_region
      %s135 = ssub.s32 16, 16
      %136 = vsyncadd [#allocation10], %s135
      %s138 = sshll.u32 [#allocation11], 4
      %s139 = int_to_ptr.vmem [resolvable:$true] %s138
      %141 = dma.hbm_to_vmem [thread:$0]  %s17, 16, %s139, [#allocation10]
    $region37: #{tpu_custom_call.1} parent=1 // pred_fallthru
      _
    // Predicated region
    $region38: #{tpu_custom_call.1} parent=1 // pred_check
      _
    $region39: #{tpu_custom_call.1} parent=1 // pred_check_branch
      %143 = sbr.rel (0) target = $region41
    $region40: #{tpu_custom_call.1} parent=1 // pred_region
      %s145 = ssub.s32 16, 16
      %146 = vsyncadd [#allocation13], %s145
      %s148 = sshll.u32 [#allocation12], 4
      %s149 = int_to_ptr.vmem [resolvable:$true] %s148
      %151 = dma.hbm_to_vmem [thread:$0]  %s19, 16, %s149, [#allocation13]
    $region41: #{tpu_custom_call.1} parent=1 // pred_fallthru
      _
    // Predicated region
    $region42: #{tpu_custom_call.1} parent=1 // pred_check
      _
    $region43: #{tpu_custom_call.1} parent=1 // pred_check_branch
      %153 = sbr.rel (0) target = $region45
    $region44: #{tpu_custom_call.1} parent=1 // pred_region
      _
    $region45: #{tpu_custom_call.1} parent=1 // pred_fallthru
      _
    // Predicated region
    $region46: #{tpu_custom_call.1} parent=1 // pred_check
      _
    $region47: #{tpu_custom_call.1} parent=1 // pred_check_branch
      %155 = sbr.rel (0) target = $region49
    $region48: #{tpu_custom_call.1} parent=1 // pred_region
      _
    $region49: #{tpu_custom_call.1} parent=1 // pred_fallthru
      _
    // Predicated region
    $region50: #{tpu_custom_call.1} parent=1 // pred_check
      _
    $region51: #{tpu_custom_call.1} parent=1 // pred_check_branch
      %157 = sbr.rel (0) target = $region53
    $region52: #{tpu_custom_call.1} parent=1 // pred_region
      _
    $region53: #{tpu_custom_call.1} parent=1 // pred_fallthru
      _
    // Predicated region
    $region54: #{tpu_custom_call.1} parent=1 // pred_check
      _
    $region55: #{tpu_custom_call.1} parent=1 // pred_check_branch
      %159 = sbr.rel (0) target = $region57
    $region56: #{tpu_custom_call.1} parent=1 // pred_region
      _
    $region57: #{tpu_custom_call.1} parent=1 // pred_fallthru
      _
    // Predicated region
    $region58: #{tpu_custom_call.1} parent=1 // pred_check
      _
    $region59: #{tpu_custom_call.1} parent=1 // pred_check_branch
      %161 = sbr.rel (0) target = $region61
    $region60: #{tpu_custom_call.1} parent=1 // pred_region
      _
    $region61: #{tpu_custom_call.1} parent=1 // pred_fallthru
      _
    // Predicated region
    $region62: #{tpu_custom_call.1} parent=1 // pred_check
      _
    $region63: #{tpu_custom_call.1} parent=1 // pred_check_branch
      %163 = sbr.rel (0) target = $region65
    $region64: #{tpu_custom_call.1} parent=1 // pred_region
      _
    $region65: #{tpu_custom_call.1} parent=1 // pred_fallthru
      _
    // Predicated region
    $region66: #{tpu_custom_call.1} parent=1 // pred_check
      _
    $region67: #{tpu_custom_call.1} parent=1 // pred_check_branch
      %165 = sbr.rel (0) target = $region69
    $region68: #{tpu_custom_call.1} parent=1 // pred_region
      %s167 = ssub.s32 1024, 1024
      %168 = vsyncadd [#allocation13], %s167
      %s169 = sshll.u32 [#allocation14], 4
      %s170 = int_to_ptr.vmem [resolvable:$true] %s169
      %175 = dma.hbm_to_vmem [thread:$0]  %s33, 1024, %s170, [#allocation13], 128, 128, 8
    $region69: #{tpu_custom_call.1} parent=1 // pred_fallthru
      _
    // Predicated region
    $region70: #{tpu_custom_call.1} parent=1 // pred_check
      _
    $region71: #{tpu_custom_call.1} parent=1 // pred_check_branch
      %177 = sbr.rel (0) target = $region73
    $region72: #{tpu_custom_call.1} parent=1 // pred_region
      _
    $region73: #{tpu_custom_call.1} parent=1 // pred_fallthru
      _
    // Predicated region
    $region74: #{tpu_custom_call.1} parent=1 // pred_check
      _
    $region75: #{tpu_custom_call.1} parent=1 // pred_check_branch
      %179 = sbr.rel (0) target = $region77
    $region76: #{tpu_custom_call.1} parent=1 // pred_region
      _
    $region77: #{tpu_custom_call.1} parent=1 // pred_fallthru
      _
    // Predicated region
    $region78: #{tpu_custom_call.1} parent=1 // pred_check
      _
    $region79: #{tpu_custom_call.1} parent=1 // pred_check_branch
      %181 = sbr.rel (0) target = $region81
    $region80: #{tpu_custom_call.1} parent=1 // pred_region
      _
    $region81: #{tpu_custom_call.1} parent=1 // pred_fallthru
      _
    // Predicated region
    $region82: #{tpu_custom_call.1} parent=1 // pred_check
      _
    $region83: #{tpu_custom_call.1} parent=1 // pred_check_branch
      %183 = sbr.rel (0) target = $region85
    $region84: #{tpu_custom_call.1} parent=1 // pred_region
      %s185 = ssub.s32 1024, 1024
      %186 = vsyncadd [#allocation16], %s185
      %s187 = sshll.u32 [#allocation15], 4
      %s188 = int_to_ptr.vmem [resolvable:$true] %s187
      %193 = dma.hbm_to_vmem [thread:$0]  %s41, 1024, %s188, [#allocation16], 128, 128, 8
    $region85: #{tpu_custom_call.1} parent=1 // pred_fallthru
      _
    // Predicated region
    $region86: #{tpu_custom_call.1} parent=1 // pred_check
      _
    $region87: #{tpu_custom_call.1} parent=1 // pred_check_branch
      %195 = sbr.rel (0) target = $region89
    $region88: #{tpu_custom_call.1} parent=1 // pred_region
      _
    $region89: #{tpu_custom_call.1} parent=1 // pred_fallthru
      _
    // Predicated region
    $region90: #{tpu_custom_call.1} parent=1 // pred_check
      _
    $region91: #{tpu_custom_call.1} parent=1 // pred_check_branch
      %197 = sbr.rel (0) target = $region93
    $region92: #{tpu_custom_call.1} parent=1 // pred_region
      _
    $region93: #{tpu_custom_call.1} parent=1 // pred_fallthru
      _
    // Predicated region
    $region94: #{tpu_custom_call.1} parent=1 // pred_check
      _
    $region95: #{tpu_custom_call.1} parent=1 // pred_check_branch
      %199 = sbr.rel (0) target = $region97
    $region96: #{tpu_custom_call.1} parent=1 // pred_region
      _
    $region97: #{tpu_custom_call.1} parent=1 // pred_fallthru
      _
    // Predicated region
    $region98: #{tpu_custom_call.1} parent=1 // pred_check
      _
    $region99: #{tpu_custom_call.1} parent=1 // pred_check_branch
      %201 = sbr.rel (0) target = $region101
    $region100: #{tpu_custom_call.1} parent=1 // pred_region
      _
    $region101: #{tpu_custom_call.1} parent=1 // pred_fallthru
      _
    // Predicated region
    $region102: #{tpu_custom_call.1} parent=1 // pred_check
      _
    $region103: #{tpu_custom_call.1} parent=1 // pred_check_branch
      %203 = sbr.rel (0) target = $region105
    $region104: #{tpu_custom_call.1} parent=1 // pred_region
      _
    $region105: #{tpu_custom_call.1} parent=1 // pred_fallthru
      _
    // Predicated region
    $region106: #{tpu_custom_call.1} parent=1 // pred_check
      _
    $region107: #{tpu_custom_call.1} parent=1 // pred_check_branch
      %205 = sbr.rel (0) target = $region109
    $region108: #{tpu_custom_call.1} parent=1 // pred_region
      _
    $region109: #{tpu_custom_call.1} parent=1 // pred_fallthru
      _
    // Predicated region
    $region110: #{tpu_custom_call.1} parent=1 // pred_check
      _
    $region111: #{tpu_custom_call.1} parent=1 // pred_check_branch
      %207 = sbr.rel (0) target = $region113
    $region112: #{tpu_custom_call.1} parent=1 // pred_region
      %s209 = ssub.s32 512, 512
      %210 = vsyncadd [#allocation16], %s209
      %s211 = sshll.u32 [#allocation17], 4
      %s212 = int_to_ptr.vmem [resolvable:$true] %s211
      %217 = dma.hbm_to_vmem [thread:$0]  %s55, 512, %s212, [#allocation16], 128, 128, 8
    $region113: #{tpu_custom_call.1} parent=1 // pred_fallthru
      _
    // Predicated region
    $region114: #{tpu_custom_call.1} parent=1 // pred_check
      _
    $region115: #{tpu_custom_call.1} parent=1 // pred_check_branch
      %219 = sbr.rel (0) target = $region117
    $region116: #{tpu_custom_call.1} parent=1 // pred_region
      _
    $region117: #{tpu_custom_call.1} parent=1 // pred_fallthru
      _
    // Predicated region
    $region118: #{tpu_custom_call.1} parent=1 // pred_check
      _
    $region119: #{tpu_custom_call.1} parent=1 // pred_check_branch
      %221 = sbr.rel (0) target = $region121
    $region120: #{tpu_custom_call.1} parent=1 // pred_region
      _
    $region121: #{tpu_custom_call.1} parent=1 // pred_fallthru
      _
    // Predicated region
    $region122: #{tpu_custom_call.1} parent=1 // pred_check
      _
    $region123: #{tpu_custom_call.1} parent=1 // pred_check_branch
      %223 = sbr.rel (0) target = $region125
    $region124: #{tpu_custom_call.1} parent=1 // pred_region
      _
    $region125: #{tpu_custom_call.1} parent=1 // pred_fallthru
      _
    // Predicated region
    $region126: #{tpu_custom_call.1} parent=1 // pred_check
      _
    $region127: #{tpu_custom_call.1} parent=1 // pred_check_branch
      %225 = sbr.rel (0) target = $region129
    $region128: #{tpu_custom_call.1} parent=1 // pred_region
      _
    $region129: #{tpu_custom_call.1} parent=1 // pred_fallthru
      _
    // Predicated region
    $region130: #{tpu_custom_call.1} parent=1 // pred_check
      _
    $region131: #{tpu_custom_call.1} parent=1 // pred_check_branch
      %227 = sbr.rel (0) target = $region133
    $region132: #{tpu_custom_call.1} parent=1 // pred_region
      _
    $region133: #{tpu_custom_call.1} parent=1 // pred_fallthru
      _
    // Predicated region
    $region134: #{tpu_custom_call.1} parent=1 // pred_check
      _
    $region135: #{tpu_custom_call.1} parent=1 // pred_check_branch
      %229 = sbr.rel (0) target = $region137
    $region136: #{tpu_custom_call.1} parent=1 // pred_region
      _
    $region137: #{tpu_custom_call.1} parent=1 // pred_fallthru
      _
    // Predicated region
    $region138: #{tpu_custom_call.1} parent=1 // pred_check
      _
    $region139: #{tpu_custom_call.1} parent=1 // pred_check_branch
      %231 = sbr.rel (0) target = $region141
    $region140: #{tpu_custom_call.1} parent=1 // pred_region
      %232 = dma.done [#allocation4], 256
    $region141: #{tpu_custom_call.1} parent=1 // pred_fallthru
      _
    // Predicated region
    $region142: #{tpu_custom_call.1} parent=1 // pred_check
      _
    $region143: #{tpu_custom_call.1} parent=1 // pred_check_branch
      %234 = sbr.rel (0) target = $region145
    $region144: #{tpu_custom_call.1} parent=1 // pred_region
      %235 = dma.done [#allocation7], 32
    $region145: #{tpu_custom_call.1} parent=1 // pred_fallthru
      _
    // Predicated region
    $region146: #{tpu_custom_call.1} parent=1 // pred_check
      _
    $region147: #{tpu_custom_call.1} parent=1 // pred_check_branch
      %237 = sbr.rel (0) target = $region149
    $region148: #{tpu_custom_call.1} parent=1 // pred_region
      %238 = dma.done [#allocation7], 32
    $region149: #{tpu_custom_call.1} parent=1 // pred_fallthru
      _
    // Predicated region
    $region150: #{tpu_custom_call.1} parent=1 // pred_check
      _
    $region151: #{tpu_custom_call.1} parent=1 // pred_check_branch
      %240 = sbr.rel (0) target = $region153
    $region152: #{tpu_custom_call.1} parent=1 // pred_region
      %241 = dma.done [#allocation10], 32
    $region153: #{tpu_custom_call.1} parent=1 // pred_fallthru
      _
    // Predicated region
    $region154: #{tpu_custom_call.1} parent=1 // pred_check
      _
    $region155: #{tpu_custom_call.1} parent=1 // pred_check_branch
      %243 = sbr.rel (0) target = $region157
    $region156: #{tpu_custom_call.1} parent=1 // pred_region
      %244 = dma.done [#allocation10], 16
    $region157: #{tpu_custom_call.1} parent=1 // pred_fallthru
      _
    // Predicated region
    $region158: #{tpu_custom_call.1} parent=1 // pred_check
      _
    $region159: #{tpu_custom_call.1} parent=1 // pred_check_branch
      %246 = sbr.rel (0) target = $region161
    $region160: #{tpu_custom_call.1} parent=1 // pred_region
      %247 = dma.done [#allocation13], 16
    $region161: #{tpu_custom_call.1} parent=1 // pred_fallthru
      _
    // Predicated region
    $region162: #{tpu_custom_call.1} parent=1 // pred_check
      _
    $region163: #{tpu_custom_call.1} parent=1 // pred_check_branch
      %249 = sbr.rel (0) target = $region165
    $region164: #{tpu_custom_call.1} parent=1 // pred_region
      %250 = dma.done [#allocation13], 1024
    $region165: #{tpu_custom_call.1} parent=1 // pred_fallthru
      _
    // Predicated region
    $region166: #{tpu_custom_call.1} parent=1 // pred_check
      _
    $region167: #{tpu_custom_call.1} parent=1 // pred_check_branch
      %252 = sbr.rel (0) target = $region169
    $region168: #{tpu_custom_call.1} parent=1 // pred_region
      %253 = dma.done [#allocation16], 1024
    $region169: #{tpu_custom_call.1} parent=1 // pred_fallthru
      _
    // Predicated region
    $region170: #{tpu_custom_call.1} parent=1 // pred_check
      _
    $region171: #{tpu_custom_call.1} parent=1 // pred_check_branch
      %255 = sbr.rel (0) target = $region173
    $region172: #{tpu_custom_call.1} parent=1 // pred_region
      %256 = dma.done [#allocation16], 512
    $region173: #{tpu_custom_call.1} parent=1 // pred_fallthru
      _
    %v257 = vld [vmem:[#allocation3] sm:$0xff]
    %v258 = vld [vmem:[#allocation3 + $0x8] sm:$0xff]
    %v259 = vld [vmem:[#allocation11] sm:$0x1]
    %v260 = vld [vmem:[#allocation12] sm:$0x1]
    %vm261 = vcmask 261120
    %v262 = vsel %vm261, %v257, 0.0
    %263 = vadd.xlane.f32.xlu0 %v262
    %v264 = vpop.xlane.xlu0 %263
    %v265 = vsel %vm261, %v258, 0.0
    %266 = vadd.xlane.f32.xlu0 %v265
    %v267 = vpop.xlane.xlu0 %266
    %v268 = vrcp.pop 32.0
    %v269 = vmul.f32 %v264, %v268
    %v270 = vmul.f32 %v267, %v268
    %v271 = vsub.f32 %v257, %v269
    %v272 = vsub.f32 %v258, %v270
    %v273 = vmul.f32 %v271, %v271
    %v274 = vmul.f32 %v272, %v272
    %v275 = vsel %vm261, %v273, 0.0
    %276 = vadd.xlane.f32.xlu0 %v275
    %v277 = vpop.xlane.xlu0 %276
    %v278 = vsel %vm261, %v274, 0.0
    %279 = vadd.xlane.f32.xlu0 %v278
    %v280 = vpop.xlane.xlu0 %279
    %v281 = vmul.f32 %v277, %v268
    %v282 = vmul.f32 %v280, %v268
    %v283 = vadd.f32 %v281, 1e-12
    %v284 = vadd.f32 %v282, 1e-12
    %v285 = vrsqrt.pop %v283
    %v286 = vrsqrt.pop %v284
    %v287 = vmul.f32 %v271, %v285
    %v288 = vmul.f32 %v272, %v286
    %v290 = vlaneseq
    %v291 = vshrl.u32 %v290, 7
    %v292 = vsub.s32 0, %v291
    %v293 = vrot.slane %v259, %v292
    %v295 = vmul.f32 %v287, %v293
    %v296 = vmul.f32 %v288, %v293
    %v298 = vlaneseq
    %v299 = vshrl.u32 %v298, 7
    %v300 = vsub.s32 0, %v299
    %v301 = vrot.slane %v260, %v300
    %v303 = vadd.f32 %v295, %v301
    %v304 = vadd.f32 %v296, %v301
    %v305 = vld [vmem:[#allocation6] sm:$0x3]
    %v306 = vsub.f32 1.0, %v305
    %v307 = vmul.f32 %v306, -1e+09
    %v310 = vunpack.c.l.s4 1966171168
    %v311 = vunpack.c.0.s8 %v310
    %v312 = vlaneseq
    %v313 = vshrl.u32 %v312, 7
    %v314 = vsub.s32 %v311, %v313
    %v315 = vrot.slane %v307, %v314
    %v316 = vcombine.high %v315, %v315
    %v318 = vunpack.c.l.s4 1966171168
    %v319 = vunpack.c.0.s8 %v318
    %v320 = vlaneseq
    %v321 = vshrl.u32 %v320, 7
    %v322 = vsub.s32 %v319, %v321
    %v323 = vrot.slane %v315, %v322
    %v325 = vunpack.c.l.s4 1966171168
    %v326 = vunpack.c.0.s8 %v325
    %v327 = vlaneseq
    %v328 = vshrl.u32 %v327, 7
    %v329 = vsub.s32 %v326, %v328
    %v330 = vrot.slane %v316, %v329
    %v331 = vld [vmem:[%s21] sm:$0xff]
    %v332 = vld [vmem:[%s21 + $0x8] sm:$0xff]
    %v333 = vld [vmem:[%s21 + $0x10] sm:$0xff]
    %v334 = vld [vmem:[%s21 + $0x18] sm:$0xff]
    %v335 = vld [vmem:[%s23] sm:$0x1]
    %v337 = vlaneseq
    %v338 = vshrl.u32 %v337, 7
    %v339 = vsub.s32 0, %v338
    %v340 = vrot.slane %v335, %v339
    %v343 = vsel %vm261, %v303, 0
    %v346 = vsel %vm261, %v304, 0
    %348 = vmatprep.subr.mxu0 0.0
    %349 = vmatpush1.msra.mxu0 0.0
    %350 = vmatprep.subr.mxu0 0.0
    %351 = vmatpush1.msra.mxu0 0.0
    %352 = vmatprep.subr.mxu0 0.0
    %353 = vmatpush1.msra.mxu0 0.0
    %354 = vmatprep.subr.mxu0 0.0
    %355 = vmatpush1.msra.mxu0 0.0
    %356 = vmatprep.subr.mxu0 0.0
    %357 = vmatpush1.msra.mxu0 0.0
    %358 = vmatprep.subr.mxu0 0.0
    %359 = vmatpush1.msra.mxu0 0.0
    %360 = vmatprep.subr.mxu0 0.0
    %361 = vmatpush1.msra.mxu0 0.0
    %362 = vmatprep.subr.mxu0 0.0
    %363 = vmatpush1.msra.mxu0 0.0
    %364 = vmatprep.subr.mxu0 0.0
    %365 = vmatpush1.msra.mxu0 0.0
    %366 = vmatprep.subr.mxu0 0.0
    %367 = vmatpush1.msra.mxu0 0.0
    %368 = vmatprep.subr.mxu0 0.0
    %369 = vmatpush1.msra.mxu0 0.0
    %370 = vmatprep.subr.mxu0 0.0
    %371 = vmatpush1.msra.mxu0 0.0
    %372 = vmatprep.subr.mxu0 0.0
    %373 = vmatpush1.msra.mxu0 %v334
    %374 = vmatprep.subr.mxu0 0.0
    %375 = vmatpush1.msra.mxu0 %v333
    %376 = vmatprep.subr.mxu0 0.0
    %377 = vmatpush1.msra.mxu0 %v332
    %378 = vmatprep.subr.mxu0 0.0
    %379 = vmatpush1.msra.mxu0 %v331
    %380 = vmatprep.subr.mxu0 0.0
    %381 = vmatpush2.msra.mxu0 0.0
    %382 = vmatprep.subr.mxu0 0.0
    %383 = vmatpush2.msra.mxu0 0.0
    %384 = vmatprep.subr.mxu0 0.0
    %385 = vmatpush2.msra.mxu0 0.0
    %386 = vmatprep.subr.mxu0 0.0
    %387 = vmatpush2.msra.mxu0 0.0
    %388 = vmatprep.subr.mxu0 0.0
    %389 = vmatpush2.msra.mxu0 0.0
    %390 = vmatprep.subr.mxu0 0.0
    %391 = vmatpush2.msra.mxu0 0.0
    %392 = vmatprep.subr.mxu0 0.0
    %393 = vmatpush2.msra.mxu0 0.0
    %394 = vmatprep.subr.mxu0 0.0
    %395 = vmatpush2.msra.mxu0 0.0
    %396 = vmatprep.subr.mxu0 0.0
    %397 = vmatpush2.msra.mxu0 0.0
    %398 = vmatprep.subr.mxu0 0.0
    %399 = vmatpush2.msra.mxu0 0.0
    %400 = vmatprep.subr.mxu0 0.0
    %401 = vmatpush2.msra.mxu0 0.0
    %402 = vmatprep.subr.mxu0 0.0
    %403 = vmatpush2.msra.mxu0 0.0
    %404 = vmatprep.subr.mxu0 0.0
    %405 = vmatpush2.msra.mxu0 0.0
    %406 = vmatprep.subr.mxu0 0.0
    %407 = vmatpush2.msra.mxu0 0.0
    %408 = vmatprep.subr.mxu0 0.0
    %409 = vmatpush2.msra.mxu0 0.0
    %410 = vmatprep.subr.mxu0 0.0
    %411 = vmatpush2.msra.mxu0 0.0
    %412 = vmatprep.mubr.f32.mxu0 0.0
    %413 = vmatmul.mubr.f32.gmra.mxu0 %v343
    %v414 = vpop.f32.mrf.mxu0
    %v415 = vadd.f32 %v340, %v414
    %v416 = vpop.f32.mrf.mxu0
    %417 = vmatprep.mubr.f32.mxu0 0.0
    %418 = vmatmul.mubr.f32.gmra.mxu0 %v346
    %v419 = vpop.f32.mrf.mxu0
    %v420 = vadd.f32 %v340, %v419
    %v421 = vpop.f32.mrf.mxu0
    %422 = vdwg.mxu0
    %v423 = vld [vmem:[%s25] sm:$0xff]
    %v424 = vld [vmem:[%s25 + $0x8] sm:$0xff]
    %v425 = vld [vmem:[%s25 + $0x10] sm:$0xff]
    %v426 = vld [vmem:[%s25 + $0x18] sm:$0xff]
    %v427 = vld [vmem:[%s27] sm:$0x1]
    %v429 = vlaneseq
    %v430 = vshrl.u32 %v429, 7
    %v431 = vsub.s32 0, %v430
    %v432 = vrot.slane %v427, %v431
    %434 = vmatprep.subr.mxu0 0.0
    %435 = vmatpush1.msra.mxu0 0.0
    %436 = vmatprep.subr.mxu0 0.0
    %437 = vmatpush1.msra.mxu0 0.0
    %438 = vmatprep.subr.mxu0 0.0
    %439 = vmatpush1.msra.mxu0 0.0
    %440 = vmatprep.subr.mxu0 0.0
    %441 = vmatpush1.msra.mxu0 0.0
    %442 = vmatprep.subr.mxu0 0.0
    %443 = vmatpush1.msra.mxu0 0.0
    %444 = vmatprep.subr.mxu0 0.0
    %445 = vmatpush1.msra.mxu0 0.0
    %446 = vmatprep.subr.mxu0 0.0
    %447 = vmatpush1.msra.mxu0 0.0
    %448 = vmatprep.subr.mxu0 0.0
    %449 = vmatpush1.msra.mxu0 0.0
    %450 = vmatprep.subr.mxu0 0.0
    %451 = vmatpush1.msra.mxu0 0.0
    %452 = vmatprep.subr.mxu0 0.0
    %453 = vmatpush1.msra.mxu0 0.0
    %454 = vmatprep.subr.mxu0 0.0
    %455 = vmatpush1.msra.mxu0 0.0
    %456 = vmatprep.subr.mxu0 0.0
    %457 = vmatpush1.msra.mxu0 0.0
    %458 = vmatprep.subr.mxu0 0.0
    %459 = vmatpush1.msra.mxu0 %v426
    %460 = vmatprep.subr.mxu0 0.0
    %461 = vmatpush1.msra.mxu0 %v425
    %462 = vmatprep.subr.mxu0 0.0
    %463 = vmatpush1.msra.mxu0 %v424
    %464 = vmatprep.subr.mxu0 0.0
    %465 = vmatpush1.msra.mxu0 %v423
    %466 = vmatprep.subr.mxu0 0.0
    %467 = vmatpush2.msra.mxu0 0.0
    %468 = vmatprep.subr.mxu0 0.0
    %469 = vmatpush2.msra.mxu0 0.0
    %470 = vmatprep.subr.mxu0 0.0
    %471 = vmatpush2.msra.mxu0 0.0
    %472 = vmatprep.subr.mxu0 0.0
    %473 = vmatpush2.msra.mxu0 0.0
    %474 = vmatprep.subr.mxu0 0.0
    %475 = vmatpush2.msra.mxu0 0.0
    %476 = vmatprep.subr.mxu0 0.0
    %477 = vmatpush2.msra.mxu0 0.0
    %478 = vmatprep.subr.mxu0 0.0
    %479 = vmatpush2.msra.mxu0 0.0
    %480 = vmatprep.subr.mxu0 0.0
    %481 = vmatpush2.msra.mxu0 0.0
    %482 = vmatprep.subr.mxu0 0.0
    %483 = vmatpush2.msra.mxu0 0.0
    %484 = vmatprep.subr.mxu0 0.0
    %485 = vmatpush2.msra.mxu0 0.0
    %486 = vmatprep.subr.mxu0 0.0
    %487 = vmatpush2.msra.mxu0 0.0
    %488 = vmatprep.subr.mxu0 0.0
    %489 = vmatpush2.msra.mxu0 0.0
    %490 = vmatprep.subr.mxu0 0.0
    %491 = vmatpush2.msra.mxu0 0.0
    %492 = vmatprep.subr.mxu0 0.0
    %493 = vmatpush2.msra.mxu0 0.0
    %494 = vmatprep.subr.mxu0 0.0
    %495 = vmatpush2.msra.mxu0 0.0
    %496 = vmatprep.subr.mxu0 0.0
    %497 = vmatpush2.msra.mxu0 0.0
    %498 = vmatprep.mubr.f32.mxu0 0.0
    %499 = vmatmul.mubr.f32.gmra.mxu0 %v343
    %v500 = vpop.f32.mrf.mxu0
    %v501 = vadd.f32 %v432, %v500
    %v502 = vpop.f32.mrf.mxu0
    %503 = vmatprep.mubr.f32.mxu0 0.0
    %504 = vmatmul.mubr.f32.gmra.mxu0 %v346
    %v505 = vpop.f32.mrf.mxu0
    %v506 = vadd.f32 %v432, %v505
    %v507 = vpop.f32.mrf.mxu0
    %508 = vdwg.mxu0
    %v509 = vld [vmem:[%s29] sm:$0xff]
    %v510 = vld [vmem:[%s29 + $0x8] sm:$0xff]
    %v511 = vld [vmem:[%s29 + $0x10] sm:$0xff]
    %v512 = vld [vmem:[%s29 + $0x18] sm:$0xff]
    %v513 = vld [vmem:[%s31] sm:$0x1]
    %v515 = vlaneseq
    %v516 = vshrl.u32 %v515, 7
    %v517 = vsub.s32 0, %v516
    %v518 = vrot.slane %v513, %v517
    %520 = vmatprep.subr.mxu0 0.0
    %521 = vmatpush1.msra.mxu0 0.0
    %522 = vmatprep.subr.mxu0 0.0
    %523 = vmatpush1.msra.mxu0 0.0
    %524 = vmatprep.subr.mxu0 0.0
    %525 = vmatpush1.msra.mxu0 0.0
    %526 = vmatprep.subr.mxu0 0.0
    %527 = vmatpush1.msra.mxu0 0.0
    %528 = vmatprep.subr.mxu0 0.0
    %529 = vmatpush1.msra.mxu0 0.0
    %530 = vmatprep.subr.mxu0 0.0
    %531 = vmatpush1.msra.mxu0 0.0
    %532 = vmatprep.subr.mxu0 0.0
    %533 = vmatpush1.msra.mxu0 0.0
    %534 = vmatprep.subr.mxu0 0.0
    %535 = vmatpush1.msra.mxu0 0.0
    %536 = vmatprep.subr.mxu0 0.0
    %537 = vmatpush1.msra.mxu0 0.0
    %538 = vmatprep.subr.mxu0 0.0
    %539 = vmatpush1.msra.mxu0 0.0
    %540 = vmatprep.subr.mxu0 0.0
    %541 = vmatpush1.msra.mxu0 0.0
    %542 = vmatprep.subr.mxu0 0.0
    %543 = vmatpush1.msra.mxu0 0.0
    %544 = vmatprep.subr.mxu0 0.0
    %545 = vmatpush1.msra.mxu0 %v512
    %546 = vmatprep.subr.mxu0 0.0
    %547 = vmatpush1.msra.mxu0 %v511
    %548 = vmatprep.subr.mxu0 0.0
    %549 = vmatpush1.msra.mxu0 %v510
    %550 = vmatprep.subr.mxu0 0.0
    %551 = vmatpush1.msra.mxu0 %v509
    %552 = vmatprep.subr.mxu0 0.0
    %553 = vmatpush2.msra.mxu0 0.0
    %554 = vmatprep.subr.mxu0 0.0
    %555 = vmatpush2.msra.mxu0 0.0
    %556 = vmatprep.subr.mxu0 0.0
    %557 = vmatpush2.msra.mxu0 0.0
    %558 = vmatprep.subr.mxu0 0.0
    %559 = vmatpush2.msra.mxu0 0.0
    %560 = vmatprep.subr.mxu0 0.0
    %561 = vmatpush2.msra.mxu0 0.0
    %562 = vmatprep.subr.mxu0 0.0
    %563 = vmatpush2.msra.mxu0 0.0
    %564 = vmatprep.subr.mxu0 0.0
    %565 = vmatpush2.msra.mxu0 0.0
    %566 = vmatprep.subr.mxu0 0.0
    %567 = vmatpush2.msra.mxu0 0.0
    %568 = vmatprep.subr.mxu0 0.0
    %569 = vmatpush2.msra.mxu0 0.0
    %570 = vmatprep.subr.mxu0 0.0
    %571 = vmatpush2.msra.mxu0 0.0
    %572 = vmatprep.subr.mxu0 0.0
    %573 = vmatpush2.msra.mxu0 0.0
    %574 = vmatprep.subr.mxu0 0.0
    %575 = vmatpush2.msra.mxu0 0.0
    %576 = vmatprep.subr.mxu0 0.0
    %577 = vmatpush2.msra.mxu0 0.0
    %578 = vmatprep.subr.mxu0 0.0
    %579 = vmatpush2.msra.mxu0 0.0
    %580 = vmatprep.subr.mxu0 0.0
    %581 = vmatpush2.msra.mxu0 0.0
    %582 = vmatprep.subr.mxu0 0.0
    %583 = vmatpush2.msra.mxu0 0.0
    %584 = vmatprep.mubr.f32.mxu0 0.0
    %585 = vmatmul.mubr.f32.gmra.mxu0 %v343
    %v586 = vpop.f32.mrf.mxu0
    %v587 = vadd.f32 %v518, %v586
    %v588 = vpop.f32.mrf.mxu0
    %589 = vmatprep.mubr.f32.mxu0 0.0
    %590 = vmatmul.mubr.f32.gmra.mxu0 %v346
    %v591 = vpop.f32.mrf.mxu0
    %v592 = vadd.f32 %v518, %v591
    %v593 = vpop.f32.mrf.mxu0
    %594 = vdwg.mxu0
    %vm595 = vcmask 130048
    %v597 = vsel %vm595, %v415, 0
    %v600 = vsel %vm595, %v501, 0
    %602 = vmatprep.subr.mxu0 0.0
    %603 = vmatpush1.xpose.msra.mxu0 0.0
    %604 = vmatprep.subr.mxu0 0.0
    %605 = vmatpush1.xpose.msra.mxu0 0.0
    %606 = vmatprep.subr.mxu0 0.0
    %607 = vmatpush1.xpose.msra.mxu0 0.0
    %608 = vmatprep.subr.mxu0 0.0
    %609 = vmatpush1.xpose.msra.mxu0 0.0
    %610 = vmatprep.subr.mxu0 0.0
    %611 = vmatpush1.xpose.msra.mxu0 0.0
    %612 = vmatprep.subr.mxu0 0.0
    %613 = vmatpush1.xpose.msra.mxu0 0.0
    %614 = vmatprep.subr.mxu0 0.0
    %615 = vmatpush1.xpose.msra.mxu0 0.0
    %616 = vmatprep.subr.mxu0 0.0
    %617 = vmatpush1.xpose.msra.mxu0 0.0
    %618 = vmatprep.subr.mxu0 0.0
    %619 = vmatpush1.xpose.msra.mxu0 0.0
    %620 = vmatprep.subr.mxu0 0.0
    %621 = vmatpush1.xpose.msra.mxu0 0.0
    %622 = vmatprep.subr.mxu0 0.0
    %623 = vmatpush1.xpose.msra.mxu0 0.0
    %624 = vmatprep.subr.mxu0 0.0
    %625 = vmatpush1.xpose.msra.mxu0 0.0
    %626 = vmatprep.subr.mxu0 0.0
    %627 = vmatpush1.xpose.msra.mxu0 0.0
    %628 = vmatprep.subr.mxu0 0.0
    %629 = vmatpush1.xpose.msra.mxu0 0.0
    %630 = vmatprep.subr.mxu0 0.0
    %631 = vmatpush1.xpose.msra.mxu0 0.0
    %632 = vmatprep.subr.mxu0 0.0
    %633 = vmatpush1.xpose.msra.mxu0 %v600
    %634 = vmatprep.subr.mxu0 0.0
    %635 = vmatpush2.xpose.msra.mxu0 0.0
    %636 = vmatprep.subr.mxu0 0.0
    %637 = vmatpush2.xpose.msra.mxu0 0.0
    %638 = vmatprep.subr.mxu0 0.0
    %639 = vmatpush2.xpose.msra.mxu0 0.0
    %640 = vmatprep.subr.mxu0 0.0
    %641 = vmatpush2.xpose.msra.mxu0 0.0
    %642 = vmatprep.subr.mxu0 0.0
    %643 = vmatpush2.xpose.msra.mxu0 0.0
    %644 = vmatprep.subr.mxu0 0.0
    %645 = vmatpush2.xpose.msra.mxu0 0.0
    %646 = vmatprep.subr.mxu0 0.0
    %647 = vmatpush2.xpose.msra.mxu0 0.0
    %648 = vmatprep.subr.mxu0 0.0
    %649 = vmatpush2.xpose.msra.mxu0 0.0
    %650 = vmatprep.subr.mxu0 0.0
    %651 = vmatpush2.xpose.msra.mxu0 0.0
    %652 = vmatprep.subr.mxu0 0.0
    %653 = vmatpush2.xpose.msra.mxu0 0.0
    %654 = vmatprep.subr.mxu0 0.0
    %655 = vmatpush2.xpose.msra.mxu0 0.0
    %656 = vmatprep.subr.mxu0 0.0
    %657 = vmatpush2.xpose.msra.mxu0 0.0
    %658 = vmatprep.subr.mxu0 0.0
    %659 = vmatpush2.xpose.msra.mxu0 0.0
    %660 = vmatprep.subr.mxu0 0.0
    %661 = vmatpush2.xpose.msra.mxu0 0.0
    %662 = vmatprep.subr.mxu0 0.0
    %663 = vmatpush2.xpose.msra.mxu0 0.0
    %664 = vmatprep.subr.mxu0 0.0
    %665 = vmatpush2.xpose.msra.mxu0 0.0
    %666 = vmatprep.mubr.f32.mxu0 0.0
    %667 = vmatmul.mubr.f32.gmra.mxu0 %v597
    %v668 = vpop.f32.mrf.mxu0
    %v669 = vadd.f32 0.0, %v668
    %v670 = vpop.f32.mrf.mxu0
    %671 = vdwg.mxu0
    %v673 = vsel %vm595, %v420, 0
    %v676 = vsel %vm595, %v506, 0
    %678 = vmatprep.subr.mxu0 0.0
    %679 = vmatpush1.xpose.msra.mxu0 0.0
    %680 = vmatprep.subr.mxu0 0.0
    %681 = vmatpush1.xpose.msra.mxu0 0.0
    %682 = vmatprep.subr.mxu0 0.0
    %683 = vmatpush1.xpose.msra.mxu0 0.0
    %684 = vmatprep.subr.mxu0 0.0
    %685 = vmatpush1.xpose.msra.mxu0 0.0
    %686 = vmatprep.subr.mxu0 0.0
    %687 = vmatpush1.xpose.msra.mxu0 0.0
    %688 = vmatprep.subr.mxu0 0.0
    %689 = vmatpush1.xpose.msra.mxu0 0.0
    %690 = vmatprep.subr.mxu0 0.0
    %691 = vmatpush1.xpose.msra.mxu0 0.0
    %692 = vmatprep.subr.mxu0 0.0
    %693 = vmatpush1.xpose.msra.mxu0 0.0
    %694 = vmatprep.subr.mxu0 0.0
    %695 = vmatpush1.xpose.msra.mxu0 0.0
    %696 = vmatprep.subr.mxu0 0.0
    %697 = vmatpush1.xpose.msra.mxu0 0.0
    %698 = vmatprep.subr.mxu0 0.0
    %699 = vmatpush1.xpose.msra.mxu0 0.0
    %700 = vmatprep.subr.mxu0 0.0
    %701 = vmatpush1.xpose.msra.mxu0 0.0
    %702 = vmatprep.subr.mxu0 0.0
    %703 = vmatpush1.xpose.msra.mxu0 0.0
    %704 = vmatprep.subr.mxu0 0.0
    %705 = vmatpush1.xpose.msra.mxu0 0.0
    %706 = vmatprep.subr.mxu0 0.0
    %707 = vmatpush1.xpose.msra.mxu0 0.0
    %708 = vmatprep.subr.mxu0 0.0
    %709 = vmatpush1.xpose.msra.mxu0 %v676
    %710 = vmatprep.subr.mxu0 0.0
    %711 = vmatpush2.xpose.msra.mxu0 0.0
    %712 = vmatprep.subr.mxu0 0.0
    %713 = vmatpush2.xpose.msra.mxu0 0.0
    %714 = vmatprep.subr.mxu0 0.0
    %715 = vmatpush2.xpose.msra.mxu0 0.0
    %716 = vmatprep.subr.mxu0 0.0
    %717 = vmatpush2.xpose.msra.mxu0 0.0
    %718 = vmatprep.subr.mxu0 0.0
    %719 = vmatpush2.xpose.msra.mxu0 0.0
    %720 = vmatprep.subr.mxu0 0.0
    %721 = vmatpush2.xpose.msra.mxu0 0.0
    %722 = vmatprep.subr.mxu0 0.0
    %723 = vmatpush2.xpose.msra.mxu0 0.0
    %724 = vmatprep.subr.mxu0 0.0
    %725 = vmatpush2.xpose.msra.mxu0 0.0
    %726 = vmatprep.subr.mxu0 0.0
    %727 = vmatpush2.xpose.msra.mxu0 0.0
    %728 = vmatprep.subr.mxu0 0.0
    %729 = vmatpush2.xpose.msra.mxu0 0.0
    %730 = vmatprep.subr.mxu0 0.0
    %731 = vmatpush2.xpose.msra.mxu0 0.0
    %732 = vmatprep.subr.mxu0 0.0
    %733 = vmatpush2.xpose.msra.mxu0 0.0
    %734 = vmatprep.subr.mxu0 0.0
    %735 = vmatpush2.xpose.msra.mxu0 0.0
    %736 = vmatprep.subr.mxu0 0.0
    %737 = vmatpush2.xpose.msra.mxu0 0.0
    %738 = vmatprep.subr.mxu0 0.0
    %739 = vmatpush2.xpose.msra.mxu0 0.0
    %740 = vmatprep.subr.mxu0 0.0
    %741 = vmatpush2.xpose.msra.mxu0 0.0
    %742 = vmatprep.mubr.f32.mxu0 0.0
    %743 = vmatmul.mubr.f32.gmra.mxu0 %v673
    %v744 = vpop.f32.mrf.mxu0
    %v745 = vadd.f32 0.0, %v744
    %v746 = vpop.f32.mrf.mxu0
    %747 = vdwg.mxu0
    %v748 = vmul.f32 %v669, 0.25
    %v749 = vmul.f32 %v745, 0.25
    %v750 = vlaneseq
    %v751 = vshrl.u32 %v750, 7
    %v752 = vsub.s32 0, %v751
    %v753 = vrot.slane %v323, %v752
    %v754 = vlaneseq
    %v755 = vshrl.u32 %v754, 7
    %v756 = vsub.s32 0, %v755
    %v757 = vrot.slane %v330, %v756
    %v760 = vadd.f32 %v748, %v753
    %v761 = vadd.f32 %v749, %v757
    %vm762 = vcmask 64512
    %v763 = vsel %vm762, %v760, -inf
    %764 = vmax.xlane.f32.xlu0 %v763
    %v765 = vpop.xlane.xlu0 %764
    %v766 = vsel %vm762, %v761, -inf
    %767 = vmax.xlane.f32.xlu0 %v766
    %v768 = vpop.xlane.xlu0 %767
    %v769 = vsub.f32 %v760, %v765
    %v770 = vsub.f32 %v761, %v768
    %v771 = vmul.f32 %v769, 1.442695
    %v772 = vpow.pop %v771
    %v773 = vmul.f32 %v770, 1.442695
    %v774 = vpow.pop %v773
    %v775 = vsel %vm762, %v772, 0.0
    %776 = vadd.xlane.f32.xlu0 %v775
    %v777 = vpop.xlane.xlu0 %776
    %v778 = vsel %vm762, %v774, 0.0
    %779 = vadd.xlane.f32.xlu0 %v778
    %v780 = vpop.xlane.xlu0 %779
    %v781 = vrcp.pop %v777
    %v782 = vrcp.pop %v780
    %v783 = vmul.f32 %v772, %v781
    %v784 = vmul.f32 %v774, %v782
    %v786 = vsel %vm762, %v783, 0
    %788 = vmatprep.subr.mxu0 0.0
    %789 = vmatpush1.msra.mxu0 0.0
    %790 = vmatprep.subr.mxu0 0.0
    %791 = vmatpush1.msra.mxu0 0.0
    %792 = vmatprep.subr.mxu0 0.0
    %793 = vmatpush1.msra.mxu0 0.0
    %794 = vmatprep.subr.mxu0 0.0
    %795 = vmatpush1.msra.mxu0 0.0
    %796 = vmatprep.subr.mxu0 0.0
    %797 = vmatpush1.msra.mxu0 0.0
    %798 = vmatprep.subr.mxu0 0.0
    %799 = vmatpush1.msra.mxu0 0.0
    %800 = vmatprep.subr.mxu0 0.0
    %801 = vmatpush1.msra.mxu0 0.0
    %802 = vmatprep.subr.mxu0 0.0
    %803 = vmatpush1.msra.mxu0 0.0
    %804 = vmatprep.subr.mxu0 0.0
    %805 = vmatpush1.msra.mxu0 0.0
    %806 = vmatprep.subr.mxu0 0.0
    %807 = vmatpush1.msra.mxu0 0.0
    %808 = vmatprep.subr.mxu0 0.0
    %809 = vmatpush1.msra.mxu0 0.0
    %810 = vmatprep.subr.mxu0 0.0
    %811 = vmatpush1.msra.mxu0 0.0
    %812 = vmatprep.subr.mxu0 0.0
    %813 = vmatpush1.msra.mxu0 0.0
    %814 = vmatprep.subr.mxu0 0.0
    %815 = vmatpush1.msra.mxu0 0.0
    %816 = vmatprep.subr.mxu0 0.0
    %817 = vmatpush1.msra.mxu0 0.0
    %818 = vmatprep.subr.mxu0 0.0
    %819 = vmatpush1.msra.mxu0 %v587
    %820 = vmatprep.subr.mxu0 0.0
    %821 = vmatpush2.msra.mxu0 0.0
    %822 = vmatprep.subr.mxu0 0.0
    %823 = vmatpush2.msra.mxu0 0.0
    %824 = vmatprep.subr.mxu0 0.0
    %825 = vmatpush2.msra.mxu0 0.0
    %826 = vmatprep.subr.mxu0 0.0
    %827 = vmatpush2.msra.mxu0 0.0
    %828 = vmatprep.subr.mxu0 0.0
    %829 = vmatpush2.msra.mxu0 0.0
    %830 = vmatprep.subr.mxu0 0.0
    %831 = vmatpush2.msra.mxu0 0.0
    %832 = vmatprep.subr.mxu0 0.0
    %833 = vmatpush2.msra.mxu0 0.0
    %834 = vmatprep.subr.mxu0 0.0
    %835 = vmatpush2.msra.mxu0 0.0
    %836 = vmatprep.subr.mxu0 0.0
    %837 = vmatpush2.msra.mxu0 0.0
    %838 = vmatprep.subr.mxu0 0.0
    %839 = vmatpush2.msra.mxu0 0.0
    %840 = vmatprep.subr.mxu0 0.0
    %841 = vmatpush2.msra.mxu0 0.0
    %842 = vmatprep.subr.mxu0 0.0
    %843 = vmatpush2.msra.mxu0 0.0
    %844 = vmatprep.subr.mxu0 0.0
    %845 = vmatpush2.msra.mxu0 0.0
    %846 = vmatprep.subr.mxu0 0.0
    %847 = vmatpush2.msra.mxu0 0.0
    %848 = vmatprep.subr.mxu0 0.0
    %849 = vmatpush2.msra.mxu0 0.0
    %850 = vmatprep.subr.mxu0 0.0
    %851 = vmatpush2.msra.mxu0 0.0
    %852 = vmatprep.mubr.f32.mxu0 0.0
    %853 = vmatmul.mubr.f32.gmra.mxu0 %v786
    %v854 = vpop.f32.mrf.mxu0
    %v855 = vadd.f32 0.0, %v854
    %v856 = vpop.f32.mrf.mxu0
    %857 = vdwg.mxu0
    %v859 = vsel %vm762, %v784, 0
    %861 = vmatprep.subr.mxu0 0.0
    %862 = vmatpush1.msra.mxu0 0.0
    %863 = vmatprep.subr.mxu0 0.0
    %864 = vmatpush1.msra.mxu0 0.0
    %865 = vmatprep.subr.mxu0 0.0
    %866 = vmatpush1.msra.mxu0 0.0
    %867 = vmatprep.subr.mxu0 0.0
    %868 = vmatpush1.msra.mxu0 0.0
    %869 = vmatprep.subr.mxu0 0.0
    %870 = vmatpush1.msra.mxu0 0.0
    %871 = vmatprep.subr.mxu0 0.0
    %872 = vmatpush1.msra.mxu0 0.0
    %873 = vmatprep.subr.mxu0 0.0
    %874 = vmatpush1.msra.mxu0 0.0
    %875 = vmatprep.subr.mxu0 0.0
    %876 = vmatpush1.msra.mxu0 0.0
    %877 = vmatprep.subr.mxu0 0.0
    %878 = vmatpush1.msra.mxu0 0.0
    %879 = vmatprep.subr.mxu0 0.0
    %880 = vmatpush1.msra.mxu0 0.0
    %881 = vmatprep.subr.mxu0 0.0
    %882 = vmatpush1.msra.mxu0 0.0
    %883 = vmatprep.subr.mxu0 0.0
    %884 = vmatpush1.msra.mxu0 0.0
    %885 = vmatprep.subr.mxu0 0.0
    %886 = vmatpush1.msra.mxu0 0.0
    %887 = vmatprep.subr.mxu0 0.0
    %888 = vmatpush1.msra.mxu0 0.0
    %889 = vmatprep.subr.mxu0 0.0
    %890 = vmatpush1.msra.mxu0 0.0
    %891 = vmatprep.subr.mxu0 0.0
    %892 = vmatpush1.msra.mxu0 %v592
    %893 = vmatprep.subr.mxu0 0.0
    %894 = vmatpush2.msra.mxu0 0.0
    %895 = vmatprep.subr.mxu0 0.0
    %896 = vmatpush2.msra.mxu0 0.0
    %897 = vmatprep.subr.mxu0 0.0
    %898 = vmatpush2.msra.mxu0 0.0
    %899 = vmatprep.subr.mxu0 0.0
    %900 = vmatpush2.msra.mxu0 0.0
    %901 = vmatprep.subr.mxu0 0.0
    %902 = vmatpush2.msra.mxu0 0.0
    %903 = vmatprep.subr.mxu0 0.0
    %904 = vmatpush2.msra.mxu0 0.0
    %905 = vmatprep.subr.mxu0 0.0
    %906 = vmatpush2.msra.mxu0 0.0
    %907 = vmatprep.subr.mxu0 0.0
    %908 = vmatpush2.msra.mxu0 0.0
    %909 = vmatprep.subr.mxu0 0.0
    %910 = vmatpush2.msra.mxu0 0.0
    %911 = vmatprep.subr.mxu0 0.0
    %912 = vmatpush2.msra.mxu0 0.0
    %913 = vmatprep.subr.mxu0 0.0
    %914 = vmatpush2.msra.mxu0 0.0
    %915 = vmatprep.subr.mxu0 0.0
    %916 = vmatpush2.msra.mxu0 0.0
    %917 = vmatprep.subr.mxu0 0.0
    %918 = vmatpush2.msra.mxu0 0.0
    %919 = vmatprep.subr.mxu0 0.0
    %920 = vmatpush2.msra.mxu0 0.0
    %921 = vmatprep.subr.mxu0 0.0
    %922 = vmatpush2.msra.mxu0 0.0
    %923 = vmatprep.subr.mxu0 0.0
    %924 = vmatpush2.msra.mxu0 0.0
    %925 = vmatprep.mubr.f32.mxu0 0.0
    %926 = vmatmul.mubr.f32.gmra.mxu0 %v859
    %v927 = vpop.f32.mrf.mxu0
    %v928 = vadd.f32 0.0, %v927
    %v929 = vpop.f32.mrf.mxu0
    %930 = vdwg.mxu0
    %931 = vrot.lane.b32.xlu0 %v415, 112
    %v932 = vpop.permute.xlu0 %931
    %933 = vrot.lane.b32.xlu0 %v501, 112
    %v934 = vpop.permute.xlu0 %933
    %v935 = vsel %vm595, %v932, 0
    %v937 = vsel %vm595, %v934, 0
    %939 = vmatprep.subr.mxu0 0.0
    %940 = vmatpush1.xpose.msra.mxu0 0.0
    %941 = vmatprep.subr.mxu0 0.0
    %942 = vmatpush1.xpose.msra.mxu0 0.0
    %943 = vmatprep.subr.mxu0 0.0
    %944 = vmatpush1.xpose.msra.mxu0 0.0
    %945 = vmatprep.subr.mxu0 0.0
    %946 = vmatpush1.xpose.msra.mxu0 0.0
    %947 = vmatprep.subr.mxu0 0.0
    %948 = vmatpush1.xpose.msra.mxu0 0.0
    %949 = vmatprep.subr.mxu0 0.0
    %950 = vmatpush1.xpose.msra.mxu0 0.0
    %951 = vmatprep.subr.mxu0 0.0
    %952 = vmatpush1.xpose.msra.mxu0 0.0
    %953 = vmatprep.subr.mxu0 0.0
    %954 = vmatpush1.xpose.msra.mxu0 0.0
    %955 = vmatprep.subr.mxu0 0.0
    %956 = vmatpush1.xpose.msra.mxu0 0.0
    %957 = vmatprep.subr.mxu0 0.0
    %958 = vmatpush1.xpose.msra.mxu0 0.0
    %959 = vmatprep.subr.mxu0 0.0
    %960 = vmatpush1.xpose.msra.mxu0 0.0
    %961 = vmatprep.subr.mxu0 0.0
    %962 = vmatpush1.xpose.msra.mxu0 0.0
    %963 = vmatprep.subr.mxu0 0.0
    %964 = vmatpush1.xpose.msra.mxu0 0.0
    %965 = vmatprep.subr.mxu0 0.0
    %966 = vmatpush1.xpose.msra.mxu0 0.0
    %967 = vmatprep.subr.mxu0 0.0
    %968 = vmatpush1.xpose.msra.mxu0 0.0
    %969 = vmatprep.subr.mxu0 0.0
    %970 = vmatpush1.xpose.msra.mxu0 %v937
    %971 = vmatprep.subr.mxu0 0.0
    %972 = vmatpush2.xpose.msra.mxu0 0.0
    %973 = vmatprep.subr.mxu0 0.0
    %974 = vmatpush2.xpose.msra.mxu0 0.0
    %975 = vmatprep.subr.mxu0 0.0
    %976 = vmatpush2.xpose.msra.mxu0 0.0
    %977 = vmatprep.subr.mxu0 0.0
    %978 = vmatpush2.xpose.msra.mxu0 0.0
    %979 = vmatprep.subr.mxu0 0.0
    %980 = vmatpush2.xpose.msra.mxu0 0.0
    %981 = vmatprep.subr.mxu0 0.0
    %982 = vmatpush2.xpose.msra.mxu0 0.0
    %983 = vmatprep.subr.mxu0 0.0
    %984 = vmatpush2.xpose.msra.mxu0 0.0
    %985 = vmatprep.subr.mxu0 0.0
    %986 = vmatpush2.xpose.msra.mxu0 0.0
    %987 = vmatprep.subr.mxu0 0.0
    %988 = vmatpush2.xpose.msra.mxu0 0.0
    %989 = vmatprep.subr.mxu0 0.0
    %990 = vmatpush2.xpose.msra.mxu0 0.0
    %991 = vmatprep.subr.mxu0 0.0
    %992 = vmatpush2.xpose.msra.mxu0 0.0
    %993 = vmatprep.subr.mxu0 0.0
    %994 = vmatpush2.xpose.msra.mxu0 0.0
    %995 = vmatprep.subr.mxu0 0.0
    %996 = vmatpush2.xpose.msra.mxu0 0.0
    %997 = vmatprep.subr.mxu0 0.0
    %998 = vmatpush2.xpose.msra.mxu0 0.0
    %999 = vmatprep.subr.mxu0 0.0
    %1000 = vmatpush2.xpose.msra.mxu0 0.0
    %1001 = vmatprep.subr.mxu0 0.0
    %1002 = vmatpush2.xpose.msra.mxu0 0.0
    %1003 = vmatprep.mubr.f32.mxu0 0.0
    %1004 = vmatmul.mubr.f32.gmra.mxu0 %v935
    %v1005 = vpop.f32.mrf.mxu0
    %v1006 = vadd.f32 0.0, %v1005
    %v1007 = vpop.f32.mrf.mxu0
    %1008 = vdwg.mxu0
    %1009 = vrot.lane.b32.xlu0 %v420, 112
    %v1010 = vpop.permute.xlu0 %1009
    %1011 = vrot.lane.b32.xlu0 %v506, 112
    %v1012 = vpop.permute.xlu0 %1011
    %v1013 = vsel %vm595, %v1010, 0
    %v1015 = vsel %vm595, %v1012, 0
    %1017 = vmatprep.subr.mxu0 0.0
    %1018 = vmatpush1.xpose.msra.mxu0 0.0
    %1019 = vmatprep.subr.mxu0 0.0
    %1020 = vmatpush1.xpose.msra.mxu0 0.0
    %1021 = vmatprep.subr.mxu0 0.0
    %1022 = vmatpush1.xpose.msra.mxu0 0.0
    %1023 = vmatprep.subr.mxu0 0.0
    %1024 = vmatpush1.xpose.msra.mxu0 0.0
    %1025 = vmatprep.subr.mxu0 0.0
    %1026 = vmatpush1.xpose.msra.mxu0 0.0
    %1027 = vmatprep.subr.mxu0 0.0
    %1028 = vmatpush1.xpose.msra.mxu0 0.0
    %1029 = vmatprep.subr.mxu0 0.0
    %1030 = vmatpush1.xpose.msra.mxu0 0.0
    %1031 = vmatprep.subr.mxu0 0.0
    %1032 = vmatpush1.xpose.msra.mxu0 0.0
    %1033 = vmatprep.subr.mxu0 0.0
    %1034 = vmatpush1.xpose.msra.mxu0 0.0
    %1035 = vmatprep.subr.mxu0 0.0
    %1036 = vmatpush1.xpose.msra.mxu0 0.0
    %1037 = vmatprep.subr.mxu0 0.0
    %1038 = vmatpush1.xpose.msra.mxu0 0.0
    %1039 = vmatprep.subr.mxu0 0.0
    %1040 = vmatpush1.xpose.msra.mxu0 0.0
    %1041 = vmatprep.subr.mxu0 0.0
    %1042 = vmatpush1.xpose.msra.mxu0 0.0
    %1043 = vmatprep.subr.mxu0 0.0
    %1044 = vmatpush1.xpose.msra.mxu0 0.0
    %1045 = vmatprep.subr.mxu0 0.0
    %1046 = vmatpush1.xpose.msra.mxu0 0.0
    %1047 = vmatprep.subr.mxu0 0.0
    %1048 = vmatpush1.xpose.msra.mxu0 %v1015
    %1049 = vmatprep.subr.mxu0 0.0
    %1050 = vmatpush2.xpose.msra.mxu0 0.0
    %1051 = vmatprep.subr.mxu0 0.0
    %1052 = vmatpush2.xpose.msra.mxu0 0.0
    %1053 = vmatprep.subr.mxu0 0.0
    %1054 = vmatpush2.xpose.msra.mxu0 0.0
    %1055 = vmatprep.subr.mxu0 0.0
    %1056 = vmatpush2.xpose.msra.mxu0 0.0
    %1057 = vmatprep.subr.mxu0 0.0
    %1058 = vmatpush2.xpose.msra.mxu0 0.0
    %1059 = vmatprep.subr.mxu0 0.0
    %1060 = vmatpush2.xpose.msra.mxu0 0.0
    %1061 = vmatprep.subr.mxu0 0.0
    %1062 = vmatpush2.xpose.msra.mxu0 0.0
    %1063 = vmatprep.subr.mxu0 0.0
    %1064 = vmatpush2.xpose.msra.mxu0 0.0
    %1065 = vmatprep.subr.mxu0 0.0
    %1066 = vmatpush2.xpose.msra.mxu0 0.0
    %1067 = vmatprep.subr.mxu0 0.0
    %1068 = vmatpush2.xpose.msra.mxu0 0.0
    %1069 = vmatprep.subr.mxu0 0.0
    %1070 = vmatpush2.xpose.msra.mxu0 0.0
    %1071 = vmatprep.subr.mxu0 0.0
    %1072 = vmatpush2.xpose.msra.mxu0 0.0
    %1073 = vmatprep.subr.mxu0 0.0
    %1074 = vmatpush2.xpose.msra.mxu0 0.0
    %1075 = vmatprep.subr.mxu0 0.0
    %1076 = vmatpush2.xpose.msra.mxu0 0.0
    %1077 = vmatprep.subr.mxu0 0.0
    %1078 = vmatpush2.xpose.msra.mxu0 0.0
    %1079 = vmatprep.subr.mxu0 0.0
    %1080 = vmatpush2.xpose.msra.mxu0 0.0
    %1081 = vmatprep.mubr.f32.mxu0 0.0
    %1082 = vmatmul.mubr.f32.gmra.mxu0 %v1013
    %v1083 = vpop.f32.mrf.mxu0
    %v1084 = vadd.f32 0.0, %v1083
    %v1085 = vpop.f32.mrf.mxu0
    %1086 = vdwg.mxu0
    %v1087 = vmul.f32 %v1006, 0.25
    %v1088 = vmul.f32 %v1084, 0.25
    %v1089 = vadd.f32 %v1087, %v753
    %v1090 = vadd.f32 %v1088, %v757
    %v1091 = vsel %vm762, %v1089, -inf
    %1092 = vmax.xlane.f32.xlu0 %v1091
    %v1093 = vpop.xlane.xlu0 %1092
    %v1094 = vsel %vm762, %v1090, -inf
    %1095 = vmax.xlane.f32.xlu0 %v1094
    %v1096 = vpop.xlane.xlu0 %1095
    %v1097 = vsub.f32 %v1089, %v1093
    %v1098 = vsub.f32 %v1090, %v1096
    %v1099 = vmul.f32 %v1097, 1.442695
    %v1100 = vpow.pop %v1099
    %v1101 = vmul.f32 %v1098, 1.442695
    %v1102 = vpow.pop %v1101
    %v1103 = vsel %vm762, %v1100, 0.0
    %1104 = vadd.xlane.f32.xlu0 %v1103
    %v1105 = vpop.xlane.xlu0 %1104
    %v1106 = vsel %vm762, %v1102, 0.0
    %1107 = vadd.xlane.f32.xlu0 %v1106
    %v1108 = vpop.xlane.xlu0 %1107
    %v1109 = vrcp.pop %v1105
    %v1110 = vrcp.pop %v1108
    %v1111 = vmul.f32 %v1100, %v1109
    %v1112 = vmul.f32 %v1102, %v1110
    %1114 = vrot.lane.b32.xlu0 %v587, 112
    %v1115 = vpop.permute.xlu0 %1114
    %v1118 = vsel %vm762, %v1111, 0
    %1120 = vmatprep.subr.mxu0 0.0
    %1121 = vmatpush1.msra.mxu0 0.0
    %1122 = vmatprep.subr.mxu0 0.0
    %1123 = vmatpush1.msra.mxu0 0.0
    %1124 = vmatprep.subr.mxu0 0.0
    %1125 = vmatpush1.msra.mxu0 0.0
    %1126 = vmatprep.subr.mxu0 0.0
    %1127 = vmatpush1.msra.mxu0 0.0
    %1128 = vmatprep.subr.mxu0 0.0
    %1129 = vmatpush1.msra.mxu0 0.0
    %1130 = vmatprep.subr.mxu0 0.0
    %1131 = vmatpush1.msra.mxu0 0.0
    %1132 = vmatprep.subr.mxu0 0.0
    %1133 = vmatpush1.msra.mxu0 0.0
    %1134 = vmatprep.subr.mxu0 0.0
    %1135 = vmatpush1.msra.mxu0 0.0
    %1136 = vmatprep.subr.mxu0 0.0
    %1137 = vmatpush1.msra.mxu0 0.0
    %1138 = vmatprep.subr.mxu0 0.0
    %1139 = vmatpush1.msra.mxu0 0.0
    %1140 = vmatprep.subr.mxu0 0.0
    %1141 = vmatpush1.msra.mxu0 0.0
    %1142 = vmatprep.subr.mxu0 0.0
    %1143 = vmatpush1.msra.mxu0 0.0
    %1144 = vmatprep.subr.mxu0 0.0
    %1145 = vmatpush1.msra.mxu0 0.0
    %1146 = vmatprep.subr.mxu0 0.0
    %1147 = vmatpush1.msra.mxu0 0.0
    %1148 = vmatprep.subr.mxu0 0.0
    %1149 = vmatpush1.msra.mxu0 0.0
    %1150 = vmatprep.subr.mxu0 0.0
    %1151 = vmatpush1.msra.mxu0 %v1115
    %1152 = vmatprep.subr.mxu0 0.0
    %1153 = vmatpush2.msra.mxu0 0.0
    %1154 = vmatprep.subr.mxu0 0.0
    %1155 = vmatpush2.msra.mxu0 0.0
    %1156 = vmatprep.subr.mxu0 0.0
    %1157 = vmatpush2.msra.mxu0 0.0
    %1158 = vmatprep.subr.mxu0 0.0
    %1159 = vmatpush2.msra.mxu0 0.0
    %1160 = vmatprep.subr.mxu0 0.0
    %1161 = vmatpush2.msra.mxu0 0.0
    %1162 = vmatprep.subr.mxu0 0.0
    %1163 = vmatpush2.msra.mxu0 0.0
    %1164 = vmatprep.subr.mxu0 0.0
    %1165 = vmatpush2.msra.mxu0 0.0
    %1166 = vmatprep.subr.mxu0 0.0
    %1167 = vmatpush2.msra.mxu0 0.0
    %1168 = vmatprep.subr.mxu0 0.0
    %1169 = vmatpush2.msra.mxu0 0.0
    %1170 = vmatprep.subr.mxu0 0.0
    %1171 = vmatpush2.msra.mxu0 0.0
    %1172 = vmatprep.subr.mxu0 0.0
    %1173 = vmatpush2.msra.mxu0 0.0
    %1174 = vmatprep.subr.mxu0 0.0
    %1175 = vmatpush2.msra.mxu0 0.0
    %1176 = vmatprep.subr.mxu0 0.0
    %1177 = vmatpush2.msra.mxu0 0.0
    %1178 = vmatprep.subr.mxu0 0.0
    %1179 = vmatpush2.msra.mxu0 0.0
    %1180 = vmatprep.subr.mxu0 0.0
    %1181 = vmatpush2.msra.mxu0 0.0
    %1182 = vmatprep.subr.mxu0 0.0
    %1183 = vmatpush2.msra.mxu0 0.0
    %1184 = vmatprep.mubr.f32.mxu0 0.0
    %1185 = vmatmul.mubr.f32.gmra.mxu0 %v1118
    %v1186 = vpop.f32.mrf.mxu0
    %v1187 = vadd.f32 0.0, %v1186
    %v1188 = vpop.f32.mrf.mxu0
    %1189 = vdwg.mxu0
    %1191 = vrot.lane.b32.xlu0 %v592, 112
    %v1192 = vpop.permute.xlu0 %1191
    %v1195 = vsel %vm762, %v1112, 0
    %1197 = vmatprep.subr.mxu0 0.0
    %1198 = vmatpush1.msra.mxu0 0.0
    %1199 = vmatprep.subr.mxu0 0.0
    %1200 = vmatpush1.msra.mxu0 0.0
    %1201 = vmatprep.subr.mxu0 0.0
    %1202 = vmatpush1.msra.mxu0 0.0
    %1203 = vmatprep.subr.mxu0 0.0
    %1204 = vmatpush1.msra.mxu0 0.0
    %1205 = vmatprep.subr.mxu0 0.0
    %1206 = vmatpush1.msra.mxu0 0.0
    %1207 = vmatprep.subr.mxu0 0.0
    %1208 = vmatpush1.msra.mxu0 0.0
    %1209 = vmatprep.subr.mxu0 0.0
    %1210 = vmatpush1.msra.mxu0 0.0
    %1211 = vmatprep.subr.mxu0 0.0
    %1212 = vmatpush1.msra.mxu0 0.0
    %1213 = vmatprep.subr.mxu0 0.0
    %1214 = vmatpush1.msra.mxu0 0.0
    %1215 = vmatprep.subr.mxu0 0.0
    %1216 = vmatpush1.msra.mxu0 0.0
    %1217 = vmatprep.subr.mxu0 0.0
    %1218 = vmatpush1.msra.mxu0 0.0
    %1219 = vmatprep.subr.mxu0 0.0
    %1220 = vmatpush1.msra.mxu0 0.0
    %1221 = vmatprep.subr.mxu0 0.0
    %1222 = vmatpush1.msra.mxu0 0.0
    %1223 = vmatprep.subr.mxu0 0.0
    %1224 = vmatpush1.msra.mxu0 0.0
    %1225 = vmatprep.subr.mxu0 0.0
    %1226 = vmatpush1.msra.mxu0 0.0
    %1227 = vmatprep.subr.mxu0 0.0
    %1228 = vmatpush1.msra.mxu0 %v1192
    %1229 = vmatprep.subr.mxu0 0.0
    %1230 = vmatpush2.msra.mxu0 0.0
    %1231 = vmatprep.subr.mxu0 0.0
    %1232 = vmatpush2.msra.mxu0 0.0
    %1233 = vmatprep.subr.mxu0 0.0
    %1234 = vmatpush2.msra.mxu0 0.0
    %1235 = vmatprep.subr.mxu0 0.0
    %1236 = vmatpush2.msra.mxu0 0.0
    %1237 = vmatprep.subr.mxu0 0.0
    %1238 = vmatpush2.msra.mxu0 0.0
    %1239 = vmatprep.subr.mxu0 0.0
    %1240 = vmatpush2.msra.mxu0 0.0
    %1241 = vmatprep.subr.mxu0 0.0
    %1242 = vmatpush2.msra.mxu0 0.0
    %1243 = vmatprep.subr.mxu0 0.0
    %1244 = vmatpush2.msra.mxu0 0.0
    %1245 = vmatprep.subr.mxu0 0.0
    %1246 = vmatpush2.msra.mxu0 0.0
    %1247 = vmatprep.subr.mxu0 0.0
    %1248 = vmatpush2.msra.mxu0 0.0
    %1249 = vmatprep.subr.mxu0 0.0
    %1250 = vmatpush2.msra.mxu0 0.0
    %1251 = vmatprep.subr.mxu0 0.0
    %1252 = vmatpush2.msra.mxu0 0.0
    %1253 = vmatprep.subr.mxu0 0.0
    %1254 = vmatpush2.msra.mxu0 0.0
    %1255 = vmatprep.subr.mxu0 0.0
    %1256 = vmatpush2.msra.mxu0 0.0
    %1257 = vmatprep.subr.mxu0 0.0
    %1258 = vmatpush2.msra.mxu0 0.0
    %1259 = vmatprep.subr.mxu0 0.0
    %1260 = vmatpush2.msra.mxu0 0.0
    %1261 = vmatprep.mubr.f32.mxu0 0.0
    %1262 = vmatmul.mubr.f32.gmra.mxu0 %v1195
    %v1263 = vpop.f32.mrf.mxu0
    %v1264 = vadd.f32 0.0, %v1263
    %v1265 = vpop.f32.mrf.mxu0
    %1266 = vdwg.mxu0
    %1269 = vrot.lane.b32.xlu0 %v1187, 16
    %v1270 = vpop.permute.xlu0 %1269
    %1271 = vrot.lane.b32.xlu0 %v1264, 16
    %v1272 = vpop.permute.xlu0 %1271
    %v1275 = vsel %vm595, %v855, %v1270
    %v1276 = vsel %vm595, %v928, %v1272
    %v1277 = vld [vmem:[#allocation14] sm:$0xff]
    %v1278 = vld [vmem:[#allocation14 + $0x8] sm:$0xff]
    %v1279 = vld [vmem:[#allocation14 + $0x10] sm:$0xff]
    %v1280 = vld [vmem:[#allocation14 + $0x18] sm:$0xff]
    %v1281 = vld [vmem:[%s35] sm:$0x1]
    %v1283 = vlaneseq
    %v1284 = vshrl.u32 %v1283, 7
    %v1285 = vsub.s32 0, %v1284
    %v1286 = vrot.slane %v1281, %v1285
    %v1289 = vsel %vm261, %v1275, 0
    %v1292 = vsel %vm261, %v1276, 0
    %1294 = vmatprep.subr.mxu0 0.0
    %1295 = vmatpush1.msra.mxu0 0.0
    %1296 = vmatprep.subr.mxu0 0.0
    %1297 = vmatpush1.msra.mxu0 0.0
    %1298 = vmatprep.subr.mxu0 0.0
    %1299 = vmatpush1.msra.mxu0 0.0
    %1300 = vmatprep.subr.mxu0 0.0
    %1301 = vmatpush1.msra.mxu0 0.0
    %1302 = vmatprep.subr.mxu0 0.0
    %1303 = vmatpush1.msra.mxu0 0.0
    %1304 = vmatprep.subr.mxu0 0.0
    %1305 = vmatpush1.msra.mxu0 0.0
    %1306 = vmatprep.subr.mxu0 0.0
    %1307 = vmatpush1.msra.mxu0 0.0
    %1308 = vmatprep.subr.mxu0 0.0
    %1309 = vmatpush1.msra.mxu0 0.0
    %1310 = vmatprep.subr.mxu0 0.0
    %1311 = vmatpush1.msra.mxu0 0.0
    %1312 = vmatprep.subr.mxu0 0.0
    %1313 = vmatpush1.msra.mxu0 0.0
    %1314 = vmatprep.subr.mxu0 0.0
    %1315 = vmatpush1.msra.mxu0 0.0
    %1316 = vmatprep.subr.mxu0 0.0
    %1317 = vmatpush1.msra.mxu0 0.0
    %1318 = vmatprep.subr.mxu0 0.0
    %1319 = vmatpush1.msra.mxu0 %v1280
    %1320 = vmatprep.subr.mxu0 0.0
    %1321 = vmatpush1.msra.mxu0 %v1279
    %1322 = vmatprep.subr.mxu0 0.0
    %1323 = vmatpush1.msra.mxu0 %v1278
    %1324 = vmatprep.subr.mxu0 0.0
    %1325 = vmatpush1.msra.mxu0 %v1277
    %1326 = vmatprep.subr.mxu0 0.0
    %1327 = vmatpush2.msra.mxu0 0.0
    %1328 = vmatprep.subr.mxu0 0.0
    %1329 = vmatpush2.msra.mxu0 0.0
    %1330 = vmatprep.subr.mxu0 0.0
    %1331 = vmatpush2.msra.mxu0 0.0
    %1332 = vmatprep.subr.mxu0 0.0
    %1333 = vmatpush2.msra.mxu0 0.0
    %1334 = vmatprep.subr.mxu0 0.0
    %1335 = vmatpush2.msra.mxu0 0.0
    %1336 = vmatprep.subr.mxu0 0.0
    %1337 = vmatpush2.msra.mxu0 0.0
    %1338 = vmatprep.subr.mxu0 0.0
    %1339 = vmatpush2.msra.mxu0 0.0
    %1340 = vmatprep.subr.mxu0 0.0
    %1341 = vmatpush2.msra.mxu0 0.0
    %1342 = vmatprep.subr.mxu0 0.0
    %1343 = vmatpush2.msra.mxu0 0.0
    %1344 = vmatprep.subr.mxu0 0.0
    %1345 = vmatpush2.msra.mxu0 0.0
    %1346 = vmatprep.subr.mxu0 0.0
    %1347 = vmatpush2.msra.mxu0 0.0
    %1348 = vmatprep.subr.mxu0 0.0
    %1349 = vmatpush2.msra.mxu0 0.0
    %1350 = vmatprep.subr.mxu0 0.0
    %1351 = vmatpush2.msra.mxu0 0.0
    %1352 = vmatprep.subr.mxu0 0.0
    %1353 = vmatpush2.msra.mxu0 0.0
    %1354 = vmatprep.subr.mxu0 0.0
    %1355 = vmatpush2.msra.mxu0 0.0
    %1356 = vmatprep.subr.mxu0 0.0
    %1357 = vmatpush2.msra.mxu0 0.0
    %1358 = vmatprep.mubr.f32.mxu0 0.0
    %1359 = vmatmul.mubr.f32.gmra.mxu0 %v1289
    %v1360 = vpop.f32.mrf.mxu0
    %v1361 = vadd.f32 %v1286, %v1360
    %v1362 = vpop.f32.mrf.mxu0
    %1363 = vmatprep.mubr.f32.mxu0 0.0
    %1364 = vmatmul.mubr.f32.gmra.mxu0 %v1292
    %v1365 = vpop.f32.mrf.mxu0
    %v1366 = vadd.f32 %v1286, %v1365
    %v1367 = vpop.f32.mrf.mxu0
    %1368 = vdwg.mxu0
    %v1369 = vadd.f32 %v303, %v1361
    %v1370 = vadd.f32 %v304, %v1366
    %v1371 = vld [vmem:[%s37] sm:$0x1]
    %v1372 = vld [vmem:[%s39] sm:$0x1]
    %v1373 = vsel %vm261, %v1369, 0.0
    %1374 = vadd.xlane.f32.xlu0 %v1373
    %v1375 = vpop.xlane.xlu0 %1374
    %v1376 = vsel %vm261, %v1370, 0.0
    %1377 = vadd.xlane.f32.xlu0 %v1376
    %v1378 = vpop.xlane.xlu0 %1377
    %v1379 = vmul.f32 %v1375, %v268
    %v1380 = vmul.f32 %v1378, %v268
    %v1381 = vsub.f32 %v1369, %v1379
    %v1382 = vsub.f32 %v1370, %v1380
    %v1383 = vmul.f32 %v1381, %v1381
    %v1384 = vmul.f32 %v1382, %v1382
    %v1385 = vsel %vm261, %v1383, 0.0
    %1386 = vadd.xlane.f32.xlu0 %v1385
    %v1387 = vpop.xlane.xlu0 %1386
    %v1388 = vsel %vm261, %v1384, 0.0
    %1389 = vadd.xlane.f32.xlu0 %v1388
    %v1390 = vpop.xlane.xlu0 %1389
    %v1391 = vmul.f32 %v1387, %v268
    %v1392 = vmul.f32 %v1390, %v268
    %v1393 = vadd.f32 %v1391, 1e-12
    %v1394 = vadd.f32 %v1392, 1e-12
    %v1395 = vrsqrt.pop %v1393
    %v1396 = vrsqrt.pop %v1394
    %v1397 = vmul.f32 %v1381, %v1395
    %v1398 = vmul.f32 %v1382, %v1396
    %v1400 = vlaneseq
    %v1401 = vshrl.u32 %v1400, 7
    %v1402 = vsub.s32 0, %v1401
    %v1403 = vrot.slane %v1371, %v1402
    %v1405 = vmul.f32 %v1397, %v1403
    %v1406 = vmul.f32 %v1398, %v1403
    %v1408 = vlaneseq
    %v1409 = vshrl.u32 %v1408, 7
    %v1410 = vsub.s32 0, %v1409
    %v1411 = vrot.slane %v1372, %v1410
    %v1413 = vadd.f32 %v1405, %v1411
    %v1414 = vadd.f32 %v1406, %v1411
    %v1415 = vld [vmem:[#allocation15] sm:$0xff]
    %v1416 = vld [vmem:[#allocation15 + $0x8] sm:$0xff]
    %v1417 = vld [vmem:[#allocation15 + $0x10] sm:$0xff]
    %v1418 = vld [vmem:[#allocation15 + $0x18] sm:$0xff]
    %v1419 = vld [vmem:[%s43] sm:$0x1]
    %v1421 = vlaneseq
    %v1422 = vshrl.u32 %v1421, 7
    %v1423 = vsub.s32 0, %v1422
    %v1424 = vrot.slane %v1419, %v1423
    %v1427 = vsel %vm261, %v1413, 0
    %v1430 = vsel %vm261, %v1414, 0
    %1432 = vmatprep.subr.mxu0 0.0
    %1433 = vmatpush1.msra.mxu0 0.0
    %1434 = vmatprep.subr.mxu0 0.0
    %1435 = vmatpush1.msra.mxu0 0.0
    %1436 = vmatprep.subr.mxu0 0.0
    %1437 = vmatpush1.msra.mxu0 0.0
    %1438 = vmatprep.subr.mxu0 0.0
    %1439 = vmatpush1.msra.mxu0 0.0
    %1440 = vmatprep.subr.mxu0 0.0
    %1441 = vmatpush1.msra.mxu0 0.0
    %1442 = vmatprep.subr.mxu0 0.0
    %1443 = vmatpush1.msra.mxu0 0.0
    %1444 = vmatprep.subr.mxu0 0.0
    %1445 = vmatpush1.msra.mxu0 0.0
    %1446 = vmatprep.subr.mxu0 0.0
    %1447 = vmatpush1.msra.mxu0 0.0
    %1448 = vmatprep.subr.mxu0 0.0
    %1449 = vmatpush1.msra.mxu0 0.0
    %1450 = vmatprep.subr.mxu0 0.0
    %1451 = vmatpush1.msra.mxu0 0.0
    %1452 = vmatprep.subr.mxu0 0.0
    %1453 = vmatpush1.msra.mxu0 0.0
    %1454 = vmatprep.subr.mxu0 0.0
    %1455 = vmatpush1.msra.mxu0 0.0
    %1456 = vmatprep.subr.mxu0 0.0
    %1457 = vmatpush1.msra.mxu0 %v1418
    %1458 = vmatprep.subr.mxu0 0.0
    %1459 = vmatpush1.msra.mxu0 %v1417
    %1460 = vmatprep.subr.mxu0 0.0
    %1461 = vmatpush1.msra.mxu0 %v1416
    %1462 = vmatprep.subr.mxu0 0.0
    %1463 = vmatpush1.msra.mxu0 %v1415
    %1464 = vmatprep.subr.mxu0 0.0
    %1465 = vmatpush2.msra.mxu0 0.0
    %1466 = vmatprep.subr.mxu0 0.0
    %1467 = vmatpush2.msra.mxu0 0.0
    %1468 = vmatprep.subr.mxu0 0.0
    %1469 = vmatpush2.msra.mxu0 0.0
    %1470 = vmatprep.subr.mxu0 0.0
    %1471 = vmatpush2.msra.mxu0 0.0
    %1472 = vmatprep.subr.mxu0 0.0
    %1473 = vmatpush2.msra.mxu0 0.0
    %1474 = vmatprep.subr.mxu0 0.0
    %1475 = vmatpush2.msra.mxu0 0.0
    %1476 = vmatprep.subr.mxu0 0.0
    %1477 = vmatpush2.msra.mxu0 0.0
    %1478 = vmatprep.subr.mxu0 0.0
    %1479 = vmatpush2.msra.mxu0 0.0
    %1480 = vmatprep.subr.mxu0 0.0
    %1481 = vmatpush2.msra.mxu0 0.0
    %1482 = vmatprep.subr.mxu0 0.0
    %1483 = vmatpush2.msra.mxu0 0.0
    %1484 = vmatprep.subr.mxu0 0.0
    %1485 = vmatpush2.msra.mxu0 0.0
    %1486 = vmatprep.subr.mxu0 0.0
    %1487 = vmatpush2.msra.mxu0 0.0
    %1488 = vmatprep.subr.mxu0 0.0
    %1489 = vmatpush2.msra.mxu0 0.0
    %1490 = vmatprep.subr.mxu0 0.0
    %1491 = vmatpush2.msra.mxu0 0.0
    %1492 = vmatprep.subr.mxu0 0.0
    %1493 = vmatpush2.msra.mxu0 0.0
    %1494 = vmatprep.subr.mxu0 0.0
    %1495 = vmatpush2.msra.mxu0 0.0
    %1496 = vmatprep.mubr.f32.mxu0 0.0
    %1497 = vmatmul.mubr.f32.gmra.mxu0 %v1427
    %v1498 = vpop.f32.mrf.mxu0
    %v1499 = vadd.f32 %v1424, %v1498
    %v1500 = vpop.f32.mrf.mxu0
    %1501 = vmatprep.mubr.f32.mxu0 0.0
    %1502 = vmatmul.mubr.f32.gmra.mxu0 %v1430
    %v1503 = vpop.f32.mrf.mxu0
    %v1504 = vadd.f32 %v1424, %v1503
    %v1505 = vpop.f32.mrf.mxu0
    %1506 = vdwg.mxu0
    %v1507 = vmul.f32 %v1499, %v1499
    %v1508 = vmul.f32 %v1504, %v1504
    %v1509 = vmul.f32 %v1499, %v1507
    %v1510 = vmul.f32 %v1504, %v1508
    %v1511 = vmul.f32 %v1509, 0.044715
    %v1512 = vmul.f32 %v1510, 0.044715
    %v1513 = vadd.f32 %v1499, %v1511
    %v1514 = vadd.f32 %v1504, %v1512
    %v1515 = vmul.f32 %v1513, 0.7978846
    %v1516 = vmul.f32 %v1514, 0.7978846
    %v1517 = vtanh.pop %v1515
    %v1518 = vtanh.pop %v1516
    %v1519 = vadd.f32 %v1517, 1.0
    %v1520 = vadd.f32 %v1518, 1.0
    %v1521 = vmul.f32 %v1519, 0.5
    %v1522 = vmul.f32 %v1520, 0.5
    %v1523 = vmul.f32 %v1499, %v1521
    %v1524 = vmul.f32 %v1504, %v1522
    %v1525 = vld [vmem:[%s45] sm:$0xff]
    %v1526 = vld [vmem:[%s45 + $0x8] sm:$0xff]
    %v1527 = vld [vmem:[%s45 + $0x10] sm:$0xff]
    %v1528 = vld [vmem:[%s45 + $0x18] sm:$0xff]
    %v1529 = vld [vmem:[%s45 + $0x20] sm:$0xff]
    %v1530 = vld [vmem:[%s45 + $0x28] sm:$0xff]
    %v1531 = vld [vmem:[%s45 + $0x30] sm:$0xff]
    %v1532 = vld [vmem:[%s45 + $0x38] sm:$0xff]
    %v1533 = vld [vmem:[%s45 + $0x40] sm:$0xff]
    %v1534 = vld [vmem:[%s45 + $0x48] sm:$0xff]
    %v1535 = vld [vmem:[%s45 + $0x50] sm:$0xff]
    %v1536 = vld [vmem:[%s45 + $0x58] sm:$0xff]
    %v1537 = vld [vmem:[%s45 + $0x60] sm:$0xff]
    %v1538 = vld [vmem:[%s45 + $0x68] sm:$0xff]
    %v1539 = vld [vmem:[%s45 + $0x70] sm:$0xff]
    %v1540 = vld [vmem:[%s45 + $0x78] sm:$0xff]
    %v1541 = vld [vmem:[%s47] sm:$0x1]
    %v1543 = vlaneseq
    %v1544 = vshrl.u32 %v1543, 7
    %v1545 = vsub.s32 0, %v1544
    %v1546 = vrot.slane %v1541, %v1545
    %1548 = vmatprep.subr.mxu0 0.0
    %1549 = vmatpush1.msra.mxu0 %v1540
    %1550 = vmatprep.subr.mxu0 0.0
    %1551 = vmatpush1.msra.mxu0 %v1539
    %1552 = vmatprep.subr.mxu0 0.0
    %1553 = vmatpush1.msra.mxu0 %v1538
    %1554 = vmatprep.subr.mxu0 0.0
    %1555 = vmatpush1.msra.mxu0 %v1537
    %1556 = vmatprep.subr.mxu0 0.0
    %1557 = vmatpush1.msra.mxu0 %v1536
    %1558 = vmatprep.subr.mxu0 0.0
    %1559 = vmatpush1.msra.mxu0 %v1535
    %1560 = vmatprep.subr.mxu0 0.0
    %1561 = vmatpush1.msra.mxu0 %v1534
    %1562 = vmatprep.subr.mxu0 0.0
    %1563 = vmatpush1.msra.mxu0 %v1533
    %1564 = vmatprep.subr.mxu0 0.0
    %1565 = vmatpush1.msra.mxu0 %v1532
    %1566 = vmatprep.subr.mxu0 0.0
    %1567 = vmatpush1.msra.mxu0 %v1531
    %1568 = vmatprep.subr.mxu0 0.0
    %1569 = vmatpush1.msra.mxu0 %v1530
    %1570 = vmatprep.subr.mxu0 0.0
    %1571 = vmatpush1.msra.mxu0 %v1529
    %1572 = vmatprep.subr.mxu0 0.0
    %1573 = vmatpush1.msra.mxu0 %v1528
    %1574 = vmatprep.subr.mxu0 0.0
    %1575 = vmatpush1.msra.mxu0 %v1527
    %1576 = vmatprep.subr.mxu0 0.0
    %1577 = vmatpush1.msra.mxu0 %v1526
    %1578 = vmatprep.subr.mxu0 0.0
    %1579 = vmatpush1.msra.mxu0 %v1525
    %1580 = vmatprep.subr.mxu0 0.0
    %1581 = vmatpush2.msra.mxu0 0.0
    %1582 = vmatprep.subr.mxu0 0.0
    %1583 = vmatpush2.msra.mxu0 0.0
    %1584 = vmatprep.subr.mxu0 0.0
    %1585 = vmatpush2.msra.mxu0 0.0
    %1586 = vmatprep.subr.mxu0 0.0
    %1587 = vmatpush2.msra.mxu0 0.0
    %1588 = vmatprep.subr.mxu0 0.0
    %1589 = vmatpush2.msra.mxu0 0.0
    %1590 = vmatprep.subr.mxu0 0.0
    %1591 = vmatpush2.msra.mxu0 0.0
    %1592 = vmatprep.subr.mxu0 0.0
    %1593 = vmatpush2.msra.mxu0 0.0
    %1594 = vmatprep.subr.mxu0 0.0
    %1595 = vmatpush2.msra.mxu0 0.0
    %1596 = vmatprep.subr.mxu0 0.0
    %1597 = vmatpush2.msra.mxu0 0.0
    %1598 = vmatprep.subr.mxu0 0.0
    %1599 = vmatpush2.msra.mxu0 0.0
    %1600 = vmatprep.subr.mxu0 0.0
    %1601 = vmatpush2.msra.mxu0 0.0
    %1602 = vmatprep.subr.mxu0 0.0
    %1603 = vmatpush2.msra.mxu0 0.0
    %1604 = vmatprep.subr.mxu0 0.0
    %1605 = vmatpush2.msra.mxu0 0.0
    %1606 = vmatprep.subr.mxu0 0.0
    %1607 = vmatpush2.msra.mxu0 0.0
    %1608 = vmatprep.subr.mxu0 0.0
    %1609 = vmatpush2.msra.mxu0 0.0
    %1610 = vmatprep.subr.mxu0 0.0
    %1611 = vmatpush2.msra.mxu0 0.0
    %1612 = vmatprep.mubr.f32.mxu0 0.0
    %1613 = vmatmul.mubr.f32.gmra.mxu0 %v1523
    %v1614 = vpop.f32.mrf.mxu0
    %v1615 = vadd.f32 %v1546, %v1614
    %v1616 = vpop.f32.mrf.mxu0
    %1617 = vmatprep.mubr.f32.mxu0 0.0
    %1618 = vmatmul.mubr.f32.gmra.mxu0 %v1524
    %v1619 = vpop.f32.mrf.mxu0
    %v1620 = vadd.f32 %v1546, %v1619
    %v1621 = vpop.f32.mrf.mxu0
    %1622 = vdwg.mxu0
    %v1623 = vadd.f32 %v1413, %v1615
    %v1624 = vadd.f32 %v1414, %v1620
    %v1625 = vld [vmem:[%s49] sm:$0x1]
    %v1626 = vld [vmem:[%s51] sm:$0x1]
    %v1627 = vsel %vm261, %v1623, 0.0
    %1628 = vadd.xlane.f32.xlu0 %v1627
    %v1629 = vpop.xlane.xlu0 %1628
    %v1630 = vsel %vm261, %v1624, 0.0
    %1631 = vadd.xlane.f32.xlu0 %v1630
    %v1632 = vpop.xlane.xlu0 %1631
    %v1633 = vmul.f32 %v1629, %v268
    %v1634 = vmul.f32 %v1632, %v268
    %v1635 = vsub.f32 %v1623, %v1633
    %v1636 = vsub.f32 %v1624, %v1634
    %v1637 = vmul.f32 %v1635, %v1635
    %v1638 = vmul.f32 %v1636, %v1636
    %v1639 = vsel %vm261, %v1637, 0.0
    %1640 = vadd.xlane.f32.xlu0 %v1639
    %v1641 = vpop.xlane.xlu0 %1640
    %v1642 = vsel %vm261, %v1638, 0.0
    %1643 = vadd.xlane.f32.xlu0 %v1642
    %v1644 = vpop.xlane.xlu0 %1643
    %v1645 = vmul.f32 %v1641, %v268
    %v1646 = vmul.f32 %v1644, %v268
    %v1647 = vadd.f32 %v1645, 1e-12
    %v1648 = vadd.f32 %v1646, 1e-12
    %v1649 = vrsqrt.pop %v1647
    %v1650 = vrsqrt.pop %v1648
    %v1651 = vmul.f32 %v1635, %v1649
    %v1652 = vmul.f32 %v1636, %v1650
    %v1654 = vlaneseq
    %v1655 = vshrl.u32 %v1654, 7
    %v1656 = vsub.s32 0, %v1655
    %v1657 = vrot.slane %v1625, %v1656
    %v1659 = vmul.f32 %v1651, %v1657
    %v1660 = vmul.f32 %v1652, %v1657
    %v1662 = vlaneseq
    %v1663 = vshrl.u32 %v1662, 7
    %v1664 = vsub.s32 0, %v1663
    %v1665 = vrot.slane %v1626, %v1664
    %v1667 = vadd.f32 %v1659, %v1665
    %v1668 = vadd.f32 %v1660, %v1665
    %s1669 = scalar_lea.vmem %s21, 32
    %v1670 = vld [vmem:[%s1669] sm:$0xff]
    %v1671 = vld [vmem:[%s1669 + $0x8] sm:$0xff]
    %v1672 = vld [vmem:[%s1669 + $0x10] sm:$0xff]
    %v1673 = vld [vmem:[%s1669 + $0x18] sm:$0xff]
    %s1674 = scalar_lea.vmem %s23, 1
    %v1675 = vld [vmem:[%s1674] sm:$0x1]
    %v1677 = vlaneseq
    %v1678 = vshrl.u32 %v1677, 7
    %v1679 = vsub.s32 0, %v1678
    %v1680 = vrot.slane %v1675, %v1679
    %v1683 = vsel %vm261, %v1667, 0
    %v1686 = vsel %vm261, %v1668, 0
    %1688 = vmatprep.subr.mxu0 0.0
    %1689 = vmatpush1.msra.mxu0 0.0
    %1690 = vmatprep.subr.mxu0 0.0
    %1691 = vmatpush1.msra.mxu0 0.0
    %1692 = vmatprep.subr.mxu0 0.0
    %1693 = vmatpush1.msra.mxu0 0.0
    %1694 = vmatprep.subr.mxu0 0.0
    %1695 = vmatpush1.msra.mxu0 0.0
    %1696 = vmatprep.subr.mxu0 0.0
    %1697 = vmatpush1.msra.mxu0 0.0
    %1698 = vmatprep.subr.mxu0 0.0
    %1699 = vmatpush1.msra.mxu0 0.0
    %1700 = vmatprep.subr.mxu0 0.0
    %1701 = vmatpush1.msra.mxu0 0.0
    %1702 = vmatprep.subr.mxu0 0.0
    %1703 = vmatpush1.msra.mxu0 0.0
    %1704 = vmatprep.subr.mxu0 0.0
    %1705 = vmatpush1.msra.mxu0 0.0
    %1706 = vmatprep.subr.mxu0 0.0
    %1707 = vmatpush1.msra.mxu0 0.0
    %1708 = vmatprep.subr.mxu0 0.0
    %1709 = vmatpush1.msra.mxu0 0.0
    %1710 = vmatprep.subr.mxu0 0.0
    %1711 = vmatpush1.msra.mxu0 0.0
    %1712 = vmatprep.subr.mxu0 0.0
    %1713 = vmatpush1.msra.mxu0 %v1673
    %1714 = vmatprep.subr.mxu0 0.0
    %1715 = vmatpush1.msra.mxu0 %v1672
    %1716 = vmatprep.subr.mxu0 0.0
    %1717 = vmatpush1.msra.mxu0 %v1671
    %1718 = vmatprep.subr.mxu0 0.0
    %1719 = vmatpush1.msra.mxu0 %v1670
    %1720 = vmatprep.subr.mxu0 0.0
    %1721 = vmatpush2.msra.mxu0 0.0
    %1722 = vmatprep.subr.mxu0 0.0
    %1723 = vmatpush2.msra.mxu0 0.0
    %1724 = vmatprep.subr.mxu0 0.0
    %1725 = vmatpush2.msra.mxu0 0.0
    %1726 = vmatprep.subr.mxu0 0.0
    %1727 = vmatpush2.msra.mxu0 0.0
    %1728 = vmatprep.subr.mxu0 0.0
    %1729 = vmatpush2.msra.mxu0 0.0
    %1730 = vmatprep.subr.mxu0 0.0
    %1731 = vmatpush2.msra.mxu0 0.0
    %1732 = vmatprep.subr.mxu0 0.0
    %1733 = vmatpush2.msra.mxu0 0.0
    %1734 = vmatprep.subr.mxu0 0.0
    %1735 = vmatpush2.msra.mxu0 0.0
    %1736 = vmatprep.subr.mxu0 0.0
    %1737 = vmatpush2.msra.mxu0 0.0
    %1738 = vmatprep.subr.mxu0 0.0
    %1739 = vmatpush2.msra.mxu0 0.0
    %1740 = vmatprep.subr.mxu0 0.0
    %1741 = vmatpush2.msra.mxu0 0.0
    %1742 = vmatprep.subr.mxu0 0.0
    %1743 = vmatpush2.msra.mxu0 0.0
    %1744 = vmatprep.subr.mxu0 0.0
    %1745 = vmatpush2.msra.mxu0 0.0
    %1746 = vmatprep.subr.mxu0 0.0
    %1747 = vmatpush2.msra.mxu0 0.0
    %1748 = vmatprep.subr.mxu0 0.0
    %1749 = vmatpush2.msra.mxu0 0.0
    %1750 = vmatprep.subr.mxu0 0.0
    %1751 = vmatpush2.msra.mxu0 0.0
    %1752 = vmatprep.mubr.f32.mxu0 0.0
    %1753 = vmatmul.mubr.f32.gmra.mxu0 %v1683
    %v1754 = vpop.f32.mrf.mxu0
    %v1755 = vadd.f32 %v1680, %v1754
    %v1756 = vpop.f32.mrf.mxu0
    %1757 = vmatprep.mubr.f32.mxu0 0.0
    %1758 = vmatmul.mubr.f32.gmra.mxu0 %v1686
    %v1759 = vpop.f32.mrf.mxu0
    %v1760 = vadd.f32 %v1680, %v1759
    %v1761 = vpop.f32.mrf.mxu0
    %1762 = vdwg.mxu0
    %s1763 = scalar_lea.vmem %s25, 32
    %v1764 = vld [vmem:[%s1763] sm:$0xff]
    %v1765 = vld [vmem:[%s1763 + $0x8] sm:$0xff]
    %v1766 = vld [vmem:[%s1763 + $0x10] sm:$0xff]
    %v1767 = vld [vmem:[%s1763 + $0x18] sm:$0xff]
    %s1768 = scalar_lea.vmem %s27, 1
    %v1769 = vld [vmem:[%s1768] sm:$0x1]
    %v1771 = vlaneseq
    %v1772 = vshrl.u32 %v1771, 7
    %v1773 = vsub.s32 0, %v1772
    %v1774 = vrot.slane %v1769, %v1773
    %1776 = vmatprep.subr.mxu0 0.0
    %1777 = vmatpush1.msra.mxu0 0.0
    %1778 = vmatprep.subr.mxu0 0.0
    %1779 = vmatpush1.msra.mxu0 0.0
    %1780 = vmatprep.subr.mxu0 0.0
    %1781 = vmatpush1.msra.mxu0 0.0
    %1782 = vmatprep.subr.mxu0 0.0
    %1783 = vmatpush1.msra.mxu0 0.0
    %1784 = vmatprep.subr.mxu0 0.0
    %1785 = vmatpush1.msra.mxu0 0.0
    %1786 = vmatprep.subr.mxu0 0.0
    %1787 = vmatpush1.msra.mxu0 0.0
    %1788 = vmatprep.subr.mxu0 0.0
    %1789 = vmatpush1.msra.mxu0 0.0
    %1790 = vmatprep.subr.mxu0 0.0
    %1791 = vmatpush1.msra.mxu0 0.0
    %1792 = vmatprep.subr.mxu0 0.0
    %1793 = vmatpush1.msra.mxu0 0.0
    %1794 = vmatprep.subr.mxu0 0.0
    %1795 = vmatpush1.msra.mxu0 0.0
    %1796 = vmatprep.subr.mxu0 0.0
    %1797 = vmatpush1.msra.mxu0 0.0
    %1798 = vmatprep.subr.mxu0 0.0
    %1799 = vmatpush1.msra.mxu0 0.0
    %1800 = vmatprep.subr.mxu0 0.0
    %1801 = vmatpush1.msra.mxu0 %v1767
    %1802 = vmatprep.subr.mxu0 0.0
    %1803 = vmatpush1.msra.mxu0 %v1766
    %1804 = vmatprep.subr.mxu0 0.0
    %1805 = vmatpush1.msra.mxu0 %v1765
    %1806 = vmatprep.subr.mxu0 0.0
    %1807 = vmatpush1.msra.mxu0 %v1764
    %1808 = vmatprep.subr.mxu0 0.0
    %1809 = vmatpush2.msra.mxu0 0.0
    %1810 = vmatprep.subr.mxu0 0.0
    %1811 = vmatpush2.msra.mxu0 0.0
    %1812 = vmatprep.subr.mxu0 0.0
    %1813 = vmatpush2.msra.mxu0 0.0
    %1814 = vmatprep.subr.mxu0 0.0
    %1815 = vmatpush2.msra.mxu0 0.0
    %1816 = vmatprep.subr.mxu0 0.0
    %1817 = vmatpush2.msra.mxu0 0.0
    %1818 = vmatprep.subr.mxu0 0.0
    %1819 = vmatpush2.msra.mxu0 0.0
    %1820 = vmatprep.subr.mxu0 0.0
    %1821 = vmatpush2.msra.mxu0 0.0
    %1822 = vmatprep.subr.mxu0 0.0
    %1823 = vmatpush2.msra.mxu0 0.0
    %1824 = vmatprep.subr.mxu0 0.0
    %1825 = vmatpush2.msra.mxu0 0.0
    %1826 = vmatprep.subr.mxu0 0.0
    %1827 = vmatpush2.msra.mxu0 0.0
    %1828 = vmatprep.subr.mxu0 0.0
    %1829 = vmatpush2.msra.mxu0 0.0
    %1830 = vmatprep.subr.mxu0 0.0
    %1831 = vmatpush2.msra.mxu0 0.0
    %1832 = vmatprep.subr.mxu0 0.0
    %1833 = vmatpush2.msra.mxu0 0.0
    %1834 = vmatprep.subr.mxu0 0.0
    %1835 = vmatpush2.msra.mxu0 0.0
    %1836 = vmatprep.subr.mxu0 0.0
    %1837 = vmatpush2.msra.mxu0 0.0
    %1838 = vmatprep.subr.mxu0 0.0
    %1839 = vmatpush2.msra.mxu0 0.0
    %1840 = vmatprep.mubr.f32.mxu0 0.0
    %1841 = vmatmul.mubr.f32.gmra.mxu0 %v1683
    %v1842 = vpop.f32.mrf.mxu0
    %v1843 = vadd.f32 %v1774, %v1842
    %v1844 = vpop.f32.mrf.mxu0
    %1845 = vmatprep.mubr.f32.mxu0 0.0
    %1846 = vmatmul.mubr.f32.gmra.mxu0 %v1686
    %v1847 = vpop.f32.mrf.mxu0
    %v1848 = vadd.f32 %v1774, %v1847
    %v1849 = vpop.f32.mrf.mxu0
    %1850 = vdwg.mxu0
    %s1851 = scalar_lea.vmem %s29, 32
    %v1852 = vld [vmem:[%s1851] sm:$0xff]
    %v1853 = vld [vmem:[%s1851 + $0x8] sm:$0xff]
    %v1854 = vld [vmem:[%s1851 + $0x10] sm:$0xff]
    %v1855 = vld [vmem:[%s1851 + $0x18] sm:$0xff]
    %s1856 = scalar_lea.vmem %s31, 1
    %v1857 = vld [vmem:[%s1856] sm:$0x1]
    %v1859 = vlaneseq
    %v1860 = vshrl.u32 %v1859, 7
    %v1861 = vsub.s32 0, %v1860
    %v1862 = vrot.slane %v1857, %v1861
    %1864 = vmatprep.subr.mxu0 0.0
    %1865 = vmatpush1.msra.mxu0 0.0
    %1866 = vmatprep.subr.mxu0 0.0
    %1867 = vmatpush1.msra.mxu0 0.0
    %1868 = vmatprep.subr.mxu0 0.0
    %1869 = vmatpush1.msra.mxu0 0.0
    %1870 = vmatprep.subr.mxu0 0.0
    %1871 = vmatpush1.msra.mxu0 0.0
    %1872 = vmatprep.subr.mxu0 0.0
    %1873 = vmatpush1.msra.mxu0 0.0
    %1874 = vmatprep.subr.mxu0 0.0
    %1875 = vmatpush1.msra.mxu0 0.0
    %1876 = vmatprep.subr.mxu0 0.0
    %1877 = vmatpush1.msra.mxu0 0.0
    %1878 = vmatprep.subr.mxu0 0.0
    %1879 = vmatpush1.msra.mxu0 0.0
    %1880 = vmatprep.subr.mxu0 0.0
    %1881 = vmatpush1.msra.mxu0 0.0
    %1882 = vmatprep.subr.mxu0 0.0
    %1883 = vmatpush1.msra.mxu0 0.0
    %1884 = vmatprep.subr.mxu0 0.0
    %1885 = vmatpush1.msra.mxu0 0.0
    %1886 = vmatprep.subr.mxu0 0.0
    %1887 = vmatpush1.msra.mxu0 0.0
    %1888 = vmatprep.subr.mxu0 0.0
    %1889 = vmatpush1.msra.mxu0 %v1855
    %1890 = vmatprep.subr.mxu0 0.0
    %1891 = vmatpush1.msra.mxu0 %v1854
    %1892 = vmatprep.subr.mxu0 0.0
    %1893 = vmatpush1.msra.mxu0 %v1853
    %1894 = vmatprep.subr.mxu0 0.0
    %1895 = vmatpush1.msra.mxu0 %v1852
    %1896 = vmatprep.subr.mxu0 0.0
    %1897 = vmatpush2.msra.mxu0 0.0
    %1898 = vmatprep.subr.mxu0 0.0
    %1899 = vmatpush2.msra.mxu0 0.0
    %1900 = vmatprep.subr.mxu0 0.0
    %1901 = vmatpush2.msra.mxu0 0.0
    %1902 = vmatprep.subr.mxu0 0.0
    %1903 = vmatpush2.msra.mxu0 0.0
    %1904 = vmatprep.subr.mxu0 0.0
    %1905 = vmatpush2.msra.mxu0 0.0
    %1906 = vmatprep.subr.mxu0 0.0
    %1907 = vmatpush2.msra.mxu0 0.0
    %1908 = vmatprep.subr.mxu0 0.0
    %1909 = vmatpush2.msra.mxu0 0.0
    %1910 = vmatprep.subr.mxu0 0.0
    %1911 = vmatpush2.msra.mxu0 0.0
    %1912 = vmatprep.subr.mxu0 0.0
    %1913 = vmatpush2.msra.mxu0 0.0
    %1914 = vmatprep.subr.mxu0 0.0
    %1915 = vmatpush2.msra.mxu0 0.0
    %1916 = vmatprep.subr.mxu0 0.0
    %1917 = vmatpush2.msra.mxu0 0.0
    %1918 = vmatprep.subr.mxu0 0.0
    %1919 = vmatpush2.msra.mxu0 0.0
    %1920 = vmatprep.subr.mxu0 0.0
    %1921 = vmatpush2.msra.mxu0 0.0
    %1922 = vmatprep.subr.mxu0 0.0
    %1923 = vmatpush2.msra.mxu0 0.0
    %1924 = vmatprep.subr.mxu0 0.0
    %1925 = vmatpush2.msra.mxu0 0.0
    %1926 = vmatprep.subr.mxu0 0.0
    %1927 = vmatpush2.msra.mxu0 0.0
    %1928 = vmatprep.mubr.f32.mxu0 0.0
    %1929 = vmatmul.mubr.f32.gmra.mxu0 %v1683
    %v1930 = vpop.f32.mrf.mxu0
    %v1931 = vadd.f32 %v1862, %v1930
    %v1932 = vpop.f32.mrf.mxu0
    %1933 = vmatprep.mubr.f32.mxu0 0.0
    %1934 = vmatmul.mubr.f32.gmra.mxu0 %v1686
    %v1935 = vpop.f32.mrf.mxu0
    %v1936 = vadd.f32 %v1862, %v1935
    %v1937 = vpop.f32.mrf.mxu0
    %1938 = vdwg.mxu0
    %v1940 = vsel %vm595, %v1755, 0
    %v1943 = vsel %vm595, %v1843, 0
    %1945 = vmatprep.subr.mxu0 0.0
    %1946 = vmatpush1.xpose.msra.mxu0 0.0
    %1947 = vmatprep.subr.mxu0 0.0
    %1948 = vmatpush1.xpose.msra.mxu0 0.0
    %1949 = vmatprep.subr.mxu0 0.0
    %1950 = vmatpush1.xpose.msra.mxu0 0.0
    %1951 = vmatprep.subr.mxu0 0.0
    %1952 = vmatpush1.xpose.msra.mxu0 0.0
    %1953 = vmatprep.subr.mxu0 0.0
    %1954 = vmatpush1.xpose.msra.mxu0 0.0
    %1955 = vmatprep.subr.mxu0 0.0
    %1956 = vmatpush1.xpose.msra.mxu0 0.0
    %1957 = vmatprep.subr.mxu0 0.0
    %1958 = vmatpush1.xpose.msra.mxu0 0.0
    %1959 = vmatprep.subr.mxu0 0.0
    %1960 = vmatpush1.xpose.msra.mxu0 0.0
    %1961 = vmatprep.subr.mxu0 0.0
    %1962 = vmatpush1.xpose.msra.mxu0 0.0
    %1963 = vmatprep.subr.mxu0 0.0
    %1964 = vmatpush1.xpose.msra.mxu0 0.0
    %1965 = vmatprep.subr.mxu0 0.0
    %1966 = vmatpush1.xpose.msra.mxu0 0.0
    %1967 = vmatprep.subr.mxu0 0.0
    %1968 = vmatpush1.xpose.msra.mxu0 0.0
    %1969 = vmatprep.subr.mxu0 0.0
    %1970 = vmatpush1.xpose.msra.mxu0 0.0
    %1971 = vmatprep.subr.mxu0 0.0
    %1972 = vmatpush1.xpose.msra.mxu0 0.0
    %1973 = vmatprep.subr.mxu0 0.0
    %1974 = vmatpush1.xpose.msra.mxu0 0.0
    %1975 = vmatprep.subr.mxu0 0.0
    %1976 = vmatpush1.xpose.msra.mxu0 %v1943
    %1977 = vmatprep.subr.mxu0 0.0
    %1978 = vmatpush2.xpose.msra.mxu0 0.0
    %1979 = vmatprep.subr.mxu0 0.0
    %1980 = vmatpush2.xpose.msra.mxu0 0.0
    %1981 = vmatprep.subr.mxu0 0.0
    %1982 = vmatpush2.xpose.msra.mxu0 0.0
    %1983 = vmatprep.subr.mxu0 0.0
    %1984 = vmatpush2.xpose.msra.mxu0 0.0
    %1985 = vmatprep.subr.mxu0 0.0
    %1986 = vmatpush2.xpose.msra.mxu0 0.0
    %1987 = vmatprep.subr.mxu0 0.0
    %1988 = vmatpush2.xpose.msra.mxu0 0.0
    %1989 = vmatprep.subr.mxu0 0.0
    %1990 = vmatpush2.xpose.msra.mxu0 0.0
    %1991 = vmatprep.subr.mxu0 0.0
    %1992 = vmatpush2.xpose.msra.mxu0 0.0
    %1993 = vmatprep.subr.mxu0 0.0
    %1994 = vmatpush2.xpose.msra.mxu0 0.0
    %1995 = vmatprep.subr.mxu0 0.0
    %1996 = vmatpush2.xpose.msra.mxu0 0.0
    %1997 = vmatprep.subr.mxu0 0.0
    %1998 = vmatpush2.xpose.msra.mxu0 0.0
    %1999 = vmatprep.subr.mxu0 0.0
    %2000 = vmatpush2.xpose.msra.mxu0 0.0
    %2001 = vmatprep.subr.mxu0 0.0
    %2002 = vmatpush2.xpose.msra.mxu0 0.0
    %2003 = vmatprep.subr.mxu0 0.0
    %2004 = vmatpush2.xpose.msra.mxu0 0.0
    %2005 = vmatprep.subr.mxu0 0.0
    %2006 = vmatpush2.xpose.msra.mxu0 0.0
    %2007 = vmatprep.subr.mxu0 0.0
    %2008 = vmatpush2.xpose.msra.mxu0 0.0
    %2009 = vmatprep.mubr.f32.mxu0 0.0
    %2010 = vmatmul.mubr.f32.gmra.mxu0 %v1940
    %v2011 = vpop.f32.mrf.mxu0
    %v2012 = vadd.f32 0.0, %v2011
    %v2013 = vpop.f32.mrf.mxu0
    %2014 = vdwg.mxu0
    %v2016 = vsel %vm595, %v1760, 0
    %v2019 = vsel %vm595, %v1848, 0
    %2021 = vmatprep.subr.mxu0 0.0
    %2022 = vmatpush1.xpose.msra.mxu0 0.0
    %2023 = vmatprep.subr.mxu0 0.0
    %2024 = vmatpush1.xpose.msra.mxu0 0.0
    %2025 = vmatprep.subr.mxu0 0.0
    %2026 = vmatpush1.xpose.msra.mxu0 0.0
    %2027 = vmatprep.subr.mxu0 0.0
    %2028 = vmatpush1.xpose.msra.mxu0 0.0
    %2029 = vmatprep.subr.mxu0 0.0
    %2030 = vmatpush1.xpose.msra.mxu0 0.0
    %2031 = vmatprep.subr.mxu0 0.0
    %2032 = vmatpush1.xpose.msra.mxu0 0.0
    %2033 = vmatprep.subr.mxu0 0.0
    %2034 = vmatpush1.xpose.msra.mxu0 0.0
    %2035 = vmatprep.subr.mxu0 0.0
    %2036 = vmatpush1.xpose.msra.mxu0 0.0
    %2037 = vmatprep.subr.mxu0 0.0
    %2038 = vmatpush1.xpose.msra.mxu0 0.0
    %2039 = vmatprep.subr.mxu0 0.0
    %2040 = vmatpush1.xpose.msra.mxu0 0.0
    %2041 = vmatprep.subr.mxu0 0.0
    %2042 = vmatpush1.xpose.msra.mxu0 0.0
    %2043 = vmatprep.subr.mxu0 0.0
    %2044 = vmatpush1.xpose.msra.mxu0 0.0
    %2045 = vmatprep.subr.mxu0 0.0
    %2046 = vmatpush1.xpose.msra.mxu0 0.0
    %2047 = vmatprep.subr.mxu0 0.0
    %2048 = vmatpush1.xpose.msra.mxu0 0.0
    %2049 = vmatprep.subr.mxu0 0.0
    %2050 = vmatpush1.xpose.msra.mxu0 0.0
    %2051 = vmatprep.subr.mxu0 0.0
    %2052 = vmatpush1.xpose.msra.mxu0 %v2019
    %2053 = vmatprep.subr.mxu0 0.0
    %2054 = vmatpush2.xpose.msra.mxu0 0.0
    %2055 = vmatprep.subr.mxu0 0.0
    %2056 = vmatpush2.xpose.msra.mxu0 0.0
    %2057 = vmatprep.subr.mxu0 0.0
    %2058 = vmatpush2.xpose.msra.mxu0 0.0
    %2059 = vmatprep.subr.mxu0 0.0
    %2060 = vmatpush2.xpose.msra.mxu0 0.0
    %2061 = vmatprep.subr.mxu0 0.0
    %2062 = vmatpush2.xpose.msra.mxu0 0.0
    %2063 = vmatprep.subr.mxu0 0.0
    %2064 = vmatpush2.xpose.msra.mxu0 0.0
    %2065 = vmatprep.subr.mxu0 0.0
    %2066 = vmatpush2.xpose.msra.mxu0 0.0
    %2067 = vmatprep.subr.mxu0 0.0
    %2068 = vmatpush2.xpose.msra.mxu0 0.0
    %2069 = vmatprep.subr.mxu0 0.0
    %2070 = vmatpush2.xpose.msra.mxu0 0.0
    %2071 = vmatprep.subr.mxu0 0.0
    %2072 = vmatpush2.xpose.msra.mxu0 0.0
    %2073 = vmatprep.subr.mxu0 0.0
    %2074 = vmatpush2.xpose.msra.mxu0 0.0
    %2075 = vmatprep.subr.mxu0 0.0
    %2076 = vmatpush2.xpose.msra.mxu0 0.0
    %2077 = vmatprep.subr.mxu0 0.0
    %2078 = vmatpush2.xpose.msra.mxu0 0.0
    %2079 = vmatprep.subr.mxu0 0.0
    %2080 = vmatpush2.xpose.msra.mxu0 0.0
    %2081 = vmatprep.subr.mxu0 0.0
    %2082 = vmatpush2.xpose.msra.mxu0 0.0
    %2083 = vmatprep.subr.mxu0 0.0
    %2084 = vmatpush2.xpose.msra.mxu0 0.0
    %2085 = vmatprep.mubr.f32.mxu0 0.0
    %2086 = vmatmul.mubr.f32.gmra.mxu0 %v2016
    %v2087 = vpop.f32.mrf.mxu0
    %v2088 = vadd.f32 0.0, %v2087
    %v2089 = vpop.f32.mrf.mxu0
    %2090 = vdwg.mxu0
    %v2091 = vmul.f32 %v2012, 0.25
    %v2092 = vmul.f32 %v2088, 0.25
    %v2093 = vadd.f32 %v2091, %v753
    %v2094 = vadd.f32 %v2092, %v757
    %v2095 = vsel %vm762, %v2093, -inf
    %2096 = vmax.xlane.f32.xlu0 %v2095
    %v2097 = vpop.xlane.xlu0 %2096
    %v2098 = vsel %vm762, %v2094, -inf
    %2099 = vmax.xlane.f32.xlu0 %v2098
    %v2100 = vpop.xlane.xlu0 %2099
    %v2101 = vsub.f32 %v2093, %v2097
    %v2102 = vsub.f32 %v2094, %v2100
    %v2103 = vmul.f32 %v2101, 1.442695
    %v2104 = vpow.pop %v2103
    %v2105 = vmul.f32 %v2102, 1.442695
    %v2106 = vpow.pop %v2105
    %v2107 = vsel %vm762, %v2104, 0.0
    %2108 = vadd.xlane.f32.xlu0 %v2107
    %v2109 = vpop.xlane.xlu0 %2108
    %v2110 = vsel %vm762, %v2106, 0.0
    %2111 = vadd.xlane.f32.xlu0 %v2110
    %v2112 = vpop.xlane.xlu0 %2111
    %v2113 = vrcp.pop %v2109
    %v2114 = vrcp.pop %v2112
    %v2115 = vmul.f32 %v2104, %v2113
    %v2116 = vmul.f32 %v2106, %v2114
    %v2118 = vsel %vm762, %v2115, 0
    %2120 = vmatprep.subr.mxu0 0.0
    %2121 = vmatpush1.msra.mxu0 0.0
    %2122 = vmatprep.subr.mxu0 0.0
    %2123 = vmatpush1.msra.mxu0 0.0
    %2124 = vmatprep.subr.mxu0 0.0
    %2125 = vmatpush1.msra.mxu0 0.0
    %2126 = vmatprep.subr.mxu0 0.0
    %2127 = vmatpush1.msra.mxu0 0.0
    %2128 = vmatprep.subr.mxu0 0.0
    %2129 = vmatpush1.msra.mxu0 0.0
    %2130 = vmatprep.subr.mxu0 0.0
    %2131 = vmatpush1.msra.mxu0 0.0
    %2132 = vmatprep.subr.mxu0 0.0
    %2133 = vmatpush1.msra.mxu0 0.0
    %2134 = vmatprep.subr.mxu0 0.0
    %2135 = vmatpush1.msra.mxu0 0.0
    %2136 = vmatprep.subr.mxu0 0.0
    %2137 = vmatpush1.msra.mxu0 0.0
    %2138 = vmatprep.subr.mxu0 0.0
    %2139 = vmatpush1.msra.mxu0 0.0
    %2140 = vmatprep.subr.mxu0 0.0
    %2141 = vmatpush1.msra.mxu0 0.0
    %2142 = vmatprep.subr.mxu0 0.0
    %2143 = vmatpush1.msra.mxu0 0.0
    %2144 = vmatprep.subr.mxu0 0.0
    %2145 = vmatpush1.msra.mxu0 0.0
    %2146 = vmatprep.subr.mxu0 0.0
    %2147 = vmatpush1.msra.mxu0 0.0
    %2148 = vmatprep.subr.mxu0 0.0
    %2149 = vmatpush1.msra.mxu0 0.0
    %2150 = vmatprep.subr.mxu0 0.0
    %2151 = vmatpush1.msra.mxu0 %v1931
    %2152 = vmatprep.subr.mxu0 0.0
    %2153 = vmatpush2.msra.mxu0 0.0
    %2154 = vmatprep.subr.mxu0 0.0
    %2155 = vmatpush2.msra.mxu0 0.0
    %2156 = vmatprep.subr.mxu0 0.0
    %2157 = vmatpush2.msra.mxu0 0.0
    %2158 = vmatprep.subr.mxu0 0.0
    %2159 = vmatpush2.msra.mxu0 0.0
    %2160 = vmatprep.subr.mxu0 0.0
    %2161 = vmatpush2.msra.mxu0 0.0
    %2162 = vmatprep.subr.mxu0 0.0
    %2163 = vmatpush2.msra.mxu0 0.0
    %2164 = vmatprep.subr.mxu0 0.0
    %2165 = vmatpush2.msra.mxu0 0.0
    %2166 = vmatprep.subr.mxu0 0.0
    %2167 = vmatpush2.msra.mxu0 0.0
    %2168 = vmatprep.subr.mxu0 0.0
    %2169 = vmatpush2.msra.mxu0 0.0
    %2170 = vmatprep.subr.mxu0 0.0
    %2171 = vmatpush2.msra.mxu0 0.0
    %2172 = vmatprep.subr.mxu0 0.0
    %2173 = vmatpush2.msra.mxu0 0.0
    %2174 = vmatprep.subr.mxu0 0.0
    %2175 = vmatpush2.msra.mxu0 0.0
    %2176 = vmatprep.subr.mxu0 0.0
    %2177 = vmatpush2.msra.mxu0 0.0
    %2178 = vmatprep.subr.mxu0 0.0
    %2179 = vmatpush2.msra.mxu0 0.0
    %2180 = vmatprep.subr.mxu0 0.0
    %2181 = vmatpush2.msra.mxu0 0.0
    %2182 = vmatprep.subr.mxu0 0.0
    %2183 = vmatpush2.msra.mxu0 0.0
    %2184 = vmatprep.mubr.f32.mxu0 0.0
    %2185 = vmatmul.mubr.f32.gmra.mxu0 %v2118
    %v2186 = vpop.f32.mrf.mxu0
    %v2187 = vadd.f32 0.0, %v2186
    %v2188 = vpop.f32.mrf.mxu0
    %2189 = vdwg.mxu0
    %v2191 = vsel %vm762, %v2116, 0
    %2193 = vmatprep.subr.mxu0 0.0
    %2194 = vmatpush1.msra.mxu0 0.0
    %2195 = vmatprep.subr.mxu0 0.0
    %2196 = vmatpush1.msra.mxu0 0.0
    %2197 = vmatprep.subr.mxu0 0.0
    %2198 = vmatpush1.msra.mxu0 0.0
    %2199 = vmatprep.subr.mxu0 0.0
    %2200 = vmatpush1.msra.mxu0 0.0
    %2201 = vmatprep.subr.mxu0 0.0
    %2202 = vmatpush1.msra.mxu0 0.0
    %2203 = vmatprep.subr.mxu0 0.0
    %2204 = vmatpush1.msra.mxu0 0.0
    %2205 = vmatprep.subr.mxu0 0.0
    %2206 = vmatpush1.msra.mxu0 0.0
    %2207 = vmatprep.subr.mxu0 0.0
    %2208 = vmatpush1.msra.mxu0 0.0
    %2209 = vmatprep.subr.mxu0 0.0
    %2210 = vmatpush1.msra.mxu0 0.0
    %2211 = vmatprep.subr.mxu0 0.0
    %2212 = vmatpush1.msra.mxu0 0.0
    %2213 = vmatprep.subr.mxu0 0.0
    %2214 = vmatpush1.msra.mxu0 0.0
    %2215 = vmatprep.subr.mxu0 0.0
    %2216 = vmatpush1.msra.mxu0 0.0
    %2217 = vmatprep.subr.mxu0 0.0
    %2218 = vmatpush1.msra.mxu0 0.0
    %2219 = vmatprep.subr.mxu0 0.0
    %2220 = vmatpush1.msra.mxu0 0.0
    %2221 = vmatprep.subr.mxu0 0.0
    %2222 = vmatpush1.msra.mxu0 0.0
    %2223 = vmatprep.subr.mxu0 0.0
    %2224 = vmatpush1.msra.mxu0 %v1936
    %2225 = vmatprep.subr.mxu0 0.0
    %2226 = vmatpush2.msra.mxu0 0.0
    %2227 = vmatprep.subr.mxu0 0.0
    %2228 = vmatpush2.msra.mxu0 0.0
    %2229 = vmatprep.subr.mxu0 0.0
    %2230 = vmatpush2.msra.mxu0 0.0
    %2231 = vmatprep.subr.mxu0 0.0
    %2232 = vmatpush2.msra.mxu0 0.0
    %2233 = vmatprep.subr.mxu0 0.0
    %2234 = vmatpush2.msra.mxu0 0.0
    %2235 = vmatprep.subr.mxu0 0.0
    %2236 = vmatpush2.msra.mxu0 0.0
    %2237 = vmatprep.subr.mxu0 0.0
    %2238 = vmatpush2.msra.mxu0 0.0
    %2239 = vmatprep.subr.mxu0 0.0
    %2240 = vmatpush2.msra.mxu0 0.0
    %2241 = vmatprep.subr.mxu0 0.0
    %2242 = vmatpush2.msra.mxu0 0.0
    %2243 = vmatprep.subr.mxu0 0.0
    %2244 = vmatpush2.msra.mxu0 0.0
    %2245 = vmatprep.subr.mxu0 0.0
    %2246 = vmatpush2.msra.mxu0 0.0
    %2247 = vmatprep.subr.mxu0 0.0
    %2248 = vmatpush2.msra.mxu0 0.0
    %2249 = vmatprep.subr.mxu0 0.0
    %2250 = vmatpush2.msra.mxu0 0.0
    %2251 = vmatprep.subr.mxu0 0.0
    %2252 = vmatpush2.msra.mxu0 0.0
    %2253 = vmatprep.subr.mxu0 0.0
    %2254 = vmatpush2.msra.mxu0 0.0
    %2255 = vmatprep.subr.mxu0 0.0
    %2256 = vmatpush2.msra.mxu0 0.0
    %2257 = vmatprep.mubr.f32.mxu0 0.0
    %2258 = vmatmul.mubr.f32.gmra.mxu0 %v2191
    %v2259 = vpop.f32.mrf.mxu0
    %v2260 = vadd.f32 0.0, %v2259
    %v2261 = vpop.f32.mrf.mxu0
    %2262 = vdwg.mxu0
    %2263 = vrot.lane.b32.xlu0 %v1755, 112
    %v2264 = vpop.permute.xlu0 %2263
    %2265 = vrot.lane.b32.xlu0 %v1843, 112
    %v2266 = vpop.permute.xlu0 %2265
    %v2267 = vsel %vm595, %v2264, 0
    %v2269 = vsel %vm595, %v2266, 0
    %2271 = vmatprep.subr.mxu0 0.0
    %2272 = vmatpush1.xpose.msra.mxu0 0.0
    %2273 = vmatprep.subr.mxu0 0.0
    %2274 = vmatpush1.xpose.msra.mxu0 0.0
    %2275 = vmatprep.subr.mxu0 0.0
    %2276 = vmatpush1.xpose.msra.mxu0 0.0
    %2277 = vmatprep.subr.mxu0 0.0
    %2278 = vmatpush1.xpose.msra.mxu0 0.0
    %2279 = vmatprep.subr.mxu0 0.0
    %2280 = vmatpush1.xpose.msra.mxu0 0.0
    %2281 = vmatprep.subr.mxu0 0.0
    %2282 = vmatpush1.xpose.msra.mxu0 0.0
    %2283 = vmatprep.subr.mxu0 0.0
    %2284 = vmatpush1.xpose.msra.mxu0 0.0
    %2285 = vmatprep.subr.mxu0 0.0
    %2286 = vmatpush1.xpose.msra.mxu0 0.0
    %2287 = vmatprep.subr.mxu0 0.0
    %2288 = vmatpush1.xpose.msra.mxu0 0.0
    %2289 = vmatprep.subr.mxu0 0.0
    %2290 = vmatpush1.xpose.msra.mxu0 0.0
    %2291 = vmatprep.subr.mxu0 0.0
    %2292 = vmatpush1.xpose.msra.mxu0 0.0
    %2293 = vmatprep.subr.mxu0 0.0
    %2294 = vmatpush1.xpose.msra.mxu0 0.0
    %2295 = vmatprep.subr.mxu0 0.0
    %2296 = vmatpush1.xpose.msra.mxu0 0.0
    %2297 = vmatprep.subr.mxu0 0.0
    %2298 = vmatpush1.xpose.msra.mxu0 0.0
    %2299 = vmatprep.subr.mxu0 0.0
    %2300 = vmatpush1.xpose.msra.mxu0 0.0
    %2301 = vmatprep.subr.mxu0 0.0
    %2302 = vmatpush1.xpose.msra.mxu0 %v2269
    %2303 = vmatprep.subr.mxu0 0.0
    %2304 = vmatpush2.xpose.msra.mxu0 0.0
    %2305 = vmatprep.subr.mxu0 0.0
    %2306 = vmatpush2.xpose.msra.mxu0 0.0
    %2307 = vmatprep.subr.mxu0 0.0
    %2308 = vmatpush2.xpose.msra.mxu0 0.0
    %2309 = vmatprep.subr.mxu0 0.0
    %2310 = vmatpush2.xpose.msra.mxu0 0.0
    %2311 = vmatprep.subr.mxu0 0.0
    %2312 = vmatpush2.xpose.msra.mxu0 0.0
    %2313 = vmatprep.subr.mxu0 0.0
    %2314 = vmatpush2.xpose.msra.mxu0 0.0
    %2315 = vmatprep.subr.mxu0 0.0
    %2316 = vmatpush2.xpose.msra.mxu0 0.0
    %2317 = vmatprep.subr.mxu0 0.0
    %2318 = vmatpush2.xpose.msra.mxu0 0.0
    %2319 = vmatprep.subr.mxu0 0.0
    %2320 = vmatpush2.xpose.msra.mxu0 0.0
    %2321 = vmatprep.subr.mxu0 0.0
    %2322 = vmatpush2.xpose.msra.mxu0 0.0
    %2323 = vmatprep.subr.mxu0 0.0
    %2324 = vmatpush2.xpose.msra.mxu0 0.0
    %2325 = vmatprep.subr.mxu0 0.0
    %2326 = vmatpush2.xpose.msra.mxu0 0.0
    %2327 = vmatprep.subr.mxu0 0.0
    %2328 = vmatpush2.xpose.msra.mxu0 0.0
    %2329 = vmatprep.subr.mxu0 0.0
    %2330 = vmatpush2.xpose.msra.mxu0 0.0
    %2331 = vmatprep.subr.mxu0 0.0
    %2332 = vmatpush2.xpose.msra.mxu0 0.0
    %2333 = vmatprep.subr.mxu0 0.0
    %2334 = vmatpush2.xpose.msra.mxu0 0.0
    %2335 = vmatprep.mubr.f32.mxu0 0.0
    %2336 = vmatmul.mubr.f32.gmra.mxu0 %v2267
    %v2337 = vpop.f32.mrf.mxu0
    %v2338 = vadd.f32 0.0, %v2337
    %v2339 = vpop.f32.mrf.mxu0
    %2340 = vdwg.mxu0
    %2341 = vrot.lane.b32.xlu0 %v1760, 112
    %v2342 = vpop.permute.xlu0 %2341
    %2343 = vrot.lane.b32.xlu0 %v1848, 112
    %v2344 = vpop.permute.xlu0 %2343
    %v2345 = vsel %vm595, %v2342, 0
    %v2347 = vsel %vm595, %v2344, 0
    %2349 = vmatprep.subr.mxu0 0.0
    %2350 = vmatpush1.xpose.msra.mxu0 0.0
    %2351 = vmatprep.subr.mxu0 0.0
    %2352 = vmatpush1.xpose.msra.mxu0 0.0
    %2353 = vmatprep.subr.mxu0 0.0
    %2354 = vmatpush1.xpose.msra.mxu0 0.0
    %2355 = vmatprep.subr.mxu0 0.0
    %2356 = vmatpush1.xpose.msra.mxu0 0.0
    %2357 = vmatprep.subr.mxu0 0.0
    %2358 = vmatpush1.xpose.msra.mxu0 0.0
    %2359 = vmatprep.subr.mxu0 0.0
    %2360 = vmatpush1.xpose.msra.mxu0 0.0
    %2361 = vmatprep.subr.mxu0 0.0
    %2362 = vmatpush1.xpose.msra.mxu0 0.0
    %2363 = vmatprep.subr.mxu0 0.0
    %2364 = vmatpush1.xpose.msra.mxu0 0.0
    %2365 = vmatprep.subr.mxu0 0.0
    %2366 = vmatpush1.xpose.msra.mxu0 0.0
    %2367 = vmatprep.subr.mxu0 0.0
    %2368 = vmatpush1.xpose.msra.mxu0 0.0
    %2369 = vmatprep.subr.mxu0 0.0
    %2370 = vmatpush1.xpose.msra.mxu0 0.0
    %2371 = vmatprep.subr.mxu0 0.0
    %2372 = vmatpush1.xpose.msra.mxu0 0.0
    %2373 = vmatprep.subr.mxu0 0.0
    %2374 = vmatpush1.xpose.msra.mxu0 0.0
    %2375 = vmatprep.subr.mxu0 0.0
    %2376 = vmatpush1.xpose.msra.mxu0 0.0
    %2377 = vmatprep.subr.mxu0 0.0
    %2378 = vmatpush1.xpose.msra.mxu0 0.0
    %2379 = vmatprep.subr.mxu0 0.0
    %2380 = vmatpush1.xpose.msra.mxu0 %v2347
    %2381 = vmatprep.subr.mxu0 0.0
    %2382 = vmatpush2.xpose.msra.mxu0 0.0
    %2383 = vmatprep.subr.mxu0 0.0
    %2384 = vmatpush2.xpose.msra.mxu0 0.0
    %2385 = vmatprep.subr.mxu0 0.0
    %2386 = vmatpush2.xpose.msra.mxu0 0.0
    %2387 = vmatprep.subr.mxu0 0.0
    %2388 = vmatpush2.xpose.msra.mxu0 0.0
    %2389 = vmatprep.subr.mxu0 0.0
    %2390 = vmatpush2.xpose.msra.mxu0 0.0
    %2391 = vmatprep.subr.mxu0 0.0
    %2392 = vmatpush2.xpose.msra.mxu0 0.0
    %2393 = vmatprep.subr.mxu0 0.0
    %2394 = vmatpush2.xpose.msra.mxu0 0.0
    %2395 = vmatprep.subr.mxu0 0.0
    %2396 = vmatpush2.xpose.msra.mxu0 0.0
    %2397 = vmatprep.subr.mxu0 0.0
    %2398 = vmatpush2.xpose.msra.mxu0 0.0
    %2399 = vmatprep.subr.mxu0 0.0
    %2400 = vmatpush2.xpose.msra.mxu0 0.0
    %2401 = vmatprep.subr.mxu0 0.0
    %2402 = vmatpush2.xpose.msra.mxu0 0.0
    %2403 = vmatprep.subr.mxu0 0.0
    %2404 = vmatpush2.xpose.msra.mxu0 0.0
    %2405 = vmatprep.subr.mxu0 0.0
    %2406 = vmatpush2.xpose.msra.mxu0 0.0
    %2407 = vmatprep.subr.mxu0 0.0
    %2408 = vmatpush2.xpose.msra.mxu0 0.0
    %2409 = vmatprep.subr.mxu0 0.0
    %2410 = vmatpush2.xpose.msra.mxu0 0.0
    %2411 = vmatprep.subr.mxu0 0.0
    %2412 = vmatpush2.xpose.msra.mxu0 0.0
    %2413 = vmatprep.mubr.f32.mxu0 0.0
    %2414 = vmatmul.mubr.f32.gmra.mxu0 %v2345
    %v2415 = vpop.f32.mrf.mxu0
    %v2416 = vadd.f32 0.0, %v2415
    %v2417 = vpop.f32.mrf.mxu0
    %2418 = vdwg.mxu0
    %v2419 = vmul.f32 %v2338, 0.25
    %v2420 = vmul.f32 %v2416, 0.25
    %v2421 = vadd.f32 %v2419, %v753
    %v2422 = vadd.f32 %v2420, %v757
    %v2423 = vsel %vm762, %v2421, -inf
    %2424 = vmax.xlane.f32.xlu0 %v2423
    %v2425 = vpop.xlane.xlu0 %2424
    %v2426 = vsel %vm762, %v2422, -inf
    %2427 = vmax.xlane.f32.xlu0 %v2426
    %v2428 = vpop.xlane.xlu0 %2427
    %v2429 = vsub.f32 %v2421, %v2425
    %v2430 = vsub.f32 %v2422, %v2428
    %v2431 = vmul.f32 %v2429, 1.442695
    %v2432 = vpow.pop %v2431
    %v2433 = vmul.f32 %v2430, 1.442695
    %v2434 = vpow.pop %v2433
    %v2435 = vsel %vm762, %v2432, 0.0
    %2436 = vadd.xlane.f32.xlu0 %v2435
    %v2437 = vpop.xlane.xlu0 %2436
    %v2438 = vsel %vm762, %v2434, 0.0
    %2439 = vadd.xlane.f32.xlu0 %v2438
    %v2440 = vpop.xlane.xlu0 %2439
    %v2441 = vrcp.pop %v2437
    %v2442 = vrcp.pop %v2440
    %v2443 = vmul.f32 %v2432, %v2441
    %v2444 = vmul.f32 %v2434, %v2442
    %2446 = vrot.lane.b32.xlu0 %v1931, 112
    %v2447 = vpop.permute.xlu0 %2446
    %v2450 = vsel %vm762, %v2443, 0
    %2452 = vmatprep.subr.mxu0 0.0
    %2453 = vmatpush1.msra.mxu0 0.0
    %2454 = vmatprep.subr.mxu0 0.0
    %2455 = vmatpush1.msra.mxu0 0.0
    %2456 = vmatprep.subr.mxu0 0.0
    %2457 = vmatpush1.msra.mxu0 0.0
    %2458 = vmatprep.subr.mxu0 0.0
    %2459 = vmatpush1.msra.mxu0 0.0
    %2460 = vmatprep.subr.mxu0 0.0
    %2461 = vmatpush1.msra.mxu0 0.0
    %2462 = vmatprep.subr.mxu0 0.0
    %2463 = vmatpush1.msra.mxu0 0.0
    %2464 = vmatprep.subr.mxu0 0.0
    %2465 = vmatpush1.msra.mxu0 0.0
    %2466 = vmatprep.subr.mxu0 0.0
    %2467 = vmatpush1.msra.mxu0 0.0
    %2468 = vmatprep.subr.mxu0 0.0
    %2469 = vmatpush1.msra.mxu0 0.0
    %2470 = vmatprep.subr.mxu0 0.0
    %2471 = vmatpush1.msra.mxu0 0.0
    %2472 = vmatprep.subr.mxu0 0.0
    %2473 = vmatpush1.msra.mxu0 0.0
    %2474 = vmatprep.subr.mxu0 0.0
    %2475 = vmatpush1.msra.mxu0 0.0
    %2476 = vmatprep.subr.mxu0 0.0
    %2477 = vmatpush1.msra.mxu0 0.0
    %2478 = vmatprep.subr.mxu0 0.0
    %2479 = vmatpush1.msra.mxu0 0.0
    %2480 = vmatprep.subr.mxu0 0.0
    %2481 = vmatpush1.msra.mxu0 0.0
    %2482 = vmatprep.subr.mxu0 0.0
    %2483 = vmatpush1.msra.mxu0 %v2447
    %2484 = vmatprep.subr.mxu0 0.0
    %2485 = vmatpush2.msra.mxu0 0.0
    %2486 = vmatprep.subr.mxu0 0.0
    %2487 = vmatpush2.msra.mxu0 0.0
    %2488 = vmatprep.subr.mxu0 0.0
    %2489 = vmatpush2.msra.mxu0 0.0
    %2490 = vmatprep.subr.mxu0 0.0
    %2491 = vmatpush2.msra.mxu0 0.0
    %2492 = vmatprep.subr.mxu0 0.0
    %2493 = vmatpush2.msra.mxu0 0.0
    %2494 = vmatprep.subr.mxu0 0.0
    %2495 = vmatpush2.msra.mxu0 0.0
    %2496 = vmatprep.subr.mxu0 0.0
    %2497 = vmatpush2.msra.mxu0 0.0
    %2498 = vmatprep.subr.mxu0 0.0
    %2499 = vmatpush2.msra.mxu0 0.0
    %2500 = vmatprep.subr.mxu0 0.0
    %2501 = vmatpush2.msra.mxu0 0.0
    %2502 = vmatprep.subr.mxu0 0.0
    %2503 = vmatpush2.msra.mxu0 0.0
    %2504 = vmatprep.subr.mxu0 0.0
    %2505 = vmatpush2.msra.mxu0 0.0
    %2506 = vmatprep.subr.mxu0 0.0
    %2507 = vmatpush2.msra.mxu0 0.0
    %2508 = vmatprep.subr.mxu0 0.0
    %2509 = vmatpush2.msra.mxu0 0.0
    %2510 = vmatprep.subr.mxu0 0.0
    %2511 = vmatpush2.msra.mxu0 0.0
    %2512 = vmatprep.subr.mxu0 0.0
    %2513 = vmatpush2.msra.mxu0 0.0
    %2514 = vmatprep.subr.mxu0 0.0
    %2515 = vmatpush2.msra.mxu0 0.0
    %2516 = vmatprep.mubr.f32.mxu0 0.0
    %2517 = vmatmul.mubr.f32.gmra.mxu0 %v2450
    %v2518 = vpop.f32.mrf.mxu0
    %v2519 = vadd.f32 0.0, %v2518
    %v2520 = vpop.f32.mrf.mxu0
    %2521 = vdwg.mxu0
    %2523 = vrot.lane.b32.xlu0 %v1936, 112
    %v2524 = vpop.permute.xlu0 %2523
    %v2527 = vsel %vm762, %v2444, 0
    %2529 = vmatprep.subr.mxu0 0.0
    %2530 = vmatpush1.msra.mxu0 0.0
    %2531 = vmatprep.subr.mxu0 0.0
    %2532 = vmatpush1.msra.mxu0 0.0
    %2533 = vmatprep.subr.mxu0 0.0
    %2534 = vmatpush1.msra.mxu0 0.0
    %2535 = vmatprep.subr.mxu0 0.0
    %2536 = vmatpush1.msra.mxu0 0.0
    %2537 = vmatprep.subr.mxu0 0.0
    %2538 = vmatpush1.msra.mxu0 0.0
    %2539 = vmatprep.subr.mxu0 0.0
    %2540 = vmatpush1.msra.mxu0 0.0
    %2541 = vmatprep.subr.mxu0 0.0
    %2542 = vmatpush1.msra.mxu0 0.0
    %2543 = vmatprep.subr.mxu0 0.0
    %2544 = vmatpush1.msra.mxu0 0.0
    %2545 = vmatprep.subr.mxu0 0.0
    %2546 = vmatpush1.msra.mxu0 0.0
    %2547 = vmatprep.subr.mxu0 0.0
    %2548 = vmatpush1.msra.mxu0 0.0
    %2549 = vmatprep.subr.mxu0 0.0
    %2550 = vmatpush1.msra.mxu0 0.0
    %2551 = vmatprep.subr.mxu0 0.0
    %2552 = vmatpush1.msra.mxu0 0.0
    %2553 = vmatprep.subr.mxu0 0.0
    %2554 = vmatpush1.msra.mxu0 0.0
    %2555 = vmatprep.subr.mxu0 0.0
    %2556 = vmatpush1.msra.mxu0 0.0
    %2557 = vmatprep.subr.mxu0 0.0
    %2558 = vmatpush1.msra.mxu0 0.0
    %2559 = vmatprep.subr.mxu0 0.0
    %2560 = vmatpush1.msra.mxu0 %v2524
    %2561 = vmatprep.subr.mxu0 0.0
    %2562 = vmatpush2.msra.mxu0 0.0
    %2563 = vmatprep.subr.mxu0 0.0
    %2564 = vmatpush2.msra.mxu0 0.0
    %2565 = vmatprep.subr.mxu0 0.0
    %2566 = vmatpush2.msra.mxu0 0.0
    %2567 = vmatprep.subr.mxu0 0.0
    %2568 = vmatpush2.msra.mxu0 0.0
    %2569 = vmatprep.subr.mxu0 0.0
    %2570 = vmatpush2.msra.mxu0 0.0
    %2571 = vmatprep.subr.mxu0 0.0
    %2572 = vmatpush2.msra.mxu0 0.0
    %2573 = vmatprep.subr.mxu0 0.0
    %2574 = vmatpush2.msra.mxu0 0.0
    %2575 = vmatprep.subr.mxu0 0.0
    %2576 = vmatpush2.msra.mxu0 0.0
    %2577 = vmatprep.subr.mxu0 0.0
    %2578 = vmatpush2.msra.mxu0 0.0
    %2579 = vmatprep.subr.mxu0 0.0
    %2580 = vmatpush2.msra.mxu0 0.0
    %2581 = vmatprep.subr.mxu0 0.0
    %2582 = vmatpush2.msra.mxu0 0.0
    %2583 = vmatprep.subr.mxu0 0.0
    %2584 = vmatpush2.msra.mxu0 0.0
    %2585 = vmatprep.subr.mxu0 0.0
    %2586 = vmatpush2.msra.mxu0 0.0
    %2587 = vmatprep.subr.mxu0 0.0
    %2588 = vmatpush2.msra.mxu0 0.0
    %2589 = vmatprep.subr.mxu0 0.0
    %2590 = vmatpush2.msra.mxu0 0.0
    %2591 = vmatprep.subr.mxu0 0.0
    %2592 = vmatpush2.msra.mxu0 0.0
    %2593 = vmatprep.mubr.f32.mxu0 0.0
    %2594 = vmatmul.mubr.f32.gmra.mxu0 %v2527
    %v2595 = vpop.f32.mrf.mxu0
    %v2596 = vadd.f32 0.0, %v2595
    %v2597 = vpop.f32.mrf.mxu0
    %2598 = vdwg.mxu0
    %2601 = vrot.lane.b32.xlu0 %v2519, 16
    %v2602 = vpop.permute.xlu0 %2601
    %2603 = vrot.lane.b32.xlu0 %v2596, 16
    %v2604 = vpop.permute.xlu0 %2603
    %v2607 = vsel %vm595, %v2187, %v2602
    %v2608 = vsel %vm595, %v2260, %v2604
    %s2609 = scalar_lea.vmem [#allocation14], 32
    %v2610 = vld [vmem:[%s2609] sm:$0xff]
    %v2611 = vld [vmem:[%s2609 + $0x8] sm:$0xff]
    %v2612 = vld [vmem:[%s2609 + $0x10] sm:$0xff]
    %v2613 = vld [vmem:[%s2609 + $0x18] sm:$0xff]
    %s2614 = scalar_lea.vmem %s35, 1
    %v2615 = vld [vmem:[%s2614] sm:$0x1]
    %v2617 = vlaneseq
    %v2618 = vshrl.u32 %v2617, 7
    %v2619 = vsub.s32 0, %v2618
    %v2620 = vrot.slane %v2615, %v2619
    %v2623 = vsel %vm261, %v2607, 0
    %v2626 = vsel %vm261, %v2608, 0
    %2628 = vmatprep.subr.mxu0 0.0
    %2629 = vmatpush1.msra.mxu0 0.0
    %2630 = vmatprep.subr.mxu0 0.0
    %2631 = vmatpush1.msra.mxu0 0.0
    %2632 = vmatprep.subr.mxu0 0.0
    %2633 = vmatpush1.msra.mxu0 0.0
    %2634 = vmatprep.subr.mxu0 0.0
    %2635 = vmatpush1.msra.mxu0 0.0
    %2636 = vmatprep.subr.mxu0 0.0
    %2637 = vmatpush1.msra.mxu0 0.0
    %2638 = vmatprep.subr.mxu0 0.0
    %2639 = vmatpush1.msra.mxu0 0.0
    %2640 = vmatprep.subr.mxu0 0.0
    %2641 = vmatpush1.msra.mxu0 0.0
    %2642 = vmatprep.subr.mxu0 0.0
    %2643 = vmatpush1.msra.mxu0 0.0
    %2644 = vmatprep.subr.mxu0 0.0
    %2645 = vmatpush1.msra.mxu0 0.0
    %2646 = vmatprep.subr.mxu0 0.0
    %2647 = vmatpush1.msra.mxu0 0.0
    %2648 = vmatprep.subr.mxu0 0.0
    %2649 = vmatpush1.msra.mxu0 0.0
    %2650 = vmatprep.subr.mxu0 0.0
    %2651 = vmatpush1.msra.mxu0 0.0
    %2652 = vmatprep.subr.mxu0 0.0
    %2653 = vmatpush1.msra.mxu0 %v2613
    %2654 = vmatprep.subr.mxu0 0.0
    %2655 = vmatpush1.msra.mxu0 %v2612
    %2656 = vmatprep.subr.mxu0 0.0
    %2657 = vmatpush1.msra.mxu0 %v2611
    %2658 = vmatprep.subr.mxu0 0.0
    %2659 = vmatpush1.msra.mxu0 %v2610
    %2660 = vmatprep.subr.mxu0 0.0
    %2661 = vmatpush2.msra.mxu0 0.0
    %2662 = vmatprep.subr.mxu0 0.0
    %2663 = vmatpush2.msra.mxu0 0.0
    %2664 = vmatprep.subr.mxu0 0.0
    %2665 = vmatpush2.msra.mxu0 0.0
    %2666 = vmatprep.subr.mxu0 0.0
    %2667 = vmatpush2.msra.mxu0 0.0
    %2668 = vmatprep.subr.mxu0 0.0
    %2669 = vmatpush2.msra.mxu0 0.0
    %2670 = vmatprep.subr.mxu0 0.0
    %2671 = vmatpush2.msra.mxu0 0.0
    %2672 = vmatprep.subr.mxu0 0.0
    %2673 = vmatpush2.msra.mxu0 0.0
    %2674 = vmatprep.subr.mxu0 0.0
    %2675 = vmatpush2.msra.mxu0 0.0
    %2676 = vmatprep.subr.mxu0 0.0
    %2677 = vmatpush2.msra.mxu0 0.0
    %2678 = vmatprep.subr.mxu0 0.0
    %2679 = vmatpush2.msra.mxu0 0.0
    %2680 = vmatprep.subr.mxu0 0.0
    %2681 = vmatpush2.msra.mxu0 0.0
    %2682 = vmatprep.subr.mxu0 0.0
    %2683 = vmatpush2.msra.mxu0 0.0
    %2684 = vmatprep.subr.mxu0 0.0
    %2685 = vmatpush2.msra.mxu0 0.0
    %2686 = vmatprep.subr.mxu0 0.0
    %2687 = vmatpush2.msra.mxu0 0.0
    %2688 = vmatprep.subr.mxu0 0.0
    %2689 = vmatpush2.msra.mxu0 0.0
    %2690 = vmatprep.subr.mxu0 0.0
    %2691 = vmatpush2.msra.mxu0 0.0
    %2692 = vmatprep.mubr.f32.mxu0 0.0
    %2693 = vmatmul.mubr.f32.gmra.mxu0 %v2623
    %v2694 = vpop.f32.mrf.mxu0
    %v2695 = vadd.f32 %v2620, %v2694
    %v2696 = vpop.f32.mrf.mxu0
    %2697 = vmatprep.mubr.f32.mxu0 0.0
    %2698 = vmatmul.mubr.f32.gmra.mxu0 %v2626
    %v2699 = vpop.f32.mrf.mxu0
    %v2700 = vadd.f32 %v2620, %v2699
    %v2701 = vpop.f32.mrf.mxu0
    %2702 = vdwg.mxu0
    %v2703 = vadd.f32 %v1667, %v2695
    %v2704 = vadd.f32 %v1668, %v2700
    %s2705 = scalar_lea.vmem %s37, 1
    %v2706 = vld [vmem:[%s2705] sm:$0x1]
    %s2707 = scalar_lea.vmem %s39, 1
    %v2708 = vld [vmem:[%s2707] sm:$0x1]
    %v2709 = vsel %vm261, %v2703, 0.0
    %2710 = vadd.xlane.f32.xlu0 %v2709
    %v2711 = vpop.xlane.xlu0 %2710
    %v2712 = vsel %vm261, %v2704, 0.0
    %2713 = vadd.xlane.f32.xlu0 %v2712
    %v2714 = vpop.xlane.xlu0 %2713
    %v2715 = vmul.f32 %v2711, %v268
    %v2716 = vmul.f32 %v2714, %v268
    %v2717 = vsub.f32 %v2703, %v2715
    %v2718 = vsub.f32 %v2704, %v2716
    %v2719 = vmul.f32 %v2717, %v2717
    %v2720 = vmul.f32 %v2718, %v2718
    %v2721 = vsel %vm261, %v2719, 0.0
    %2722 = vadd.xlane.f32.xlu0 %v2721
    %v2723 = vpop.xlane.xlu0 %2722
    %v2724 = vsel %vm261, %v2720, 0.0
    %2725 = vadd.xlane.f32.xlu0 %v2724
    %v2726 = vpop.xlane.xlu0 %2725
    %v2727 = vmul.f32 %v2723, %v268
    %v2728 = vmul.f32 %v2726, %v268
    %v2729 = vadd.f32 %v2727, 1e-12
    %v2730 = vadd.f32 %v2728, 1e-12
    %v2731 = vrsqrt.pop %v2729
    %v2732 = vrsqrt.pop %v2730
    %v2733 = vmul.f32 %v2717, %v2731
    %v2734 = vmul.f32 %v2718, %v2732
    %v2736 = vlaneseq
    %v2737 = vshrl.u32 %v2736, 7
    %v2738 = vsub.s32 0, %v2737
    %v2739 = vrot.slane %v2706, %v2738
    %v2741 = vmul.f32 %v2733, %v2739
    %v2742 = vmul.f32 %v2734, %v2739
    %v2744 = vlaneseq
    %v2745 = vshrl.u32 %v2744, 7
    %v2746 = vsub.s32 0, %v2745
    %v2747 = vrot.slane %v2708, %v2746
    %v2749 = vadd.f32 %v2741, %v2747
    %v2750 = vadd.f32 %v2742, %v2747
    %s2751 = scalar_lea.vmem [#allocation15], 32
    %v2752 = vld [vmem:[%s2751] sm:$0xff]
    %v2753 = vld [vmem:[%s2751 + $0x8] sm:$0xff]
    %v2754 = vld [vmem:[%s2751 + $0x10] sm:$0xff]
    %v2755 = vld [vmem:[%s2751 + $0x18] sm:$0xff]
    %s2756 = scalar_lea.vmem %s43, 1
    %v2757 = vld [vmem:[%s2756] sm:$0x1]
    %v2759 = vlaneseq
    %v2760 = vshrl.u32 %v2759, 7
    %v2761 = vsub.s32 0, %v2760
    %v2762 = vrot.slane %v2757, %v2761
    %v2765 = vsel %vm261, %v2749, 0
    %v2768 = vsel %vm261, %v2750, 0
    %2770 = vmatprep.subr.mxu0 0.0
    %2771 = vmatpush1.msra.mxu0 0.0
    %2772 = vmatprep.subr.mxu0 0.0
    %2773 = vmatpush1.msra.mxu0 0.0
    %2774 = vmatprep.subr.mxu0 0.0
    %2775 = vmatpush1.msra.mxu0 0.0
    %2776 = vmatprep.subr.mxu0 0.0
    %2777 = vmatpush1.msra.mxu0 0.0
    %2778 = vmatprep.subr.mxu0 0.0
    %2779 = vmatpush1.msra.mxu0 0.0
    %2780 = vmatprep.subr.mxu0 0.0
    %2781 = vmatpush1.msra.mxu0 0.0
    %2782 = vmatprep.subr.mxu0 0.0
    %2783 = vmatpush1.msra.mxu0 0.0
    %2784 = vmatprep.subr.mxu0 0.0
    %2785 = vmatpush1.msra.mxu0 0.0
    %2786 = vmatprep.subr.mxu0 0.0
    %2787 = vmatpush1.msra.mxu0 0.0
    %2788 = vmatprep.subr.mxu0 0.0
    %2789 = vmatpush1.msra.mxu0 0.0
    %2790 = vmatprep.subr.mxu0 0.0
    %2791 = vmatpush1.msra.mxu0 0.0
    %2792 = vmatprep.subr.mxu0 0.0
    %2793 = vmatpush1.msra.mxu0 0.0
    %2794 = vmatprep.subr.mxu0 0.0
    %2795 = vmatpush1.msra.mxu0 %v2755
    %2796 = vmatprep.subr.mxu0 0.0
    %2797 = vmatpush1.msra.mxu0 %v2754
    %2798 = vmatprep.subr.mxu0 0.0
    %2799 = vmatpush1.msra.mxu0 %v2753
    %2800 = vmatprep.subr.mxu0 0.0
    %2801 = vmatpush1.msra.mxu0 %v2752
    %2802 = vmatprep.subr.mxu0 0.0
    %2803 = vmatpush2.msra.mxu0 0.0
    %2804 = vmatprep.subr.mxu0 0.0
    %2805 = vmatpush2.msra.mxu0 0.0
    %2806 = vmatprep.subr.mxu0 0.0
    %2807 = vmatpush2.msra.mxu0 0.0
    %2808 = vmatprep.subr.mxu0 0.0
    %2809 = vmatpush2.msra.mxu0 0.0
    %2810 = vmatprep.subr.mxu0 0.0
    %2811 = vmatpush2.msra.mxu0 0.0
    %2812 = vmatprep.subr.mxu0 0.0
    %2813 = vmatpush2.msra.mxu0 0.0
    %2814 = vmatprep.subr.mxu0 0.0
    %2815 = vmatpush2.msra.mxu0 0.0
    %2816 = vmatprep.subr.mxu0 0.0
    %2817 = vmatpush2.msra.mxu0 0.0
    %2818 = vmatprep.subr.mxu0 0.0
    %2819 = vmatpush2.msra.mxu0 0.0
    %2820 = vmatprep.subr.mxu0 0.0
    %2821 = vmatpush2.msra.mxu0 0.0
    %2822 = vmatprep.subr.mxu0 0.0
    %2823 = vmatpush2.msra.mxu0 0.0
    %2824 = vmatprep.subr.mxu0 0.0
    %2825 = vmatpush2.msra.mxu0 0.0
    %2826 = vmatprep.subr.mxu0 0.0
    %2827 = vmatpush2.msra.mxu0 0.0
    %2828 = vmatprep.subr.mxu0 0.0
    %2829 = vmatpush2.msra.mxu0 0.0
    %2830 = vmatprep.subr.mxu0 0.0
    %2831 = vmatpush2.msra.mxu0 0.0
    %2832 = vmatprep.subr.mxu0 0.0
    %2833 = vmatpush2.msra.mxu0 0.0
    %2834 = vmatprep.mubr.f32.mxu0 0.0
    %2835 = vmatmul.mubr.f32.gmra.mxu0 %v2765
    %v2836 = vpop.f32.mrf.mxu0
    %v2837 = vadd.f32 %v2762, %v2836
    %v2838 = vpop.f32.mrf.mxu0
    %2839 = vmatprep.mubr.f32.mxu0 0.0
    %2840 = vmatmul.mubr.f32.gmra.mxu0 %v2768
    %v2841 = vpop.f32.mrf.mxu0
    %v2842 = vadd.f32 %v2762, %v2841
    %v2843 = vpop.f32.mrf.mxu0
    %2844 = vdwg.mxu0
    %v2845 = vmul.f32 %v2837, %v2837
    %v2846 = vmul.f32 %v2842, %v2842
    %v2847 = vmul.f32 %v2837, %v2845
    %v2848 = vmul.f32 %v2842, %v2846
    %v2849 = vmul.f32 %v2847, 0.044715
    %v2850 = vmul.f32 %v2848, 0.044715
    %v2851 = vadd.f32 %v2837, %v2849
    %v2852 = vadd.f32 %v2842, %v2850
    %v2853 = vmul.f32 %v2851, 0.7978846
    %v2854 = vmul.f32 %v2852, 0.7978846
    %v2855 = vtanh.pop %v2853
    %v2856 = vtanh.pop %v2854
    %v2857 = vadd.f32 %v2855, 1.0
    %v2858 = vadd.f32 %v2856, 1.0
    %v2859 = vmul.f32 %v2857, 0.5
    %v2860 = vmul.f32 %v2858, 0.5
    %v2861 = vmul.f32 %v2837, %v2859
    %v2862 = vmul.f32 %v2842, %v2860
    %s2863 = scalar_lea.vmem %s45, 128
    %v2864 = vld [vmem:[%s2863] sm:$0xff]
    %v2865 = vld [vmem:[%s2863 + $0x8] sm:$0xff]
    %v2866 = vld [vmem:[%s2863 + $0x10] sm:$0xff]
    %v2867 = vld [vmem:[%s2863 + $0x18] sm:$0xff]
    %v2868 = vld [vmem:[%s2863 + $0x20] sm:$0xff]
    %v2869 = vld [vmem:[%s2863 + $0x28] sm:$0xff]
    %v2870 = vld [vmem:[%s2863 + $0x30] sm:$0xff]
    %v2871 = vld [vmem:[%s2863 + $0x38] sm:$0xff]
    %v2872 = vld [vmem:[%s2863 + $0x40] sm:$0xff]
    %v2873 = vld [vmem:[%s2863 + $0x48] sm:$0xff]
    %v2874 = vld [vmem:[%s2863 + $0x50] sm:$0xff]
    %v2875 = vld [vmem:[%s2863 + $0x58] sm:$0xff]
    %v2876 = vld [vmem:[%s2863 + $0x60] sm:$0xff]
    %v2877 = vld [vmem:[%s2863 + $0x68] sm:$0xff]
    %v2878 = vld [vmem:[%s2863 + $0x70] sm:$0xff]
    %v2879 = vld [vmem:[%s2863 + $0x78] sm:$0xff]
    %s2880 = scalar_lea.vmem %s47, 1
    %v2881 = vld [vmem:[%s2880] sm:$0x1]
    %v2883 = vlaneseq
    %v2884 = vshrl.u32 %v2883, 7
    %v2885 = vsub.s32 0, %v2884
    %v2886 = vrot.slane %v2881, %v2885
    %2888 = vmatprep.subr.mxu0 0.0
    %2889 = vmatpush1.msra.mxu0 %v2879
    %2890 = vmatprep.subr.mxu0 0.0
    %2891 = vmatpush1.msra.mxu0 %v2878
    %2892 = vmatprep.subr.mxu0 0.0
    %2893 = vmatpush1.msra.mxu0 %v2877
    %2894 = vmatprep.subr.mxu0 0.0
    %2895 = vmatpush1.msra.mxu0 %v2876
    %2896 = vmatprep.subr.mxu0 0.0
    %2897 = vmatpush1.msra.mxu0 %v2875
    %2898 = vmatprep.subr.mxu0 0.0
    %2899 = vmatpush1.msra.mxu0 %v2874
    %2900 = vmatprep.subr.mxu0 0.0
    %2901 = vmatpush1.msra.mxu0 %v2873
    %2902 = vmatprep.subr.mxu0 0.0
    %2903 = vmatpush1.msra.mxu0 %v2872
    %2904 = vmatprep.subr.mxu0 0.0
    %2905 = vmatpush1.msra.mxu0 %v2871
    %2906 = vmatprep.subr.mxu0 0.0
    %2907 = vmatpush1.msra.mxu0 %v2870
    %2908 = vmatprep.subr.mxu0 0.0
    %2909 = vmatpush1.msra.mxu0 %v2869
    %2910 = vmatprep.subr.mxu0 0.0
    %2911 = vmatpush1.msra.mxu0 %v2868
    %2912 = vmatprep.subr.mxu0 0.0
    %2913 = vmatpush1.msra.mxu0 %v2867
    %2914 = vmatprep.subr.mxu0 0.0
    %2915 = vmatpush1.msra.mxu0 %v2866
    %2916 = vmatprep.subr.mxu0 0.0
    %2917 = vmatpush1.msra.mxu0 %v2865
    %2918 = vmatprep.subr.mxu0 0.0
    %2919 = vmatpush1.msra.mxu0 %v2864
    %2920 = vmatprep.subr.mxu0 0.0
    %2921 = vmatpush2.msra.mxu0 0.0
    %2922 = vmatprep.subr.mxu0 0.0
    %2923 = vmatpush2.msra.mxu0 0.0
    %2924 = vmatprep.subr.mxu0 0.0
    %2925 = vmatpush2.msra.mxu0 0.0
    %2926 = vmatprep.subr.mxu0 0.0
    %2927 = vmatpush2.msra.mxu0 0.0
    %2928 = vmatprep.subr.mxu0 0.0
    %2929 = vmatpush2.msra.mxu0 0.0
    %2930 = vmatprep.subr.mxu0 0.0
    %2931 = vmatpush2.msra.mxu0 0.0
    %2932 = vmatprep.subr.mxu0 0.0
    %2933 = vmatpush2.msra.mxu0 0.0
    %2934 = vmatprep.subr.mxu0 0.0
    %2935 = vmatpush2.msra.mxu0 0.0
    %2936 = vmatprep.subr.mxu0 0.0
    %2937 = vmatpush2.msra.mxu0 0.0
    %2938 = vmatprep.subr.mxu0 0.0
    %2939 = vmatpush2.msra.mxu0 0.0
    %2940 = vmatprep.subr.mxu0 0.0
    %2941 = vmatpush2.msra.mxu0 0.0
    %2942 = vmatprep.subr.mxu0 0.0
    %2943 = vmatpush2.msra.mxu0 0.0
    %2944 = vmatprep.subr.mxu0 0.0
    %2945 = vmatpush2.msra.mxu0 0.0
    %2946 = vmatprep.subr.mxu0 0.0
    %2947 = vmatpush2.msra.mxu0 0.0
    %2948 = vmatprep.subr.mxu0 0.0
    %2949 = vmatpush2.msra.mxu0 0.0
    %2950 = vmatprep.subr.mxu0 0.0
    %2951 = vmatpush2.msra.mxu0 0.0
    %2952 = vmatprep.mubr.f32.mxu0 0.0
    %2953 = vmatmul.mubr.f32.gmra.mxu0 %v2861
    %v2954 = vpop.f32.mrf.mxu0
    %v2955 = vadd.f32 %v2886, %v2954
    %v2956 = vpop.f32.mrf.mxu0
    %2957 = vmatprep.mubr.f32.mxu0 0.0
    %2958 = vmatmul.mubr.f32.gmra.mxu0 %v2862
    %v2959 = vpop.f32.mrf.mxu0
    %v2960 = vadd.f32 %v2886, %v2959
    %v2961 = vpop.f32.mrf.mxu0
    %2962 = vdwg.mxu0
    %v2963 = vadd.f32 %v2749, %v2955
    %v2964 = vadd.f32 %v2750, %v2960
    %s2965 = scalar_lea.vmem %s49, 1
    %v2966 = vld [vmem:[%s2965] sm:$0x1]
    %s2967 = scalar_lea.vmem %s51, 1
    %v2968 = vld [vmem:[%s2967] sm:$0x1]
    %v2969 = vsel %vm261, %v2963, 0.0
    %2970 = vadd.xlane.f32.xlu0 %v2969
    %v2971 = vpop.xlane.xlu0 %2970
    %v2972 = vsel %vm261, %v2964, 0.0
    %2973 = vadd.xlane.f32.xlu0 %v2972
    %v2974 = vpop.xlane.xlu0 %2973
    %v2975 = vmul.f32 %v2971, %v268
    %v2976 = vmul.f32 %v2974, %v268
    %v2977 = vsub.f32 %v2963, %v2975
    %v2978 = vsub.f32 %v2964, %v2976
    %v2979 = vmul.f32 %v2977, %v2977
    %v2980 = vmul.f32 %v2978, %v2978
    %v2981 = vsel %vm261, %v2979, 0.0
    %2982 = vadd.xlane.f32.xlu0 %v2981
    %v2983 = vpop.xlane.xlu0 %2982
    %v2984 = vsel %vm261, %v2980, 0.0
    %2985 = vadd.xlane.f32.xlu0 %v2984
    %v2986 = vpop.xlane.xlu0 %2985
    %v2987 = vmul.f32 %v2983, %v268
    %v2988 = vmul.f32 %v2986, %v268
    %v2989 = vadd.f32 %v2987, 1e-12
    %v2990 = vadd.f32 %v2988, 1e-12
    %v2991 = vrsqrt.pop %v2989
    %v2992 = vrsqrt.pop %v2990
    %v2993 = vmul.f32 %v2977, %v2991
    %v2994 = vmul.f32 %v2978, %v2992
    %v2996 = vlaneseq
    %v2997 = vshrl.u32 %v2996, 7
    %v2998 = vsub.s32 0, %v2997
    %v2999 = vrot.slane %v2966, %v2998
    %v3001 = vmul.f32 %v2993, %v2999
    %v3002 = vmul.f32 %v2994, %v2999
    %v3004 = vlaneseq
    %v3005 = vshrl.u32 %v3004, 7
    %v3006 = vsub.s32 0, %v3005
    %v3007 = vrot.slane %v2968, %v3006
    %v3009 = vadd.f32 %v3001, %v3007
    %v3010 = vadd.f32 %v3002, %v3007
    %v3011 = vlaneseq
    %v3012 = vand.u32 %v3011, 127
    %v3013 = vld [vmem:[%s5] sm:$0x3]
    %3014 = vset.pattern.permute.xlu0 0
    %3015 = vperm.xlu0 %3014, %v3013
    %v3016 = vpop.permute.xlu0 %3015
    %vm3017 = vcmp.eq.s32.totalorder %v3012, %v3016
    %v3018 = vsel %vm3017, 1, 0
    %v3019 = vcvt.s32.f32 %v3018
    %v3022 = vunpack.c.l.s4 1966171168
    %v3023 = vunpack.c.0.s8 %v3022
    %v3024 = vlaneseq
    %v3025 = vshrl.u32 %v3024, 7
    %v3026 = vsub.s32 %v3023, %v3025
    %v3027 = vrot.slane %v3019, %v3026
    %v3028 = vcombine.high %v3027, %v3027
    %v3030 = vunpack.c.l.s4 1966171168
    %v3031 = vunpack.c.0.s8 %v3030
    %v3032 = vlaneseq
    %v3033 = vshrl.u32 %v3032, 7
    %v3034 = vsub.s32 %v3031, %v3033
    %v3035 = vrot.slane %v3027, %v3034
    %v3037 = vunpack.c.l.s4 1966171168
    %v3038 = vunpack.c.0.s8 %v3037
    %v3039 = vlaneseq
    %v3040 = vshrl.u32 %v3039, 7
    %v3041 = vsub.s32 %v3038, %v3040
    %v3042 = vrot.slane %v3028, %v3041
    %v3045 = vld [vmem:[%s7] sm:$0x3]
    %3046 = vset.pattern.permute.xlu0 0
    %3047 = vperm.xlu0 %3046, %v3045
    %v3048 = vpop.permute.xlu0 %3047
    %vm3049 = vcmp.eq.s32.totalorder %v3012, %v3048
    %v3050 = vsel %vm3049, 1, 0
    %v3051 = vcvt.s32.f32 %v3050
    %v3054 = vunpack.c.l.s4 1966171168
    %v3055 = vunpack.c.0.s8 %v3054
    %v3056 = vlaneseq
    %v3057 = vshrl.u32 %v3056, 7
    %v3058 = vsub.s32 %v3055, %v3057
    %v3059 = vrot.slane %v3051, %v3058
    %v3060 = vcombine.high %v3059, %v3059
    %v3062 = vunpack.c.l.s4 1966171168
    %v3063 = vunpack.c.0.s8 %v3062
    %v3064 = vlaneseq
    %v3065 = vshrl.u32 %v3064, 7
    %v3066 = vsub.s32 %v3063, %v3065
    %v3067 = vrot.slane %v3059, %v3066
    %v3069 = vunpack.c.l.s4 1966171168
    %v3070 = vunpack.c.0.s8 %v3069
    %v3071 = vlaneseq
    %v3072 = vshrl.u32 %v3071, 7
    %v3073 = vsub.s32 %v3070, %v3072
    %v3074 = vrot.slane %v3060, %v3073
    %v3075 = vlaneseq
    %v3076 = vshrl.u32 %v3075, 7
    %v3077 = vsub.s32 0, %v3076
    %v3078 = vrot.slane %v3067, %v3077
    %v3079 = vlaneseq
    %v3080 = vshrl.u32 %v3079, 7
    %v3081 = vsub.s32 0, %v3080
    %v3082 = vrot.slane %v3074, %v3081
    %vm3085 = vcmask 1040384
    %v3086 = vsel %vm3085, %v3035, %v3078
    %v3087 = vsel %vm3085, %v3042, %v3082
    %v3089 = vsel %vm762, %v3086, 0
    %3091 = vmatprep.subr.mxu0 0.0
    %3092 = vmatpush1.msra.mxu0 0.0
    %3093 = vmatprep.subr.mxu0 0.0
    %3094 = vmatpush1.msra.mxu0 0.0
    %3095 = vmatprep.subr.mxu0 0.0
    %3096 = vmatpush1.msra.mxu0 0.0
    %3097 = vmatprep.subr.mxu0 0.0
    %3098 = vmatpush1.msra.mxu0 0.0
    %3099 = vmatprep.subr.mxu0 0.0
    %3100 = vmatpush1.msra.mxu0 0.0
    %3101 = vmatprep.subr.mxu0 0.0
    %3102 = vmatpush1.msra.mxu0 0.0
    %3103 = vmatprep.subr.mxu0 0.0
    %3104 = vmatpush1.msra.mxu0 0.0
    %3105 = vmatprep.subr.mxu0 0.0
    %3106 = vmatpush1.msra.mxu0 0.0
    %3107 = vmatprep.subr.mxu0 0.0
    %3108 = vmatpush1.msra.mxu0 0.0
    %3109 = vmatprep.subr.mxu0 0.0
    %3110 = vmatpush1.msra.mxu0 0.0
    %3111 = vmatprep.subr.mxu0 0.0
    %3112 = vmatpush1.msra.mxu0 0.0
    %3113 = vmatprep.subr.mxu0 0.0
    %3114 = vmatpush1.msra.mxu0 0.0
    %3115 = vmatprep.subr.mxu0 0.0
    %3116 = vmatpush1.msra.mxu0 0.0
    %3117 = vmatprep.subr.mxu0 0.0
    %3118 = vmatpush1.msra.mxu0 0.0
    %3119 = vmatprep.subr.mxu0 0.0
    %3120 = vmatpush1.msra.mxu0 0.0
    %3121 = vmatprep.subr.mxu0 0.0
    %3122 = vmatpush1.msra.mxu0 %v3009
    %3123 = vmatprep.subr.mxu0 0.0
    %3124 = vmatpush2.msra.mxu0 0.0
    %3125 = vmatprep.subr.mxu0 0.0
    %3126 = vmatpush2.msra.mxu0 0.0
    %3127 = vmatprep.subr.mxu0 0.0
    %3128 = vmatpush2.msra.mxu0 0.0
    %3129 = vmatprep.subr.mxu0 0.0
    %3130 = vmatpush2.msra.mxu0 0.0
    %3131 = vmatprep.subr.mxu0 0.0
    %3132 = vmatpush2.msra.mxu0 0.0
    %3133 = vmatprep.subr.mxu0 0.0
    %3134 = vmatpush2.msra.mxu0 0.0
    %3135 = vmatprep.subr.mxu0 0.0
    %3136 = vmatpush2.msra.mxu0 0.0
    %3137 = vmatprep.subr.mxu0 0.0
    %3138 = vmatpush2.msra.mxu0 0.0
    %3139 = vmatprep.subr.mxu0 0.0
    %3140 = vmatpush2.msra.mxu0 0.0
    %3141 = vmatprep.subr.mxu0 0.0
    %3142 = vmatpush2.msra.mxu0 0.0
    %3143 = vmatprep.subr.mxu0 0.0
    %3144 = vmatpush2.msra.mxu0 0.0
    %3145 = vmatprep.subr.mxu0 0.0
    %3146 = vmatpush2.msra.mxu0 0.0
    %3147 = vmatprep.subr.mxu0 0.0
    %3148 = vmatpush2.msra.mxu0 0.0
    %3149 = vmatprep.subr.mxu0 0.0
    %3150 = vmatpush2.msra.mxu0 0.0
    %3151 = vmatprep.subr.mxu0 0.0
    %3152 = vmatpush2.msra.mxu0 0.0
    %3153 = vmatprep.subr.mxu0 0.0
    %3154 = vmatpush2.msra.mxu0 0.0
    %3155 = vmatprep.mubr.f32.mxu0 0.0
    %3156 = vmatmul.mubr.f32.gmra.mxu0 %v3089
    %v3157 = vpop.f32.mrf.mxu0
    %v3158 = vadd.f32 0.0, %v3157
    %v3159 = vpop.f32.mrf.mxu0
    %3160 = vdwg.mxu0
    %v3162 = vsel %vm762, %v3087, 0
    %3164 = vmatprep.subr.mxu0 0.0
    %3165 = vmatpush1.msra.mxu0 0.0
    %3166 = vmatprep.subr.mxu0 0.0
    %3167 = vmatpush1.msra.mxu0 0.0
    %3168 = vmatprep.subr.mxu0 0.0
    %3169 = vmatpush1.msra.mxu0 0.0
    %3170 = vmatprep.subr.mxu0 0.0
    %3171 = vmatpush1.msra.mxu0 0.0
    %3172 = vmatprep.subr.mxu0 0.0
    %3173 = vmatpush1.msra.mxu0 0.0
    %3174 = vmatprep.subr.mxu0 0.0
    %3175 = vmatpush1.msra.mxu0 0.0
    %3176 = vmatprep.subr.mxu0 0.0
    %3177 = vmatpush1.msra.mxu0 0.0
    %3178 = vmatprep.subr.mxu0 0.0
    %3179 = vmatpush1.msra.mxu0 0.0
    %3180 = vmatprep.subr.mxu0 0.0
    %3181 = vmatpush1.msra.mxu0 0.0
    %3182 = vmatprep.subr.mxu0 0.0
    %3183 = vmatpush1.msra.mxu0 0.0
    %3184 = vmatprep.subr.mxu0 0.0
    %3185 = vmatpush1.msra.mxu0 0.0
    %3186 = vmatprep.subr.mxu0 0.0
    %3187 = vmatpush1.msra.mxu0 0.0
    %3188 = vmatprep.subr.mxu0 0.0
    %3189 = vmatpush1.msra.mxu0 0.0
    %3190 = vmatprep.subr.mxu0 0.0
    %3191 = vmatpush1.msra.mxu0 0.0
    %3192 = vmatprep.subr.mxu0 0.0
    %3193 = vmatpush1.msra.mxu0 0.0
    %3194 = vmatprep.subr.mxu0 0.0
    %3195 = vmatpush1.msra.mxu0 %v3010
    %3196 = vmatprep.subr.mxu0 0.0
    %3197 = vmatpush2.msra.mxu0 0.0
    %3198 = vmatprep.subr.mxu0 0.0
    %3199 = vmatpush2.msra.mxu0 0.0
    %3200 = vmatprep.subr.mxu0 0.0
    %3201 = vmatpush2.msra.mxu0 0.0
    %3202 = vmatprep.subr.mxu0 0.0
    %3203 = vmatpush2.msra.mxu0 0.0
    %3204 = vmatprep.subr.mxu0 0.0
    %3205 = vmatpush2.msra.mxu0 0.0
    %3206 = vmatprep.subr.mxu0 0.0
    %3207 = vmatpush2.msra.mxu0 0.0
    %3208 = vmatprep.subr.mxu0 0.0
    %3209 = vmatpush2.msra.mxu0 0.0
    %3210 = vmatprep.subr.mxu0 0.0
    %3211 = vmatpush2.msra.mxu0 0.0
    %3212 = vmatprep.subr.mxu0 0.0
    %3213 = vmatpush2.msra.mxu0 0.0
    %3214 = vmatprep.subr.mxu0 0.0
    %3215 = vmatpush2.msra.mxu0 0.0
    %3216 = vmatprep.subr.mxu0 0.0
    %3217 = vmatpush2.msra.mxu0 0.0
    %3218 = vmatprep.subr.mxu0 0.0
    %3219 = vmatpush2.msra.mxu0 0.0
    %3220 = vmatprep.subr.mxu0 0.0
    %3221 = vmatpush2.msra.mxu0 0.0
    %3222 = vmatprep.subr.mxu0 0.0
    %3223 = vmatpush2.msra.mxu0 0.0
    %3224 = vmatprep.subr.mxu0 0.0
    %3225 = vmatpush2.msra.mxu0 0.0
    %3226 = vmatprep.subr.mxu0 0.0
    %3227 = vmatpush2.msra.mxu0 0.0
    %3228 = vmatprep.mubr.f32.mxu0 0.0
    %3229 = vmatmul.mubr.f32.gmra.mxu0 %v3162
    %v3230 = vpop.f32.mrf.mxu0
    %v3231 = vadd.f32 0.0, %v3230
    %v3232 = vpop.f32.mrf.mxu0
    %3233 = vdwg.mxu0
    %v3234 = vld [vmem:[%s53] sm:$0xff]
    %v3235 = vld [vmem:[%s53 + $0x8] sm:$0xff]
    %v3236 = vld [vmem:[%s53 + $0x10] sm:$0xff]
    %v3237 = vld [vmem:[%s53 + $0x18] sm:$0xff]
    %v3238 = vld [vmem:[#allocation17] sm:$0xff]
    %v3239 = vld [vmem:[#allocation17 + $0x8] sm:$0xff]
    %v3240 = vld [vmem:[#allocation17 + $0x10] sm:$0xff]
    %v3241 = vld [vmem:[#allocation17 + $0x18] sm:$0xff]
    %v3242 = vld [vmem:[%s57] sm:$0x1]
    %v3243 = vld [vmem:[%s59] sm:$0x1]
    %v3244 = vld [vmem:[%s61] sm:$0x1]
    %v3245 = vld [vmem:[#allocation2] sm:$0x1]
    %v3246 = vld [vmem:[#allocation8] sm:$0x3]
    %v3247 = vld [vmem:[%s13] sm:$0x3]
    %v3248 = vlaneseq
    %v3249 = vshrl.u32 %v3248, 7
    %v3250 = vsub.s32 0, %v3249
    %v3251 = vrot.slane %v3246, %v3250
    %3253 = vbcast.lane.b32.xlu0 %v3251, 256
    %v3254 = vpop.permute.xlu0 %3253
    %v3255 = vlaneseq
    %v3256 = vshrl.u32 %v3255, 7
    %v3257 = vsub.s32 1, %v3256
    %v3258 = vrot.slane %v3246, %v3257
    %3260 = vbcast.lane.b32.xlu0 %v3258, 256
    %v3261 = vpop.permute.xlu0 %3260
    %vm3262 = vcmp.eq.s32.totalorder %v3012, %v3254
    %vm3263 = vcmp.eq.s32.totalorder %v3012, %v3261
    %v3264 = vsel %vm3262, 1, 0
    %v3265 = vsel %vm3263, 1, 0
    %v3266 = vcvt.s32.f32 %v3264
    %v3267 = vcvt.s32.f32 %v3265
    %v3269 = vsel %vm762, %v3266, 0
    %3271 = vmatprep.subr.mxu0 0.0
    %3272 = vmatpush1.msra.mxu0 0.0
    %3273 = vmatprep.subr.mxu0 0.0
    %3274 = vmatpush1.msra.mxu0 0.0
    %3275 = vmatprep.subr.mxu0 0.0
    %3276 = vmatpush1.msra.mxu0 0.0
    %3277 = vmatprep.subr.mxu0 0.0
    %3278 = vmatpush1.msra.mxu0 0.0
    %3279 = vmatprep.subr.mxu0 0.0
    %3280 = vmatpush1.msra.mxu0 0.0
    %3281 = vmatprep.subr.mxu0 0.0
    %3282 = vmatpush1.msra.mxu0 0.0
    %3283 = vmatprep.subr.mxu0 0.0
    %3284 = vmatpush1.msra.mxu0 0.0
    %3285 = vmatprep.subr.mxu0 0.0
    %3286 = vmatpush1.msra.mxu0 0.0
    %3287 = vmatprep.subr.mxu0 0.0
    %3288 = vmatpush1.msra.mxu0 0.0
    %3289 = vmatprep.subr.mxu0 0.0
    %3290 = vmatpush1.msra.mxu0 0.0
    %3291 = vmatprep.subr.mxu0 0.0
    %3292 = vmatpush1.msra.mxu0 0.0
    %3293 = vmatprep.subr.mxu0 0.0
    %3294 = vmatpush1.msra.mxu0 0.0
    %3295 = vmatprep.subr.mxu0 0.0
    %3296 = vmatpush1.msra.mxu0 0.0
    %3297 = vmatprep.subr.mxu0 0.0
    %3298 = vmatpush1.msra.mxu0 0.0
    %3299 = vmatprep.subr.mxu0 0.0
    %3300 = vmatpush1.msra.mxu0 0.0
    %3301 = vmatprep.subr.mxu0 0.0
    %3302 = vmatpush1.msra.mxu0 %v3009
    %3303 = vmatprep.subr.mxu0 0.0
    %3304 = vmatpush2.msra.mxu0 0.0
    %3305 = vmatprep.subr.mxu0 0.0
    %3306 = vmatpush2.msra.mxu0 0.0
    %3307 = vmatprep.subr.mxu0 0.0
    %3308 = vmatpush2.msra.mxu0 0.0
    %3309 = vmatprep.subr.mxu0 0.0
    %3310 = vmatpush2.msra.mxu0 0.0
    %3311 = vmatprep.subr.mxu0 0.0
    %3312 = vmatpush2.msra.mxu0 0.0
    %3313 = vmatprep.subr.mxu0 0.0
    %3314 = vmatpush2.msra.mxu0 0.0
    %3315 = vmatprep.subr.mxu0 0.0
    %3316 = vmatpush2.msra.mxu0 0.0
    %3317 = vmatprep.subr.mxu0 0.0
    %3318 = vmatpush2.msra.mxu0 0.0
    %3319 = vmatprep.subr.mxu0 0.0
    %3320 = vmatpush2.msra.mxu0 0.0
    %3321 = vmatprep.subr.mxu0 0.0
    %3322 = vmatpush2.msra.mxu0 0.0
    %3323 = vmatprep.subr.mxu0 0.0
    %3324 = vmatpush2.msra.mxu0 0.0
    %3325 = vmatprep.subr.mxu0 0.0
    %3326 = vmatpush2.msra.mxu0 0.0
    %3327 = vmatprep.subr.mxu0 0.0
    %3328 = vmatpush2.msra.mxu0 0.0
    %3329 = vmatprep.subr.mxu0 0.0
    %3330 = vmatpush2.msra.mxu0 0.0
    %3331 = vmatprep.subr.mxu0 0.0
    %3332 = vmatpush2.msra.mxu0 0.0
    %3333 = vmatprep.subr.mxu0 0.0
    %3334 = vmatpush2.msra.mxu0 0.0
    %3335 = vmatprep.mubr.f32.mxu0 0.0
    %3336 = vmatmul.mubr.f32.gmra.mxu0 %v3269
    %v3337 = vpop.f32.mrf.mxu0
    %v3338 = vadd.f32 0.0, %v3337
    %v3339 = vpop.f32.mrf.mxu0
    %3340 = vdwg.mxu0
    %v3342 = vsel %vm762, %v3267, 0
    %3344 = vmatprep.subr.mxu0 0.0
    %3345 = vmatpush1.msra.mxu0 0.0
    %3346 = vmatprep.subr.mxu0 0.0
    %3347 = vmatpush1.msra.mxu0 0.0
    %3348 = vmatprep.subr.mxu0 0.0
    %3349 = vmatpush1.msra.mxu0 0.0
    %3350 = vmatprep.subr.mxu0 0.0
    %3351 = vmatpush1.msra.mxu0 0.0
    %3352 = vmatprep.subr.mxu0 0.0
    %3353 = vmatpush1.msra.mxu0 0.0
    %3354 = vmatprep.subr.mxu0 0.0
    %3355 = vmatpush1.msra.mxu0 0.0
    %3356 = vmatprep.subr.mxu0 0.0
    %3357 = vmatpush1.msra.mxu0 0.0
    %3358 = vmatprep.subr.mxu0 0.0
    %3359 = vmatpush1.msra.mxu0 0.0
    %3360 = vmatprep.subr.mxu0 0.0
    %3361 = vmatpush1.msra.mxu0 0.0
    %3362 = vmatprep.subr.mxu0 0.0
    %3363 = vmatpush1.msra.mxu0 0.0
    %3364 = vmatprep.subr.mxu0 0.0
    %3365 = vmatpush1.msra.mxu0 0.0
    %3366 = vmatprep.subr.mxu0 0.0
    %3367 = vmatpush1.msra.mxu0 0.0
    %3368 = vmatprep.subr.mxu0 0.0
    %3369 = vmatpush1.msra.mxu0 0.0
    %3370 = vmatprep.subr.mxu0 0.0
    %3371 = vmatpush1.msra.mxu0 0.0
    %3372 = vmatprep.subr.mxu0 0.0
    %3373 = vmatpush1.msra.mxu0 0.0
    %3374 = vmatprep.subr.mxu0 0.0
    %3375 = vmatpush1.msra.mxu0 %v3010
    %3376 = vmatprep.subr.mxu0 0.0
    %3377 = vmatpush2.msra.mxu0 0.0
    %3378 = vmatprep.subr.mxu0 0.0
    %3379 = vmatpush2.msra.mxu0 0.0
    %3380 = vmatprep.subr.mxu0 0.0
    %3381 = vmatpush2.msra.mxu0 0.0
    %3382 = vmatprep.subr.mxu0 0.0
    %3383 = vmatpush2.msra.mxu0 0.0
    %3384 = vmatprep.subr.mxu0 0.0
    %3385 = vmatpush2.msra.mxu0 0.0
    %3386 = vmatprep.subr.mxu0 0.0
    %3387 = vmatpush2.msra.mxu0 0.0
    %3388 = vmatprep.subr.mxu0 0.0
    %3389 = vmatpush2.msra.mxu0 0.0
    %3390 = vmatprep.subr.mxu0 0.0
    %3391 = vmatpush2.msra.mxu0 0.0
    %3392 = vmatprep.subr.mxu0 0.0
    %3393 = vmatpush2.msra.mxu0 0.0
    %3394 = vmatprep.subr.mxu0 0.0
    %3395 = vmatpush2.msra.mxu0 0.0
    %3396 = vmatprep.subr.mxu0 0.0
    %3397 = vmatpush2.msra.mxu0 0.0
    %3398 = vmatprep.subr.mxu0 0.0
    %3399 = vmatpush2.msra.mxu0 0.0
    %3400 = vmatprep.subr.mxu0 0.0
    %3401 = vmatpush2.msra.mxu0 0.0
    %3402 = vmatprep.subr.mxu0 0.0
    %3403 = vmatpush2.msra.mxu0 0.0
    %3404 = vmatprep.subr.mxu0 0.0
    %3405 = vmatpush2.msra.mxu0 0.0
    %3406 = vmatprep.subr.mxu0 0.0
    %3407 = vmatpush2.msra.mxu0 0.0
    %3408 = vmatprep.mubr.f32.mxu0 0.0
    %3409 = vmatmul.mubr.f32.gmra.mxu0 %v3342
    %v3410 = vpop.f32.mrf.mxu0
    %v3411 = vadd.f32 0.0, %v3410
    %v3412 = vpop.f32.mrf.mxu0
    %3413 = vdwg.mxu0
    %v3415 = vlaneseq
    %v3416 = vshrl.u32 %v3415, 7
    %v3417 = vsub.s32 0, %v3416
    %v3418 = vrot.slane %v3242, %v3417
    %v3422 = vrot.slane %v3411, 7
    %vm3423 = vcmask 1041409
    %v3424 = vsel %vm3423, %v3422, %v3338
    %v3425 = vsel %vm261, %v3424, 0
    %3427 = vmatprep.subr.mxu0 0.0
    %3428 = vmatpush1.msra.mxu0 0.0
    %3429 = vmatprep.subr.mxu0 0.0
    %3430 = vmatpush1.msra.mxu0 0.0
    %3431 = vmatprep.subr.mxu0 0.0
    %3432 = vmatpush1.msra.mxu0 0.0
    %3433 = vmatprep.subr.mxu0 0.0
    %3434 = vmatpush1.msra.mxu0 0.0
    %3435 = vmatprep.subr.mxu0 0.0
    %3436 = vmatpush1.msra.mxu0 0.0
    %3437 = vmatprep.subr.mxu0 0.0
    %3438 = vmatpush1.msra.mxu0 0.0
    %3439 = vmatprep.subr.mxu0 0.0
    %3440 = vmatpush1.msra.mxu0 0.0
    %3441 = vmatprep.subr.mxu0 0.0
    %3442 = vmatpush1.msra.mxu0 0.0
    %3443 = vmatprep.subr.mxu0 0.0
    %3444 = vmatpush1.msra.mxu0 0.0
    %3445 = vmatprep.subr.mxu0 0.0
    %3446 = vmatpush1.msra.mxu0 0.0
    %3447 = vmatprep.subr.mxu0 0.0
    %3448 = vmatpush1.msra.mxu0 0.0
    %3449 = vmatprep.subr.mxu0 0.0
    %3450 = vmatpush1.msra.mxu0 0.0
    %3451 = vmatprep.subr.mxu0 0.0
    %3452 = vmatpush1.msra.mxu0 %v3237
    %3453 = vmatprep.subr.mxu0 0.0
    %3454 = vmatpush1.msra.mxu0 %v3236
    %3455 = vmatprep.subr.mxu0 0.0
    %3456 = vmatpush1.msra.mxu0 %v3235
    %3457 = vmatprep.subr.mxu0 0.0
    %3458 = vmatpush1.msra.mxu0 %v3234
    %3459 = vmatprep.subr.mxu0 0.0
    %3460 = vmatpush2.msra.mxu0 0.0
    %3461 = vmatprep.subr.mxu0 0.0
    %3462 = vmatpush2.msra.mxu0 0.0
    %3463 = vmatprep.subr.mxu0 0.0
    %3464 = vmatpush2.msra.mxu0 0.0
    %3465 = vmatprep.subr.mxu0 0.0
    %3466 = vmatpush2.msra.mxu0 0.0
    %3467 = vmatprep.subr.mxu0 0.0
    %3468 = vmatpush2.msra.mxu0 0.0
    %3469 = vmatprep.subr.mxu0 0.0
    %3470 = vmatpush2.msra.mxu0 0.0
    %3471 = vmatprep.subr.mxu0 0.0
    %3472 = vmatpush2.msra.mxu0 0.0
    %3473 = vmatprep.subr.mxu0 0.0
    %3474 = vmatpush2.msra.mxu0 0.0
    %3475 = vmatprep.subr.mxu0 0.0
    %3476 = vmatpush2.msra.mxu0 0.0
    %3477 = vmatprep.subr.mxu0 0.0
    %3478 = vmatpush2.msra.mxu0 0.0
    %3479 = vmatprep.subr.mxu0 0.0
    %3480 = vmatpush2.msra.mxu0 0.0
    %3481 = vmatprep.subr.mxu0 0.0
    %3482 = vmatpush2.msra.mxu0 0.0
    %3483 = vmatprep.subr.mxu0 0.0
    %3484 = vmatpush2.msra.mxu0 0.0
    %3485 = vmatprep.subr.mxu0 0.0
    %3486 = vmatpush2.msra.mxu0 0.0
    %3487 = vmatprep.subr.mxu0 0.0
    %3488 = vmatpush2.msra.mxu0 0.0
    %3489 = vmatprep.subr.mxu0 0.0
    %3490 = vmatpush2.msra.mxu0 0.0
    %3491 = vmatprep.mubr.f32.mxu0 0.0
    %3492 = vmatmul.mubr.f32.gmra.mxu0 %v3425
    %v3493 = vpop.f32.mrf.mxu0
    %v3494 = vadd.f32 %v3418, %v3493
    %v3495 = vpop.f32.mrf.mxu0
    %3496 = vdwg.mxu0
    %v3498 = vsel %vm261, 0.0, 0
    %3500 = vmatprep.subr.mxu0 0.0
    %3501 = vmatpush1.msra.mxu0 0.0
    %3502 = vmatprep.subr.mxu0 0.0
    %3503 = vmatpush1.msra.mxu0 0.0
    %3504 = vmatprep.subr.mxu0 0.0
    %3505 = vmatpush1.msra.mxu0 0.0
    %3506 = vmatprep.subr.mxu0 0.0
    %3507 = vmatpush1.msra.mxu0 0.0
    %3508 = vmatprep.subr.mxu0 0.0
    %3509 = vmatpush1.msra.mxu0 0.0
    %3510 = vmatprep.subr.mxu0 0.0
    %3511 = vmatpush1.msra.mxu0 0.0
    %3512 = vmatprep.subr.mxu0 0.0
    %3513 = vmatpush1.msra.mxu0 0.0
    %3514 = vmatprep.subr.mxu0 0.0
    %3515 = vmatpush1.msra.mxu0 0.0
    %3516 = vmatprep.subr.mxu0 0.0
    %3517 = vmatpush1.msra.mxu0 0.0
    %3518 = vmatprep.subr.mxu0 0.0
    %3519 = vmatpush1.msra.mxu0 0.0
    %3520 = vmatprep.subr.mxu0 0.0
    %3521 = vmatpush1.msra.mxu0 0.0
    %3522 = vmatprep.subr.mxu0 0.0
    %3523 = vmatpush1.msra.mxu0 0.0
    %3524 = vmatprep.subr.mxu0 0.0
    %3525 = vmatpush1.msra.mxu0 %v3241
    %3526 = vmatprep.subr.mxu0 0.0
    %3527 = vmatpush1.msra.mxu0 %v3240
    %3528 = vmatprep.subr.mxu0 0.0
    %3529 = vmatpush1.msra.mxu0 %v3239
    %3530 = vmatprep.subr.mxu0 0.0
    %3531 = vmatpush1.msra.mxu0 %v3238
    %3532 = vmatprep.subr.mxu0 0.0
    %3533 = vmatpush2.msra.mxu0 0.0
    %3534 = vmatprep.subr.mxu0 0.0
    %3535 = vmatpush2.msra.mxu0 0.0
    %3536 = vmatprep.subr.mxu0 0.0
    %3537 = vmatpush2.msra.mxu0 0.0
    %3538 = vmatprep.subr.mxu0 0.0
    %3539 = vmatpush2.msra.mxu0 0.0
    %3540 = vmatprep.subr.mxu0 0.0
    %3541 = vmatpush2.msra.mxu0 0.0
    %3542 = vmatprep.subr.mxu0 0.0
    %3543 = vmatpush2.msra.mxu0 0.0
    %3544 = vmatprep.subr.mxu0 0.0
    %3545 = vmatpush2.msra.mxu0 0.0
    %3546 = vmatprep.subr.mxu0 0.0
    %3547 = vmatpush2.msra.mxu0 0.0
    %3548 = vmatprep.subr.mxu0 0.0
    %3549 = vmatpush2.msra.mxu0 0.0
    %3550 = vmatprep.subr.mxu0 0.0
    %3551 = vmatpush2.msra.mxu0 0.0
    %3552 = vmatprep.subr.mxu0 0.0
    %3553 = vmatpush2.msra.mxu0 0.0
    %3554 = vmatprep.subr.mxu0 0.0
    %3555 = vmatpush2.msra.mxu0 0.0
    %3556 = vmatprep.subr.mxu0 0.0
    %3557 = vmatpush2.msra.mxu0 0.0
    %3558 = vmatprep.subr.mxu0 0.0
    %3559 = vmatpush2.msra.mxu0 0.0
    %3560 = vmatprep.subr.mxu0 0.0
    %3561 = vmatpush2.msra.mxu0 0.0
    %3562 = vmatprep.subr.mxu0 0.0
    %3563 = vmatpush2.msra.mxu0 0.0
    %3564 = vmatprep.mubr.f32.mxu0 0.0
    %3565 = vmatmul.mubr.f32.gmra.mxu0 %v3498
    %v3566 = vpop.f32.mrf.mxu0
    %v3567 = vadd.f32 0.0, %v3566
    %v3568 = vpop.f32.mrf.mxu0
    %3569 = vdwg.mxu0
    %v3570 = vadd.f32 %v3494, %v3567
    %v3572 = vlaneseq
    %v3573 = vshrl.u32 %v3572, 7
    %v3574 = vsub.s32 0, %v3573
    %v3575 = vrot.slane %v3243, %v3574
    %v3577 = vadd.f32 %v3570, %v3575
    %v3578 = vxor.u32 %v3577, 2147483648
    %v3579 = vmul.f32 %v3578, 1.442695
    %v3580 = vpow.pop %v3579
    %v3581 = vadd.f32 %v3580, 1.0
    %v3582 = vrcp.pop %v3581
    %v3583 = vmul.f32 1.0, %v3582
    %v3584 = vtanh.pop %v3577
    %v3585 = vmul.f32 %v3583, 0.0
    %3587 = vrot.lane.b32.xlu0 %v3584, 64
    %v3588 = vpop.permute.xlu0 %3587
    %v3590 = vmul.f32 %v3583, %v3588
    %3592 = vrot.lane.b32.xlu0 %v3590, 32
    %v3593 = vpop.permute.xlu0 %3592
    %v3595 = vadd.f32 %v3585, %v3593
    %v3596 = vtanh.pop %v3595
    %3598 = vrot.lane.b32.xlu0 %v3596, 64
    %v3599 = vpop.permute.xlu0 %3598
    %v3601 = vmul.f32 %v3583, %v3599
    %v3602 = vrot.slane %v3338, 1
    %v3603 = vsel %vm3423, %v3411, %v3602
    %v3604 = vsel %vm261, %v3603, 0
    %3606 = vmatprep.subr.mxu0 0.0
    %3607 = vmatpush1.msra.mxu0 0.0
    %3608 = vmatprep.subr.mxu0 0.0
    %3609 = vmatpush1.msra.mxu0 0.0
    %3610 = vmatprep.subr.mxu0 0.0
    %3611 = vmatpush1.msra.mxu0 0.0
    %3612 = vmatprep.subr.mxu0 0.0
    %3613 = vmatpush1.msra.mxu0 0.0
    %3614 = vmatprep.subr.mxu0 0.0
    %3615 = vmatpush1.msra.mxu0 0.0
    %3616 = vmatprep.subr.mxu0 0.0
    %3617 = vmatpush1.msra.mxu0 0.0
    %3618 = vmatprep.subr.mxu0 0.0
    %3619 = vmatpush1.msra.mxu0 0.0
    %3620 = vmatprep.subr.mxu0 0.0
    %3621 = vmatpush1.msra.mxu0 0.0
    %3622 = vmatprep.subr.mxu0 0.0
    %3623 = vmatpush1.msra.mxu0 0.0
    %3624 = vmatprep.subr.mxu0 0.0
    %3625 = vmatpush1.msra.mxu0 0.0
    %3626 = vmatprep.subr.mxu0 0.0
    %3627 = vmatpush1.msra.mxu0 0.0
    %3628 = vmatprep.subr.mxu0 0.0
    %3629 = vmatpush1.msra.mxu0 0.0
    %3630 = vmatprep.subr.mxu0 0.0
    %3631 = vmatpush1.msra.mxu0 %v3237
    %3632 = vmatprep.subr.mxu0 0.0
    %3633 = vmatpush1.msra.mxu0 %v3236
    %3634 = vmatprep.subr.mxu0 0.0
    %3635 = vmatpush1.msra.mxu0 %v3235
    %3636 = vmatprep.subr.mxu0 0.0
    %3637 = vmatpush1.msra.mxu0 %v3234
    %3638 = vmatprep.subr.mxu0 0.0
    %3639 = vmatpush2.msra.mxu0 0.0
    %3640 = vmatprep.subr.mxu0 0.0
    %3641 = vmatpush2.msra.mxu0 0.0
    %3642 = vmatprep.subr.mxu0 0.0
    %3643 = vmatpush2.msra.mxu0 0.0
    %3644 = vmatprep.subr.mxu0 0.0
    %3645 = vmatpush2.msra.mxu0 0.0
    %3646 = vmatprep.subr.mxu0 0.0
    %3647 = vmatpush2.msra.mxu0 0.0
    %3648 = vmatprep.subr.mxu0 0.0
    %3649 = vmatpush2.msra.mxu0 0.0
    %3650 = vmatprep.subr.mxu0 0.0
    %3651 = vmatpush2.msra.mxu0 0.0
    %3652 = vmatprep.subr.mxu0 0.0
    %3653 = vmatpush2.msra.mxu0 0.0
    %3654 = vmatprep.subr.mxu0 0.0
    %3655 = vmatpush2.msra.mxu0 0.0
    %3656 = vmatprep.subr.mxu0 0.0
    %3657 = vmatpush2.msra.mxu0 0.0
    %3658 = vmatprep.subr.mxu0 0.0
    %3659 = vmatpush2.msra.mxu0 0.0
    %3660 = vmatprep.subr.mxu0 0.0
    %3661 = vmatpush2.msra.mxu0 0.0
    %3662 = vmatprep.subr.mxu0 0.0
    %3663 = vmatpush2.msra.mxu0 0.0
    %3664 = vmatprep.subr.mxu0 0.0
    %3665 = vmatpush2.msra.mxu0 0.0
    %3666 = vmatprep.subr.mxu0 0.0
    %3667 = vmatpush2.msra.mxu0 0.0
    %3668 = vmatprep.subr.mxu0 0.0
    %3669 = vmatpush2.msra.mxu0 0.0
    %3670 = vmatprep.mubr.f32.mxu0 0.0
    %3671 = vmatmul.mubr.f32.gmra.mxu0 %v3604
    %v3672 = vpop.f32.mrf.mxu0
    %v3673 = vadd.f32 %v3418, %v3672
    %v3674 = vpop.f32.mrf.mxu0
    %3675 = vdwg.mxu0
    %3677 = vrot.lane.b32.xlu0 %v3601, 32
    %v3678 = vpop.permute.xlu0 %3677
    %v3679 = vsel %vm261, %v3678, 0
    %3681 = vmatprep.subr.mxu0 0.0
    %3682 = vmatpush1.msra.mxu0 0.0
    %3683 = vmatprep.subr.mxu0 0.0
    %3684 = vmatpush1.msra.mxu0 0.0
    %3685 = vmatprep.subr.mxu0 0.0
    %3686 = vmatpush1.msra.mxu0 0.0
    %3687 = vmatprep.subr.mxu0 0.0
    %3688 = vmatpush1.msra.mxu0 0.0
    %3689 = vmatprep.subr.mxu0 0.0
    %3690 = vmatpush1.msra.mxu0 0.0
    %3691 = vmatprep.subr.mxu0 0.0
    %3692 = vmatpush1.msra.mxu0 0.0
    %3693 = vmatprep.subr.mxu0 0.0
    %3694 = vmatpush1.msra.mxu0 0.0
    %3695 = vmatprep.subr.mxu0 0.0
    %3696 = vmatpush1.msra.mxu0 0.0
    %3697 = vmatprep.subr.mxu0 0.0
    %3698 = vmatpush1.msra.mxu0 0.0
    %3699 = vmatprep.subr.mxu0 0.0
    %3700 = vmatpush1.msra.mxu0 0.0
    %3701 = vmatprep.subr.mxu0 0.0
    %3702 = vmatpush1.msra.mxu0 0.0
    %3703 = vmatprep.subr.mxu0 0.0
    %3704 = vmatpush1.msra.mxu0 0.0
    %3705 = vmatprep.subr.mxu0 0.0
    %3706 = vmatpush1.msra.mxu0 %v3241
    %3707 = vmatprep.subr.mxu0 0.0
    %3708 = vmatpush1.msra.mxu0 %v3240
    %3709 = vmatprep.subr.mxu0 0.0
    %3710 = vmatpush1.msra.mxu0 %v3239
    %3711 = vmatprep.subr.mxu0 0.0
    %3712 = vmatpush1.msra.mxu0 %v3238
    %3713 = vmatprep.subr.mxu0 0.0
    %3714 = vmatpush2.msra.mxu0 0.0
    %3715 = vmatprep.subr.mxu0 0.0
    %3716 = vmatpush2.msra.mxu0 0.0
    %3717 = vmatprep.subr.mxu0 0.0
    %3718 = vmatpush2.msra.mxu0 0.0
    %3719 = vmatprep.subr.mxu0 0.0
    %3720 = vmatpush2.msra.mxu0 0.0
    %3721 = vmatprep.subr.mxu0 0.0
    %3722 = vmatpush2.msra.mxu0 0.0
    %3723 = vmatprep.subr.mxu0 0.0
    %3724 = vmatpush2.msra.mxu0 0.0
    %3725 = vmatprep.subr.mxu0 0.0
    %3726 = vmatpush2.msra.mxu0 0.0
    %3727 = vmatprep.subr.mxu0 0.0
    %3728 = vmatpush2.msra.mxu0 0.0
    %3729 = vmatprep.subr.mxu0 0.0
    %3730 = vmatpush2.msra.mxu0 0.0
    %3731 = vmatprep.subr.mxu0 0.0
    %3732 = vmatpush2.msra.mxu0 0.0
    %3733 = vmatprep.subr.mxu0 0.0
    %3734 = vmatpush2.msra.mxu0 0.0
    %3735 = vmatprep.subr.mxu0 0.0
    %3736 = vmatpush2.msra.mxu0 0.0
    %3737 = vmatprep.subr.mxu0 0.0
    %3738 = vmatpush2.msra.mxu0 0.0
    %3739 = vmatprep.subr.mxu0 0.0
    %3740 = vmatpush2.msra.mxu0 0.0
    %3741 = vmatprep.subr.mxu0 0.0
    %3742 = vmatpush2.msra.mxu0 0.0
    %3743 = vmatprep.subr.mxu0 0.0
    %3744 = vmatpush2.msra.mxu0 0.0
    %3745 = vmatprep.mubr.f32.mxu0 0.0
    %3746 = vmatmul.mubr.f32.gmra.mxu0 %v3679
    %v3747 = vpop.f32.mrf.mxu0
    %v3748 = vadd.f32 0.0, %v3747
    %v3749 = vpop.f32.mrf.mxu0
    %3750 = vdwg.mxu0
    %v3751 = vadd.f32 %v3673, %v3748
    %v3752 = vadd.f32 %v3751, %v3575
    %v3753 = vxor.u32 %v3752, 2147483648
    %v3754 = vmul.f32 %v3753, 1.442695
    %v3755 = vpow.pop %v3754
    %v3756 = vadd.f32 %v3755, 1.0
    %v3757 = vrcp.pop %v3756
    %v3758 = vmul.f32 1.0, %v3757
    %v3759 = vtanh.pop %v3752
    %v3760 = vmul.f32 %v3758, %v3595
    %3762 = vrot.lane.b32.xlu0 %v3759, 64
    %v3763 = vpop.permute.xlu0 %3762
    %v3765 = vmul.f32 %v3758, %v3763
    %3767 = vrot.lane.b32.xlu0 %v3765, 32
    %v3768 = vpop.permute.xlu0 %3767
    %v3770 = vadd.f32 %v3760, %v3768
    %v3771 = vtanh.pop %v3770
    %3773 = vrot.lane.b32.xlu0 %v3771, 64
    %v3774 = vpop.permute.xlu0 %3773
    %v3776 = vmul.f32 %v3758, %v3774
    %v3777 = vrot.slane %v3338, 2
    %v3778 = vrot.slane %v3411, 1
    %v3779 = vsel %vm3423, %v3778, %v3777
    %v3780 = vsel %vm261, %v3779, 0
    %3782 = vmatprep.subr.mxu0 0.0
    %3783 = vmatpush1.msra.mxu0 0.0
    %3784 = vmatprep.subr.mxu0 0.0
    %3785 = vmatpush1.msra.mxu0 0.0
    %3786 = vmatprep.subr.mxu0 0.0
    %3787 = vmatpush1.msra.mxu0 0.0
    %3788 = vmatprep.subr.mxu0 0.0
    %3789 = vmatpush1.msra.mxu0 0.0
    %3790 = vmatprep.subr.mxu0 0.0
    %3791 = vmatpush1.msra.mxu0 0.0
    %3792 = vmatprep.subr.mxu0 0.0
    %3793 = vmatpush1.msra.mxu0 0.0
    %3794 = vmatprep.subr.mxu0 0.0
    %3795 = vmatpush1.msra.mxu0 0.0
    %3796 = vmatprep.subr.mxu0 0.0
    %3797 = vmatpush1.msra.mxu0 0.0
    %3798 = vmatprep.subr.mxu0 0.0
    %3799 = vmatpush1.msra.mxu0 0.0
    %3800 = vmatprep.subr.mxu0 0.0
    %3801 = vmatpush1.msra.mxu0 0.0
    %3802 = vmatprep.subr.mxu0 0.0
    %3803 = vmatpush1.msra.mxu0 0.0
    %3804 = vmatprep.subr.mxu0 0.0
    %3805 = vmatpush1.msra.mxu0 0.0
    %3806 = vmatprep.subr.mxu0 0.0
    %3807 = vmatpush1.msra.mxu0 %v3237
    %3808 = vmatprep.subr.mxu0 0.0
    %3809 = vmatpush1.msra.mxu0 %v3236
    %3810 = vmatprep.subr.mxu0 0.0
    %3811 = vmatpush1.msra.mxu0 %v3235
    %3812 = vmatprep.subr.mxu0 0.0
    %3813 = vmatpush1.msra.mxu0 %v3234
    %3814 = vmatprep.subr.mxu0 0.0
    %3815 = vmatpush2.msra.mxu0 0.0
    %3816 = vmatprep.subr.mxu0 0.0
    %3817 = vmatpush2.msra.mxu0 0.0
    %3818 = vmatprep.subr.mxu0 0.0
    %3819 = vmatpush2.msra.mxu0 0.0
    %3820 = vmatprep.subr.mxu0 0.0
    %3821 = vmatpush2.msra.mxu0 0.0
    %3822 = vmatprep.subr.mxu0 0.0
    %3823 = vmatpush2.msra.mxu0 0.0
    %3824 = vmatprep.subr.mxu0 0.0
    %3825 = vmatpush2.msra.mxu0 0.0
    %3826 = vmatprep.subr.mxu0 0.0
    %3827 = vmatpush2.msra.mxu0 0.0
    %3828 = vmatprep.subr.mxu0 0.0
    %3829 = vmatpush2.msra.mxu0 0.0
    %3830 = vmatprep.subr.mxu0 0.0
    %3831 = vmatpush2.msra.mxu0 0.0
    %3832 = vmatprep.subr.mxu0 0.0
    %3833 = vmatpush2.msra.mxu0 0.0
    %3834 = vmatprep.subr.mxu0 0.0
    %3835 = vmatpush2.msra.mxu0 0.0
    %3836 = vmatprep.subr.mxu0 0.0
    %3837 = vmatpush2.msra.mxu0 0.0
    %3838 = vmatprep.subr.mxu0 0.0
    %3839 = vmatpush2.msra.mxu0 0.0
    %3840 = vmatprep.subr.mxu0 0.0
    %3841 = vmatpush2.msra.mxu0 0.0
    %3842 = vmatprep.subr.mxu0 0.0
    %3843 = vmatpush2.msra.mxu0 0.0
    %3844 = vmatprep.subr.mxu0 0.0
    %3845 = vmatpush2.msra.mxu0 0.0
    %3846 = vmatprep.mubr.f32.mxu0 0.0
    %3847 = vmatmul.mubr.f32.gmra.mxu0 %v3780
    %v3848 = vpop.f32.mrf.mxu0
    %v3849 = vadd.f32 %v3418, %v3848
    %v3850 = vpop.f32.mrf.mxu0
    %3851 = vdwg.mxu0
    %3853 = vrot.lane.b32.xlu0 %v3776, 32
    %v3854 = vpop.permute.xlu0 %3853
    %v3855 = vsel %vm261, %v3854, 0
    %3857 = vmatprep.subr.mxu0 0.0
    %3858 = vmatpush1.msra.mxu0 0.0
    %3859 = vmatprep.subr.mxu0 0.0
    %3860 = vmatpush1.msra.mxu0 0.0
    %3861 = vmatprep.subr.mxu0 0.0
    %3862 = vmatpush1.msra.mxu0 0.0
    %3863 = vmatprep.subr.mxu0 0.0
    %3864 = vmatpush1.msra.mxu0 0.0
    %3865 = vmatprep.subr.mxu0 0.0
    %3866 = vmatpush1.msra.mxu0 0.0
    %3867 = vmatprep.subr.mxu0 0.0
    %3868 = vmatpush1.msra.mxu0 0.0
    %3869 = vmatprep.subr.mxu0 0.0
    %3870 = vmatpush1.msra.mxu0 0.0
    %3871 = vmatprep.subr.mxu0 0.0
    %3872 = vmatpush1.msra.mxu0 0.0
    %3873 = vmatprep.subr.mxu0 0.0
    %3874 = vmatpush1.msra.mxu0 0.0
    %3875 = vmatprep.subr.mxu0 0.0
    %3876 = vmatpush1.msra.mxu0 0.0
    %3877 = vmatprep.subr.mxu0 0.0
    %3878 = vmatpush1.msra.mxu0 0.0
    %3879 = vmatprep.subr.mxu0 0.0
    %3880 = vmatpush1.msra.mxu0 0.0
    %3881 = vmatprep.subr.mxu0 0.0
    %3882 = vmatpush1.msra.mxu0 %v3241
    %3883 = vmatprep.subr.mxu0 0.0
    %3884 = vmatpush1.msra.mxu0 %v3240
    %3885 = vmatprep.subr.mxu0 0.0
    %3886 = vmatpush1.msra.mxu0 %v3239
    %3887 = vmatprep.subr.mxu0 0.0
    %3888 = vmatpush1.msra.mxu0 %v3238
    %3889 = vmatprep.subr.mxu0 0.0
    %3890 = vmatpush2.msra.mxu0 0.0
    %3891 = vmatprep.subr.mxu0 0.0
    %3892 = vmatpush2.msra.mxu0 0.0
    %3893 = vmatprep.subr.mxu0 0.0
    %3894 = vmatpush2.msra.mxu0 0.0
    %3895 = vmatprep.subr.mxu0 0.0
    %3896 = vmatpush2.msra.mxu0 0.0
    %3897 = vmatprep.subr.mxu0 0.0
    %3898 = vmatpush2.msra.mxu0 0.0
    %3899 = vmatprep.subr.mxu0 0.0
    %3900 = vmatpush2.msra.mxu0 0.0
    %3901 = vmatprep.subr.mxu0 0.0
    %3902 = vmatpush2.msra.mxu0 0.0
    %3903 = vmatprep.subr.mxu0 0.0
    %3904 = vmatpush2.msra.mxu0 0.0
    %3905 = vmatprep.subr.mxu0 0.0
    %3906 = vmatpush2.msra.mxu0 0.0
    %3907 = vmatprep.subr.mxu0 0.0
    %3908 = vmatpush2.msra.mxu0 0.0
    %3909 = vmatprep.subr.mxu0 0.0
    %3910 = vmatpush2.msra.mxu0 0.0
    %3911 = vmatprep.subr.mxu0 0.0
    %3912 = vmatpush2.msra.mxu0 0.0
    %3913 = vmatprep.subr.mxu0 0.0
    %3914 = vmatpush2.msra.mxu0 0.0
    %3915 = vmatprep.subr.mxu0 0.0
    %3916 = vmatpush2.msra.mxu0 0.0
    %3917 = vmatprep.subr.mxu0 0.0
    %3918 = vmatpush2.msra.mxu0 0.0
    %3919 = vmatprep.subr.mxu0 0.0
    %3920 = vmatpush2.msra.mxu0 0.0
    %3921 = vmatprep.mubr.f32.mxu0 0.0
    %3922 = vmatmul.mubr.f32.gmra.mxu0 %v3855
    %v3923 = vpop.f32.mrf.mxu0
    %v3924 = vadd.f32 0.0, %v3923
    %v3925 = vpop.f32.mrf.mxu0
    %3926 = vdwg.mxu0
    %v3927 = vadd.f32 %v3849, %v3924
    %v3928 = vadd.f32 %v3927, %v3575
    %v3929 = vxor.u32 %v3928, 2147483648
    %v3930 = vmul.f32 %v3929, 1.442695
    %v3931 = vpow.pop %v3930
    %v3932 = vadd.f32 %v3931, 1.0
    %v3933 = vrcp.pop %v3932
    %v3934 = vmul.f32 1.0, %v3933
    %v3935 = vtanh.pop %v3928
    %v3936 = vmul.f32 %v3934, %v3770
    %3938 = vrot.lane.b32.xlu0 %v3935, 64
    %v3939 = vpop.permute.xlu0 %3938
    %v3941 = vmul.f32 %v3934, %v3939
    %3943 = vrot.lane.b32.xlu0 %v3941, 32
    %v3944 = vpop.permute.xlu0 %3943
    %v3946 = vadd.f32 %v3936, %v3944
    %v3947 = vtanh.pop %v3946
    %3949 = vrot.lane.b32.xlu0 %v3947, 64
    %v3950 = vpop.permute.xlu0 %3949
    %v3952 = vmul.f32 %v3934, %v3950
    %v3953 = vrot.slane %v3338, 3
    %v3954 = vrot.slane %v3411, 2
    %v3955 = vsel %vm3423, %v3954, %v3953
    %v3956 = vsel %vm261, %v3955, 0
    %3958 = vmatprep.subr.mxu0 0.0
    %3959 = vmatpush1.msra.mxu0 0.0
    %3960 = vmatprep.subr.mxu0 0.0
    %3961 = vmatpush1.msra.mxu0 0.0
    %3962 = vmatprep.subr.mxu0 0.0
    %3963 = vmatpush1.msra.mxu0 0.0
    %3964 = vmatprep.subr.mxu0 0.0
    %3965 = vmatpush1.msra.mxu0 0.0
    %3966 = vmatprep.subr.mxu0 0.0
    %3967 = vmatpush1.msra.mxu0 0.0
    %3968 = vmatprep.subr.mxu0 0.0
    %3969 = vmatpush1.msra.mxu0 0.0
    %3970 = vmatprep.subr.mxu0 0.0
    %3971 = vmatpush1.msra.mxu0 0.0
    %3972 = vmatprep.subr.mxu0 0.0
    %3973 = vmatpush1.msra.mxu0 0.0
    %3974 = vmatprep.subr.mxu0 0.0
    %3975 = vmatpush1.msra.mxu0 0.0
    %3976 = vmatprep.subr.mxu0 0.0
    %3977 = vmatpush1.msra.mxu0 0.0
    %3978 = vmatprep.subr.mxu0 0.0
    %3979 = vmatpush1.msra.mxu0 0.0
    %3980 = vmatprep.subr.mxu0 0.0
    %3981 = vmatpush1.msra.mxu0 0.0
    %3982 = vmatprep.subr.mxu0 0.0
    %3983 = vmatpush1.msra.mxu0 %v3237
    %3984 = vmatprep.subr.mxu0 0.0
    %3985 = vmatpush1.msra.mxu0 %v3236
    %3986 = vmatprep.subr.mxu0 0.0
    %3987 = vmatpush1.msra.mxu0 %v3235
    %3988 = vmatprep.subr.mxu0 0.0
    %3989 = vmatpush1.msra.mxu0 %v3234
    %3990 = vmatprep.subr.mxu0 0.0
    %3991 = vmatpush2.msra.mxu0 0.0
    %3992 = vmatprep.subr.mxu0 0.0
    %3993 = vmatpush2.msra.mxu0 0.0
    %3994 = vmatprep.subr.mxu0 0.0
    %3995 = vmatpush2.msra.mxu0 0.0
    %3996 = vmatprep.subr.mxu0 0.0
    %3997 = vmatpush2.msra.mxu0 0.0
    %3998 = vmatprep.subr.mxu0 0.0
    %3999 = vmatpush2.msra.mxu0 0.0
    %4000 = vmatprep.subr.mxu0 0.0
    %4001 = vmatpush2.msra.mxu0 0.0
    %4002 = vmatprep.subr.mxu0 0.0
    %4003 = vmatpush2.msra.mxu0 0.0
    %4004 = vmatprep.subr.mxu0 0.0
    %4005 = vmatpush2.msra.mxu0 0.0
    %4006 = vmatprep.subr.mxu0 0.0
    %4007 = vmatpush2.msra.mxu0 0.0
    %4008 = vmatprep.subr.mxu0 0.0
    %4009 = vmatpush2.msra.mxu0 0.0
    %4010 = vmatprep.subr.mxu0 0.0
    %4011 = vmatpush2.msra.mxu0 0.0
    %4012 = vmatprep.subr.mxu0 0.0
    %4013 = vmatpush2.msra.mxu0 0.0
    %4014 = vmatprep.subr.mxu0 0.0
    %4015 = vmatpush2.msra.mxu0 0.0
    %4016 = vmatprep.subr.mxu0 0.0
    %4017 = vmatpush2.msra.mxu0 0.0
    %4018 = vmatprep.subr.mxu0 0.0
    %4019 = vmatpush2.msra.mxu0 0.0
    %4020 = vmatprep.subr.mxu0 0.0
    %4021 = vmatpush2.msra.mxu0 0.0
    %4022 = vmatprep.mubr.f32.mxu0 0.0
    %4023 = vmatmul.mubr.f32.gmra.mxu0 %v3956
    %v4024 = vpop.f32.mrf.mxu0
    %v4025 = vadd.f32 %v3418, %v4024
    %v4026 = vpop.f32.mrf.mxu0
    %4027 = vdwg.mxu0
    %4029 = vrot.lane.b32.xlu0 %v3952, 32
    %v4030 = vpop.permute.xlu0 %4029
    %v4031 = vsel %vm261, %v4030, 0
    %4033 = vmatprep.subr.mxu0 0.0
    %4034 = vmatpush1.msra.mxu0 0.0
    %4035 = vmatprep.subr.mxu0 0.0
    %4036 = vmatpush1.msra.mxu0 0.0
    %4037 = vmatprep.subr.mxu0 0.0
    %4038 = vmatpush1.msra.mxu0 0.0
    %4039 = vmatprep.subr.mxu0 0.0
    %4040 = vmatpush1.msra.mxu0 0.0
    %4041 = vmatprep.subr.mxu0 0.0
    %4042 = vmatpush1.msra.mxu0 0.0
    %4043 = vmatprep.subr.mxu0 0.0
    %4044 = vmatpush1.msra.mxu0 0.0
    %4045 = vmatprep.subr.mxu0 0.0
    %4046 = vmatpush1.msra.mxu0 0.0
    %4047 = vmatprep.subr.mxu0 0.0
    %4048 = vmatpush1.msra.mxu0 0.0
    %4049 = vmatprep.subr.mxu0 0.0
    %4050 = vmatpush1.msra.mxu0 0.0
    %4051 = vmatprep.subr.mxu0 0.0
    %4052 = vmatpush1.msra.mxu0 0.0
    %4053 = vmatprep.subr.mxu0 0.0
    %4054 = vmatpush1.msra.mxu0 0.0
    %4055 = vmatprep.subr.mxu0 0.0
    %4056 = vmatpush1.msra.mxu0 0.0
    %4057 = vmatprep.subr.mxu0 0.0
    %4058 = vmatpush1.msra.mxu0 %v3241
    %4059 = vmatprep.subr.mxu0 0.0
    %4060 = vmatpush1.msra.mxu0 %v3240
    %4061 = vmatprep.subr.mxu0 0.0
    %4062 = vmatpush1.msra.mxu0 %v3239
    %4063 = vmatprep.subr.mxu0 0.0
    %4064 = vmatpush1.msra.mxu0 %v3238
    %4065 = vmatprep.subr.mxu0 0.0
    %4066 = vmatpush2.msra.mxu0 0.0
    %4067 = vmatprep.subr.mxu0 0.0
    %4068 = vmatpush2.msra.mxu0 0.0
    %4069 = vmatprep.subr.mxu0 0.0
    %4070 = vmatpush2.msra.mxu0 0.0
    %4071 = vmatprep.subr.mxu0 0.0
    %4072 = vmatpush2.msra.mxu0 0.0
    %4073 = vmatprep.subr.mxu0 0.0
    %4074 = vmatpush2.msra.mxu0 0.0
    %4075 = vmatprep.subr.mxu0 0.0
    %4076 = vmatpush2.msra.mxu0 0.0
    %4077 = vmatprep.subr.mxu0 0.0
    %4078 = vmatpush2.msra.mxu0 0.0
    %4079 = vmatprep.subr.mxu0 0.0
    %4080 = vmatpush2.msra.mxu0 0.0
    %4081 = vmatprep.subr.mxu0 0.0
    %4082 = vmatpush2.msra.mxu0 0.0
    %4083 = vmatprep.subr.mxu0 0.0
    %4084 = vmatpush2.msra.mxu0 0.0
    %4085 = vmatprep.subr.mxu0 0.0
    %4086 = vmatpush2.msra.mxu0 0.0
    %4087 = vmatprep.subr.mxu0 0.0
    %4088 = vmatpush2.msra.mxu0 0.0
    %4089 = vmatprep.subr.mxu0 0.0
    %4090 = vmatpush2.msra.mxu0 0.0
    %4091 = vmatprep.subr.mxu0 0.0
    %4092 = vmatpush2.msra.mxu0 0.0
    %4093 = vmatprep.subr.mxu0 0.0
    %4094 = vmatpush2.msra.mxu0 0.0
    %4095 = vmatprep.subr.mxu0 0.0
    %4096 = vmatpush2.msra.mxu0 0.0
    %4097 = vmatprep.mubr.f32.mxu0 0.0
    %4098 = vmatmul.mubr.f32.gmra.mxu0 %v4031
    %v4099 = vpop.f32.mrf.mxu0
    %v4100 = vadd.f32 0.0, %v4099
    %v4101 = vpop.f32.mrf.mxu0
    %4102 = vdwg.mxu0
    %v4103 = vadd.f32 %v4025, %v4100
    %v4104 = vadd.f32 %v4103, %v3575
    %v4105 = vxor.u32 %v4104, 2147483648
    %v4106 = vmul.f32 %v4105, 1.442695
    %v4107 = vpow.pop %v4106
    %v4108 = vadd.f32 %v4107, 1.0
    %v4109 = vrcp.pop %v4108
    %v4110 = vmul.f32 1.0, %v4109
    %v4111 = vtanh.pop %v4104
    %v4112 = vmul.f32 %v4110, %v3946
    %4114 = vrot.lane.b32.xlu0 %v4111, 64
    %v4115 = vpop.permute.xlu0 %4114
    %v4117 = vmul.f32 %v4110, %v4115
    %4119 = vrot.lane.b32.xlu0 %v4117, 32
    %v4120 = vpop.permute.xlu0 %4119
    %v4122 = vadd.f32 %v4112, %v4120
    %v4123 = vtanh.pop %v4122
    %4125 = vrot.lane.b32.xlu0 %v4123, 64
    %v4126 = vpop.permute.xlu0 %4125
    %v4128 = vmul.f32 %v4110, %v4126
    %v4130 = vlaneseq
    %v4131 = vshrl.u32 %v4130, 7
    %v4132 = vsub.s32 0, %v4131
    %v4133 = vrot.slane %v3244, %v4132
    %4134 = vrot.lane.b32.xlu0 %v4133, 96
    %v4135 = vpop.permute.xlu0 %4134
    %v4137 = vmul.f32 %v3601, %v4135
    %4139 = vrot.lane.b32.xlu0 %v4137, 32
    %v4140 = vpop.permute.xlu0 %4139
    %vm4142 = vcmask 254976
    %v4143 = vsel %vm4142, %v4140, 0.0
    %4144 = vadd.xlane.f32.xlu0 %v4143
    %v4145 = vpop.xlane.xlu0 %4144
    %v4147 = vlaneseq
    %v4148 = vshrl.u32 %v4147, 7
    %v4149 = vsub.s32 0, %v4148
    %v4150 = vrot.slane %v3245, %v4149
    %v4152 = vadd.f32 %v4145, %v4150
    %v4153 = vmul.f32 %v3776, %v4135
    %4155 = vrot.lane.b32.xlu0 %v4153, 32
    %v4156 = vpop.permute.xlu0 %4155
    %v4158 = vsel %vm4142, %v4156, 0.0
    %4159 = vadd.xlane.f32.xlu0 %v4158
    %v4160 = vpop.xlane.xlu0 %4159
    %v4161 = vadd.f32 %v4160, %v4150
    %v4162 = vmul.f32 %v3952, %v4135
    %4164 = vrot.lane.b32.xlu0 %v4162, 32
    %v4165 = vpop.permute.xlu0 %4164
    %v4167 = vsel %vm4142, %v4165, 0.0
    %4168 = vadd.xlane.f32.xlu0 %v4167
    %v4169 = vpop.xlane.xlu0 %4168
    %v4170 = vadd.f32 %v4169, %v4150
    %v4171 = vmul.f32 %v4128, %v4135
    %4173 = vrot.lane.b32.xlu0 %v4171, 32
    %v4174 = vpop.permute.xlu0 %4173
    %v4176 = vsel %vm4142, %v4174, 0.0
    %4177 = vadd.xlane.f32.xlu0 %v4176
    %v4178 = vpop.xlane.xlu0 %4177
    %v4179 = vadd.f32 %v4178, %v4150
    %4181 = vrot.lane.b32.xlu0 %v4161, 1
    %v4182 = vpop.permute.xlu0 %4181
    %4185 = vrot.lane.b32.xlu0 %v4170, 2
    %v4186 = vpop.permute.xlu0 %4185
    %4189 = vrot.lane.b32.xlu0 %v4179, 3
    %v4190 = vpop.permute.xlu0 %4189
    %vm4192 = vcmask 7168
    %v4193 = vsel %vm4192, %v4152, %v4182
    %vm4194 = vcmask 15360
    %v4195 = vsel %vm4194, %v4193, %v4186
    %vm4196 = vcmask 23552
    %v4197 = vsel %vm4196, %v4195, %v4190
    %4198 = vset.pattern.permute.xlu0 0
    %4199 = vperm.xlu0 %4198, %v3247
    %v4200 = vpop.permute.xlu0 %4199
    %vm4201 = vcmp.lt.s32.totalorder %v3012, %v4200
    %v4202 = vsel %vm4201, %v4197, 1e-09
    %vm4203 = vcmask 25600
    %v4204 = vsel %vm4203, %v4202, -inf
    %4205 = vmax.xlane.f32.xlu0 %v4204
    %v4206 = vpop.xlane.xlu0 %4205
    %v4207 = vsub.f32 %v4202, %v4206
    %v4208 = vmul.f32 %v4207, 1.442695
    %v4209 = vpow.pop %v4208
    %v4210 = vsel %vm4203, %v4209, 0.0
    %4211 = vadd.xlane.f32.xlu0 %v4210
    %v4212 = vpop.xlane.xlu0 %4211
    %v4213 = vrcp.pop %v4212
    %v4214 = vmul.f32 %v4209, %v4213
    %4216 = vset.pattern.permute.xlu0 0
    %4217 = vperm.xlu0 %4216, %v4214
    %v4218 = vpop.permute.xlu0 %4217
    %v4220 = vmul.f32 %v4218, %v3601
    %v4221 = vadd.f32 %v4220, 0.0
    %4222 = vset.pattern.permute.xlu0 1
    %4223 = vperm.xlu0 %4222, %v4214
    %v4224 = vpop.permute.xlu0 %4223
    %v4226 = vmul.f32 %v4224, %v3776
    %v4227 = vadd.f32 %v4221, %v4226
    %4228 = vset.pattern.permute.xlu0 2
    %4229 = vperm.xlu0 %4228, %v4214
    %v4230 = vpop.permute.xlu0 %4229
    %v4232 = vmul.f32 %v4230, %v3952
    %v4233 = vadd.f32 %v4227, %v4232
    %4234 = vset.pattern.permute.xlu0 3
    %4235 = vperm.xlu0 %4234, %v4214
    %v4236 = vpop.permute.xlu0 %4235
    %v4238 = vmul.f32 %v4236, %v4128
    %v4239 = vadd.f32 %v4233, %v4238
    %v4240 = vld [vmem:[#allocation9] sm:$0x3]
    %v4241 = vld [vmem:[%s15] sm:$0x3]
    %v4242 = vlaneseq
    %v4243 = vshrl.u32 %v4242, 7
    %v4244 = vsub.s32 0, %v4243
    %v4245 = vrot.slane %v4240, %v4244
    %4247 = vbcast.lane.b32.xlu0 %v4245, 256
    %v4248 = vpop.permute.xlu0 %4247
    %v4249 = vlaneseq
    %v4250 = vshrl.u32 %v4249, 7
    %v4251 = vsub.s32 1, %v4250
    %v4252 = vrot.slane %v4240, %v4251
    %4254 = vbcast.lane.b32.xlu0 %v4252, 256
    %v4255 = vpop.permute.xlu0 %4254
    %vm4256 = vcmp.eq.s32.totalorder %v3012, %v4248
    %vm4257 = vcmp.eq.s32.totalorder %v3012, %v4255
    %v4258 = vsel %vm4256, 1, 0
    %v4259 = vsel %vm4257, 1, 0
    %v4260 = vcvt.s32.f32 %v4258
    %v4261 = vcvt.s32.f32 %v4259
    %v4263 = vsel %vm762, %v4260, 0
    %4265 = vmatprep.subr.mxu0 0.0
    %4266 = vmatpush1.msra.mxu0 0.0
    %4267 = vmatprep.subr.mxu0 0.0
    %4268 = vmatpush1.msra.mxu0 0.0
    %4269 = vmatprep.subr.mxu0 0.0
    %4270 = vmatpush1.msra.mxu0 0.0
    %4271 = vmatprep.subr.mxu0 0.0
    %4272 = vmatpush1.msra.mxu0 0.0
    %4273 = vmatprep.subr.mxu0 0.0
    %4274 = vmatpush1.msra.mxu0 0.0
    %4275 = vmatprep.subr.mxu0 0.0
    %4276 = vmatpush1.msra.mxu0 0.0
    %4277 = vmatprep.subr.mxu0 0.0
    %4278 = vmatpush1.msra.mxu0 0.0
    %4279 = vmatprep.subr.mxu0 0.0
    %4280 = vmatpush1.msra.mxu0 0.0
    %4281 = vmatprep.subr.mxu0 0.0
    %4282 = vmatpush1.msra.mxu0 0.0
    %4283 = vmatprep.subr.mxu0 0.0
    %4284 = vmatpush1.msra.mxu0 0.0
    %4285 = vmatprep.subr.mxu0 0.0
    %4286 = vmatpush1.msra.mxu0 0.0
    %4287 = vmatprep.subr.mxu0 0.0
    %4288 = vmatpush1.msra.mxu0 0.0
    %4289 = vmatprep.subr.mxu0 0.0
    %4290 = vmatpush1.msra.mxu0 0.0
    %4291 = vmatprep.subr.mxu0 0.0
    %4292 = vmatpush1.msra.mxu0 0.0
    %4293 = vmatprep.subr.mxu0 0.0
    %4294 = vmatpush1.msra.mxu0 0.0
    %4295 = vmatprep.subr.mxu0 0.0
    %4296 = vmatpush1.msra.mxu0 %v3009
    %4297 = vmatprep.subr.mxu0 0.0
    %4298 = vmatpush2.msra.mxu0 0.0
    %4299 = vmatprep.subr.mxu0 0.0
    %4300 = vmatpush2.msra.mxu0 0.0
    %4301 = vmatprep.subr.mxu0 0.0
    %4302 = vmatpush2.msra.mxu0 0.0
    %4303 = vmatprep.subr.mxu0 0.0
    %4304 = vmatpush2.msra.mxu0 0.0
    %4305 = vmatprep.subr.mxu0 0.0
    %4306 = vmatpush2.msra.mxu0 0.0
    %4307 = vmatprep.subr.mxu0 0.0
    %4308 = vmatpush2.msra.mxu0 0.0
    %4309 = vmatprep.subr.mxu0 0.0
    %4310 = vmatpush2.msra.mxu0 0.0
    %4311 = vmatprep.subr.mxu0 0.0
    %4312 = vmatpush2.msra.mxu0 0.0
    %4313 = vmatprep.subr.mxu0 0.0
    %4314 = vmatpush2.msra.mxu0 0.0
    %4315 = vmatprep.subr.mxu0 0.0
    %4316 = vmatpush2.msra.mxu0 0.0
    %4317 = vmatprep.subr.mxu0 0.0
    %4318 = vmatpush2.msra.mxu0 0.0
    %4319 = vmatprep.subr.mxu0 0.0
    %4320 = vmatpush2.msra.mxu0 0.0
    %4321 = vmatprep.subr.mxu0 0.0
    %4322 = vmatpush2.msra.mxu0 0.0
    %4323 = vmatprep.subr.mxu0 0.0
    %4324 = vmatpush2.msra.mxu0 0.0
    %4325 = vmatprep.subr.mxu0 0.0
    %4326 = vmatpush2.msra.mxu0 0.0
    %4327 = vmatprep.subr.mxu0 0.0
    %4328 = vmatpush2.msra.mxu0 0.0
    %4329 = vmatprep.mubr.f32.mxu0 0.0
    %4330 = vmatmul.mubr.f32.gmra.mxu0 %v4263
    %v4331 = vpop.f32.mrf.mxu0
    %v4332 = vadd.f32 0.0, %v4331
    %v4333 = vpop.f32.mrf.mxu0
    %4334 = vdwg.mxu0
    %v4336 = vsel %vm762, %v4261, 0
    %4338 = vmatprep.subr.mxu0 0.0
    %4339 = vmatpush1.msra.mxu0 0.0
    %4340 = vmatprep.subr.mxu0 0.0
    %4341 = vmatpush1.msra.mxu0 0.0
    %4342 = vmatprep.subr.mxu0 0.0
    %4343 = vmatpush1.msra.mxu0 0.0
    %4344 = vmatprep.subr.mxu0 0.0
    %4345 = vmatpush1.msra.mxu0 0.0
    %4346 = vmatprep.subr.mxu0 0.0
    %4347 = vmatpush1.msra.mxu0 0.0
    %4348 = vmatprep.subr.mxu0 0.0
    %4349 = vmatpush1.msra.mxu0 0.0
    %4350 = vmatprep.subr.mxu0 0.0
    %4351 = vmatpush1.msra.mxu0 0.0
    %4352 = vmatprep.subr.mxu0 0.0
    %4353 = vmatpush1.msra.mxu0 0.0
    %4354 = vmatprep.subr.mxu0 0.0
    %4355 = vmatpush1.msra.mxu0 0.0
    %4356 = vmatprep.subr.mxu0 0.0
    %4357 = vmatpush1.msra.mxu0 0.0
    %4358 = vmatprep.subr.mxu0 0.0
    %4359 = vmatpush1.msra.mxu0 0.0
    %4360 = vmatprep.subr.mxu0 0.0
    %4361 = vmatpush1.msra.mxu0 0.0
    %4362 = vmatprep.subr.mxu0 0.0
    %4363 = vmatpush1.msra.mxu0 0.0
    %4364 = vmatprep.subr.mxu0 0.0
    %4365 = vmatpush1.msra.mxu0 0.0
    %4366 = vmatprep.subr.mxu0 0.0
    %4367 = vmatpush1.msra.mxu0 0.0
    %4368 = vmatprep.subr.mxu0 0.0
    %4369 = vmatpush1.msra.mxu0 %v3010
    %4370 = vmatprep.subr.mxu0 0.0
    %4371 = vmatpush2.msra.mxu0 0.0
    %4372 = vmatprep.subr.mxu0 0.0
    %4373 = vmatpush2.msra.mxu0 0.0
    %4374 = vmatprep.subr.mxu0 0.0
    %4375 = vmatpush2.msra.mxu0 0.0
    %4376 = vmatprep.subr.mxu0 0.0
    %4377 = vmatpush2.msra.mxu0 0.0
    %4378 = vmatprep.subr.mxu0 0.0
    %4379 = vmatpush2.msra.mxu0 0.0
    %4380 = vmatprep.subr.mxu0 0.0
    %4381 = vmatpush2.msra.mxu0 0.0
    %4382 = vmatprep.subr.mxu0 0.0
    %4383 = vmatpush2.msra.mxu0 0.0
    %4384 = vmatprep.subr.mxu0 0.0
    %4385 = vmatpush2.msra.mxu0 0.0
    %4386 = vmatprep.subr.mxu0 0.0
    %4387 = vmatpush2.msra.mxu0 0.0
    %4388 = vmatprep.subr.mxu0 0.0
    %4389 = vmatpush2.msra.mxu0 0.0
    %4390 = vmatprep.subr.mxu0 0.0
    %4391 = vmatpush2.msra.mxu0 0.0
    %4392 = vmatprep.subr.mxu0 0.0
    %4393 = vmatpush2.msra.mxu0 0.0
    %4394 = vmatprep.subr.mxu0 0.0
    %4395 = vmatpush2.msra.mxu0 0.0
    %4396 = vmatprep.subr.mxu0 0.0
    %4397 = vmatpush2.msra.mxu0 0.0
    %4398 = vmatprep.subr.mxu0 0.0
    %4399 = vmatpush2.msra.mxu0 0.0
    %4400 = vmatprep.subr.mxu0 0.0
    %4401 = vmatpush2.msra.mxu0 0.0
    %4402 = vmatprep.mubr.f32.mxu0 0.0
    %4403 = vmatmul.mubr.f32.gmra.mxu0 %v4336
    %v4404 = vpop.f32.mrf.mxu0
    %v4405 = vadd.f32 0.0, %v4404
    %v4406 = vpop.f32.mrf.mxu0
    %4407 = vdwg.mxu0
    %v4410 = vrot.slane %v4405, 7
    %v4411 = vsel %vm3423, %v4410, %v4332
    %v4412 = vsel %vm261, %v4411, 0
    %4414 = vmatprep.subr.mxu0 0.0
    %4415 = vmatpush1.msra.mxu0 0.0
    %4416 = vmatprep.subr.mxu0 0.0
    %4417 = vmatpush1.msra.mxu0 0.0
    %4418 = vmatprep.subr.mxu0 0.0
    %4419 = vmatpush1.msra.mxu0 0.0
    %4420 = vmatprep.subr.mxu0 0.0
    %4421 = vmatpush1.msra.mxu0 0.0
    %4422 = vmatprep.subr.mxu0 0.0
    %4423 = vmatpush1.msra.mxu0 0.0
    %4424 = vmatprep.subr.mxu0 0.0
    %4425 = vmatpush1.msra.mxu0 0.0
    %4426 = vmatprep.subr.mxu0 0.0
    %4427 = vmatpush1.msra.mxu0 0.0
    %4428 = vmatprep.subr.mxu0 0.0
    %4429 = vmatpush1.msra.mxu0 0.0
    %4430 = vmatprep.subr.mxu0 0.0
    %4431 = vmatpush1.msra.mxu0 0.0
    %4432 = vmatprep.subr.mxu0 0.0
    %4433 = vmatpush1.msra.mxu0 0.0
    %4434 = vmatprep.subr.mxu0 0.0
    %4435 = vmatpush1.msra.mxu0 0.0
    %4436 = vmatprep.subr.mxu0 0.0
    %4437 = vmatpush1.msra.mxu0 0.0
    %4438 = vmatprep.subr.mxu0 0.0
    %4439 = vmatpush1.msra.mxu0 %v3237
    %4440 = vmatprep.subr.mxu0 0.0
    %4441 = vmatpush1.msra.mxu0 %v3236
    %4442 = vmatprep.subr.mxu0 0.0
    %4443 = vmatpush1.msra.mxu0 %v3235
    %4444 = vmatprep.subr.mxu0 0.0
    %4445 = vmatpush1.msra.mxu0 %v3234
    %4446 = vmatprep.subr.mxu0 0.0
    %4447 = vmatpush2.msra.mxu0 0.0
    %4448 = vmatprep.subr.mxu0 0.0
    %4449 = vmatpush2.msra.mxu0 0.0
    %4450 = vmatprep.subr.mxu0 0.0
    %4451 = vmatpush2.msra.mxu0 0.0
    %4452 = vmatprep.subr.mxu0 0.0
    %4453 = vmatpush2.msra.mxu0 0.0
    %4454 = vmatprep.subr.mxu0 0.0
    %4455 = vmatpush2.msra.mxu0 0.0
    %4456 = vmatprep.subr.mxu0 0.0
    %4457 = vmatpush2.msra.mxu0 0.0
    %4458 = vmatprep.subr.mxu0 0.0
    %4459 = vmatpush2.msra.mxu0 0.0
    %4460 = vmatprep.subr.mxu0 0.0
    %4461 = vmatpush2.msra.mxu0 0.0
    %4462 = vmatprep.subr.mxu0 0.0
    %4463 = vmatpush2.msra.mxu0 0.0
    %4464 = vmatprep.subr.mxu0 0.0
    %4465 = vmatpush2.msra.mxu0 0.0
    %4466 = vmatprep.subr.mxu0 0.0
    %4467 = vmatpush2.msra.mxu0 0.0
    %4468 = vmatprep.subr.mxu0 0.0
    %4469 = vmatpush2.msra.mxu0 0.0
    %4470 = vmatprep.subr.mxu0 0.0
    %4471 = vmatpush2.msra.mxu0 0.0
    %4472 = vmatprep.subr.mxu0 0.0
    %4473 = vmatpush2.msra.mxu0 0.0
    %4474 = vmatprep.subr.mxu0 0.0
    %4475 = vmatpush2.msra.mxu0 0.0
    %4476 = vmatprep.subr.mxu0 0.0
    %4477 = vmatpush2.msra.mxu0 0.0
    %4478 = vmatprep.mubr.f32.mxu0 0.0
    %4479 = vmatmul.mubr.f32.gmra.mxu0 %v4412
    %v4480 = vpop.f32.mrf.mxu0
    %v4481 = vadd.f32 %v3418, %v4480
    %v4482 = vpop.f32.mrf.mxu0
    %4483 = vdwg.mxu0
    %v4484 = vadd.f32 %v4481, %v3567
    %v4485 = vadd.f32 %v4484, %v3575
    %v4486 = vxor.u32 %v4485, 2147483648
    %v4487 = vmul.f32 %v4486, 1.442695
    %v4488 = vpow.pop %v4487
    %v4489 = vadd.f32 %v4488, 1.0
    %v4490 = vrcp.pop %v4489
    %v4491 = vmul.f32 1.0, %v4490
    %v4492 = vtanh.pop %v4485
    %v4493 = vmul.f32 %v4491, 0.0
    %4495 = vrot.lane.b32.xlu0 %v4492, 64
    %v4496 = vpop.permute.xlu0 %4495
    %v4498 = vmul.f32 %v4491, %v4496
    %4500 = vrot.lane.b32.xlu0 %v4498, 32
    %v4501 = vpop.permute.xlu0 %4500
    %v4503 = vadd.f32 %v4493, %v4501
    %v4504 = vtanh.pop %v4503
    %4506 = vrot.lane.b32.xlu0 %v4504, 64
    %v4507 = vpop.permute.xlu0 %4506
    %v4509 = vmul.f32 %v4491, %v4507
    %v4510 = vrot.slane %v4332, 1
    %v4511 = vsel %vm3423, %v4405, %v4510
    %v4512 = vsel %vm261, %v4511, 0
    %4514 = vmatprep.subr.mxu0 0.0
    %4515 = vmatpush1.msra.mxu0 0.0
    %4516 = vmatprep.subr.mxu0 0.0
    %4517 = vmatpush1.msra.mxu0 0.0
    %4518 = vmatprep.subr.mxu0 0.0
    %4519 = vmatpush1.msra.mxu0 0.0
    %4520 = vmatprep.subr.mxu0 0.0
    %4521 = vmatpush1.msra.mxu0 0.0
    %4522 = vmatprep.subr.mxu0 0.0
    %4523 = vmatpush1.msra.mxu0 0.0
    %4524 = vmatprep.subr.mxu0 0.0
    %4525 = vmatpush1.msra.mxu0 0.0
    %4526 = vmatprep.subr.mxu0 0.0
    %4527 = vmatpush1.msra.mxu0 0.0
    %4528 = vmatprep.subr.mxu0 0.0
    %4529 = vmatpush1.msra.mxu0 0.0
    %4530 = vmatprep.subr.mxu0 0.0
    %4531 = vmatpush1.msra.mxu0 0.0
    %4532 = vmatprep.subr.mxu0 0.0
    %4533 = vmatpush1.msra.mxu0 0.0
    %4534 = vmatprep.subr.mxu0 0.0
    %4535 = vmatpush1.msra.mxu0 0.0
    %4536 = vmatprep.subr.mxu0 0.0
    %4537 = vmatpush1.msra.mxu0 0.0
    %4538 = vmatprep.subr.mxu0 0.0
    %4539 = vmatpush1.msra.mxu0 %v3237
    %4540 = vmatprep.subr.mxu0 0.0
    %4541 = vmatpush1.msra.mxu0 %v3236
    %4542 = vmatprep.subr.mxu0 0.0
    %4543 = vmatpush1.msra.mxu0 %v3235
    %4544 = vmatprep.subr.mxu0 0.0
    %4545 = vmatpush1.msra.mxu0 %v3234
    %4546 = vmatprep.subr.mxu0 0.0
    %4547 = vmatpush2.msra.mxu0 0.0
    %4548 = vmatprep.subr.mxu0 0.0
    %4549 = vmatpush2.msra.mxu0 0.0
    %4550 = vmatprep.subr.mxu0 0.0
    %4551 = vmatpush2.msra.mxu0 0.0
    %4552 = vmatprep.subr.mxu0 0.0
    %4553 = vmatpush2.msra.mxu0 0.0
    %4554 = vmatprep.subr.mxu0 0.0
    %4555 = vmatpush2.msra.mxu0 0.0
    %4556 = vmatprep.subr.mxu0 0.0
    %4557 = vmatpush2.msra.mxu0 0.0
    %4558 = vmatprep.subr.mxu0 0.0
    %4559 = vmatpush2.msra.mxu0 0.0
    %4560 = vmatprep.subr.mxu0 0.0
    %4561 = vmatpush2.msra.mxu0 0.0
    %4562 = vmatprep.subr.mxu0 0.0
    %4563 = vmatpush2.msra.mxu0 0.0
    %4564 = vmatprep.subr.mxu0 0.0
    %4565 = vmatpush2.msra.mxu0 0.0
    %4566 = vmatprep.subr.mxu0 0.0
    %4567 = vmatpush2.msra.mxu0 0.0
    %4568 = vmatprep.subr.mxu0 0.0
    %4569 = vmatpush2.msra.mxu0 0.0
    %4570 = vmatprep.subr.mxu0 0.0
    %4571 = vmatpush2.msra.mxu0 0.0
    %4572 = vmatprep.subr.mxu0 0.0
    %4573 = vmatpush2.msra.mxu0 0.0
    %4574 = vmatprep.subr.mxu0 0.0
    %4575 = vmatpush2.msra.mxu0 0.0
    %4576 = vmatprep.subr.mxu0 0.0
    %4577 = vmatpush2.msra.mxu0 0.0
    %4578 = vmatprep.mubr.f32.mxu0 0.0
    %4579 = vmatmul.mubr.f32.gmra.mxu0 %v4512
    %v4580 = vpop.f32.mrf.mxu0
    %v4581 = vadd.f32 %v3418, %v4580
    %v4582 = vpop.f32.mrf.mxu0
    %4583 = vdwg.mxu0
    %4585 = vrot.lane.b32.xlu0 %v4509, 32
    %v4586 = vpop.permute.xlu0 %4585
    %v4587 = vsel %vm261, %v4586, 0
    %4589 = vmatprep.subr.mxu0 0.0
    %4590 = vmatpush1.msra.mxu0 0.0
    %4591 = vmatprep.subr.mxu0 0.0
    %4592 = vmatpush1.msra.mxu0 0.0
    %4593 = vmatprep.subr.mxu0 0.0
    %4594 = vmatpush1.msra.mxu0 0.0
    %4595 = vmatprep.subr.mxu0 0.0
    %4596 = vmatpush1.msra.mxu0 0.0
    %4597 = vmatprep.subr.mxu0 0.0
    %4598 = vmatpush1.msra.mxu0 0.0
    %4599 = vmatprep.subr.mxu0 0.0
    %4600 = vmatpush1.msra.mxu0 0.0
    %4601 = vmatprep.subr.mxu0 0.0
    %4602 = vmatpush1.msra.mxu0 0.0
    %4603 = vmatprep.subr.mxu0 0.0
    %4604 = vmatpush1.msra.mxu0 0.0
    %4605 = vmatprep.subr.mxu0 0.0
    %4606 = vmatpush1.msra.mxu0 0.0
    %4607 = vmatprep.subr.mxu0 0.0
    %4608 = vmatpush1.msra.mxu0 0.0
    %4609 = vmatprep.subr.mxu0 0.0
    %4610 = vmatpush1.msra.mxu0 0.0
    %4611 = vmatprep.subr.mxu0 0.0
    %4612 = vmatpush1.msra.mxu0 0.0
    %4613 = vmatprep.subr.mxu0 0.0
    %4614 = vmatpush1.msra.mxu0 %v3241
    %4615 = vmatprep.subr.mxu0 0.0
    %4616 = vmatpush1.msra.mxu0 %v3240
    %4617 = vmatprep.subr.mxu0 0.0
    %4618 = vmatpush1.msra.mxu0 %v3239
    %4619 = vmatprep.subr.mxu0 0.0
    %4620 = vmatpush1.msra.mxu0 %v3238
    %4621 = vmatprep.subr.mxu0 0.0
    %4622 = vmatpush2.msra.mxu0 0.0
    %4623 = vmatprep.subr.mxu0 0.0
    %4624 = vmatpush2.msra.mxu0 0.0
    %4625 = vmatprep.subr.mxu0 0.0
    %4626 = vmatpush2.msra.mxu0 0.0
    %4627 = vmatprep.subr.mxu0 0.0
    %4628 = vmatpush2.msra.mxu0 0.0
    %4629 = vmatprep.subr.mxu0 0.0
    %4630 = vmatpush2.msra.mxu0 0.0
    %4631 = vmatprep.subr.mxu0 0.0
    %4632 = vmatpush2.msra.mxu0 0.0
    %4633 = vmatprep.subr.mxu0 0.0
    %4634 = vmatpush2.msra.mxu0 0.0
    %4635 = vmatprep.subr.mxu0 0.0
    %4636 = vmatpush2.msra.mxu0 0.0
    %4637 = vmatprep.subr.mxu0 0.0
    %4638 = vmatpush2.msra.mxu0 0.0
    %4639 = vmatprep.subr.mxu0 0.0
    %4640 = vmatpush2.msra.mxu0 0.0
    %4641 = vmatprep.subr.mxu0 0.0
    %4642 = vmatpush2.msra.mxu0 0.0
    %4643 = vmatprep.subr.mxu0 0.0
    %4644 = vmatpush2.msra.mxu0 0.0
    %4645 = vmatprep.subr.mxu0 0.0
    %4646 = vmatpush2.msra.mxu0 0.0
    %4647 = vmatprep.subr.mxu0 0.0
    %4648 = vmatpush2.msra.mxu0 0.0
    %4649 = vmatprep.subr.mxu0 0.0
    %4650 = vmatpush2.msra.mxu0 0.0
    %4651 = vmatprep.subr.mxu0 0.0
    %4652 = vmatpush2.msra.mxu0 0.0
    %4653 = vmatprep.mubr.f32.mxu0 0.0
    %4654 = vmatmul.mubr.f32.gmra.mxu0 %v4587
    %v4655 = vpop.f32.mrf.mxu0
    %v4656 = vadd.f32 0.0, %v4655
    %v4657 = vpop.f32.mrf.mxu0
    %4658 = vdwg.mxu0
    %v4659 = vadd.f32 %v4581, %v4656
    %v4660 = vadd.f32 %v4659, %v3575
    %v4661 = vxor.u32 %v4660, 2147483648
    %v4662 = vmul.f32 %v4661, 1.442695
    %v4663 = vpow.pop %v4662
    %v4664 = vadd.f32 %v4663, 1.0
    %v4665 = vrcp.pop %v4664
    %v4666 = vmul.f32 1.0, %v4665
    %v4667 = vtanh.pop %v4660
    %v4668 = vmul.f32 %v4666, %v4503
    %4670 = vrot.lane.b32.xlu0 %v4667, 64
    %v4671 = vpop.permute.xlu0 %4670
    %v4673 = vmul.f32 %v4666, %v4671
    %4675 = vrot.lane.b32.xlu0 %v4673, 32
    %v4676 = vpop.permute.xlu0 %4675
    %v4678 = vadd.f32 %v4668, %v4676
    %v4679 = vtanh.pop %v4678
    %4681 = vrot.lane.b32.xlu0 %v4679, 64
    %v4682 = vpop.permute.xlu0 %4681
    %v4684 = vmul.f32 %v4666, %v4682
    %v4685 = vrot.slane %v4332, 2
    %v4686 = vrot.slane %v4405, 1
    %v4687 = vsel %vm3423, %v4686, %v4685
    %v4688 = vsel %vm261, %v4687, 0
    %4690 = vmatprep.subr.mxu0 0.0
    %4691 = vmatpush1.msra.mxu0 0.0
    %4692 = vmatprep.subr.mxu0 0.0
    %4693 = vmatpush1.msra.mxu0 0.0
    %4694 = vmatprep.subr.mxu0 0.0
    %4695 = vmatpush1.msra.mxu0 0.0
    %4696 = vmatprep.subr.mxu0 0.0
    %4697 = vmatpush1.msra.mxu0 0.0
    %4698 = vmatprep.subr.mxu0 0.0
    %4699 = vmatpush1.msra.mxu0 0.0
    %4700 = vmatprep.subr.mxu0 0.0
    %4701 = vmatpush1.msra.mxu0 0.0
    %4702 = vmatprep.subr.mxu0 0.0
    %4703 = vmatpush1.msra.mxu0 0.0
    %4704 = vmatprep.subr.mxu0 0.0
    %4705 = vmatpush1.msra.mxu0 0.0
    %4706 = vmatprep.subr.mxu0 0.0
    %4707 = vmatpush1.msra.mxu0 0.0
    %4708 = vmatprep.subr.mxu0 0.0
    %4709 = vmatpush1.msra.mxu0 0.0
    %4710 = vmatprep.subr.mxu0 0.0
    %4711 = vmatpush1.msra.mxu0 0.0
    %4712 = vmatprep.subr.mxu0 0.0
    %4713 = vmatpush1.msra.mxu0 0.0
    %4714 = vmatprep.subr.mxu0 0.0
    %4715 = vmatpush1.msra.mxu0 %v3237
    %4716 = vmatprep.subr.mxu0 0.0
    %4717 = vmatpush1.msra.mxu0 %v3236
    %4718 = vmatprep.subr.mxu0 0.0
    %4719 = vmatpush1.msra.mxu0 %v3235
    %4720 = vmatprep.subr.mxu0 0.0
    %4721 = vmatpush1.msra.mxu0 %v3234
    %4722 = vmatprep.subr.mxu0 0.0
    %4723 = vmatpush2.msra.mxu0 0.0
    %4724 = vmatprep.subr.mxu0 0.0
    %4725 = vmatpush2.msra.mxu0 0.0
    %4726 = vmatprep.subr.mxu0 0.0
    %4727 = vmatpush2.msra.mxu0 0.0
    %4728 = vmatprep.subr.mxu0 0.0
    %4729 = vmatpush2.msra.mxu0 0.0
    %4730 = vmatprep.subr.mxu0 0.0
    %4731 = vmatpush2.msra.mxu0 0.0
    %4732 = vmatprep.subr.mxu0 0.0
    %4733 = vmatpush2.msra.mxu0 0.0
    %4734 = vmatprep.subr.mxu0 0.0
    %4735 = vmatpush2.msra.mxu0 0.0
    %4736 = vmatprep.subr.mxu0 0.0
    %4737 = vmatpush2.msra.mxu0 0.0
    %4738 = vmatprep.subr.mxu0 0.0
    %4739 = vmatpush2.msra.mxu0 0.0
    %4740 = vmatprep.subr.mxu0 0.0
    %4741 = vmatpush2.msra.mxu0 0.0
    %4742 = vmatprep.subr.mxu0 0.0
    %4743 = vmatpush2.msra.mxu0 0.0
    %4744 = vmatprep.subr.mxu0 0.0
    %4745 = vmatpush2.msra.mxu0 0.0
    %4746 = vmatprep.subr.mxu0 0.0
    %4747 = vmatpush2.msra.mxu0 0.0
    %4748 = vmatprep.subr.mxu0 0.0
    %4749 = vmatpush2.msra.mxu0 0.0
    %4750 = vmatprep.subr.mxu0 0.0
    %4751 = vmatpush2.msra.mxu0 0.0
    %4752 = vmatprep.subr.mxu0 0.0
    %4753 = vmatpush2.msra.mxu0 0.0
    %4754 = vmatprep.mubr.f32.mxu0 0.0
    %4755 = vmatmul.mubr.f32.gmra.mxu0 %v4688
    %v4756 = vpop.f32.mrf.mxu0
    %v4757 = vadd.f32 %v3418, %v4756
    %v4758 = vpop.f32.mrf.mxu0
    %4759 = vdwg.mxu0
    %4761 = vrot.lane.b32.xlu0 %v4684, 32
    %v4762 = vpop.permute.xlu0 %4761
    %v4763 = vsel %vm261, %v4762, 0
    %4765 = vmatprep.subr.mxu0 0.0
    %4766 = vmatpush1.msra.mxu0 0.0
    %4767 = vmatprep.subr.mxu0 0.0
    %4768 = vmatpush1.msra.mxu0 0.0
    %4769 = vmatprep.subr.mxu0 0.0
    %4770 = vmatpush1.msra.mxu0 0.0
    %4771 = vmatprep.subr.mxu0 0.0
    %4772 = vmatpush1.msra.mxu0 0.0
    %4773 = vmatprep.subr.mxu0 0.0
    %4774 = vmatpush1.msra.mxu0 0.0
    %4775 = vmatprep.subr.mxu0 0.0
    %4776 = vmatpush1.msra.mxu0 0.0
    %4777 = vmatprep.subr.mxu0 0.0
    %4778 = vmatpush1.msra.mxu0 0.0
    %4779 = vmatprep.subr.mxu0 0.0
    %4780 = vmatpush1.msra.mxu0 0.0
    %4781 = vmatprep.subr.mxu0 0.0
    %4782 = vmatpush1.msra.mxu0 0.0
    %4783 = vmatprep.subr.mxu0 0.0
    %4784 = vmatpush1.msra.mxu0 0.0
    %4785 = vmatprep.subr.mxu0 0.0
    %4786 = vmatpush1.msra.mxu0 0.0
    %4787 = vmatprep.subr.mxu0 0.0
    %4788 = vmatpush1.msra.mxu0 0.0
    %4789 = vmatprep.subr.mxu0 0.0
    %4790 = vmatpush1.msra.mxu0 %v3241
    %4791 = vmatprep.subr.mxu0 0.0
    %4792 = vmatpush1.msra.mxu0 %v3240
    %4793 = vmatprep.subr.mxu0 0.0
    %4794 = vmatpush1.msra.mxu0 %v3239
    %4795 = vmatprep.subr.mxu0 0.0
    %4796 = vmatpush1.msra.mxu0 %v3238
    %4797 = vmatprep.subr.mxu0 0.0
    %4798 = vmatpush2.msra.mxu0 0.0
    %4799 = vmatprep.subr.mxu0 0.0
    %4800 = vmatpush2.msra.mxu0 0.0
    %4801 = vmatprep.subr.mxu0 0.0
    %4802 = vmatpush2.msra.mxu0 0.0
    %4803 = vmatprep.subr.mxu0 0.0
    %4804 = vmatpush2.msra.mxu0 0.0
    %4805 = vmatprep.subr.mxu0 0.0
    %4806 = vmatpush2.msra.mxu0 0.0
    %4807 = vmatprep.subr.mxu0 0.0
    %4808 = vmatpush2.msra.mxu0 0.0
    %4809 = vmatprep.subr.mxu0 0.0
    %4810 = vmatpush2.msra.mxu0 0.0
    %4811 = vmatprep.subr.mxu0 0.0
    %4812 = vmatpush2.msra.mxu0 0.0
    %4813 = vmatprep.subr.mxu0 0.0
    %4814 = vmatpush2.msra.mxu0 0.0
    %4815 = vmatprep.subr.mxu0 0.0
    %4816 = vmatpush2.msra.mxu0 0.0
    %4817 = vmatprep.subr.mxu0 0.0
    %4818 = vmatpush2.msra.mxu0 0.0
    %4819 = vmatprep.subr.mxu0 0.0
    %4820 = vmatpush2.msra.mxu0 0.0
    %4821 = vmatprep.subr.mxu0 0.0
    %4822 = vmatpush2.msra.mxu0 0.0
    %4823 = vmatprep.subr.mxu0 0.0
    %4824 = vmatpush2.msra.mxu0 0.0
    %4825 = vmatprep.subr.mxu0 0.0
    %4826 = vmatpush2.msra.mxu0 0.0
    %4827 = vmatprep.subr.mxu0 0.0
    %4828 = vmatpush2.msra.mxu0 0.0
    %4829 = vmatprep.mubr.f32.mxu0 0.0
    %4830 = vmatmul.mubr.f32.gmra.mxu0 %v4763
    %v4831 = vpop.f32.mrf.mxu0
    %v4832 = vadd.f32 0.0, %v4831
    %v4833 = vpop.f32.mrf.mxu0
    %4834 = vdwg.mxu0
    %v4835 = vadd.f32 %v4757, %v4832
    %v4836 = vadd.f32 %v4835, %v3575
    %v4837 = vxor.u32 %v4836, 2147483648
    %v4838 = vmul.f32 %v4837, 1.442695
    %v4839 = vpow.pop %v4838
    %v4840 = vadd.f32 %v4839, 1.0
    %v4841 = vrcp.pop %v4840
    %v4842 = vmul.f32 1.0, %v4841
    %v4843 = vtanh.pop %v4836
    %v4844 = vmul.f32 %v4842, %v4678
    %4846 = vrot.lane.b32.xlu0 %v4843, 64
    %v4847 = vpop.permute.xlu0 %4846
    %v4849 = vmul.f32 %v4842, %v4847
    %4851 = vrot.lane.b32.xlu0 %v4849, 32
    %v4852 = vpop.permute.xlu0 %4851
    %v4854 = vadd.f32 %v4844, %v4852
    %v4855 = vtanh.pop %v4854
    %4857 = vrot.lane.b32.xlu0 %v4855, 64
    %v4858 = vpop.permute.xlu0 %4857
    %v4860 = vmul.f32 %v4842, %v4858
    %v4861 = vrot.slane %v4332, 3
    %v4862 = vrot.slane %v4405, 2
    %v4863 = vsel %vm3423, %v4862, %v4861
    %v4864 = vsel %vm261, %v4863, 0
    %4866 = vmatprep.subr.mxu0 0.0
    %4867 = vmatpush1.msra.mxu0 0.0
    %4868 = vmatprep.subr.mxu0 0.0
    %4869 = vmatpush1.msra.mxu0 0.0
    %4870 = vmatprep.subr.mxu0 0.0
    %4871 = vmatpush1.msra.mxu0 0.0
    %4872 = vmatprep.subr.mxu0 0.0
    %4873 = vmatpush1.msra.mxu0 0.0
    %4874 = vmatprep.subr.mxu0 0.0
    %4875 = vmatpush1.msra.mxu0 0.0
    %4876 = vmatprep.subr.mxu0 0.0
    %4877 = vmatpush1.msra.mxu0 0.0
    %4878 = vmatprep.subr.mxu0 0.0
    %4879 = vmatpush1.msra.mxu0 0.0
    %4880 = vmatprep.subr.mxu0 0.0
    %4881 = vmatpush1.msra.mxu0 0.0
    %4882 = vmatprep.subr.mxu0 0.0
    %4883 = vmatpush1.msra.mxu0 0.0
    %4884 = vmatprep.subr.mxu0 0.0
    %4885 = vmatpush1.msra.mxu0 0.0
    %4886 = vmatprep.subr.mxu0 0.0
    %4887 = vmatpush1.msra.mxu0 0.0
    %4888 = vmatprep.subr.mxu0 0.0
    %4889 = vmatpush1.msra.mxu0 0.0
    %4890 = vmatprep.subr.mxu0 0.0
    %4891 = vmatpush1.msra.mxu0 %v3237
    %4892 = vmatprep.subr.mxu0 0.0
    %4893 = vmatpush1.msra.mxu0 %v3236
    %4894 = vmatprep.subr.mxu0 0.0
    %4895 = vmatpush1.msra.mxu0 %v3235
    %4896 = vmatprep.subr.mxu0 0.0
    %4897 = vmatpush1.msra.mxu0 %v3234
    %4898 = vmatprep.subr.mxu0 0.0
    %4899 = vmatpush2.msra.mxu0 0.0
    %4900 = vmatprep.subr.mxu0 0.0
    %4901 = vmatpush2.msra.mxu0 0.0
    %4902 = vmatprep.subr.mxu0 0.0
    %4903 = vmatpush2.msra.mxu0 0.0
    %4904 = vmatprep.subr.mxu0 0.0
    %4905 = vmatpush2.msra.mxu0 0.0
    %4906 = vmatprep.subr.mxu0 0.0
    %4907 = vmatpush2.msra.mxu0 0.0
    %4908 = vmatprep.subr.mxu0 0.0
    %4909 = vmatpush2.msra.mxu0 0.0
    %4910 = vmatprep.subr.mxu0 0.0
    %4911 = vmatpush2.msra.mxu0 0.0
    %4912 = vmatprep.subr.mxu0 0.0
    %4913 = vmatpush2.msra.mxu0 0.0
    %4914 = vmatprep.subr.mxu0 0.0
    %4915 = vmatpush2.msra.mxu0 0.0
    %4916 = vmatprep.subr.mxu0 0.0
    %4917 = vmatpush2.msra.mxu0 0.0
    %4918 = vmatprep.subr.mxu0 0.0
    %4919 = vmatpush2.msra.mxu0 0.0
    %4920 = vmatprep.subr.mxu0 0.0
    %4921 = vmatpush2.msra.mxu0 0.0
    %4922 = vmatprep.subr.mxu0 0.0
    %4923 = vmatpush2.msra.mxu0 0.0
    %4924 = vmatprep.subr.mxu0 0.0
    %4925 = vmatpush2.msra.mxu0 0.0
    %4926 = vmatprep.subr.mxu0 0.0
    %4927 = vmatpush2.msra.mxu0 0.0
    %4928 = vmatprep.subr.mxu0 0.0
    %4929 = vmatpush2.msra.mxu0 0.0
    %4930 = vmatprep.mubr.f32.mxu0 0.0
    %4931 = vmatmul.mubr.f32.gmra.mxu0 %v4864
    %v4932 = vpop.f32.mrf.mxu0
    %v4933 = vadd.f32 %v3418, %v4932
    %v4934 = vpop.f32.mrf.mxu0
    %4935 = vdwg.mxu0
    %4937 = vrot.lane.b32.xlu0 %v4860, 32
    %v4938 = vpop.permute.xlu0 %4937
    %v4939 = vsel %vm261, %v4938, 0
    %4941 = vmatprep.subr.mxu0 0.0
    %4942 = vmatpush1.msra.mxu0 0.0
    %4943 = vmatprep.subr.mxu0 0.0
    %4944 = vmatpush1.msra.mxu0 0.0
    %4945 = vmatprep.subr.mxu0 0.0
    %4946 = vmatpush1.msra.mxu0 0.0
    %4947 = vmatprep.subr.mxu0 0.0
    %4948 = vmatpush1.msra.mxu0 0.0
    %4949 = vmatprep.subr.mxu0 0.0
    %4950 = vmatpush1.msra.mxu0 0.0
    %4951 = vmatprep.subr.mxu0 0.0
    %4952 = vmatpush1.msra.mxu0 0.0
    %4953 = vmatprep.subr.mxu0 0.0
    %4954 = vmatpush1.msra.mxu0 0.0
    %4955 = vmatprep.subr.mxu0 0.0
    %4956 = vmatpush1.msra.mxu0 0.0
    %4957 = vmatprep.subr.mxu0 0.0
    %4958 = vmatpush1.msra.mxu0 0.0
    %4959 = vmatprep.subr.mxu0 0.0
    %4960 = vmatpush1.msra.mxu0 0.0
    %4961 = vmatprep.subr.mxu0 0.0
    %4962 = vmatpush1.msra.mxu0 0.0
    %4963 = vmatprep.subr.mxu0 0.0
    %4964 = vmatpush1.msra.mxu0 0.0
    %4965 = vmatprep.subr.mxu0 0.0
    %4966 = vmatpush1.msra.mxu0 %v3241
    %4967 = vmatprep.subr.mxu0 0.0
    %4968 = vmatpush1.msra.mxu0 %v3240
    %4969 = vmatprep.subr.mxu0 0.0
    %4970 = vmatpush1.msra.mxu0 %v3239
    %4971 = vmatprep.subr.mxu0 0.0
    %4972 = vmatpush1.msra.mxu0 %v3238
    %4973 = vmatprep.subr.mxu0 0.0
    %4974 = vmatpush2.msra.mxu0 0.0
    %4975 = vmatprep.subr.mxu0 0.0
    %4976 = vmatpush2.msra.mxu0 0.0
    %4977 = vmatprep.subr.mxu0 0.0
    %4978 = vmatpush2.msra.mxu0 0.0
    %4979 = vmatprep.subr.mxu0 0.0
    %4980 = vmatpush2.msra.mxu0 0.0
    %4981 = vmatprep.subr.mxu0 0.0
    %4982 = vmatpush2.msra.mxu0 0.0
    %4983 = vmatprep.subr.mxu0 0.0
    %4984 = vmatpush2.msra.mxu0 0.0
    %4985 = vmatprep.subr.mxu0 0.0
    %4986 = vmatpush2.msra.mxu0 0.0
    %4987 = vmatprep.subr.mxu0 0.0
    %4988 = vmatpush2.msra.mxu0 0.0
    %4989 = vmatprep.subr.mxu0 0.0
    %4990 = vmatpush2.msra.mxu0 0.0
    %4991 = vmatprep.subr.mxu0 0.0
    %4992 = vmatpush2.msra.mxu0 0.0
    %4993 = vmatprep.subr.mxu0 0.0
    %4994 = vmatpush2.msra.mxu0 0.0
    %4995 = vmatprep.subr.mxu0 0.0
    %4996 = vmatpush2.msra.mxu0 0.0
    %4997 = vmatprep.subr.mxu0 0.0
    %4998 = vmatpush2.msra.mxu0 0.0
    %4999 = vmatprep.subr.mxu0 0.0
    %5000 = vmatpush2.msra.mxu0 0.0
    %5001 = vmatprep.subr.mxu0 0.0
    %5002 = vmatpush2.msra.mxu0 0.0
    %5003 = vmatprep.subr.mxu0 0.0
    %5004 = vmatpush2.msra.mxu0 0.0
    %5005 = vmatprep.mubr.f32.mxu0 0.0
    %5006 = vmatmul.mubr.f32.gmra.mxu0 %v4939
    %v5007 = vpop.f32.mrf.mxu0
    %v5008 = vadd.f32 0.0, %v5007
    %v5009 = vpop.f32.mrf.mxu0
    %5010 = vdwg.mxu0
    %v5011 = vadd.f32 %v4933, %v5008
    %v5012 = vadd.f32 %v5011, %v3575
    %v5013 = vxor.u32 %v5012, 2147483648
    %v5014 = vmul.f32 %v5013, 1.442695
    %v5015 = vpow.pop %v5014
    %v5016 = vadd.f32 %v5015, 1.0
    %v5017 = vrcp.pop %v5016
    %v5018 = vmul.f32 1.0, %v5017
    %v5019 = vtanh.pop %v5012
    %v5020 = vmul.f32 %v5018, %v4854
    %5022 = vrot.lane.b32.xlu0 %v5019, 64
    %v5023 = vpop.permute.xlu0 %5022
    %v5025 = vmul.f32 %v5018, %v5023
    %5027 = vrot.lane.b32.xlu0 %v5025, 32
    %v5028 = vpop.permute.xlu0 %5027
    %v5030 = vadd.f32 %v5020, %v5028
    %v5031 = vtanh.pop %v5030
    %5033 = vrot.lane.b32.xlu0 %v5031, 64
    %v5034 = vpop.permute.xlu0 %5033
    %v5036 = vmul.f32 %v5018, %v5034
    %v5037 = vmul.f32 %v4509, %v4135
    %5039 = vrot.lane.b32.xlu0 %v5037, 32
    %v5040 = vpop.permute.xlu0 %5039
    %v5042 = vsel %vm4142, %v5040, 0.0
    %5043 = vadd.xlane.f32.xlu0 %v5042
    %v5044 = vpop.xlane.xlu0 %5043
    %v5045 = vadd.f32 %v5044, %v4150
    %v5046 = vmul.f32 %v4684, %v4135
    %5048 = vrot.lane.b32.xlu0 %v5046, 32
    %v5049 = vpop.permute.xlu0 %5048
    %v5051 = vsel %vm4142, %v5049, 0.0
    %5052 = vadd.xlane.f32.xlu0 %v5051
    %v5053 = vpop.xlane.xlu0 %5052
    %v5054 = vadd.f32 %v5053, %v4150
    %v5055 = vmul.f32 %v4860, %v4135
    %5057 = vrot.lane.b32.xlu0 %v5055, 32
    %v5058 = vpop.permute.xlu0 %5057
    %v5060 = vsel %vm4142, %v5058, 0.0
    %5061 = vadd.xlane.f32.xlu0 %v5060
    %v5062 = vpop.xlane.xlu0 %5061
    %v5063 = vadd.f32 %v5062, %v4150
    %v5064 = vmul.f32 %v5036, %v4135
    %5066 = vrot.lane.b32.xlu0 %v5064, 32
    %v5067 = vpop.permute.xlu0 %5066
    %v5069 = vsel %vm4142, %v5067, 0.0
    %5070 = vadd.xlane.f32.xlu0 %v5069
    %v5071 = vpop.xlane.xlu0 %5070
    %v5072 = vadd.f32 %v5071, %v4150
    %5074 = vrot.lane.b32.xlu0 %v5054, 1
    %v5075 = vpop.permute.xlu0 %5074
    %5078 = vrot.lane.b32.xlu0 %v5063, 2
    %v5079 = vpop.permute.xlu0 %5078
    %5082 = vrot.lane.b32.xlu0 %v5072, 3
    %v5083 = vpop.permute.xlu0 %5082
    %v5085 = vsel %vm4192, %v5045, %v5075
    %v5086 = vsel %vm4194, %v5085, %v5079
    %v5087 = vsel %vm4196, %v5086, %v5083
    %5088 = vset.pattern.permute.xlu0 0
    %5089 = vperm.xlu0 %5088, %v4241
    %v5090 = vpop.permute.xlu0 %5089
    %vm5091 = vcmp.lt.s32.totalorder %v3012, %v5090
    %v5092 = vsel %vm5091, %v5087, 1e-09
    %v5093 = vsel %vm4203, %v5092, -inf
    %5094 = vmax.xlane.f32.xlu0 %v5093
    %v5095 = vpop.xlane.xlu0 %5094
    %v5096 = vsub.f32 %v5092, %v5095
    %v5097 = vmul.f32 %v5096, 1.442695
    %v5098 = vpow.pop %v5097
    %v5099 = vsel %vm4203, %v5098, 0.0
    %5100 = vadd.xlane.f32.xlu0 %v5099
    %v5101 = vpop.xlane.xlu0 %5100
    %v5102 = vrcp.pop %v5101
    %v5103 = vmul.f32 %v5098, %v5102
    %5105 = vset.pattern.permute.xlu0 0
    %5106 = vperm.xlu0 %5105, %v5103
    %v5107 = vpop.permute.xlu0 %5106
    %v5109 = vmul.f32 %v5107, %v4509
    %v5110 = vadd.f32 %v5109, 0.0
    %5111 = vset.pattern.permute.xlu0 1
    %5112 = vperm.xlu0 %5111, %v5103
    %v5113 = vpop.permute.xlu0 %5112
    %v5115 = vmul.f32 %v5113, %v4684
    %v5116 = vadd.f32 %v5110, %v5115
    %5117 = vset.pattern.permute.xlu0 2
    %5118 = vperm.xlu0 %5117, %v5103
    %v5119 = vpop.permute.xlu0 %5118
    %v5121 = vmul.f32 %v5119, %v4860
    %v5122 = vadd.f32 %v5116, %v5121
    %5123 = vset.pattern.permute.xlu0 3
    %5124 = vperm.xlu0 %5123, %v5103
    %v5125 = vpop.permute.xlu0 %5124
    %v5127 = vmul.f32 %v5125, %v5036
    %v5128 = vadd.f32 %v5122, %v5127
    %v5131 = vrot.slane %v3231, 7
    %v5132 = vsel %vm3423, %v5131, %v3158
    %v5134 = vrot.slane %v3158, 1
    %v5135 = vsel %vm3423, %v3231, %v5134
    %5136 = vrot.lane.b32.xlu0 %v5135, 32
    %v5137 = vpop.permute.xlu0 %5136
    %5140 = vrot.lane.b32.xlu0 %v4239, 96
    %v5141 = vpop.permute.xlu0 %5140
    %v5143 = vsel %vm261, %v5132, %v5137
    %vm5144 = vcmask 523264
    %v5145 = vsel %vm5144, %v5143, %v5141
    %vm5146 = vcmask 785408
    %v5147 = vsel %vm5146, %v5145, %v5128
    %v5148 = vld [vmem:[%s65] sm:$0xff]
    %v5149 = vld [vmem:[%s65 + $0x8] sm:$0xff]
    %v5150 = vld [vmem:[%s65 + $0x10] sm:$0xff]
    %v5151 = vld [vmem:[%s65 + $0x18] sm:$0xff]
    %v5152 = vld [vmem:[%s65 + $0x20] sm:$0xff]
    %v5153 = vld [vmem:[%s65 + $0x28] sm:$0xff]
    %v5154 = vld [vmem:[%s65 + $0x30] sm:$0xff]
    %v5155 = vld [vmem:[%s65 + $0x38] sm:$0xff]
    %v5156 = vld [vmem:[%s65 + $0x40] sm:$0xff]
    %v5157 = vld [vmem:[%s65 + $0x48] sm:$0xff]
    %v5158 = vld [vmem:[%s65 + $0x50] sm:$0xff]
    %v5159 = vld [vmem:[%s65 + $0x58] sm:$0xff]
    %v5160 = vld [vmem:[%s65 + $0x60] sm:$0xff]
    %v5161 = vld [vmem:[%s65 + $0x68] sm:$0xff]
    %v5162 = vld [vmem:[%s65 + $0x70] sm:$0xff]
    %v5163 = vld [vmem:[%s65 + $0x78] sm:$0xff]
    %v5164 = vld [vmem:[%s67] sm:$0x1]
    %v5166 = vlaneseq
    %v5167 = vshrl.u32 %v5166, 7
    %v5168 = vsub.s32 0, %v5167
    %v5169 = vrot.slane %v5164, %v5168
    %5171 = vmatprep.subr.mxu0 0.0
    %5172 = vmatpush1.msra.mxu0 %v5163
    %5173 = vmatprep.subr.mxu0 0.0
    %5174 = vmatpush1.msra.mxu0 %v5162
    %5175 = vmatprep.subr.mxu0 0.0
    %5176 = vmatpush1.msra.mxu0 %v5161
    %5177 = vmatprep.subr.mxu0 0.0
    %5178 = vmatpush1.msra.mxu0 %v5160
    %5179 = vmatprep.subr.mxu0 0.0
    %5180 = vmatpush1.msra.mxu0 %v5159
    %5181 = vmatprep.subr.mxu0 0.0
    %5182 = vmatpush1.msra.mxu0 %v5158
    %5183 = vmatprep.subr.mxu0 0.0
    %5184 = vmatpush1.msra.mxu0 %v5157
    %5185 = vmatprep.subr.mxu0 0.0
    %5186 = vmatpush1.msra.mxu0 %v5156
    %5187 = vmatprep.subr.mxu0 0.0
    %5188 = vmatpush1.msra.mxu0 %v5155
    %5189 = vmatprep.subr.mxu0 0.0
    %5190 = vmatpush1.msra.mxu0 %v5154
    %5191 = vmatprep.subr.mxu0 0.0
    %5192 = vmatpush1.msra.mxu0 %v5153
    %5193 = vmatprep.subr.mxu0 0.0
    %5194 = vmatpush1.msra.mxu0 %v5152
    %5195 = vmatprep.subr.mxu0 0.0
    %5196 = vmatpush1.msra.mxu0 %v5151
    %5197 = vmatprep.subr.mxu0 0.0
    %5198 = vmatpush1.msra.mxu0 %v5150
    %5199 = vmatprep.subr.mxu0 0.0
    %5200 = vmatpush1.msra.mxu0 %v5149
    %5201 = vmatprep.subr.mxu0 0.0
    %5202 = vmatpush1.msra.mxu0 %v5148
    %5203 = vmatprep.subr.mxu0 0.0
    %5204 = vmatpush2.msra.mxu0 0.0
    %5205 = vmatprep.subr.mxu0 0.0
    %5206 = vmatpush2.msra.mxu0 0.0
    %5207 = vmatprep.subr.mxu0 0.0
    %5208 = vmatpush2.msra.mxu0 0.0
    %5209 = vmatprep.subr.mxu0 0.0
    %5210 = vmatpush2.msra.mxu0 0.0
    %5211 = vmatprep.subr.mxu0 0.0
    %5212 = vmatpush2.msra.mxu0 0.0
    %5213 = vmatprep.subr.mxu0 0.0
    %5214 = vmatpush2.msra.mxu0 0.0
    %5215 = vmatprep.subr.mxu0 0.0
    %5216 = vmatpush2.msra.mxu0 0.0
    %5217 = vmatprep.subr.mxu0 0.0
    %5218 = vmatpush2.msra.mxu0 0.0
    %5219 = vmatprep.subr.mxu0 0.0
    %5220 = vmatpush2.msra.mxu0 0.0
    %5221 = vmatprep.subr.mxu0 0.0
    %5222 = vmatpush2.msra.mxu0 0.0
    %5223 = vmatprep.subr.mxu0 0.0
    %5224 = vmatpush2.msra.mxu0 0.0
    %5225 = vmatprep.subr.mxu0 0.0
    %5226 = vmatpush2.msra.mxu0 0.0
    %5227 = vmatprep.subr.mxu0 0.0
    %5228 = vmatpush2.msra.mxu0 0.0
    %5229 = vmatprep.subr.mxu0 0.0
    %5230 = vmatpush2.msra.mxu0 0.0
    %5231 = vmatprep.subr.mxu0 0.0
    %5232 = vmatpush2.msra.mxu0 0.0
    %5233 = vmatprep.subr.mxu0 0.0
    %5234 = vmatpush2.msra.mxu0 0.0
    %5235 = vmatprep.mubr.f32.mxu0 0.0
    %5236 = vmatmul.mubr.f32.gmra.mxu0 %v5147
    %v5237 = vpop.f32.mrf.mxu0
    %v5238 = vadd.f32 %v5169, %v5237
    %v5239 = vpop.f32.mrf.mxu0
    %5240 = vdwg.mxu0
    %5241 = vst [vmem:[#allocation18] sm:$0x3] %v5238
    // Predicated region
    $region174: #{tpu_custom_call.1} parent=1 // pred_check
      _
    $region175: #{tpu_custom_call.1} parent=1 // pred_check_branch
      %5243 = sbr.rel (0) target = $region177
    $region176: #{tpu_custom_call.1} parent=1 // pred_region
      %s5245 = ssub.s32 32, 32
      %5246 = vsyncadd [#allocation5], %s5245
      %s5248 = sshll.u32 [#allocation18], 4
      %s5249 = int_to_ptr.vmem [resolvable:$true] %s5248
      %5251 = dma.vmem_to_hbm [thread:$0]  %s5249, 32, %s69, [#allocation5]
    $region177: #{tpu_custom_call.1} parent=1 // pred_fallthru
      _
    // Predicated region
    $region178: #{tpu_custom_call.1} parent=1 // pred_check
      _
    $region179: #{tpu_custom_call.1} parent=1 // pred_check_branch
      %5253 = sbr.rel (0) target = $region181
    $region180: #{tpu_custom_call.1} parent=1 // pred_region
      %5254 = dma.done [#allocation5], 32
    $region181: #{tpu_custom_call.1} parent=1 // pred_fallthru
      _
    %5255 = vsyncpa [#allocation4], 1
    %5256 = vsyncpa [#allocation7], 1
    %5257 = vsyncpa [#allocation10], 1
    %5258 = vsyncpa [#allocation13], 1
    %5259 = vsyncpa [#allocation16], 1
    %5260 = vsyncpa [#allocation5], 1

</llo_original>
